<compile_context>
chip_gen: v5e
topology: v5e:2x2
jax: 0.10.0
libtpu: 0.0.40
codegen_flags: <defaults>
</compile_context>

<pallas_src>
import functools
import math

import jax
import jax.numpy as jnp
from jax.experimental import pallas as pl
from jax.experimental.pallas import tpu as pltpu


def _sigmoid(x):
    return 1.0 / (1.0 + jnp.exp(-x))


def _thlstm_kernel(Hp, D, memory_size, t_chunk,
                   # streamed input (one chunk of time steps)
                   xgd_ref,
                   # resident weights (constant index maps)
                   W_h6_ref, W_x6_ref, w_st_ref, b_s_ref,
                   W_s5_ref, b_5_ref,
                   Waq_h_ref, Waq_c_ref, Wah_ref, ba_ref, v_ref,
                   W_h_ref, W_e_ref, W_g_ref, b_h_ref,
                   w_cls_ref, b_cls_ref,
                   # output
                   probs_ref,
                   # scratch (persists across grid steps)
                   h_prev, c_prev, h_hist, p_hist):
    tc = pl.program_id(1)
    mem_slots = h_hist.shape[0]

    @pl.when(tc == 0)
    def _init():
        h_prev[...] = jnp.zeros_like(h_prev)
        c_prev[...] = jnp.zeros_like(c_prev)
        h_hist[...] = jnp.zeros_like(h_hist)
        p_hist[...] = jnp.zeros_like(p_hist)

    hp = h_prev[...]
    cp = c_prev[...]
    neg = jnp.float32(-1e30)
    prob_cols = []

    for i in range(t_chunk):                       # unrolled chunk (static i)
        t = tc * t_chunk + i                       # global time step (traced)
        row = xgd_ref[i]                           # (B, 2D+1) = [x | g | delta]
        x_t = row[:, 0:D]
        g_t = row[:, D:2 * D]
        dlt = row[:, 2 * D:2 * D + 1]

        # ---- THLSTM cell: gate projections, no lane concats ----------------
        pre6 = (jnp.dot(hp, W_h6_ref[...], preferred_element_type=jnp.float32)
                + jnp.dot(x_t, W_x6_ref[...], preferred_element_type=jnp.float32))
        s_t = jnp.tanh(pre6[:, 0:Hp] + dlt * w_st_ref[...] + b_s_ref[...])
        gates = (pre6[:, Hp:6 * Hp]
                 + jnp.dot(s_t, W_s5_ref[...], preferred_element_type=jnp.float32)
                 + b_5_ref[...])                   # (B, 5Hp): [f|i|T|u|o]
        f_t  = _sigmoid(gates[:, 0:Hp])
        i_t  = _sigmoid(gates[:, Hp:2 * Hp])
        T_t  = _sigmoid(gates[:, 2 * Hp:3 * Hp])
        zeta = jnp.tanh(gates[:, 3 * Hp:4 * Hp])
        o_t  = _sigmoid(gates[:, 4 * Hp:5 * Hp])
        c_t = f_t * cp + i_t * zeta + T_t * s_t
        h_tilde = o_t * jnp.tanh(c_t)

        # ---- current-historical attention over the ring buffer -------------
        qproj = (jnp.dot(h_tilde, Waq_h_ref[...], preferred_element_type=jnp.float32)
                 + jnp.dot(c_t, Waq_c_ref[...], preferred_element_type=jnp.float32))
        score_pre = jnp.tanh(qproj[None, :, :] + p_hist[...] + ba_ref[...])   # (mem,B,Hp)
        scores = jnp.sum(score_pre * v_ref[...], axis=-1, keepdims=True)      # (mem,B,1)

        slot_idx = jax.lax.broadcasted_iota(jnp.int32, scores.shape, 0)
        n_valid = jnp.minimum(t, memory_size)
        valid = slot_idx < n_valid
        m = jnp.max(jnp.where(valid, scores, neg), axis=0, keepdims=True)
        e = jnp.exp(jnp.where(valid, scores - m, neg))                         # exact 0 when invalid
        denom = jnp.sum(e, axis=0, keepdims=True)
        alpha = e / jnp.maximum(denom, jnp.float32(1e-30))                     # all-zero at t == 0
        e_t = jnp.sum(alpha * h_hist[...], axis=0)                             # (B, Hp)

        # ---- interaction module --------------------------------------------
        h_t = jnp.tanh(
            jnp.dot(h_tilde, W_h_ref[...], preferred_element_type=jnp.float32)
            + jnp.dot(e_t, W_e_ref[...], preferred_element_type=jnp.float32)
            + jnp.dot(g_t, W_g_ref[...], preferred_element_type=jnp.float32)
            + b_h_ref[...])

        # carry state; cache Wah @ h_t once into its ring slot
        slot = t % mem_slots
        h_hist[slot] = h_t
        p_hist[slot] = jnp.dot(h_t, Wah_ref[...], preferred_element_type=jnp.float32)
        hp, cp = h_t, c_t

        # ---- classifier ------------------------------------------------------
        prob = _sigmoid(jnp.sum(h_t * w_cls_ref[...], axis=-1, keepdims=True)
                        + b_cls_ref[...])
        prob_cols.append(prob)

    h_prev[...] = hp
    c_prev[...] = cp
    probs_ref[0] = jnp.concatenate(prob_cols, axis=1)   # lane-dense (b_tile, T_CHUNK)


def _pad_to(a, rows, cols):
    return jnp.pad(a, ((0, rows - a.shape[0]), (0, cols - a.shape[1])))


def _pack_padded(p, D, H, Hp):
    """Pack + zero-pad all weights so every hidden dim is Hp (multiple of 128).
    Zero padding is exact: padded lanes of h/c/s stay 0 through the recurrence."""
    gate_h = [p["W_sh"], p["W_fh"], p["W_ih"], p["W_Th"], p["W_uh"], p["W_oh"]]
    gate_x = [p["W_sx"], p["W_fx"], p["W_ix"], p["W_Tx"], p["W_ux"], p["W_ox"]]
    gate_s = [p["W_fs"], p["W_is"], p["W_Ts"], p["W_us"], p["W_os"]]
    gate_b = [p["b_f"], p["b_i"], p["b_T"], p["b_u"], p["b_o"]]

    W_h6 = jnp.concatenate([_pad_to(w, Hp, Hp) for w in gate_h], axis=1)   # (Hp, 6Hp)
    W_x6 = jnp.concatenate([_pad_to(w, D, Hp) for w in gate_x], axis=1)    # (D, 6Hp)
    W_s5 = jnp.concatenate([_pad_to(w, Hp, Hp) for w in gate_s], axis=1)   # (Hp, 5Hp)
    b_5  = jnp.concatenate([_pad_to(b, 1, Hp) for b in gate_b], axis=1)    # (1, 5Hp)

    packed = dict(
        W_h6=W_h6, W_x6=W_x6, W_s5=W_s5, b_5=b_5,
        w_st=_pad_to(p["w_st"], 1, Hp), b_s=_pad_to(p["b_s"], 1, Hp),
        Waq_h=_pad_to(p["Waq"][:H], Hp, Hp), Waq_c=_pad_to(p["Waq"][H:], Hp, Hp),
        Wah=_pad_to(p["Wah"], Hp, Hp),
        ba=_pad_to(p["ba"], 1, Hp), v_t=_pad_to(p["v_t"], 1, Hp),
        W_h=_pad_to(p["W_h"], Hp, Hp), W_e=_pad_to(p["W_e"], Hp, Hp),
        W_g=_pad_to(p["W_g"], D, Hp), b_h=_pad_to(p["b_h"], 1, Hp),
        w_cls=_pad_to(p["w_cls"], 1, Hp), b_cls=p["b_cls"],
    )
    return packed


def thlstm_forward(params, x_seq, delta_seq, g_seq, memory_size,
                   *, b_tile=None, t_chunk=None):
    """x_seq: (B, S, D); delta_seq: (B, S, 1); g_seq: (B, S, D).
    Returns (final_prob (B, 1), per-step probs (B, S)); final_prob matches the
    PyTorch module output sigmoid(logits)[:, -1, :]."""
    B, S, D = x_seq.shape
    H = params["W_sh"].shape[0]
    Hp = ((H + 127) // 128) * 128                       # pad hidden dim to lane tile

    if b_tile is None:
        b_tile = B
    assert B % b_tile == 0
    assert b_tile == B or b_tile % 8 == 0, "b_tile must be a multiple of 8"
    if t_chunk is None:
        t_chunk = next(d for d in range(min(S, 8), 0, -1) if S % d == 0)
    assert S % t_chunk == 0
    n_chunks = S // t_chunk
    mem_slots = max(int(memory_size), 1)                # ring-buffer depth

    # Fused time-major stream (one DMA per chunk): (S, B, 2D+1) = [x | g | delta]
    xgd = jnp.transpose(jnp.concatenate([x_seq, g_seq, delta_seq], axis=2), (1, 0, 2))

    w = _pack_padded(params, D, H, Hp)
    args = (xgd,
            w["W_h6"], w["W_x6"], w["w_st"], w["b_s"],
            w["W_s5"], w["b_5"],
            w["Waq_h"], w["Waq_c"], w["Wah"], w["ba"], w["v_t"],
            w["W_h"], w["W_e"], w["W_g"], w["b_h"],
            w["w_cls"], w["b_cls"])

    def resident(a):
        return pl.BlockSpec(a.shape, lambda b, t: (0, 0))

    in_specs = [pl.BlockSpec((t_chunk, b_tile, 2 * D + 1), lambda b, t: (t, b, 0))
                ] + [resident(a) for a in args[1:]]

    out_shape = jax.ShapeDtypeStruct((n_chunks, B, t_chunk), jnp.float32)
    out_specs = pl.BlockSpec((1, b_tile, t_chunk), lambda b, t: (t, b, 0))

    kernel = functools.partial(_thlstm_kernel, Hp, D, int(memory_size), t_chunk)
    probs_chunks = pl.pallas_call(
        kernel,
        out_shape=out_shape,
        grid_spec=pltpu.PrefetchScalarGridSpec(
            num_scalar_prefetch=0,
            grid=(B // b_tile, n_chunks),
            in_specs=in_specs,
            out_specs=out_specs,
            scratch_shapes=[
                pltpu.VMEM((b_tile, Hp), jnp.float32),             # h_prev
                pltpu.VMEM((b_tile, Hp), jnp.float32),             # c_prev
                pltpu.VMEM((mem_slots, b_tile, Hp), jnp.float32),  # hidden ring buffer
                pltpu.VMEM((mem_slots, b_tile, Hp), jnp.float32),  # cached Wah projections
            ]),
        compiler_params=pltpu.CompilerParams(
            dimension_semantics=("parallel", "arbitrary"),
            vmem_limit_bytes=32 * 1024 * 1024),
    )(*args)

    probs = jnp.transpose(probs_chunks, (1, 0, 2)).reshape(B, S)   # (B, S)
    return probs[:, -1:], probs


def init_params(key, D, H):
    """Deterministic synthetic parameters. Linear weights stored transposed
    (in, out) so the kernel/reference compute y = x @ W."""
    lin = {  # name: (shape, fan_in)
        "W_sh": ((H, H), H), "W_sx": ((D, H), D), "w_st": ((1, H), 1),
        "W_fh": ((H, H), H), "W_fx": ((D, H), D), "W_fs": ((H, H), H),
        "W_ih": ((H, H), H), "W_ix": ((D, H), D), "W_is": ((H, H), H),
        "W_Th": ((H, H), H), "W_Tx": ((D, H), D), "W_Ts": ((H, H), H),
        "W_uh": ((H, H), H), "W_ux": ((D, H), D), "W_us": ((H, H), H),
        "W_oh": ((H, H), H), "W_ox": ((D, H), D), "W_os": ((H, H), H),
        "Waq": ((2 * H, H), 2 * H), "Wah": ((H, H), H),
        "W_h": ((H, H), H), "W_e": ((H, H), H), "W_g": ((D, H), D),
        "w_cls": ((1, H), H),
    }
    keys = jax.random.split(key, len(lin) + 1)
    params = {}
    for (name, (shape, fan_in)), k in zip(lin.items(), keys[:-1]):
        b = 1.0 / math.sqrt(float(fan_in))
        params[name] = jax.random.uniform(k, shape, jnp.float32, -b, b)
    params["v_t"] = jax.random.normal(keys[-1], (1, H), jnp.float32)
    for bname in ("b_s", "b_f", "b_i", "b_T", "b_u", "b_o", "ba", "b_h"):
        params[bname] = jnp.zeros((1, H), jnp.float32)
    params["b_cls"] = jnp.zeros((1, 1), jnp.float32)
    return params


def reference(params, x_seq, delta_seq, g_seq, memory_size):
    """Pure-JAX port of THLSTMModel.forward (PyTorch loop semantics)."""
    p = params
    B, S, D = x_seq.shape
    H = p["W_sh"].shape[0]
    h_prev = jnp.zeros((B, H), jnp.float32)
    c_prev = jnp.zeros((B, H), jnp.float32)
    all_h, probs = [], []
    for t in range(S):
        x_t, dlt, g_t = x_seq[:, t, :], delta_seq[:, t, :], g_seq[:, t, :]
        s_t = jnp.tanh(h_prev @ p["W_sh"] + x_t @ p["W_sx"] + dlt * p["w_st"] + p["b_s"])
        f_t = _sigmoid(h_prev @ p["W_fh"] + x_t @ p["W_fx"] + s_t @ p["W_fs"] + p["b_f"])
        i_t = _sigmoid(h_prev @ p["W_ih"] + x_t @ p["W_ix"] + s_t @ p["W_is"] + p["b_i"])
        T_t = _sigmoid(h_prev @ p["W_Th"] + x_t @ p["W_Tx"] + s_t @ p["W_Ts"] + p["b_T"])
        zeta = jnp.tanh(h_prev @ p["W_uh"] + x_t @ p["W_ux"] + s_t @ p["W_us"] + p["b_u"])
        c_t = f_t * c_prev + i_t * zeta + T_t * s_t
        o_t = _sigmoid(h_prev @ p["W_oh"] + x_t @ p["W_ox"] + s_t @ p["W_os"] + p["b_o"])
        h_tilde = o_t * jnp.tanh(c_t)

        hist = all_h[max(0, t - memory_size):t]
        if not hist:
            e_t = jnp.zeros_like(h_tilde)
        else:
            h_stack = jnp.stack(hist, axis=1)                               # (B, n, H)
            qproj = jnp.concatenate([h_tilde, c_t], axis=1) @ p["Waq"]
            sp = jnp.tanh(qproj[:, None, :] + h_stack @ p["Wah"] + p["ba"])
            au = jnp.sum(sp * p["v_t"], axis=-1)                            # (B, n)
            alpha = jax.nn.softmax(au, axis=1)
            e_t = jnp.sum(alpha[..., None] * h_stack, axis=1)

        h_t = jnp.tanh(h_tilde @ p["W_h"] + e_t @ p["W_e"] + g_t @ p["W_g"] + p["b_h"])
        all_h.append(h_t)
        h_prev, c_prev = h_t, c_t
        probs.append(_sigmoid(jnp.sum(h_t * p["w_cls"], axis=-1, keepdims=True) + p["b_cls"]))
    probs = jnp.concatenate(probs, axis=1)           # (B, S)
    return probs[:, -1:], probs


if __name__ == "__main__":
    B, D, H, S, MEM = 8, 16, 32, 10, 4
    key = jax.random.PRNGKey(0)
    kp, kx = jax.random.split(key)
    params = init_params(kp, D, H)

    ks = jax.random.split(kx, 3)
    x_seq = jax.random.normal(ks[0], (B, S, D), jnp.float32)
    delta_seq = jax.random.uniform(ks[1], (B, S, 1), jnp.float32)
    g_seq = jax.random.normal(ks[2], (B, S, D), jnp.float32)

    final_prob, probs_seq = thlstm_forward(params, x_seq, delta_seq, g_seq, MEM)
    jax.block_until_ready((final_prob, probs_seq))

    ref_final, ref_probs = reference(params, x_seq, delta_seq, g_seq, MEM)
    assert final_prob.shape == (B, 1) and probs_seq.shape == (B, S)
    err_f = float(jnp.max(jnp.abs(final_prob - ref_final)))
    err_p = float(jnp.max(jnp.abs(probs_seq - ref_probs)))
    assert err_f < 1e-4, f"final prob mismatch: {err_f}"
    assert err_p < 1e-4, f"per-step prob mismatch: {err_p}"
    print("KERNEL_OK")
</pallas_src>

<mosaic_0001>
module attributes {stable_mosaic.version = 11 : i64} {
  func.func @_thlstm_kernel(%arg0: i32, %arg1: i32, %arg2: memref<5x8x33xf32, #tpu.memory_space<vmem>>, %arg3: memref<128x768xf32, #tpu.memory_space<vmem>>, %arg4: memref<16x768xf32, #tpu.memory_space<vmem>>, %arg5: memref<1x128xf32, #tpu.memory_space<vmem>>, %arg6: memref<1x128xf32, #tpu.memory_space<vmem>>, %arg7: memref<128x640xf32, #tpu.memory_space<vmem>>, %arg8: memref<1x640xf32, #tpu.memory_space<vmem>>, %arg9: memref<128x128xf32, #tpu.memory_space<vmem>>, %arg10: memref<128x128xf32, #tpu.memory_space<vmem>>, %arg11: memref<128x128xf32, #tpu.memory_space<vmem>>, %arg12: memref<1x128xf32, #tpu.memory_space<vmem>>, %arg13: memref<1x128xf32, #tpu.memory_space<vmem>>, %arg14: memref<128x128xf32, #tpu.memory_space<vmem>>, %arg15: memref<128x128xf32, #tpu.memory_space<vmem>>, %arg16: memref<16x128xf32, #tpu.memory_space<vmem>>, %arg17: memref<1x128xf32, #tpu.memory_space<vmem>>, %arg18: memref<1x128xf32, #tpu.memory_space<vmem>>, %arg19: memref<1x1xf32, #tpu.memory_space<vmem>>, %arg20: memref<1x8x5xf32, #tpu.memory_space<vmem>>, %arg21: memref<8x128xf32, #tpu.memory_space<vmem>>, %arg22: memref<8x128xf32, #tpu.memory_space<vmem>>, %arg23: memref<4x8x128xf32, #tpu.memory_space<vmem>>, %arg24: memref<4x8x128xf32, #tpu.memory_space<vmem>>) attributes {dimension_semantics = [#tpu.dimension_semantics<parallel>, #tpu.dimension_semantics<arbitrary>], iteration_bounds = array<i64: 1, 2>, scalar_prefetch = 0 : i64, scratch_operands = 4 : i64, tpu.core_type = #tpu.core_type<tc>, window_params = [{transform_indices = @transform_0, window_bounds = array<i64: 5, 8, 33>}, {pipeline_mode = #tpu.pipeline_mode<synchronous>, transform_indices = @transform_1, window_bounds = array<i64: 128, 768>}, {pipeline_mode = #tpu.pipeline_mode<synchronous>, transform_indices = @transform_2, window_bounds = array<i64: 16, 768>}, {pipeline_mode = #tpu.pipeline_mode<synchronous>, transform_indices = @transform_3, window_bounds = array<i64: 1, 128>}, {pipeline_mode = #tpu.pipeline_mode<synchronous>, transform_indices = @transform_4, window_bounds = array<i64: 1, 128>}, {pipeline_mode = #tpu.pipeline_mode<synchronous>, transform_indices = @transform_5, window_bounds = array<i64: 128, 640>}, {pipeline_mode = #tpu.pipeline_mode<synchronous>, transform_indices = @transform_6, window_bounds = array<i64: 1, 640>}, {pipeline_mode = #tpu.pipeline_mode<synchronous>, transform_indices = @transform_7, window_bounds = array<i64: 128, 128>}, {pipeline_mode = #tpu.pipeline_mode<synchronous>, transform_indices = @transform_8, window_bounds = array<i64: 128, 128>}, {pipeline_mode = #tpu.pipeline_mode<synchronous>, transform_indices = @transform_9, window_bounds = array<i64: 128, 128>}, {pipeline_mode = #tpu.pipeline_mode<synchronous>, transform_indices = @transform_10, window_bounds = array<i64: 1, 128>}, {pipeline_mode = #tpu.pipeline_mode<synchronous>, transform_indices = @transform_11, window_bounds = array<i64: 1, 128>}, {pipeline_mode = #tpu.pipeline_mode<synchronous>, transform_indices = @transform_12, window_bounds = array<i64: 128, 128>}, {pipeline_mode = #tpu.pipeline_mode<synchronous>, transform_indices = @transform_13, window_bounds = array<i64: 128, 128>}, {pipeline_mode = #tpu.pipeline_mode<synchronous>, transform_indices = @transform_14, window_bounds = array<i64: 16, 128>}, {pipeline_mode = #tpu.pipeline_mode<synchronous>, transform_indices = @transform_15, window_bounds = array<i64: 1, 128>}, {pipeline_mode = #tpu.pipeline_mode<synchronous>, transform_indices = @transform_16, window_bounds = array<i64: 1, 128>}, {pipeline_mode = #tpu.pipeline_mode<synchronous>, transform_indices = @transform_17, window_bounds = array<i64: 1, 1>}, {transform_indices = @transform_18, window_bounds = array<i64: 1, 8, 5>}]} {
    %c0_i32 = arith.constant 0 : i32
    %0 = arith.cmpi eq, %arg1, %c0_i32 : i32
    %1 = arith.extui %0 : i1 to i32
    %c0_i32_0 = arith.constant 0 : i32
    %2 = arith.cmpi ne, %1, %c0_i32_0 : i32
    scf.if %2 {
      %cst_441 = arith.constant 0.000000e+00 : f32
      %811 = vector.broadcast %cst_441 : f32 to vector<8x128xf32>
      %c0_442 = arith.constant 0 : index
      %c0_443 = arith.constant 0 : index
      %812 = vector.load %arg21[%c0_442, %c0_443] : memref<8x128xf32, #tpu.memory_space<vmem>>, vector<8x128xf32>
      tpu.vector_store %arg21[%c0_442, %c0_443], %811 {strides = array<i32>} : memref<8x128xf32, #tpu.memory_space<vmem>>, vector<8x128xf32>,
      %cst_444 = arith.constant 0.000000e+00 : f32
      %813 = vector.broadcast %cst_444 : f32 to vector<8x128xf32>
      %c0_445 = arith.constant 0 : index
      %c0_446 = arith.constant 0 : index
      %814 = vector.load %arg22[%c0_445, %c0_446] : memref<8x128xf32, #tpu.memory_space<vmem>>, vector<8x128xf32>
      tpu.vector_store %arg22[%c0_445, %c0_446], %813 {strides = array<i32>} : memref<8x128xf32, #tpu.memory_space<vmem>>, vector<8x128xf32>,
      %cst_447 = arith.constant 0.000000e+00 : f32
      %815 = vector.broadcast %cst_447 : f32 to vector<4x8x128xf32>
      %c0_448 = arith.constant 0 : index
      %c0_449 = arith.constant 0 : index
      %c0_450 = arith.constant 0 : index
      %816 = vector.load %arg23[%c0_448, %c0_449, %c0_450] : memref<4x8x128xf32, #tpu.memory_space<vmem>>, vector<4x8x128xf32>
      tpu.vector_store %arg23[%c0_448, %c0_449, %c0_450], %815 {strides = array<i32>} : memref<4x8x128xf32, #tpu.memory_space<vmem>>, vector<4x8x128xf32>,
      %cst_451 = arith.constant 0.000000e+00 : f32
      %817 = vector.broadcast %cst_451 : f32 to vector<4x8x128xf32>
      %c0_452 = arith.constant 0 : index
      %c0_453 = arith.constant 0 : index
      %c0_454 = arith.constant 0 : index
      %818 = vector.load %arg24[%c0_452, %c0_453, %c0_454] : memref<4x8x128xf32, #tpu.memory_space<vmem>>, vector<4x8x128xf32>
      tpu.vector_store %arg24[%c0_452, %c0_453, %c0_454], %817 {strides = array<i32>} : memref<4x8x128xf32, #tpu.memory_space<vmem>>, vector<4x8x128xf32>,
    } else {
    }
    %c0 = arith.constant 0 : index
    %c0_1 = arith.constant 0 : index
    %3 = vector.load %arg21[%c0, %c0_1] : memref<8x128xf32, #tpu.memory_space<vmem>>, vector<8x128xf32>
    %c0_2 = arith.constant 0 : index
    %c0_3 = arith.constant 0 : index
    %4 = vector.load %arg22[%c0_2, %c0_3] : memref<8x128xf32, #tpu.memory_space<vmem>>, vector<8x128xf32>
    %c5_i32 = arith.constant 5 : i32
    %5 = arith.muli %arg1, %c5_i32 : i32
    %c0_i32_4 = arith.constant 0 : i32
    %6 = arith.addi %5, %c0_i32_4 : i32
    %c0_5 = arith.constant 0 : index
    %c0_6 = arith.constant 0 : index
    %c0_7 = arith.constant 0 : index
    %7 = vector.load %arg2[%c0_5, %c0_6, %c0_7] : memref<5x8x33xf32, #tpu.memory_space<vmem>>, vector<1x8x33xf32>
    %8 = vector.shape_cast %7 : vector<1x8x33xf32> to vector<8x33xf32>
    %9 = vector.extract_strided_slice %8 {offsets = [0, 0], sizes = [8, 16], strides = [1, 1]} : vector<8x33xf32> to vector<8x16xf32>
    %10 = vector.extract_strided_slice %8 {offsets = [0, 16], sizes = [8, 16], strides = [1, 1]} : vector<8x33xf32> to vector<8x16xf32>
    %11 = vector.extract_strided_slice %8 {offsets = [0, 32], sizes = [8, 1], strides = [1, 1]} : vector<8x33xf32> to vector<8x1xf32>
    %c0_8 = arith.constant 0 : index
    %c0_9 = arith.constant 0 : index
    %12 = vector.load %arg3[%c0_8, %c0_9] : memref<128x768xf32, #tpu.memory_space<vmem>>, vector<128x768xf32>
    %cst = arith.constant dense<0.000000e+00> : vector<8x768xf32>
    %13 = tpu.matmul %3, %12, %cst {dimension_numbers = #tpu.dot_dimension_numbers<[1], [0], [0], [1], [0, 0, 1, 1], [], []>} : vector<8x128xf32>, vector<128x768xf32>, vector<8x768xf32> -> vector<8x768xf32>
    %c0_10 = arith.constant 0 : index
    %c0_11 = arith.constant 0 : index
    %14 = vector.load %arg4[%c0_10, %c0_11] : memref<16x768xf32, #tpu.memory_space<vmem>>, vector<16x768xf32>
    %cst_12 = arith.constant dense<0.000000e+00> : vector<8x768xf32>
    %15 = tpu.matmul %9, %14, %cst_12 {dimension_numbers = #tpu.dot_dimension_numbers<[1], [0], [0], [1], [0, 0, 1, 1], [], []>} : vector<8x16xf32>, vector<16x768xf32>, vector<8x768xf32> -> vector<8x768xf32>
    %16 = arith.addf %13, %15 : vector<8x768xf32>
    %17 = vector.extract_strided_slice %16 {offsets = [0, 0], sizes = [8, 128], strides = [1, 1]} : vector<8x768xf32> to vector<8x128xf32>
    %c0_13 = arith.constant 0 : index
    %c0_14 = arith.constant 0 : index
    %18 = vector.load %arg5[%c0_13, %c0_14] : memref<1x128xf32, #tpu.memory_space<vmem>>, vector<1x128xf32>
    %19 = vector.broadcast %11 : vector<8x1xf32> to vector<8x128xf32>
    %20 = vector.broadcast %18 : vector<1x128xf32> to vector<8x128xf32>
    %21 = arith.mulf %19, %20 : vector<8x128xf32>
    %22 = arith.addf %17, %21 : vector<8x128xf32>
    %c0_15 = arith.constant 0 : index
    %c0_16 = arith.constant 0 : index
    %23 = vector.load %arg6[%c0_15, %c0_16] : memref<1x128xf32, #tpu.memory_space<vmem>>, vector<1x128xf32>
    %24 = vector.broadcast %23 : vector<1x128xf32> to vector<8x128xf32>
    %25 = arith.addf %22, %24 : vector<8x128xf32>
    %26 = math.tanh %25 : vector<8x128xf32>
    %27 = vector.extract_strided_slice %16 {offsets = [0, 128], sizes = [8, 640], strides = [1, 1]} : vector<8x768xf32> to vector<8x640xf32>
    %c0_17 = arith.constant 0 : index
    %c0_18 = arith.constant 0 : index
    %28 = vector.load %arg7[%c0_17, %c0_18] : memref<128x640xf32, #tpu.memory_space<vmem>>, vector<128x640xf32>
    %cst_19 = arith.constant dense<0.000000e+00> : vector<8x640xf32>
    %29 = tpu.matmul %26, %28, %cst_19 {dimension_numbers = #tpu.dot_dimension_numbers<[1], [0], [0], [1], [0, 0, 1, 1], [], []>} : vector<8x128xf32>, vector<128x640xf32>, vector<8x640xf32> -> vector<8x640xf32>
    %30 = arith.addf %27, %29 : vector<8x640xf32>
    %c0_20 = arith.constant 0 : index
    %c0_21 = arith.constant 0 : index
    %31 = vector.load %arg8[%c0_20, %c0_21] : memref<1x640xf32, #tpu.memory_space<vmem>>, vector<1x640xf32>
    %32 = vector.broadcast %31 : vector<1x640xf32> to vector<8x640xf32>
    %33 = arith.addf %30, %32 : vector<8x640xf32>
    %34 = vector.extract_strided_slice %33 {offsets = [0, 0], sizes = [8, 128], strides = [1, 1]} : vector<8x640xf32> to vector<8x128xf32>
    %cst_22 = arith.constant 0.000000e+00 : f32
    %35 = vector.broadcast %cst_22 : f32 to vector<8x128xf32>
    %36 = arith.subf %35, %34 : vector<8x128xf32>
    %37 = math.exp %36 : vector<8x128xf32>
    %cst_23 = arith.constant 1.000000e+00 : f32
    %38 = vector.broadcast %cst_23 : f32 to vector<8x128xf32>
    %39 = arith.addf %38, %37 : vector<8x128xf32>
    %cst_24 = arith.constant 1.000000e+00 : f32
    %40 = vector.broadcast %cst_24 : f32 to vector<8x128xf32>
    %41 = arith.divf %40, %39 : vector<8x128xf32>
    %42 = vector.extract_strided_slice %33 {offsets = [0, 128], sizes = [8, 128], strides = [1, 1]} : vector<8x640xf32> to vector<8x128xf32>
    %cst_25 = arith.constant 0.000000e+00 : f32
    %43 = vector.broadcast %cst_25 : f32 to vector<8x128xf32>
    %44 = arith.subf %43, %42 : vector<8x128xf32>
    %45 = math.exp %44 : vector<8x128xf32>
    %cst_26 = arith.constant 1.000000e+00 : f32
    %46 = vector.broadcast %cst_26 : f32 to vector<8x128xf32>
    %47 = arith.addf %46, %45 : vector<8x128xf32>
    %cst_27 = arith.constant 1.000000e+00 : f32
    %48 = vector.broadcast %cst_27 : f32 to vector<8x128xf32>
    %49 = arith.divf %48, %47 : vector<8x128xf32>
    %50 = vector.extract_strided_slice %33 {offsets = [0, 256], sizes = [8, 128], strides = [1, 1]} : vector<8x640xf32> to vector<8x128xf32>
    %cst_28 = arith.constant 0.000000e+00 : f32
    %51 = vector.broadcast %cst_28 : f32 to vector<8x128xf32>
    %52 = arith.subf %51, %50 : vector<8x128xf32>
    %53 = math.exp %52 : vector<8x128xf32>
    %cst_29 = arith.constant 1.000000e+00 : f32
    %54 = vector.broadcast %cst_29 : f32 to vector<8x128xf32>
    %55 = arith.addf %54, %53 : vector<8x128xf32>
    %cst_30 = arith.constant 1.000000e+00 : f32
    %56 = vector.broadcast %cst_30 : f32 to vector<8x128xf32>
    %57 = arith.divf %56, %55 : vector<8x128xf32>
    %58 = vector.extract_strided_slice %33 {offsets = [0, 384], sizes = [8, 128], strides = [1, 1]} : vector<8x640xf32> to vector<8x128xf32>
    %59 = math.tanh %58 : vector<8x128xf32>
    %60 = vector.extract_strided_slice %33 {offsets = [0, 512], sizes = [8, 128], strides = [1, 1]} : vector<8x640xf32> to vector<8x128xf32>
    %cst_31 = arith.constant 0.000000e+00 : f32
    %61 = vector.broadcast %cst_31 : f32 to vector<8x128xf32>
    %62 = arith.subf %61, %60 : vector<8x128xf32>
    %63 = math.exp %62 : vector<8x128xf32>
    %cst_32 = arith.constant 1.000000e+00 : f32
    %64 = vector.broadcast %cst_32 : f32 to vector<8x128xf32>
    %65 = arith.addf %64, %63 : vector<8x128xf32>
    %cst_33 = arith.constant 1.000000e+00 : f32
    %66 = vector.broadcast %cst_33 : f32 to vector<8x128xf32>
    %67 = arith.divf %66, %65 : vector<8x128xf32>
    %68 = arith.mulf %41, %4 : vector<8x128xf32>
    %69 = arith.mulf %49, %59 : vector<8x128xf32>
    %70 = arith.addf %68, %69 : vector<8x128xf32>
    %71 = arith.mulf %57, %26 : vector<8x128xf32>
    %72 = arith.addf %70, %71 : vector<8x128xf32>
    %73 = math.tanh %72 : vector<8x128xf32>
    %74 = arith.mulf %67, %73 : vector<8x128xf32>
    %c0_34 = arith.constant 0 : index
    %c0_35 = arith.constant 0 : index
    %75 = vector.load %arg9[%c0_34, %c0_35] : memref<128x128xf32, #tpu.memory_space<vmem>>, vector<128x128xf32>
    %cst_36 = arith.constant dense<0.000000e+00> : vector<8x128xf32>
    %76 = tpu.matmul %74, %75, %cst_36 {dimension_numbers = #tpu.dot_dimension_numbers<[1], [0], [0], [1], [0, 0, 1, 1], [], []>} : vector<8x128xf32>, vector<128x128xf32>, vector<8x128xf32> -> vector<8x128xf32>
    %c0_37 = arith.constant 0 : index
    %c0_38 = arith.constant 0 : index
    %77 = vector.load %arg10[%c0_37, %c0_38] : memref<128x128xf32, #tpu.memory_space<vmem>>, vector<128x128xf32>
    %cst_39 = arith.constant dense<0.000000e+00> : vector<8x128xf32>
    %78 = tpu.matmul %72, %77, %cst_39 {dimension_numbers = #tpu.dot_dimension_numbers<[1], [0], [0], [1], [0, 0, 1, 1], [], []>} : vector<8x128xf32>, vector<128x128xf32>, vector<8x128xf32> -> vector<8x128xf32>
    %79 = arith.addf %76, %78 : vector<8x128xf32>
    %80 = vector.shape_cast %79 : vector<8x128xf32> to vector<1x8x128xf32>
    %c0_40 = arith.constant 0 : index
    %c0_41 = arith.constant 0 : index
    %c0_42 = arith.constant 0 : index
    %81 = vector.load %arg24[%c0_40, %c0_41, %c0_42] : memref<4x8x128xf32, #tpu.memory_space<vmem>>, vector<4x8x128xf32>
    %82 = vector.broadcast %80 : vector<1x8x128xf32> to vector<4x8x128xf32>
    %83 = arith.addf %82, %81 : vector<4x8x128xf32>
    %c0_43 = arith.constant 0 : index
    %c0_44 = arith.constant 0 : index
    %84 = vector.load %arg12[%c0_43, %c0_44] : memref<1x128xf32, #tpu.memory_space<vmem>>, vector<1x128xf32>
    %85 = vector.shape_cast %84 : vector<1x128xf32> to vector<1x1x128xf32>
    %86 = vector.broadcast %85 : vector<1x1x128xf32> to vector<4x8x128xf32>
    %87 = arith.addf %83, %86 : vector<4x8x128xf32>
    %88 = math.tanh %87 : vector<4x8x128xf32>
    %c0_45 = arith.constant 0 : index
    %c0_46 = arith.constant 0 : index
    %89 = vector.load %arg13[%c0_45, %c0_46] : memref<1x128xf32, #tpu.memory_space<vmem>>, vector<1x128xf32>
    %90 = vector.shape_cast %89 : vector<1x128xf32> to vector<1x1x128xf32>
    %91 = vector.broadcast %90 : vector<1x1x128xf32> to vector<4x8x128xf32>
    %92 = arith.mulf %88, %91 : vector<4x8x128xf32>
    %cst_47 = arith.constant dense<0.000000e+00> : vector<4x8xf32>
    %93 = vector.multi_reduction <add>, %92, %cst_47 [2] : vector<4x8x128xf32> to vector<4x8xf32>
    %94 = vector.shape_cast %93 : vector<4x8xf32> to vector<4x8x1xf32>
    %95 = tpu.iota {dimensions = array<i32: 0>} : vector<4x8x1xi32>
    %c4_i32 = arith.constant 4 : i32
    %96 = arith.minsi %6, %c4_i32 : i32
    %97 = vector.broadcast %96 : i32 to vector<4x8x1xi32>
    %98 = arith.cmpi slt, %95, %97 : vector<4x8x1xi32>
    %cst_48 = arith.constant -1.000000e+30 : f32
    %99 = vector.broadcast %cst_48 : f32 to vector<4x8x1xf32>
    %100 = arith.select %98, %94, %99 : vector<4x8x1xi1>, vector<4x8x1xf32>
    %cst_49 = arith.constant dense<0xFF800000> : vector<8x1xf32>
    %101 = vector.multi_reduction <maximumf>, %100, %cst_49 [0] : vector<4x8x1xf32> to vector<8x1xf32>
    %102 = vector.shape_cast %101 : vector<8x1xf32> to vector<1x8x1xf32>
    %103 = vector.broadcast %102 : vector<1x8x1xf32> to vector<4x8x1xf32>
    %104 = arith.subf %94, %103 : vector<4x8x1xf32>
    %cst_50 = arith.constant -1.000000e+30 : f32
    %105 = vector.broadcast %cst_50 : f32 to vector<4x8x1xf32>
    %106 = arith.select %98, %104, %105 : vector<4x8x1xi1>, vector<4x8x1xf32>
    %107 = math.exp %106 : vector<4x8x1xf32>
    %cst_51 = arith.constant dense<0.000000e+00> : vector<8x1xf32>
    %108 = vector.multi_reduction <add>, %107, %cst_51 [0] : vector<4x8x1xf32> to vector<8x1xf32>
    %109 = vector.shape_cast %108 : vector<8x1xf32> to vector<1x8x1xf32>
    %cst_52 = arith.constant 1.000000e-30 : f32
    %110 = vector.broadcast %cst_52 : f32 to vector<1x8x1xf32>
    %111 = arith.maximumf %109, %110 : vector<1x8x1xf32>
    %112 = vector.broadcast %111 : vector<1x8x1xf32> to vector<4x8x1xf32>
    %113 = arith.divf %107, %112 : vector<4x8x1xf32>
    %c0_53 = arith.constant 0 : index
    %c0_54 = arith.constant 0 : index
    %c0_55 = arith.constant 0 : index
    %114 = vector.load %arg23[%c0_53, %c0_54, %c0_55] : memref<4x8x128xf32, #tpu.memory_space<vmem>>, vector<4x8x128xf32>
    %115 = vector.broadcast %113 : vector<4x8x1xf32> to vector<4x8x128xf32>
    %116 = arith.mulf %115, %114 : vector<4x8x128xf32>
    %cst_56 = arith.constant dense<0.000000e+00> : vector<8x128xf32>
    %117 = vector.multi_reduction <add>, %116, %cst_56 [0] : vector<4x8x128xf32> to vector<8x128xf32>
    %c0_57 = arith.constant 0 : index
    %c0_58 = arith.constant 0 : index
    %118 = vector.load %arg14[%c0_57, %c0_58] : memref<128x128xf32, #tpu.memory_space<vmem>>, vector<128x128xf32>
    %cst_59 = arith.constant dense<0.000000e+00> : vector<8x128xf32>
    %119 = tpu.matmul %74, %118, %cst_59 {dimension_numbers = #tpu.dot_dimension_numbers<[1], [0], [0], [1], [0, 0, 1, 1], [], []>} : vector<8x128xf32>, vector<128x128xf32>, vector<8x128xf32> -> vector<8x128xf32>
    %c0_60 = arith.constant 0 : index
    %c0_61 = arith.constant 0 : index
    %120 = vector.load %arg15[%c0_60, %c0_61] : memref<128x128xf32, #tpu.memory_space<vmem>>, vector<128x128xf32>
    %cst_62 = arith.constant dense<0.000000e+00> : vector<8x128xf32>
    %121 = tpu.matmul %117, %120, %cst_62 {dimension_numbers = #tpu.dot_dimension_numbers<[1], [0], [0], [1], [0, 0, 1, 1], [], []>} : vector<8x128xf32>, vector<128x128xf32>, vector<8x128xf32> -> vector<8x128xf32>
    %122 = arith.addf %119, %121 : vector<8x128xf32>
    %c0_63 = arith.constant 0 : index
    %c0_64 = arith.constant 0 : index
    %123 = vector.load %arg16[%c0_63, %c0_64] : memref<16x128xf32, #tpu.memory_space<vmem>>, vector<16x128xf32>
    %cst_65 = arith.constant dense<0.000000e+00> : vector<8x128xf32>
    %124 = tpu.matmul %10, %123, %cst_65 {dimension_numbers = #tpu.dot_dimension_numbers<[1], [0], [0], [1], [0, 0, 1, 1], [], []>} : vector<8x16xf32>, vector<16x128xf32>, vector<8x128xf32> -> vector<8x128xf32>
    %125 = arith.addf %122, %124 : vector<8x128xf32>
    %c0_66 = arith.constant 0 : index
    %c0_67 = arith.constant 0 : index
    %126 = vector.load %arg17[%c0_66, %c0_67] : memref<1x128xf32, #tpu.memory_space<vmem>>, vector<1x128xf32>
    %127 = vector.broadcast %126 : vector<1x128xf32> to vector<8x128xf32>
    %128 = arith.addf %125, %127 : vector<8x128xf32>
    %129 = math.tanh %128 : vector<8x128xf32>
    %c4_i32_68 = arith.constant 4 : i32
    %c0_i32_69 = arith.constant 0 : i32
    %130 = arith.cmpi eq, %c4_i32_68, %c0_i32_69 : i32
    %c1_i32 = arith.constant 1 : i32
    %131 = arith.select %130, %c1_i32, %c4_i32_68 : i32
    %132 = arith.remsi %6, %131 : i32
    %c0_i32_70 = arith.constant 0 : i32
    %133 = arith.cmpi ne, %132, %c0_i32_70 : i32
    %c0_i32_71 = arith.constant 0 : i32
    %134 = arith.cmpi slt, %132, %c0_i32_71 : i32
    %c0_i32_72 = arith.constant 0 : i32
    %135 = arith.cmpi slt, %131, %c0_i32_72 : i32
    %136 = arith.xori %134, %135 : i1
    %137 = arith.andi %136, %133 : i1
    %138 = arith.addi %132, %131 : i32
    %139 = arith.select %137, %138, %132 : i32
    %140 = arith.index_cast %139 : i32 to index
    %c0_73 = arith.constant 0 : index
    %c0_74 = arith.constant 0 : index
    %141 = vector.load %arg23[%140, %c0_73, %c0_74] : memref<4x8x128xf32, #tpu.memory_space<vmem>>, vector<1x8x128xf32>
    %142 = vector.shape_cast %141 : vector<1x8x128xf32> to vector<8x128xf32>
    %143 = vector.shape_cast %129 : vector<8x128xf32> to vector<1x8x128xf32>
    tpu.vector_store %arg23[%140, %c0_73, %c0_74], %143 {strides = array<i32>} : memref<4x8x128xf32, #tpu.memory_space<vmem>>, vector<1x8x128xf32>,
    %c0_75 = arith.constant 0 : index
    %c0_76 = arith.constant 0 : index
    %144 = vector.load %arg11[%c0_75, %c0_76] : memref<128x128xf32, #tpu.memory_space<vmem>>, vector<128x128xf32>
    %cst_77 = arith.constant dense<0.000000e+00> : vector<8x128xf32>
    %145 = tpu.matmul %129, %144, %cst_77 {dimension_numbers = #tpu.dot_dimension_numbers<[1], [0], [0], [1], [0, 0, 1, 1], [], []>} : vector<8x128xf32>, vector<128x128xf32>, vector<8x128xf32> -> vector<8x128xf32>
    %146 = arith.index_cast %139 : i32 to index
    %c0_78 = arith.constant 0 : index
    %c0_79 = arith.constant 0 : index
    %147 = vector.load %arg24[%146, %c0_78, %c0_79] : memref<4x8x128xf32, #tpu.memory_space<vmem>>, vector<1x8x128xf32>
    %148 = vector.shape_cast %147 : vector<1x8x128xf32> to vector<8x128xf32>
    %149 = vector.shape_cast %145 : vector<8x128xf32> to vector<1x8x128xf32>
    tpu.vector_store %arg24[%146, %c0_78, %c0_79], %149 {strides = array<i32>} : memref<4x8x128xf32, #tpu.memory_space<vmem>>, vector<1x8x128xf32>,
    %c0_80 = arith.constant 0 : index
    %c0_81 = arith.constant 0 : index
    %150 = vector.load %arg18[%c0_80, %c0_81] : memref<1x128xf32, #tpu.memory_space<vmem>>, vector<1x128xf32>
    %151 = vector.broadcast %150 : vector<1x128xf32> to vector<8x128xf32>
    %152 = arith.mulf %129, %151 : vector<8x128xf32>
    %cst_82 = arith.constant dense<0.000000e+00> : vector<8xf32>
    %153 = vector.multi_reduction <add>, %152, %cst_82 [1] : vector<8x128xf32> to vector<8xf32>
    %154 = vector.shape_cast %153 : vector<8xf32> to vector<8x1xf32>
    %c0_83 = arith.constant 0 : index
    %c0_84 = arith.constant 0 : index
    %155 = vector.load %arg19[%c0_83, %c0_84] : memref<1x1xf32, #tpu.memory_space<vmem>>, vector<1x1xf32>
    %156 = vector.broadcast %155 : vector<1x1xf32> to vector<8x1xf32>
    %157 = arith.addf %154, %156 : vector<8x1xf32>
    %cst_85 = arith.constant 0.000000e+00 : f32
    %158 = vector.broadcast %cst_85 : f32 to vector<8x1xf32>
    %159 = arith.subf %158, %157 : vector<8x1xf32>
    %160 = math.exp %159 : vector<8x1xf32>
    %cst_86 = arith.constant 1.000000e+00 : f32
    %161 = vector.broadcast %cst_86 : f32 to vector<8x1xf32>
    %162 = arith.addf %161, %160 : vector<8x1xf32>
    %cst_87 = arith.constant 1.000000e+00 : f32
    %163 = vector.broadcast %cst_87 : f32 to vector<8x1xf32>
    %164 = arith.divf %163, %162 : vector<8x1xf32>
    %c5_i32_88 = arith.constant 5 : i32
    %165 = arith.muli %arg1, %c5_i32_88 : i32
    %c1_i32_89 = arith.constant 1 : i32
    %166 = arith.addi %165, %c1_i32_89 : i32
    %c1 = arith.constant 1 : index
    %c0_90 = arith.constant 0 : index
    %c0_91 = arith.constant 0 : index
    %167 = vector.load %arg2[%c1, %c0_90, %c0_91] : memref<5x8x33xf32, #tpu.memory_space<vmem>>, vector<1x8x33xf32>
    %168 = vector.shape_cast %167 : vector<1x8x33xf32> to vector<8x33xf32>
    %169 = vector.extract_strided_slice %168 {offsets = [0, 0], sizes = [8, 16], strides = [1, 1]} : vector<8x33xf32> to vector<8x16xf32>
    %170 = vector.extract_strided_slice %168 {offsets = [0, 16], sizes = [8, 16], strides = [1, 1]} : vector<8x33xf32> to vector<8x16xf32>
    %171 = vector.extract_strided_slice %168 {offsets = [0, 32], sizes = [8, 1], strides = [1, 1]} : vector<8x33xf32> to vector<8x1xf32>
    %c0_92 = arith.constant 0 : index
    %c0_93 = arith.constant 0 : index
    %172 = vector.load %arg3[%c0_92, %c0_93] : memref<128x768xf32, #tpu.memory_space<vmem>>, vector<128x768xf32>
    %cst_94 = arith.constant dense<0.000000e+00> : vector<8x768xf32>
    %173 = tpu.matmul %129, %172, %cst_94 {dimension_numbers = #tpu.dot_dimension_numbers<[1], [0], [0], [1], [0, 0, 1, 1], [], []>} : vector<8x128xf32>, vector<128x768xf32>, vector<8x768xf32> -> vector<8x768xf32>
    %c0_95 = arith.constant 0 : index
    %c0_96 = arith.constant 0 : index
    %174 = vector.load %arg4[%c0_95, %c0_96] : memref<16x768xf32, #tpu.memory_space<vmem>>, vector<16x768xf32>
    %cst_97 = arith.constant dense<0.000000e+00> : vector<8x768xf32>
    %175 = tpu.matmul %169, %174, %cst_97 {dimension_numbers = #tpu.dot_dimension_numbers<[1], [0], [0], [1], [0, 0, 1, 1], [], []>} : vector<8x16xf32>, vector<16x768xf32>, vector<8x768xf32> -> vector<8x768xf32>
    %176 = arith.addf %173, %175 : vector<8x768xf32>
    %177 = vector.extract_strided_slice %176 {offsets = [0, 0], sizes = [8, 128], strides = [1, 1]} : vector<8x768xf32> to vector<8x128xf32>
    %c0_98 = arith.constant 0 : index
    %c0_99 = arith.constant 0 : index
    %178 = vector.load %arg5[%c0_98, %c0_99] : memref<1x128xf32, #tpu.memory_space<vmem>>, vector<1x128xf32>
    %179 = vector.broadcast %171 : vector<8x1xf32> to vector<8x128xf32>
    %180 = vector.broadcast %178 : vector<1x128xf32> to vector<8x128xf32>
    %181 = arith.mulf %179, %180 : vector<8x128xf32>
    %182 = arith.addf %177, %181 : vector<8x128xf32>
    %c0_100 = arith.constant 0 : index
    %c0_101 = arith.constant 0 : index
    %183 = vector.load %arg6[%c0_100, %c0_101] : memref<1x128xf32, #tpu.memory_space<vmem>>, vector<1x128xf32>
    %184 = vector.broadcast %183 : vector<1x128xf32> to vector<8x128xf32>
    %185 = arith.addf %182, %184 : vector<8x128xf32>
    %186 = math.tanh %185 : vector<8x128xf32>
    %187 = vector.extract_strided_slice %176 {offsets = [0, 128], sizes = [8, 640], strides = [1, 1]} : vector<8x768xf32> to vector<8x640xf32>
    %c0_102 = arith.constant 0 : index
    %c0_103 = arith.constant 0 : index
    %188 = vector.load %arg7[%c0_102, %c0_103] : memref<128x640xf32, #tpu.memory_space<vmem>>, vector<128x640xf32>
    %cst_104 = arith.constant dense<0.000000e+00> : vector<8x640xf32>
    %189 = tpu.matmul %186, %188, %cst_104 {dimension_numbers = #tpu.dot_dimension_numbers<[1], [0], [0], [1], [0, 0, 1, 1], [], []>} : vector<8x128xf32>, vector<128x640xf32>, vector<8x640xf32> -> vector<8x640xf32>
    %190 = arith.addf %187, %189 : vector<8x640xf32>
    %c0_105 = arith.constant 0 : index
    %c0_106 = arith.constant 0 : index
    %191 = vector.load %arg8[%c0_105, %c0_106] : memref<1x640xf32, #tpu.memory_space<vmem>>, vector<1x640xf32>
    %192 = vector.broadcast %191 : vector<1x640xf32> to vector<8x640xf32>
    %193 = arith.addf %190, %192 : vector<8x640xf32>
    %194 = vector.extract_strided_slice %193 {offsets = [0, 0], sizes = [8, 128], strides = [1, 1]} : vector<8x640xf32> to vector<8x128xf32>
    %cst_107 = arith.constant 0.000000e+00 : f32
    %195 = vector.broadcast %cst_107 : f32 to vector<8x128xf32>
    %196 = arith.subf %195, %194 : vector<8x128xf32>
    %197 = math.exp %196 : vector<8x128xf32>
    %cst_108 = arith.constant 1.000000e+00 : f32
    %198 = vector.broadcast %cst_108 : f32 to vector<8x128xf32>
    %199 = arith.addf %198, %197 : vector<8x128xf32>
    %cst_109 = arith.constant 1.000000e+00 : f32
    %200 = vector.broadcast %cst_109 : f32 to vector<8x128xf32>
    %201 = arith.divf %200, %199 : vector<8x128xf32>
    %202 = vector.extract_strided_slice %193 {offsets = [0, 128], sizes = [8, 128], strides = [1, 1]} : vector<8x640xf32> to vector<8x128xf32>
    %cst_110 = arith.constant 0.000000e+00 : f32
    %203 = vector.broadcast %cst_110 : f32 to vector<8x128xf32>
    %204 = arith.subf %203, %202 : vector<8x128xf32>
    %205 = math.exp %204 : vector<8x128xf32>
    %cst_111 = arith.constant 1.000000e+00 : f32
    %206 = vector.broadcast %cst_111 : f32 to vector<8x128xf32>
    %207 = arith.addf %206, %205 : vector<8x128xf32>
    %cst_112 = arith.constant 1.000000e+00 : f32
    %208 = vector.broadcast %cst_112 : f32 to vector<8x128xf32>
    %209 = arith.divf %208, %207 : vector<8x128xf32>
    %210 = vector.extract_strided_slice %193 {offsets = [0, 256], sizes = [8, 128], strides = [1, 1]} : vector<8x640xf32> to vector<8x128xf32>
    %cst_113 = arith.constant 0.000000e+00 : f32
    %211 = vector.broadcast %cst_113 : f32 to vector<8x128xf32>
    %212 = arith.subf %211, %210 : vector<8x128xf32>
    %213 = math.exp %212 : vector<8x128xf32>
    %cst_114 = arith.constant 1.000000e+00 : f32
    %214 = vector.broadcast %cst_114 : f32 to vector<8x128xf32>
    %215 = arith.addf %214, %213 : vector<8x128xf32>
    %cst_115 = arith.constant 1.000000e+00 : f32
    %216 = vector.broadcast %cst_115 : f32 to vector<8x128xf32>
    %217 = arith.divf %216, %215 : vector<8x128xf32>
    %218 = vector.extract_strided_slice %193 {offsets = [0, 384], sizes = [8, 128], strides = [1, 1]} : vector<8x640xf32> to vector<8x128xf32>
    %219 = math.tanh %218 : vector<8x128xf32>
    %220 = vector.extract_strided_slice %193 {offsets = [0, 512], sizes = [8, 128], strides = [1, 1]} : vector<8x640xf32> to vector<8x128xf32>
    %cst_116 = arith.constant 0.000000e+00 : f32
    %221 = vector.broadcast %cst_116 : f32 to vector<8x128xf32>
    %222 = arith.subf %221, %220 : vector<8x128xf32>
    %223 = math.exp %222 : vector<8x128xf32>
    %cst_117 = arith.constant 1.000000e+00 : f32
    %224 = vector.broadcast %cst_117 : f32 to vector<8x128xf32>
    %225 = arith.addf %224, %223 : vector<8x128xf32>
    %cst_118 = arith.constant 1.000000e+00 : f32
    %226 = vector.broadcast %cst_118 : f32 to vector<8x128xf32>
    %227 = arith.divf %226, %225 : vector<8x128xf32>
    %228 = arith.mulf %201, %72 : vector<8x128xf32>
    %229 = arith.mulf %209, %219 : vector<8x128xf32>
    %230 = arith.addf %228, %229 : vector<8x128xf32>
    %231 = arith.mulf %217, %186 : vector<8x128xf32>
    %232 = arith.addf %230, %231 : vector<8x128xf32>
    %233 = math.tanh %232 : vector<8x128xf32>
    %234 = arith.mulf %227, %233 : vector<8x128xf32>
    %c0_119 = arith.constant 0 : index
    %c0_120 = arith.constant 0 : index
    %235 = vector.load %arg9[%c0_119, %c0_120] : memref<128x128xf32, #tpu.memory_space<vmem>>, vector<128x128xf32>
    %cst_121 = arith.constant dense<0.000000e+00> : vector<8x128xf32>
    %236 = tpu.matmul %234, %235, %cst_121 {dimension_numbers = #tpu.dot_dimension_numbers<[1], [0], [0], [1], [0, 0, 1, 1], [], []>} : vector<8x128xf32>, vector<128x128xf32>, vector<8x128xf32> -> vector<8x128xf32>
    %c0_122 = arith.constant 0 : index
    %c0_123 = arith.constant 0 : index
    %237 = vector.load %arg10[%c0_122, %c0_123] : memref<128x128xf32, #tpu.memory_space<vmem>>, vector<128x128xf32>
    %cst_124 = arith.constant dense<0.000000e+00> : vector<8x128xf32>
    %238 = tpu.matmul %232, %237, %cst_124 {dimension_numbers = #tpu.dot_dimension_numbers<[1], [0], [0], [1], [0, 0, 1, 1], [], []>} : vector<8x128xf32>, vector<128x128xf32>, vector<8x128xf32> -> vector<8x128xf32>
    %239 = arith.addf %236, %238 : vector<8x128xf32>
    %240 = vector.shape_cast %239 : vector<8x128xf32> to vector<1x8x128xf32>
    %c0_125 = arith.constant 0 : index
    %c0_126 = arith.constant 0 : index
    %c0_127 = arith.constant 0 : index
    %241 = vector.load %arg24[%c0_125, %c0_126, %c0_127] : memref<4x8x128xf32, #tpu.memory_space<vmem>>, vector<4x8x128xf32>
    %242 = vector.broadcast %240 : vector<1x8x128xf32> to vector<4x8x128xf32>
    %243 = arith.addf %242, %241 : vector<4x8x128xf32>
    %c0_128 = arith.constant 0 : index
    %c0_129 = arith.constant 0 : index
    %244 = vector.load %arg12[%c0_128, %c0_129] : memref<1x128xf32, #tpu.memory_space<vmem>>, vector<1x128xf32>
    %245 = vector.shape_cast %244 : vector<1x128xf32> to vector<1x1x128xf32>
    %246 = vector.broadcast %245 : vector<1x1x128xf32> to vector<4x8x128xf32>
    %247 = arith.addf %243, %246 : vector<4x8x128xf32>
    %248 = math.tanh %247 : vector<4x8x128xf32>
    %c0_130 = arith.constant 0 : index
    %c0_131 = arith.constant 0 : index
    %249 = vector.load %arg13[%c0_130, %c0_131] : memref<1x128xf32, #tpu.memory_space<vmem>>, vector<1x128xf32>
    %250 = vector.shape_cast %249 : vector<1x128xf32> to vector<1x1x128xf32>
    %251 = vector.broadcast %250 : vector<1x1x128xf32> to vector<4x8x128xf32>
    %252 = arith.mulf %248, %251 : vector<4x8x128xf32>
    %cst_132 = arith.constant dense<0.000000e+00> : vector<4x8xf32>
    %253 = vector.multi_reduction <add>, %252, %cst_132 [2] : vector<4x8x128xf32> to vector<4x8xf32>
    %254 = vector.shape_cast %253 : vector<4x8xf32> to vector<4x8x1xf32>
    %255 = tpu.iota {dimensions = array<i32: 0>} : vector<4x8x1xi32>
    %c4_i32_133 = arith.constant 4 : i32
    %256 = arith.minsi %166, %c4_i32_133 : i32
    %257 = vector.broadcast %256 : i32 to vector<4x8x1xi32>
    %258 = arith.cmpi slt, %255, %257 : vector<4x8x1xi32>
    %cst_134 = arith.constant -1.000000e+30 : f32
    %259 = vector.broadcast %cst_134 : f32 to vector<4x8x1xf32>
    %260 = arith.select %258, %254, %259 : vector<4x8x1xi1>, vector<4x8x1xf32>
    %cst_135 = arith.constant dense<0xFF800000> : vector<8x1xf32>
    %261 = vector.multi_reduction <maximumf>, %260, %cst_135 [0] : vector<4x8x1xf32> to vector<8x1xf32>
    %262 = vector.shape_cast %261 : vector<8x1xf32> to vector<1x8x1xf32>
    %263 = vector.broadcast %262 : vector<1x8x1xf32> to vector<4x8x1xf32>
    %264 = arith.subf %254, %263 : vector<4x8x1xf32>
    %cst_136 = arith.constant -1.000000e+30 : f32
    %265 = vector.broadcast %cst_136 : f32 to vector<4x8x1xf32>
    %266 = arith.select %258, %264, %265 : vector<4x8x1xi1>, vector<4x8x1xf32>
    %267 = math.exp %266 : vector<4x8x1xf32>
    %cst_137 = arith.constant dense<0.000000e+00> : vector<8x1xf32>
    %268 = vector.multi_reduction <add>, %267, %cst_137 [0] : vector<4x8x1xf32> to vector<8x1xf32>
    %269 = vector.shape_cast %268 : vector<8x1xf32> to vector<1x8x1xf32>
    %cst_138 = arith.constant 1.000000e-30 : f32
    %270 = vector.broadcast %cst_138 : f32 to vector<1x8x1xf32>
    %271 = arith.maximumf %269, %270 : vector<1x8x1xf32>
    %272 = vector.broadcast %271 : vector<1x8x1xf32> to vector<4x8x1xf32>
    %273 = arith.divf %267, %272 : vector<4x8x1xf32>
    %c0_139 = arith.constant 0 : index
    %c0_140 = arith.constant 0 : index
    %c0_141 = arith.constant 0 : index
    %274 = vector.load %arg23[%c0_139, %c0_140, %c0_141] : memref<4x8x128xf32, #tpu.memory_space<vmem>>, vector<4x8x128xf32>
    %275 = vector.broadcast %273 : vector<4x8x1xf32> to vector<4x8x128xf32>
    %276 = arith.mulf %275, %274 : vector<4x8x128xf32>
    %cst_142 = arith.constant dense<0.000000e+00> : vector<8x128xf32>
    %277 = vector.multi_reduction <add>, %276, %cst_142 [0] : vector<4x8x128xf32> to vector<8x128xf32>
    %c0_143 = arith.constant 0 : index
    %c0_144 = arith.constant 0 : index
    %278 = vector.load %arg14[%c0_143, %c0_144] : memref<128x128xf32, #tpu.memory_space<vmem>>, vector<128x128xf32>
    %cst_145 = arith.constant dense<0.000000e+00> : vector<8x128xf32>
    %279 = tpu.matmul %234, %278, %cst_145 {dimension_numbers = #tpu.dot_dimension_numbers<[1], [0], [0], [1], [0, 0, 1, 1], [], []>} : vector<8x128xf32>, vector<128x128xf32>, vector<8x128xf32> -> vector<8x128xf32>
    %c0_146 = arith.constant 0 : index
    %c0_147 = arith.constant 0 : index
    %280 = vector.load %arg15[%c0_146, %c0_147] : memref<128x128xf32, #tpu.memory_space<vmem>>, vector<128x128xf32>
    %cst_148 = arith.constant dense<0.000000e+00> : vector<8x128xf32>
    %281 = tpu.matmul %277, %280, %cst_148 {dimension_numbers = #tpu.dot_dimension_numbers<[1], [0], [0], [1], [0, 0, 1, 1], [], []>} : vector<8x128xf32>, vector<128x128xf32>, vector<8x128xf32> -> vector<8x128xf32>
    %282 = arith.addf %279, %281 : vector<8x128xf32>
    %c0_149 = arith.constant 0 : index
    %c0_150 = arith.constant 0 : index
    %283 = vector.load %arg16[%c0_149, %c0_150] : memref<16x128xf32, #tpu.memory_space<vmem>>, vector<16x128xf32>
    %cst_151 = arith.constant dense<0.000000e+00> : vector<8x128xf32>
    %284 = tpu.matmul %170, %283, %cst_151 {dimension_numbers = #tpu.dot_dimension_numbers<[1], [0], [0], [1], [0, 0, 1, 1], [], []>} : vector<8x16xf32>, vector<16x128xf32>, vector<8x128xf32> -> vector<8x128xf32>
    %285 = arith.addf %282, %284 : vector<8x128xf32>
    %c0_152 = arith.constant 0 : index
    %c0_153 = arith.constant 0 : index
    %286 = vector.load %arg17[%c0_152, %c0_153] : memref<1x128xf32, #tpu.memory_space<vmem>>, vector<1x128xf32>
    %287 = vector.broadcast %286 : vector<1x128xf32> to vector<8x128xf32>
    %288 = arith.addf %285, %287 : vector<8x128xf32>
    %289 = math.tanh %288 : vector<8x128xf32>
    %c4_i32_154 = arith.constant 4 : i32
    %c0_i32_155 = arith.constant 0 : i32
    %290 = arith.cmpi eq, %c4_i32_154, %c0_i32_155 : i32
    %c1_i32_156 = arith.constant 1 : i32
    %291 = arith.select %290, %c1_i32_156, %c4_i32_154 : i32
    %292 = arith.remsi %166, %291 : i32
    %c0_i32_157 = arith.constant 0 : i32
    %293 = arith.cmpi ne, %292, %c0_i32_157 : i32
    %c0_i32_158 = arith.constant 0 : i32
    %294 = arith.cmpi slt, %292, %c0_i32_158 : i32
    %c0_i32_159 = arith.constant 0 : i32
    %295 = arith.cmpi slt, %291, %c0_i32_159 : i32
    %296 = arith.xori %294, %295 : i1
    %297 = arith.andi %296, %293 : i1
    %298 = arith.addi %292, %291 : i32
    %299 = arith.select %297, %298, %292 : i32
    %300 = arith.index_cast %299 : i32 to index
    %c0_160 = arith.constant 0 : index
    %c0_161 = arith.constant 0 : index
    %301 = vector.load %arg23[%300, %c0_160, %c0_161] : memref<4x8x128xf32, #tpu.memory_space<vmem>>, vector<1x8x128xf32>
    %302 = vector.shape_cast %301 : vector<1x8x128xf32> to vector<8x128xf32>
    %303 = vector.shape_cast %289 : vector<8x128xf32> to vector<1x8x128xf32>
    tpu.vector_store %arg23[%300, %c0_160, %c0_161], %303 {strides = array<i32>} : memref<4x8x128xf32, #tpu.memory_space<vmem>>, vector<1x8x128xf32>,
    %c0_162 = arith.constant 0 : index
    %c0_163 = arith.constant 0 : index
    %304 = vector.load %arg11[%c0_162, %c0_163] : memref<128x128xf32, #tpu.memory_space<vmem>>, vector<128x128xf32>
    %cst_164 = arith.constant dense<0.000000e+00> : vector<8x128xf32>
    %305 = tpu.matmul %289, %304, %cst_164 {dimension_numbers = #tpu.dot_dimension_numbers<[1], [0], [0], [1], [0, 0, 1, 1], [], []>} : vector<8x128xf32>, vector<128x128xf32>, vector<8x128xf32> -> vector<8x128xf32>
    %306 = arith.index_cast %299 : i32 to index
    %c0_165 = arith.constant 0 : index
    %c0_166 = arith.constant 0 : index
    %307 = vector.load %arg24[%306, %c0_165, %c0_166] : memref<4x8x128xf32, #tpu.memory_space<vmem>>, vector<1x8x128xf32>
    %308 = vector.shape_cast %307 : vector<1x8x128xf32> to vector<8x128xf32>
    %309 = vector.shape_cast %305 : vector<8x128xf32> to vector<1x8x128xf32>
    tpu.vector_store %arg24[%306, %c0_165, %c0_166], %309 {strides = array<i32>} : memref<4x8x128xf32, #tpu.memory_space<vmem>>, vector<1x8x128xf32>,
    %c0_167 = arith.constant 0 : index
    %c0_168 = arith.constant 0 : index
    %310 = vector.load %arg18[%c0_167, %c0_168] : memref<1x128xf32, #tpu.memory_space<vmem>>, vector<1x128xf32>
    %311 = vector.broadcast %310 : vector<1x128xf32> to vector<8x128xf32>
    %312 = arith.mulf %289, %311 : vector<8x128xf32>
    %cst_169 = arith.constant dense<0.000000e+00> : vector<8xf32>
    %313 = vector.multi_reduction <add>, %312, %cst_169 [1] : vector<8x128xf32> to vector<8xf32>
    %314 = vector.shape_cast %313 : vector<8xf32> to vector<8x1xf32>
    %c0_170 = arith.constant 0 : index
    %c0_171 = arith.constant 0 : index
    %315 = vector.load %arg19[%c0_170, %c0_171] : memref<1x1xf32, #tpu.memory_space<vmem>>, vector<1x1xf32>
    %316 = vector.broadcast %315 : vector<1x1xf32> to vector<8x1xf32>
    %317 = arith.addf %314, %316 : vector<8x1xf32>
    %cst_172 = arith.constant 0.000000e+00 : f32
    %318 = vector.broadcast %cst_172 : f32 to vector<8x1xf32>
    %319 = arith.subf %318, %317 : vector<8x1xf32>
    %320 = math.exp %319 : vector<8x1xf32>
    %cst_173 = arith.constant 1.000000e+00 : f32
    %321 = vector.broadcast %cst_173 : f32 to vector<8x1xf32>
    %322 = arith.addf %321, %320 : vector<8x1xf32>
    %cst_174 = arith.constant 1.000000e+00 : f32
    %323 = vector.broadcast %cst_174 : f32 to vector<8x1xf32>
    %324 = arith.divf %323, %322 : vector<8x1xf32>
    %c5_i32_175 = arith.constant 5 : i32
    %325 = arith.muli %arg1, %c5_i32_175 : i32
    %c2_i32 = arith.constant 2 : i32
    %326 = arith.addi %325, %c2_i32 : i32
    %c2 = arith.constant 2 : index
    %c0_176 = arith.constant 0 : index
    %c0_177 = arith.constant 0 : index
    %327 = vector.load %arg2[%c2, %c0_176, %c0_177] : memref<5x8x33xf32, #tpu.memory_space<vmem>>, vector<1x8x33xf32>
    %328 = vector.shape_cast %327 : vector<1x8x33xf32> to vector<8x33xf32>
    %329 = vector.extract_strided_slice %328 {offsets = [0, 0], sizes = [8, 16], strides = [1, 1]} : vector<8x33xf32> to vector<8x16xf32>
    %330 = vector.extract_strided_slice %328 {offsets = [0, 16], sizes = [8, 16], strides = [1, 1]} : vector<8x33xf32> to vector<8x16xf32>
    %331 = vector.extract_strided_slice %328 {offsets = [0, 32], sizes = [8, 1], strides = [1, 1]} : vector<8x33xf32> to vector<8x1xf32>
    %c0_178 = arith.constant 0 : index
    %c0_179 = arith.constant 0 : index
    %332 = vector.load %arg3[%c0_178, %c0_179] : memref<128x768xf32, #tpu.memory_space<vmem>>, vector<128x768xf32>
    %cst_180 = arith.constant dense<0.000000e+00> : vector<8x768xf32>
    %333 = tpu.matmul %289, %332, %cst_180 {dimension_numbers = #tpu.dot_dimension_numbers<[1], [0], [0], [1], [0, 0, 1, 1], [], []>} : vector<8x128xf32>, vector<128x768xf32>, vector<8x768xf32> -> vector<8x768xf32>
    %c0_181 = arith.constant 0 : index
    %c0_182 = arith.constant 0 : index
    %334 = vector.load %arg4[%c0_181, %c0_182] : memref<16x768xf32, #tpu.memory_space<vmem>>, vector<16x768xf32>
    %cst_183 = arith.constant dense<0.000000e+00> : vector<8x768xf32>
    %335 = tpu.matmul %329, %334, %cst_183 {dimension_numbers = #tpu.dot_dimension_numbers<[1], [0], [0], [1], [0, 0, 1, 1], [], []>} : vector<8x16xf32>, vector<16x768xf32>, vector<8x768xf32> -> vector<8x768xf32>
    %336 = arith.addf %333, %335 : vector<8x768xf32>
    %337 = vector.extract_strided_slice %336 {offsets = [0, 0], sizes = [8, 128], strides = [1, 1]} : vector<8x768xf32> to vector<8x128xf32>
    %c0_184 = arith.constant 0 : index
    %c0_185 = arith.constant 0 : index
    %338 = vector.load %arg5[%c0_184, %c0_185] : memref<1x128xf32, #tpu.memory_space<vmem>>, vector<1x128xf32>
    %339 = vector.broadcast %331 : vector<8x1xf32> to vector<8x128xf32>
    %340 = vector.broadcast %338 : vector<1x128xf32> to vector<8x128xf32>
    %341 = arith.mulf %339, %340 : vector<8x128xf32>
    %342 = arith.addf %337, %341 : vector<8x128xf32>
    %c0_186 = arith.constant 0 : index
    %c0_187 = arith.constant 0 : index
    %343 = vector.load %arg6[%c0_186, %c0_187] : memref<1x128xf32, #tpu.memory_space<vmem>>, vector<1x128xf32>
    %344 = vector.broadcast %343 : vector<1x128xf32> to vector<8x128xf32>
    %345 = arith.addf %342, %344 : vector<8x128xf32>
    %346 = math.tanh %345 : vector<8x128xf32>
    %347 = vector.extract_strided_slice %336 {offsets = [0, 128], sizes = [8, 640], strides = [1, 1]} : vector<8x768xf32> to vector<8x640xf32>
    %c0_188 = arith.constant 0 : index
    %c0_189 = arith.constant 0 : index
    %348 = vector.load %arg7[%c0_188, %c0_189] : memref<128x640xf32, #tpu.memory_space<vmem>>, vector<128x640xf32>
    %cst_190 = arith.constant dense<0.000000e+00> : vector<8x640xf32>
    %349 = tpu.matmul %346, %348, %cst_190 {dimension_numbers = #tpu.dot_dimension_numbers<[1], [0], [0], [1], [0, 0, 1, 1], [], []>} : vector<8x128xf32>, vector<128x640xf32>, vector<8x640xf32> -> vector<8x640xf32>
    %350 = arith.addf %347, %349 : vector<8x640xf32>
    %c0_191 = arith.constant 0 : index
    %c0_192 = arith.constant 0 : index
    %351 = vector.load %arg8[%c0_191, %c0_192] : memref<1x640xf32, #tpu.memory_space<vmem>>, vector<1x640xf32>
    %352 = vector.broadcast %351 : vector<1x640xf32> to vector<8x640xf32>
    %353 = arith.addf %350, %352 : vector<8x640xf32>
    %354 = vector.extract_strided_slice %353 {offsets = [0, 0], sizes = [8, 128], strides = [1, 1]} : vector<8x640xf32> to vector<8x128xf32>
    %cst_193 = arith.constant 0.000000e+00 : f32
    %355 = vector.broadcast %cst_193 : f32 to vector<8x128xf32>
    %356 = arith.subf %355, %354 : vector<8x128xf32>
    %357 = math.exp %356 : vector<8x128xf32>
    %cst_194 = arith.constant 1.000000e+00 : f32
    %358 = vector.broadcast %cst_194 : f32 to vector<8x128xf32>
    %359 = arith.addf %358, %357 : vector<8x128xf32>
    %cst_195 = arith.constant 1.000000e+00 : f32
    %360 = vector.broadcast %cst_195 : f32 to vector<8x128xf32>
    %361 = arith.divf %360, %359 : vector<8x128xf32>
    %362 = vector.extract_strided_slice %353 {offsets = [0, 128], sizes = [8, 128], strides = [1, 1]} : vector<8x640xf32> to vector<8x128xf32>
    %cst_196 = arith.constant 0.000000e+00 : f32
    %363 = vector.broadcast %cst_196 : f32 to vector<8x128xf32>
    %364 = arith.subf %363, %362 : vector<8x128xf32>
    %365 = math.exp %364 : vector<8x128xf32>
    %cst_197 = arith.constant 1.000000e+00 : f32
    %366 = vector.broadcast %cst_197 : f32 to vector<8x128xf32>
    %367 = arith.addf %366, %365 : vector<8x128xf32>
    %cst_198 = arith.constant 1.000000e+00 : f32
    %368 = vector.broadcast %cst_198 : f32 to vector<8x128xf32>
    %369 = arith.divf %368, %367 : vector<8x128xf32>
    %370 = vector.extract_strided_slice %353 {offsets = [0, 256], sizes = [8, 128], strides = [1, 1]} : vector<8x640xf32> to vector<8x128xf32>
    %cst_199 = arith.constant 0.000000e+00 : f32
    %371 = vector.broadcast %cst_199 : f32 to vector<8x128xf32>
    %372 = arith.subf %371, %370 : vector<8x128xf32>
    %373 = math.exp %372 : vector<8x128xf32>
    %cst_200 = arith.constant 1.000000e+00 : f32
    %374 = vector.broadcast %cst_200 : f32 to vector<8x128xf32>
    %375 = arith.addf %374, %373 : vector<8x128xf32>
    %cst_201 = arith.constant 1.000000e+00 : f32
    %376 = vector.broadcast %cst_201 : f32 to vector<8x128xf32>
    %377 = arith.divf %376, %375 : vector<8x128xf32>
    %378 = vector.extract_strided_slice %353 {offsets = [0, 384], sizes = [8, 128], strides = [1, 1]} : vector<8x640xf32> to vector<8x128xf32>
    %379 = math.tanh %378 : vector<8x128xf32>
    %380 = vector.extract_strided_slice %353 {offsets = [0, 512], sizes = [8, 128], strides = [1, 1]} : vector<8x640xf32> to vector<8x128xf32>
    %cst_202 = arith.constant 0.000000e+00 : f32
    %381 = vector.broadcast %cst_202 : f32 to vector<8x128xf32>
    %382 = arith.subf %381, %380 : vector<8x128xf32>
    %383 = math.exp %382 : vector<8x128xf32>
    %cst_203 = arith.constant 1.000000e+00 : f32
    %384 = vector.broadcast %cst_203 : f32 to vector<8x128xf32>
    %385 = arith.addf %384, %383 : vector<8x128xf32>
    %cst_204 = arith.constant 1.000000e+00 : f32
    %386 = vector.broadcast %cst_204 : f32 to vector<8x128xf32>
    %387 = arith.divf %386, %385 : vector<8x128xf32>
    %388 = arith.mulf %361, %232 : vector<8x128xf32>
    %389 = arith.mulf %369, %379 : vector<8x128xf32>
    %390 = arith.addf %388, %389 : vector<8x128xf32>
    %391 = arith.mulf %377, %346 : vector<8x128xf32>
    %392 = arith.addf %390, %391 : vector<8x128xf32>
    %393 = math.tanh %392 : vector<8x128xf32>
    %394 = arith.mulf %387, %393 : vector<8x128xf32>
    %c0_205 = arith.constant 0 : index
    %c0_206 = arith.constant 0 : index
    %395 = vector.load %arg9[%c0_205, %c0_206] : memref<128x128xf32, #tpu.memory_space<vmem>>, vector<128x128xf32>
    %cst_207 = arith.constant dense<0.000000e+00> : vector<8x128xf32>
    %396 = tpu.matmul %394, %395, %cst_207 {dimension_numbers = #tpu.dot_dimension_numbers<[1], [0], [0], [1], [0, 0, 1, 1], [], []>} : vector<8x128xf32>, vector<128x128xf32>, vector<8x128xf32> -> vector<8x128xf32>
    %c0_208 = arith.constant 0 : index
    %c0_209 = arith.constant 0 : index
    %397 = vector.load %arg10[%c0_208, %c0_209] : memref<128x128xf32, #tpu.memory_space<vmem>>, vector<128x128xf32>
    %cst_210 = arith.constant dense<0.000000e+00> : vector<8x128xf32>
    %398 = tpu.matmul %392, %397, %cst_210 {dimension_numbers = #tpu.dot_dimension_numbers<[1], [0], [0], [1], [0, 0, 1, 1], [], []>} : vector<8x128xf32>, vector<128x128xf32>, vector<8x128xf32> -> vector<8x128xf32>
    %399 = arith.addf %396, %398 : vector<8x128xf32>
    %400 = vector.shape_cast %399 : vector<8x128xf32> to vector<1x8x128xf32>
    %c0_211 = arith.constant 0 : index
    %c0_212 = arith.constant 0 : index
    %c0_213 = arith.constant 0 : index
    %401 = vector.load %arg24[%c0_211, %c0_212, %c0_213] : memref<4x8x128xf32, #tpu.memory_space<vmem>>, vector<4x8x128xf32>
    %402 = vector.broadcast %400 : vector<1x8x128xf32> to vector<4x8x128xf32>
    %403 = arith.addf %402, %401 : vector<4x8x128xf32>
    %c0_214 = arith.constant 0 : index
    %c0_215 = arith.constant 0 : index
    %404 = vector.load %arg12[%c0_214, %c0_215] : memref<1x128xf32, #tpu.memory_space<vmem>>, vector<1x128xf32>
    %405 = vector.shape_cast %404 : vector<1x128xf32> to vector<1x1x128xf32>
    %406 = vector.broadcast %405 : vector<1x1x128xf32> to vector<4x8x128xf32>
    %407 = arith.addf %403, %406 : vector<4x8x128xf32>
    %408 = math.tanh %407 : vector<4x8x128xf32>
    %c0_216 = arith.constant 0 : index
    %c0_217 = arith.constant 0 : index
    %409 = vector.load %arg13[%c0_216, %c0_217] : memref<1x128xf32, #tpu.memory_space<vmem>>, vector<1x128xf32>
    %410 = vector.shape_cast %409 : vector<1x128xf32> to vector<1x1x128xf32>
    %411 = vector.broadcast %410 : vector<1x1x128xf32> to vector<4x8x128xf32>
    %412 = arith.mulf %408, %411 : vector<4x8x128xf32>
    %cst_218 = arith.constant dense<0.000000e+00> : vector<4x8xf32>
    %413 = vector.multi_reduction <add>, %412, %cst_218 [2] : vector<4x8x128xf32> to vector<4x8xf32>
    %414 = vector.shape_cast %413 : vector<4x8xf32> to vector<4x8x1xf32>
    %415 = tpu.iota {dimensions = array<i32: 0>} : vector<4x8x1xi32>
    %c4_i32_219 = arith.constant 4 : i32
    %416 = arith.minsi %326, %c4_i32_219 : i32
    %417 = vector.broadcast %416 : i32 to vector<4x8x1xi32>
    %418 = arith.cmpi slt, %415, %417 : vector<4x8x1xi32>
    %cst_220 = arith.constant -1.000000e+30 : f32
    %419 = vector.broadcast %cst_220 : f32 to vector<4x8x1xf32>
    %420 = arith.select %418, %414, %419 : vector<4x8x1xi1>, vector<4x8x1xf32>
    %cst_221 = arith.constant dense<0xFF800000> : vector<8x1xf32>
    %421 = vector.multi_reduction <maximumf>, %420, %cst_221 [0] : vector<4x8x1xf32> to vector<8x1xf32>
    %422 = vector.shape_cast %421 : vector<8x1xf32> to vector<1x8x1xf32>
    %423 = vector.broadcast %422 : vector<1x8x1xf32> to vector<4x8x1xf32>
    %424 = arith.subf %414, %423 : vector<4x8x1xf32>
    %cst_222 = arith.constant -1.000000e+30 : f32
    %425 = vector.broadcast %cst_222 : f32 to vector<4x8x1xf32>
    %426 = arith.select %418, %424, %425 : vector<4x8x1xi1>, vector<4x8x1xf32>
    %427 = math.exp %426 : vector<4x8x1xf32>
    %cst_223 = arith.constant dense<0.000000e+00> : vector<8x1xf32>
    %428 = vector.multi_reduction <add>, %427, %cst_223 [0] : vector<4x8x1xf32> to vector<8x1xf32>
    %429 = vector.shape_cast %428 : vector<8x1xf32> to vector<1x8x1xf32>
    %cst_224 = arith.constant 1.000000e-30 : f32
    %430 = vector.broadcast %cst_224 : f32 to vector<1x8x1xf32>
    %431 = arith.maximumf %429, %430 : vector<1x8x1xf32>
    %432 = vector.broadcast %431 : vector<1x8x1xf32> to vector<4x8x1xf32>
    %433 = arith.divf %427, %432 : vector<4x8x1xf32>
    %c0_225 = arith.constant 0 : index
    %c0_226 = arith.constant 0 : index
    %c0_227 = arith.constant 0 : index
    %434 = vector.load %arg23[%c0_225, %c0_226, %c0_227] : memref<4x8x128xf32, #tpu.memory_space<vmem>>, vector<4x8x128xf32>
    %435 = vector.broadcast %433 : vector<4x8x1xf32> to vector<4x8x128xf32>
    %436 = arith.mulf %435, %434 : vector<4x8x128xf32>
    %cst_228 = arith.constant dense<0.000000e+00> : vector<8x128xf32>
    %437 = vector.multi_reduction <add>, %436, %cst_228 [0] : vector<4x8x128xf32> to vector<8x128xf32>
    %c0_229 = arith.constant 0 : index
    %c0_230 = arith.constant 0 : index
    %438 = vector.load %arg14[%c0_229, %c0_230] : memref<128x128xf32, #tpu.memory_space<vmem>>, vector<128x128xf32>
    %cst_231 = arith.constant dense<0.000000e+00> : vector<8x128xf32>
    %439 = tpu.matmul %394, %438, %cst_231 {dimension_numbers = #tpu.dot_dimension_numbers<[1], [0], [0], [1], [0, 0, 1, 1], [], []>} : vector<8x128xf32>, vector<128x128xf32>, vector<8x128xf32> -> vector<8x128xf32>
    %c0_232 = arith.constant 0 : index
    %c0_233 = arith.constant 0 : index
    %440 = vector.load %arg15[%c0_232, %c0_233] : memref<128x128xf32, #tpu.memory_space<vmem>>, vector<128x128xf32>
    %cst_234 = arith.constant dense<0.000000e+00> : vector<8x128xf32>
    %441 = tpu.matmul %437, %440, %cst_234 {dimension_numbers = #tpu.dot_dimension_numbers<[1], [0], [0], [1], [0, 0, 1, 1], [], []>} : vector<8x128xf32>, vector<128x128xf32>, vector<8x128xf32> -> vector<8x128xf32>
    %442 = arith.addf %439, %441 : vector<8x128xf32>
    %c0_235 = arith.constant 0 : index
    %c0_236 = arith.constant 0 : index
    %443 = vector.load %arg16[%c0_235, %c0_236] : memref<16x128xf32, #tpu.memory_space<vmem>>, vector<16x128xf32>
    %cst_237 = arith.constant dense<0.000000e+00> : vector<8x128xf32>
    %444 = tpu.matmul %330, %443, %cst_237 {dimension_numbers = #tpu.dot_dimension_numbers<[1], [0], [0], [1], [0, 0, 1, 1], [], []>} : vector<8x16xf32>, vector<16x128xf32>, vector<8x128xf32> -> vector<8x128xf32>
    %445 = arith.addf %442, %444 : vector<8x128xf32>
    %c0_238 = arith.constant 0 : index
    %c0_239 = arith.constant 0 : index
    %446 = vector.load %arg17[%c0_238, %c0_239] : memref<1x128xf32, #tpu.memory_space<vmem>>, vector<1x128xf32>
    %447 = vector.broadcast %446 : vector<1x128xf32> to vector<8x128xf32>
    %448 = arith.addf %445, %447 : vector<8x128xf32>
    %449 = math.tanh %448 : vector<8x128xf32>
    %c4_i32_240 = arith.constant 4 : i32
    %c0_i32_241 = arith.constant 0 : i32
    %450 = arith.cmpi eq, %c4_i32_240, %c0_i32_241 : i32
    %c1_i32_242 = arith.constant 1 : i32
    %451 = arith.select %450, %c1_i32_242, %c4_i32_240 : i32
    %452 = arith.remsi %326, %451 : i32
    %c0_i32_243 = arith.constant 0 : i32
    %453 = arith.cmpi ne, %452, %c0_i32_243 : i32
    %c0_i32_244 = arith.constant 0 : i32
    %454 = arith.cmpi slt, %452, %c0_i32_244 : i32
    %c0_i32_245 = arith.constant 0 : i32
    %455 = arith.cmpi slt, %451, %c0_i32_245 : i32
    %456 = arith.xori %454, %455 : i1
    %457 = arith.andi %456, %453 : i1
    %458 = arith.addi %452, %451 : i32
    %459 = arith.select %457, %458, %452 : i32
    %460 = arith.index_cast %459 : i32 to index
    %c0_246 = arith.constant 0 : index
    %c0_247 = arith.constant 0 : index
    %461 = vector.load %arg23[%460, %c0_246, %c0_247] : memref<4x8x128xf32, #tpu.memory_space<vmem>>, vector<1x8x128xf32>
    %462 = vector.shape_cast %461 : vector<1x8x128xf32> to vector<8x128xf32>
    %463 = vector.shape_cast %449 : vector<8x128xf32> to vector<1x8x128xf32>
    tpu.vector_store %arg23[%460, %c0_246, %c0_247], %463 {strides = array<i32>} : memref<4x8x128xf32, #tpu.memory_space<vmem>>, vector<1x8x128xf32>,
    %c0_248 = arith.constant 0 : index
    %c0_249 = arith.constant 0 : index
    %464 = vector.load %arg11[%c0_248, %c0_249] : memref<128x128xf32, #tpu.memory_space<vmem>>, vector<128x128xf32>
    %cst_250 = arith.constant dense<0.000000e+00> : vector<8x128xf32>
    %465 = tpu.matmul %449, %464, %cst_250 {dimension_numbers = #tpu.dot_dimension_numbers<[1], [0], [0], [1], [0, 0, 1, 1], [], []>} : vector<8x128xf32>, vector<128x128xf32>, vector<8x128xf32> -> vector<8x128xf32>
    %466 = arith.index_cast %459 : i32 to index
    %c0_251 = arith.constant 0 : index
    %c0_252 = arith.constant 0 : index
    %467 = vector.load %arg24[%466, %c0_251, %c0_252] : memref<4x8x128xf32, #tpu.memory_space<vmem>>, vector<1x8x128xf32>
    %468 = vector.shape_cast %467 : vector<1x8x128xf32> to vector<8x128xf32>
    %469 = vector.shape_cast %465 : vector<8x128xf32> to vector<1x8x128xf32>
    tpu.vector_store %arg24[%466, %c0_251, %c0_252], %469 {strides = array<i32>} : memref<4x8x128xf32, #tpu.memory_space<vmem>>, vector<1x8x128xf32>,
    %c0_253 = arith.constant 0 : index
    %c0_254 = arith.constant 0 : index
    %470 = vector.load %arg18[%c0_253, %c0_254] : memref<1x128xf32, #tpu.memory_space<vmem>>, vector<1x128xf32>
    %471 = vector.broadcast %470 : vector<1x128xf32> to vector<8x128xf32>
    %472 = arith.mulf %449, %471 : vector<8x128xf32>
    %cst_255 = arith.constant dense<0.000000e+00> : vector<8xf32>
    %473 = vector.multi_reduction <add>, %472, %cst_255 [1] : vector<8x128xf32> to vector<8xf32>
    %474 = vector.shape_cast %473 : vector<8xf32> to vector<8x1xf32>
    %c0_256 = arith.constant 0 : index
    %c0_257 = arith.constant 0 : index
    %475 = vector.load %arg19[%c0_256, %c0_257] : memref<1x1xf32, #tpu.memory_space<vmem>>, vector<1x1xf32>
    %476 = vector.broadcast %475 : vector<1x1xf32> to vector<8x1xf32>
    %477 = arith.addf %474, %476 : vector<8x1xf32>
    %cst_258 = arith.constant 0.000000e+00 : f32
    %478 = vector.broadcast %cst_258 : f32 to vector<8x1xf32>
    %479 = arith.subf %478, %477 : vector<8x1xf32>
    %480 = math.exp %479 : vector<8x1xf32>
    %cst_259 = arith.constant 1.000000e+00 : f32
    %481 = vector.broadcast %cst_259 : f32 to vector<8x1xf32>
    %482 = arith.addf %481, %480 : vector<8x1xf32>
    %cst_260 = arith.constant 1.000000e+00 : f32
    %483 = vector.broadcast %cst_260 : f32 to vector<8x1xf32>
    %484 = arith.divf %483, %482 : vector<8x1xf32>
    %c5_i32_261 = arith.constant 5 : i32
    %485 = arith.muli %arg1, %c5_i32_261 : i32
    %c3_i32 = arith.constant 3 : i32
    %486 = arith.addi %485, %c3_i32 : i32
    %c3 = arith.constant 3 : index
    %c0_262 = arith.constant 0 : index
    %c0_263 = arith.constant 0 : index
    %487 = vector.load %arg2[%c3, %c0_262, %c0_263] : memref<5x8x33xf32, #tpu.memory_space<vmem>>, vector<1x8x33xf32>
    %488 = vector.shape_cast %487 : vector<1x8x33xf32> to vector<8x33xf32>
    %489 = vector.extract_strided_slice %488 {offsets = [0, 0], sizes = [8, 16], strides = [1, 1]} : vector<8x33xf32> to vector<8x16xf32>
    %490 = vector.extract_strided_slice %488 {offsets = [0, 16], sizes = [8, 16], strides = [1, 1]} : vector<8x33xf32> to vector<8x16xf32>
    %491 = vector.extract_strided_slice %488 {offsets = [0, 32], sizes = [8, 1], strides = [1, 1]} : vector<8x33xf32> to vector<8x1xf32>
    %c0_264 = arith.constant 0 : index
    %c0_265 = arith.constant 0 : index
    %492 = vector.load %arg3[%c0_264, %c0_265] : memref<128x768xf32, #tpu.memory_space<vmem>>, vector<128x768xf32>
    %cst_266 = arith.constant dense<0.000000e+00> : vector<8x768xf32>
    %493 = tpu.matmul %449, %492, %cst_266 {dimension_numbers = #tpu.dot_dimension_numbers<[1], [0], [0], [1], [0, 0, 1, 1], [], []>} : vector<8x128xf32>, vector<128x768xf32>, vector<8x768xf32> -> vector<8x768xf32>
    %c0_267 = arith.constant 0 : index
    %c0_268 = arith.constant 0 : index
    %494 = vector.load %arg4[%c0_267, %c0_268] : memref<16x768xf32, #tpu.memory_space<vmem>>, vector<16x768xf32>
    %cst_269 = arith.constant dense<0.000000e+00> : vector<8x768xf32>
    %495 = tpu.matmul %489, %494, %cst_269 {dimension_numbers = #tpu.dot_dimension_numbers<[1], [0], [0], [1], [0, 0, 1, 1], [], []>} : vector<8x16xf32>, vector<16x768xf32>, vector<8x768xf32> -> vector<8x768xf32>
    %496 = arith.addf %493, %495 : vector<8x768xf32>
    %497 = vector.extract_strided_slice %496 {offsets = [0, 0], sizes = [8, 128], strides = [1, 1]} : vector<8x768xf32> to vector<8x128xf32>
    %c0_270 = arith.constant 0 : index
    %c0_271 = arith.constant 0 : index
    %498 = vector.load %arg5[%c0_270, %c0_271] : memref<1x128xf32, #tpu.memory_space<vmem>>, vector<1x128xf32>
    %499 = vector.broadcast %491 : vector<8x1xf32> to vector<8x128xf32>
    %500 = vector.broadcast %498 : vector<1x128xf32> to vector<8x128xf32>
    %501 = arith.mulf %499, %500 : vector<8x128xf32>
    %502 = arith.addf %497, %501 : vector<8x128xf32>
    %c0_272 = arith.constant 0 : index
    %c0_273 = arith.constant 0 : index
    %503 = vector.load %arg6[%c0_272, %c0_273] : memref<1x128xf32, #tpu.memory_space<vmem>>, vector<1x128xf32>
    %504 = vector.broadcast %503 : vector<1x128xf32> to vector<8x128xf32>
    %505 = arith.addf %502, %504 : vector<8x128xf32>
    %506 = math.tanh %505 : vector<8x128xf32>
    %507 = vector.extract_strided_slice %496 {offsets = [0, 128], sizes = [8, 640], strides = [1, 1]} : vector<8x768xf32> to vector<8x640xf32>
    %c0_274 = arith.constant 0 : index
    %c0_275 = arith.constant 0 : index
    %508 = vector.load %arg7[%c0_274, %c0_275] : memref<128x640xf32, #tpu.memory_space<vmem>>, vector<128x640xf32>
    %cst_276 = arith.constant dense<0.000000e+00> : vector<8x640xf32>
    %509 = tpu.matmul %506, %508, %cst_276 {dimension_numbers = #tpu.dot_dimension_numbers<[1], [0], [0], [1], [0, 0, 1, 1], [], []>} : vector<8x128xf32>, vector<128x640xf32>, vector<8x640xf32> -> vector<8x640xf32>
    %510 = arith.addf %507, %509 : vector<8x640xf32>
    %c0_277 = arith.constant 0 : index
    %c0_278 = arith.constant 0 : index
    %511 = vector.load %arg8[%c0_277, %c0_278] : memref<1x640xf32, #tpu.memory_space<vmem>>, vector<1x640xf32>
    %512 = vector.broadcast %511 : vector<1x640xf32> to vector<8x640xf32>
    %513 = arith.addf %510, %512 : vector<8x640xf32>
    %514 = vector.extract_strided_slice %513 {offsets = [0, 0], sizes = [8, 128], strides = [1, 1]} : vector<8x640xf32> to vector<8x128xf32>
    %cst_279 = arith.constant 0.000000e+00 : f32
    %515 = vector.broadcast %cst_279 : f32 to vector<8x128xf32>
    %516 = arith.subf %515, %514 : vector<8x128xf32>
    %517 = math.exp %516 : vector<8x128xf32>
    %cst_280 = arith.constant 1.000000e+00 : f32
    %518 = vector.broadcast %cst_280 : f32 to vector<8x128xf32>
    %519 = arith.addf %518, %517 : vector<8x128xf32>
    %cst_281 = arith.constant 1.000000e+00 : f32
    %520 = vector.broadcast %cst_281 : f32 to vector<8x128xf32>
    %521 = arith.divf %520, %519 : vector<8x128xf32>
    %522 = vector.extract_strided_slice %513 {offsets = [0, 128], sizes = [8, 128], strides = [1, 1]} : vector<8x640xf32> to vector<8x128xf32>
    %cst_282 = arith.constant 0.000000e+00 : f32
    %523 = vector.broadcast %cst_282 : f32 to vector<8x128xf32>
    %524 = arith.subf %523, %522 : vector<8x128xf32>
    %525 = math.exp %524 : vector<8x128xf32>
    %cst_283 = arith.constant 1.000000e+00 : f32
    %526 = vector.broadcast %cst_283 : f32 to vector<8x128xf32>
    %527 = arith.addf %526, %525 : vector<8x128xf32>
    %cst_284 = arith.constant 1.000000e+00 : f32
    %528 = vector.broadcast %cst_284 : f32 to vector<8x128xf32>
    %529 = arith.divf %528, %527 : vector<8x128xf32>
    %530 = vector.extract_strided_slice %513 {offsets = [0, 256], sizes = [8, 128], strides = [1, 1]} : vector<8x640xf32> to vector<8x128xf32>
    %cst_285 = arith.constant 0.000000e+00 : f32
    %531 = vector.broadcast %cst_285 : f32 to vector<8x128xf32>
    %532 = arith.subf %531, %530 : vector<8x128xf32>
    %533 = math.exp %532 : vector<8x128xf32>
    %cst_286 = arith.constant 1.000000e+00 : f32
    %534 = vector.broadcast %cst_286 : f32 to vector<8x128xf32>
    %535 = arith.addf %534, %533 : vector<8x128xf32>
    %cst_287 = arith.constant 1.000000e+00 : f32
    %536 = vector.broadcast %cst_287 : f32 to vector<8x128xf32>
    %537 = arith.divf %536, %535 : vector<8x128xf32>
    %538 = vector.extract_strided_slice %513 {offsets = [0, 384], sizes = [8, 128], strides = [1, 1]} : vector<8x640xf32> to vector<8x128xf32>
    %539 = math.tanh %538 : vector<8x128xf32>
    %540 = vector.extract_strided_slice %513 {offsets = [0, 512], sizes = [8, 128], strides = [1, 1]} : vector<8x640xf32> to vector<8x128xf32>
    %cst_288 = arith.constant 0.000000e+00 : f32
    %541 = vector.broadcast %cst_288 : f32 to vector<8x128xf32>
    %542 = arith.subf %541, %540 : vector<8x128xf32>
    %543 = math.exp %542 : vector<8x128xf32>
    %cst_289 = arith.constant 1.000000e+00 : f32
    %544 = vector.broadcast %cst_289 : f32 to vector<8x128xf32>
    %545 = arith.addf %544, %543 : vector<8x128xf32>
    %cst_290 = arith.constant 1.000000e+00 : f32
    %546 = vector.broadcast %cst_290 : f32 to vector<8x128xf32>
    %547 = arith.divf %546, %545 : vector<8x128xf32>
    %548 = arith.mulf %521, %392 : vector<8x128xf32>
    %549 = arith.mulf %529, %539 : vector<8x128xf32>
    %550 = arith.addf %548, %549 : vector<8x128xf32>
    %551 = arith.mulf %537, %506 : vector<8x128xf32>
    %552 = arith.addf %550, %551 : vector<8x128xf32>
    %553 = math.tanh %552 : vector<8x128xf32>
    %554 = arith.mulf %547, %553 : vector<8x128xf32>
    %c0_291 = arith.constant 0 : index
    %c0_292 = arith.constant 0 : index
    %555 = vector.load %arg9[%c0_291, %c0_292] : memref<128x128xf32, #tpu.memory_space<vmem>>, vector<128x128xf32>
    %cst_293 = arith.constant dense<0.000000e+00> : vector<8x128xf32>
    %556 = tpu.matmul %554, %555, %cst_293 {dimension_numbers = #tpu.dot_dimension_numbers<[1], [0], [0], [1], [0, 0, 1, 1], [], []>} : vector<8x128xf32>, vector<128x128xf32>, vector<8x128xf32> -> vector<8x128xf32>
    %c0_294 = arith.constant 0 : index
    %c0_295 = arith.constant 0 : index
    %557 = vector.load %arg10[%c0_294, %c0_295] : memref<128x128xf32, #tpu.memory_space<vmem>>, vector<128x128xf32>
    %cst_296 = arith.constant dense<0.000000e+00> : vector<8x128xf32>
    %558 = tpu.matmul %552, %557, %cst_296 {dimension_numbers = #tpu.dot_dimension_numbers<[1], [0], [0], [1], [0, 0, 1, 1], [], []>} : vector<8x128xf32>, vector<128x128xf32>, vector<8x128xf32> -> vector<8x128xf32>
    %559 = arith.addf %556, %558 : vector<8x128xf32>
    %560 = vector.shape_cast %559 : vector<8x128xf32> to vector<1x8x128xf32>
    %c0_297 = arith.constant 0 : index
    %c0_298 = arith.constant 0 : index
    %c0_299 = arith.constant 0 : index
    %561 = vector.load %arg24[%c0_297, %c0_298, %c0_299] : memref<4x8x128xf32, #tpu.memory_space<vmem>>, vector<4x8x128xf32>
    %562 = vector.broadcast %560 : vector<1x8x128xf32> to vector<4x8x128xf32>
    %563 = arith.addf %562, %561 : vector<4x8x128xf32>
    %c0_300 = arith.constant 0 : index
    %c0_301 = arith.constant 0 : index
    %564 = vector.load %arg12[%c0_300, %c0_301] : memref<1x128xf32, #tpu.memory_space<vmem>>, vector<1x128xf32>
    %565 = vector.shape_cast %564 : vector<1x128xf32> to vector<1x1x128xf32>
    %566 = vector.broadcast %565 : vector<1x1x128xf32> to vector<4x8x128xf32>
    %567 = arith.addf %563, %566 : vector<4x8x128xf32>
    %568 = math.tanh %567 : vector<4x8x128xf32>
    %c0_302 = arith.constant 0 : index
    %c0_303 = arith.constant 0 : index
    %569 = vector.load %arg13[%c0_302, %c0_303] : memref<1x128xf32, #tpu.memory_space<vmem>>, vector<1x128xf32>
    %570 = vector.shape_cast %569 : vector<1x128xf32> to vector<1x1x128xf32>
    %571 = vector.broadcast %570 : vector<1x1x128xf32> to vector<4x8x128xf32>
    %572 = arith.mulf %568, %571 : vector<4x8x128xf32>
    %cst_304 = arith.constant dense<0.000000e+00> : vector<4x8xf32>
    %573 = vector.multi_reduction <add>, %572, %cst_304 [2] : vector<4x8x128xf32> to vector<4x8xf32>
    %574 = vector.shape_cast %573 : vector<4x8xf32> to vector<4x8x1xf32>
    %575 = tpu.iota {dimensions = array<i32: 0>} : vector<4x8x1xi32>
    %c4_i32_305 = arith.constant 4 : i32
    %576 = arith.minsi %486, %c4_i32_305 : i32
    %577 = vector.broadcast %576 : i32 to vector<4x8x1xi32>
    %578 = arith.cmpi slt, %575, %577 : vector<4x8x1xi32>
    %cst_306 = arith.constant -1.000000e+30 : f32
    %579 = vector.broadcast %cst_306 : f32 to vector<4x8x1xf32>
    %580 = arith.select %578, %574, %579 : vector<4x8x1xi1>, vector<4x8x1xf32>
    %cst_307 = arith.constant dense<0xFF800000> : vector<8x1xf32>
    %581 = vector.multi_reduction <maximumf>, %580, %cst_307 [0] : vector<4x8x1xf32> to vector<8x1xf32>
    %582 = vector.shape_cast %581 : vector<8x1xf32> to vector<1x8x1xf32>
    %583 = vector.broadcast %582 : vector<1x8x1xf32> to vector<4x8x1xf32>
    %584 = arith.subf %574, %583 : vector<4x8x1xf32>
    %cst_308 = arith.constant -1.000000e+30 : f32
    %585 = vector.broadcast %cst_308 : f32 to vector<4x8x1xf32>
    %586 = arith.select %578, %584, %585 : vector<4x8x1xi1>, vector<4x8x1xf32>
    %587 = math.exp %586 : vector<4x8x1xf32>
    %cst_309 = arith.constant dense<0.000000e+00> : vector<8x1xf32>
    %588 = vector.multi_reduction <add>, %587, %cst_309 [0] : vector<4x8x1xf32> to vector<8x1xf32>
    %589 = vector.shape_cast %588 : vector<8x1xf32> to vector<1x8x1xf32>
    %cst_310 = arith.constant 1.000000e-30 : f32
    %590 = vector.broadcast %cst_310 : f32 to vector<1x8x1xf32>
    %591 = arith.maximumf %589, %590 : vector<1x8x1xf32>
    %592 = vector.broadcast %591 : vector<1x8x1xf32> to vector<4x8x1xf32>
    %593 = arith.divf %587, %592 : vector<4x8x1xf32>
    %c0_311 = arith.constant 0 : index
    %c0_312 = arith.constant 0 : index
    %c0_313 = arith.constant 0 : index
    %594 = vector.load %arg23[%c0_311, %c0_312, %c0_313] : memref<4x8x128xf32, #tpu.memory_space<vmem>>, vector<4x8x128xf32>
    %595 = vector.broadcast %593 : vector<4x8x1xf32> to vector<4x8x128xf32>
    %596 = arith.mulf %595, %594 : vector<4x8x128xf32>
    %cst_314 = arith.constant dense<0.000000e+00> : vector<8x128xf32>
    %597 = vector.multi_reduction <add>, %596, %cst_314 [0] : vector<4x8x128xf32> to vector<8x128xf32>
    %c0_315 = arith.constant 0 : index
    %c0_316 = arith.constant 0 : index
    %598 = vector.load %arg14[%c0_315, %c0_316] : memref<128x128xf32, #tpu.memory_space<vmem>>, vector<128x128xf32>
    %cst_317 = arith.constant dense<0.000000e+00> : vector<8x128xf32>
    %599 = tpu.matmul %554, %598, %cst_317 {dimension_numbers = #tpu.dot_dimension_numbers<[1], [0], [0], [1], [0, 0, 1, 1], [], []>} : vector<8x128xf32>, vector<128x128xf32>, vector<8x128xf32> -> vector<8x128xf32>
    %c0_318 = arith.constant 0 : index
    %c0_319 = arith.constant 0 : index
    %600 = vector.load %arg15[%c0_318, %c0_319] : memref<128x128xf32, #tpu.memory_space<vmem>>, vector<128x128xf32>
    %cst_320 = arith.constant dense<0.000000e+00> : vector<8x128xf32>
    %601 = tpu.matmul %597, %600, %cst_320 {dimension_numbers = #tpu.dot_dimension_numbers<[1], [0], [0], [1], [0, 0, 1, 1], [], []>} : vector<8x128xf32>, vector<128x128xf32>, vector<8x128xf32> -> vector<8x128xf32>
    %602 = arith.addf %599, %601 : vector<8x128xf32>
    %c0_321 = arith.constant 0 : index
    %c0_322 = arith.constant 0 : index
    %603 = vector.load %arg16[%c0_321, %c0_322] : memref<16x128xf32, #tpu.memory_space<vmem>>, vector<16x128xf32>
    %cst_323 = arith.constant dense<0.000000e+00> : vector<8x128xf32>
    %604 = tpu.matmul %490, %603, %cst_323 {dimension_numbers = #tpu.dot_dimension_numbers<[1], [0], [0], [1], [0, 0, 1, 1], [], []>} : vector<8x16xf32>, vector<16x128xf32>, vector<8x128xf32> -> vector<8x128xf32>
    %605 = arith.addf %602, %604 : vector<8x128xf32>
    %c0_324 = arith.constant 0 : index
    %c0_325 = arith.constant 0 : index
    %606 = vector.load %arg17[%c0_324, %c0_325] : memref<1x128xf32, #tpu.memory_space<vmem>>, vector<1x128xf32>
    %607 = vector.broadcast %606 : vector<1x128xf32> to vector<8x128xf32>
    %608 = arith.addf %605, %607 : vector<8x128xf32>
    %609 = math.tanh %608 : vector<8x128xf32>
    %c4_i32_326 = arith.constant 4 : i32
    %c0_i32_327 = arith.constant 0 : i32
    %610 = arith.cmpi eq, %c4_i32_326, %c0_i32_327 : i32
    %c1_i32_328 = arith.constant 1 : i32
    %611 = arith.select %610, %c1_i32_328, %c4_i32_326 : i32
    %612 = arith.remsi %486, %611 : i32
    %c0_i32_329 = arith.constant 0 : i32
    %613 = arith.cmpi ne, %612, %c0_i32_329 : i32
    %c0_i32_330 = arith.constant 0 : i32
    %614 = arith.cmpi slt, %612, %c0_i32_330 : i32
    %c0_i32_331 = arith.constant 0 : i32
    %615 = arith.cmpi slt, %611, %c0_i32_331 : i32
    %616 = arith.xori %614, %615 : i1
    %617 = arith.andi %616, %613 : i1
    %618 = arith.addi %612, %611 : i32
    %619 = arith.select %617, %618, %612 : i32
    %620 = arith.index_cast %619 : i32 to index
    %c0_332 = arith.constant 0 : index
    %c0_333 = arith.constant 0 : index
    %621 = vector.load %arg23[%620, %c0_332, %c0_333] : memref<4x8x128xf32, #tpu.memory_space<vmem>>, vector<1x8x128xf32>
    %622 = vector.shape_cast %621 : vector<1x8x128xf32> to vector<8x128xf32>
    %623 = vector.shape_cast %609 : vector<8x128xf32> to vector<1x8x128xf32>
    tpu.vector_store %arg23[%620, %c0_332, %c0_333], %623 {strides = array<i32>} : memref<4x8x128xf32, #tpu.memory_space<vmem>>, vector<1x8x128xf32>,
    %c0_334 = arith.constant 0 : index
    %c0_335 = arith.constant 0 : index
    %624 = vector.load %arg11[%c0_334, %c0_335] : memref<128x128xf32, #tpu.memory_space<vmem>>, vector<128x128xf32>
    %cst_336 = arith.constant dense<0.000000e+00> : vector<8x128xf32>
    %625 = tpu.matmul %609, %624, %cst_336 {dimension_numbers = #tpu.dot_dimension_numbers<[1], [0], [0], [1], [0, 0, 1, 1], [], []>} : vector<8x128xf32>, vector<128x128xf32>, vector<8x128xf32> -> vector<8x128xf32>
    %626 = arith.index_cast %619 : i32 to index
    %c0_337 = arith.constant 0 : index
    %c0_338 = arith.constant 0 : index
    %627 = vector.load %arg24[%626, %c0_337, %c0_338] : memref<4x8x128xf32, #tpu.memory_space<vmem>>, vector<1x8x128xf32>
    %628 = vector.shape_cast %627 : vector<1x8x128xf32> to vector<8x128xf32>
    %629 = vector.shape_cast %625 : vector<8x128xf32> to vector<1x8x128xf32>
    tpu.vector_store %arg24[%626, %c0_337, %c0_338], %629 {strides = array<i32>} : memref<4x8x128xf32, #tpu.memory_space<vmem>>, vector<1x8x128xf32>,
    %c0_339 = arith.constant 0 : index
    %c0_340 = arith.constant 0 : index
    %630 = vector.load %arg18[%c0_339, %c0_340] : memref<1x128xf32, #tpu.memory_space<vmem>>, vector<1x128xf32>
    %631 = vector.broadcast %630 : vector<1x128xf32> to vector<8x128xf32>
    %632 = arith.mulf %609, %631 : vector<8x128xf32>
    %cst_341 = arith.constant dense<0.000000e+00> : vector<8xf32>
    %633 = vector.multi_reduction <add>, %632, %cst_341 [1] : vector<8x128xf32> to vector<8xf32>
    %634 = vector.shape_cast %633 : vector<8xf32> to vector<8x1xf32>
    %c0_342 = arith.constant 0 : index
    %c0_343 = arith.constant 0 : index
    %635 = vector.load %arg19[%c0_342, %c0_343] : memref<1x1xf32, #tpu.memory_space<vmem>>, vector<1x1xf32>
    %636 = vector.broadcast %635 : vector<1x1xf32> to vector<8x1xf32>
    %637 = arith.addf %634, %636 : vector<8x1xf32>
    %cst_344 = arith.constant 0.000000e+00 : f32
    %638 = vector.broadcast %cst_344 : f32 to vector<8x1xf32>
    %639 = arith.subf %638, %637 : vector<8x1xf32>
    %640 = math.exp %639 : vector<8x1xf32>
    %cst_345 = arith.constant 1.000000e+00 : f32
    %641 = vector.broadcast %cst_345 : f32 to vector<8x1xf32>
    %642 = arith.addf %641, %640 : vector<8x1xf32>
    %cst_346 = arith.constant 1.000000e+00 : f32
    %643 = vector.broadcast %cst_346 : f32 to vector<8x1xf32>
    %644 = arith.divf %643, %642 : vector<8x1xf32>
    %c5_i32_347 = arith.constant 5 : i32
    %645 = arith.muli %arg1, %c5_i32_347 : i32
    %c4_i32_348 = arith.constant 4 : i32
    %646 = arith.addi %645, %c4_i32_348 : i32
    %c4 = arith.constant 4 : index
    %c0_349 = arith.constant 0 : index
    %c0_350 = arith.constant 0 : index
    %647 = vector.load %arg2[%c4, %c0_349, %c0_350] : memref<5x8x33xf32, #tpu.memory_space<vmem>>, vector<1x8x33xf32>
    %648 = vector.shape_cast %647 : vector<1x8x33xf32> to vector<8x33xf32>
    %649 = vector.extract_strided_slice %648 {offsets = [0, 0], sizes = [8, 16], strides = [1, 1]} : vector<8x33xf32> to vector<8x16xf32>
    %650 = vector.extract_strided_slice %648 {offsets = [0, 16], sizes = [8, 16], strides = [1, 1]} : vector<8x33xf32> to vector<8x16xf32>
    %651 = vector.extract_strided_slice %648 {offsets = [0, 32], sizes = [8, 1], strides = [1, 1]} : vector<8x33xf32> to vector<8x1xf32>
    %c0_351 = arith.constant 0 : index
    %c0_352 = arith.constant 0 : index
    %652 = vector.load %arg3[%c0_351, %c0_352] : memref<128x768xf32, #tpu.memory_space<vmem>>, vector<128x768xf32>
    %cst_353 = arith.constant dense<0.000000e+00> : vector<8x768xf32>
    %653 = tpu.matmul %609, %652, %cst_353 {dimension_numbers = #tpu.dot_dimension_numbers<[1], [0], [0], [1], [0, 0, 1, 1], [], []>} : vector<8x128xf32>, vector<128x768xf32>, vector<8x768xf32> -> vector<8x768xf32>
    %c0_354 = arith.constant 0 : index
    %c0_355 = arith.constant 0 : index
    %654 = vector.load %arg4[%c0_354, %c0_355] : memref<16x768xf32, #tpu.memory_space<vmem>>, vector<16x768xf32>
    %cst_356 = arith.constant dense<0.000000e+00> : vector<8x768xf32>
    %655 = tpu.matmul %649, %654, %cst_356 {dimension_numbers = #tpu.dot_dimension_numbers<[1], [0], [0], [1], [0, 0, 1, 1], [], []>} : vector<8x16xf32>, vector<16x768xf32>, vector<8x768xf32> -> vector<8x768xf32>
    %656 = arith.addf %653, %655 : vector<8x768xf32>
    %657 = vector.extract_strided_slice %656 {offsets = [0, 0], sizes = [8, 128], strides = [1, 1]} : vector<8x768xf32> to vector<8x128xf32>
    %c0_357 = arith.constant 0 : index
    %c0_358 = arith.constant 0 : index
    %658 = vector.load %arg5[%c0_357, %c0_358] : memref<1x128xf32, #tpu.memory_space<vmem>>, vector<1x128xf32>
    %659 = vector.broadcast %651 : vector<8x1xf32> to vector<8x128xf32>
    %660 = vector.broadcast %658 : vector<1x128xf32> to vector<8x128xf32>
    %661 = arith.mulf %659, %660 : vector<8x128xf32>
    %662 = arith.addf %657, %661 : vector<8x128xf32>
    %c0_359 = arith.constant 0 : index
    %c0_360 = arith.constant 0 : index
    %663 = vector.load %arg6[%c0_359, %c0_360] : memref<1x128xf32, #tpu.memory_space<vmem>>, vector<1x128xf32>
    %664 = vector.broadcast %663 : vector<1x128xf32> to vector<8x128xf32>
    %665 = arith.addf %662, %664 : vector<8x128xf32>
    %666 = math.tanh %665 : vector<8x128xf32>
    %667 = vector.extract_strided_slice %656 {offsets = [0, 128], sizes = [8, 640], strides = [1, 1]} : vector<8x768xf32> to vector<8x640xf32>
    %c0_361 = arith.constant 0 : index
    %c0_362 = arith.constant 0 : index
    %668 = vector.load %arg7[%c0_361, %c0_362] : memref<128x640xf32, #tpu.memory_space<vmem>>, vector<128x640xf32>
    %cst_363 = arith.constant dense<0.000000e+00> : vector<8x640xf32>
    %669 = tpu.matmul %666, %668, %cst_363 {dimension_numbers = #tpu.dot_dimension_numbers<[1], [0], [0], [1], [0, 0, 1, 1], [], []>} : vector<8x128xf32>, vector<128x640xf32>, vector<8x640xf32> -> vector<8x640xf32>
    %670 = arith.addf %667, %669 : vector<8x640xf32>
    %c0_364 = arith.constant 0 : index
    %c0_365 = arith.constant 0 : index
    %671 = vector.load %arg8[%c0_364, %c0_365] : memref<1x640xf32, #tpu.memory_space<vmem>>, vector<1x640xf32>
    %672 = vector.broadcast %671 : vector<1x640xf32> to vector<8x640xf32>
    %673 = arith.addf %670, %672 : vector<8x640xf32>
    %674 = vector.extract_strided_slice %673 {offsets = [0, 0], sizes = [8, 128], strides = [1, 1]} : vector<8x640xf32> to vector<8x128xf32>
    %cst_366 = arith.constant 0.000000e+00 : f32
    %675 = vector.broadcast %cst_366 : f32 to vector<8x128xf32>
    %676 = arith.subf %675, %674 : vector<8x128xf32>
    %677 = math.exp %676 : vector<8x128xf32>
    %cst_367 = arith.constant 1.000000e+00 : f32
    %678 = vector.broadcast %cst_367 : f32 to vector<8x128xf32>
    %679 = arith.addf %678, %677 : vector<8x128xf32>
    %cst_368 = arith.constant 1.000000e+00 : f32
    %680 = vector.broadcast %cst_368 : f32 to vector<8x128xf32>
    %681 = arith.divf %680, %679 : vector<8x128xf32>
    %682 = vector.extract_strided_slice %673 {offsets = [0, 128], sizes = [8, 128], strides = [1, 1]} : vector<8x640xf32> to vector<8x128xf32>
    %cst_369 = arith.constant 0.000000e+00 : f32
    %683 = vector.broadcast %cst_369 : f32 to vector<8x128xf32>
    %684 = arith.subf %683, %682 : vector<8x128xf32>
    %685 = math.exp %684 : vector<8x128xf32>
    %cst_370 = arith.constant 1.000000e+00 : f32
    %686 = vector.broadcast %cst_370 : f32 to vector<8x128xf32>
    %687 = arith.addf %686, %685 : vector<8x128xf32>
    %cst_371 = arith.constant 1.000000e+00 : f32
    %688 = vector.broadcast %cst_371 : f32 to vector<8x128xf32>
    %689 = arith.divf %688, %687 : vector<8x128xf32>
    %690 = vector.extract_strided_slice %673 {offsets = [0, 256], sizes = [8, 128], strides = [1, 1]} : vector<8x640xf32> to vector<8x128xf32>
    %cst_372 = arith.constant 0.000000e+00 : f32
    %691 = vector.broadcast %cst_372 : f32 to vector<8x128xf32>
    %692 = arith.subf %691, %690 : vector<8x128xf32>
    %693 = math.exp %692 : vector<8x128xf32>
    %cst_373 = arith.constant 1.000000e+00 : f32
    %694 = vector.broadcast %cst_373 : f32 to vector<8x128xf32>
    %695 = arith.addf %694, %693 : vector<8x128xf32>
    %cst_374 = arith.constant 1.000000e+00 : f32
    %696 = vector.broadcast %cst_374 : f32 to vector<8x128xf32>
    %697 = arith.divf %696, %695 : vector<8x128xf32>
    %698 = vector.extract_strided_slice %673 {offsets = [0, 384], sizes = [8, 128], strides = [1, 1]} : vector<8x640xf32> to vector<8x128xf32>
    %699 = math.tanh %698 : vector<8x128xf32>
    %700 = vector.extract_strided_slice %673 {offsets = [0, 512], sizes = [8, 128], strides = [1, 1]} : vector<8x640xf32> to vector<8x128xf32>
    %cst_375 = arith.constant 0.000000e+00 : f32
    %701 = vector.broadcast %cst_375 : f32 to vector<8x128xf32>
    %702 = arith.subf %701, %700 : vector<8x128xf32>
    %703 = math.exp %702 : vector<8x128xf32>
    %cst_376 = arith.constant 1.000000e+00 : f32
    %704 = vector.broadcast %cst_376 : f32 to vector<8x128xf32>
    %705 = arith.addf %704, %703 : vector<8x128xf32>
    %cst_377 = arith.constant 1.000000e+00 : f32
    %706 = vector.broadcast %cst_377 : f32 to vector<8x128xf32>
    %707 = arith.divf %706, %705 : vector<8x128xf32>
    %708 = arith.mulf %681, %552 : vector<8x128xf32>
    %709 = arith.mulf %689, %699 : vector<8x128xf32>
    %710 = arith.addf %708, %709 : vector<8x128xf32>
    %711 = arith.mulf %697, %666 : vector<8x128xf32>
    %712 = arith.addf %710, %711 : vector<8x128xf32>
    %713 = math.tanh %712 : vector<8x128xf32>
    %714 = arith.mulf %707, %713 : vector<8x128xf32>
    %c0_378 = arith.constant 0 : index
    %c0_379 = arith.constant 0 : index
    %715 = vector.load %arg9[%c0_378, %c0_379] : memref<128x128xf32, #tpu.memory_space<vmem>>, vector<128x128xf32>
    %cst_380 = arith.constant dense<0.000000e+00> : vector<8x128xf32>
    %716 = tpu.matmul %714, %715, %cst_380 {dimension_numbers = #tpu.dot_dimension_numbers<[1], [0], [0], [1], [0, 0, 1, 1], [], []>} : vector<8x128xf32>, vector<128x128xf32>, vector<8x128xf32> -> vector<8x128xf32>
    %c0_381 = arith.constant 0 : index
    %c0_382 = arith.constant 0 : index
    %717 = vector.load %arg10[%c0_381, %c0_382] : memref<128x128xf32, #tpu.memory_space<vmem>>, vector<128x128xf32>
    %cst_383 = arith.constant dense<0.000000e+00> : vector<8x128xf32>
    %718 = tpu.matmul %712, %717, %cst_383 {dimension_numbers = #tpu.dot_dimension_numbers<[1], [0], [0], [1], [0, 0, 1, 1], [], []>} : vector<8x128xf32>, vector<128x128xf32>, vector<8x128xf32> -> vector<8x128xf32>
    %719 = arith.addf %716, %718 : vector<8x128xf32>
    %720 = vector.shape_cast %719 : vector<8x128xf32> to vector<1x8x128xf32>
    %c0_384 = arith.constant 0 : index
    %c0_385 = arith.constant 0 : index
    %c0_386 = arith.constant 0 : index
    %721 = vector.load %arg24[%c0_384, %c0_385, %c0_386] : memref<4x8x128xf32, #tpu.memory_space<vmem>>, vector<4x8x128xf32>
    %722 = vector.broadcast %720 : vector<1x8x128xf32> to vector<4x8x128xf32>
    %723 = arith.addf %722, %721 : vector<4x8x128xf32>
    %c0_387 = arith.constant 0 : index
    %c0_388 = arith.constant 0 : index
    %724 = vector.load %arg12[%c0_387, %c0_388] : memref<1x128xf32, #tpu.memory_space<vmem>>, vector<1x128xf32>
    %725 = vector.shape_cast %724 : vector<1x128xf32> to vector<1x1x128xf32>
    %726 = vector.broadcast %725 : vector<1x1x128xf32> to vector<4x8x128xf32>
    %727 = arith.addf %723, %726 : vector<4x8x128xf32>
    %728 = math.tanh %727 : vector<4x8x128xf32>
    %c0_389 = arith.constant 0 : index
    %c0_390 = arith.constant 0 : index
    %729 = vector.load %arg13[%c0_389, %c0_390] : memref<1x128xf32, #tpu.memory_space<vmem>>, vector<1x128xf32>
    %730 = vector.shape_cast %729 : vector<1x128xf32> to vector<1x1x128xf32>
    %731 = vector.broadcast %730 : vector<1x1x128xf32> to vector<4x8x128xf32>
    %732 = arith.mulf %728, %731 : vector<4x8x128xf32>
    %cst_391 = arith.constant dense<0.000000e+00> : vector<4x8xf32>
    %733 = vector.multi_reduction <add>, %732, %cst_391 [2] : vector<4x8x128xf32> to vector<4x8xf32>
    %734 = vector.shape_cast %733 : vector<4x8xf32> to vector<4x8x1xf32>
    %735 = tpu.iota {dimensions = array<i32: 0>} : vector<4x8x1xi32>
    %c4_i32_392 = arith.constant 4 : i32
    %736 = arith.minsi %646, %c4_i32_392 : i32
    %737 = vector.broadcast %736 : i32 to vector<4x8x1xi32>
    %738 = arith.cmpi slt, %735, %737 : vector<4x8x1xi32>
    %cst_393 = arith.constant -1.000000e+30 : f32
    %739 = vector.broadcast %cst_393 : f32 to vector<4x8x1xf32>
    %740 = arith.select %738, %734, %739 : vector<4x8x1xi1>, vector<4x8x1xf32>
    %cst_394 = arith.constant dense<0xFF800000> : vector<8x1xf32>
    %741 = vector.multi_reduction <maximumf>, %740, %cst_394 [0] : vector<4x8x1xf32> to vector<8x1xf32>
    %742 = vector.shape_cast %741 : vector<8x1xf32> to vector<1x8x1xf32>
    %743 = vector.broadcast %742 : vector<1x8x1xf32> to vector<4x8x1xf32>
    %744 = arith.subf %734, %743 : vector<4x8x1xf32>
    %cst_395 = arith.constant -1.000000e+30 : f32
    %745 = vector.broadcast %cst_395 : f32 to vector<4x8x1xf32>
    %746 = arith.select %738, %744, %745 : vector<4x8x1xi1>, vector<4x8x1xf32>
    %747 = math.exp %746 : vector<4x8x1xf32>
    %cst_396 = arith.constant dense<0.000000e+00> : vector<8x1xf32>
    %748 = vector.multi_reduction <add>, %747, %cst_396 [0] : vector<4x8x1xf32> to vector<8x1xf32>
    %749 = vector.shape_cast %748 : vector<8x1xf32> to vector<1x8x1xf32>
    %cst_397 = arith.constant 1.000000e-30 : f32
    %750 = vector.broadcast %cst_397 : f32 to vector<1x8x1xf32>
    %751 = arith.maximumf %749, %750 : vector<1x8x1xf32>
    %752 = vector.broadcast %751 : vector<1x8x1xf32> to vector<4x8x1xf32>
    %753 = arith.divf %747, %752 : vector<4x8x1xf32>
    %c0_398 = arith.constant 0 : index
    %c0_399 = arith.constant 0 : index
    %c0_400 = arith.constant 0 : index
    %754 = vector.load %arg23[%c0_398, %c0_399, %c0_400] : memref<4x8x128xf32, #tpu.memory_space<vmem>>, vector<4x8x128xf32>
    %755 = vector.broadcast %753 : vector<4x8x1xf32> to vector<4x8x128xf32>
    %756 = arith.mulf %755, %754 : vector<4x8x128xf32>
    %cst_401 = arith.constant dense<0.000000e+00> : vector<8x128xf32>
    %757 = vector.multi_reduction <add>, %756, %cst_401 [0] : vector<4x8x128xf32> to vector<8x128xf32>
    %c0_402 = arith.constant 0 : index
    %c0_403 = arith.constant 0 : index
    %758 = vector.load %arg14[%c0_402, %c0_403] : memref<128x128xf32, #tpu.memory_space<vmem>>, vector<128x128xf32>
    %cst_404 = arith.constant dense<0.000000e+00> : vector<8x128xf32>
    %759 = tpu.matmul %714, %758, %cst_404 {dimension_numbers = #tpu.dot_dimension_numbers<[1], [0], [0], [1], [0, 0, 1, 1], [], []>} : vector<8x128xf32>, vector<128x128xf32>, vector<8x128xf32> -> vector<8x128xf32>
    %c0_405 = arith.constant 0 : index
    %c0_406 = arith.constant 0 : index
    %760 = vector.load %arg15[%c0_405, %c0_406] : memref<128x128xf32, #tpu.memory_space<vmem>>, vector<128x128xf32>
    %cst_407 = arith.constant dense<0.000000e+00> : vector<8x128xf32>
    %761 = tpu.matmul %757, %760, %cst_407 {dimension_numbers = #tpu.dot_dimension_numbers<[1], [0], [0], [1], [0, 0, 1, 1], [], []>} : vector<8x128xf32>, vector<128x128xf32>, vector<8x128xf32> -> vector<8x128xf32>
    %762 = arith.addf %759, %761 : vector<8x128xf32>
    %c0_408 = arith.constant 0 : index
    %c0_409 = arith.constant 0 : index
    %763 = vector.load %arg16[%c0_408, %c0_409] : memref<16x128xf32, #tpu.memory_space<vmem>>, vector<16x128xf32>
    %cst_410 = arith.constant dense<0.000000e+00> : vector<8x128xf32>
    %764 = tpu.matmul %650, %763, %cst_410 {dimension_numbers = #tpu.dot_dimension_numbers<[1], [0], [0], [1], [0, 0, 1, 1], [], []>} : vector<8x16xf32>, vector<16x128xf32>, vector<8x128xf32> -> vector<8x128xf32>
    %765 = arith.addf %762, %764 : vector<8x128xf32>
    %c0_411 = arith.constant 0 : index
    %c0_412 = arith.constant 0 : index
    %766 = vector.load %arg17[%c0_411, %c0_412] : memref<1x128xf32, #tpu.memory_space<vmem>>, vector<1x128xf32>
    %767 = vector.broadcast %766 : vector<1x128xf32> to vector<8x128xf32>
    %768 = arith.addf %765, %767 : vector<8x128xf32>
    %769 = math.tanh %768 : vector<8x128xf32>
    %c4_i32_413 = arith.constant 4 : i32
    %c0_i32_414 = arith.constant 0 : i32
    %770 = arith.cmpi eq, %c4_i32_413, %c0_i32_414 : i32
    %c1_i32_415 = arith.constant 1 : i32
    %771 = arith.select %770, %c1_i32_415, %c4_i32_413 : i32
    %772 = arith.remsi %646, %771 : i32
    %c0_i32_416 = arith.constant 0 : i32
    %773 = arith.cmpi ne, %772, %c0_i32_416 : i32
    %c0_i32_417 = arith.constant 0 : i32
    %774 = arith.cmpi slt, %772, %c0_i32_417 : i32
    %c0_i32_418 = arith.constant 0 : i32
    %775 = arith.cmpi slt, %771, %c0_i32_418 : i32
    %776 = arith.xori %774, %775 : i1
    %777 = arith.andi %776, %773 : i1
    %778 = arith.addi %772, %771 : i32
    %779 = arith.select %777, %778, %772 : i32
    %780 = arith.index_cast %779 : i32 to index
    %c0_419 = arith.constant 0 : index
    %c0_420 = arith.constant 0 : index
    %781 = vector.load %arg23[%780, %c0_419, %c0_420] : memref<4x8x128xf32, #tpu.memory_space<vmem>>, vector<1x8x128xf32>
    %782 = vector.shape_cast %781 : vector<1x8x128xf32> to vector<8x128xf32>
    %783 = vector.shape_cast %769 : vector<8x128xf32> to vector<1x8x128xf32>
    tpu.vector_store %arg23[%780, %c0_419, %c0_420], %783 {strides = array<i32>} : memref<4x8x128xf32, #tpu.memory_space<vmem>>, vector<1x8x128xf32>,
    %c0_421 = arith.constant 0 : index
    %c0_422 = arith.constant 0 : index
    %784 = vector.load %arg11[%c0_421, %c0_422] : memref<128x128xf32, #tpu.memory_space<vmem>>, vector<128x128xf32>
    %cst_423 = arith.constant dense<0.000000e+00> : vector<8x128xf32>
    %785 = tpu.matmul %769, %784, %cst_423 {dimension_numbers = #tpu.dot_dimension_numbers<[1], [0], [0], [1], [0, 0, 1, 1], [], []>} : vector<8x128xf32>, vector<128x128xf32>, vector<8x128xf32> -> vector<8x128xf32>
    %786 = arith.index_cast %779 : i32 to index
    %c0_424 = arith.constant 0 : index
    %c0_425 = arith.constant 0 : index
    %787 = vector.load %arg24[%786, %c0_424, %c0_425] : memref<4x8x128xf32, #tpu.memory_space<vmem>>, vector<1x8x128xf32>
    %788 = vector.shape_cast %787 : vector<1x8x128xf32> to vector<8x128xf32>
    %789 = vector.shape_cast %785 : vector<8x128xf32> to vector<1x8x128xf32>
    tpu.vector_store %arg24[%786, %c0_424, %c0_425], %789 {strides = array<i32>} : memref<4x8x128xf32, #tpu.memory_space<vmem>>, vector<1x8x128xf32>,
    %c0_426 = arith.constant 0 : index
    %c0_427 = arith.constant 0 : index
    %790 = vector.load %arg18[%c0_426, %c0_427] : memref<1x128xf32, #tpu.memory_space<vmem>>, vector<1x128xf32>
    %791 = vector.broadcast %790 : vector<1x128xf32> to vector<8x128xf32>
    %792 = arith.mulf %769, %791 : vector<8x128xf32>
    %cst_428 = arith.constant dense<0.000000e+00> : vector<8xf32>
    %793 = vector.multi_reduction <add>, %792, %cst_428 [1] : vector<8x128xf32> to vector<8xf32>
    %794 = vector.shape_cast %793 : vector<8xf32> to vector<8x1xf32>
    %c0_429 = arith.constant 0 : index
    %c0_430 = arith.constant 0 : index
    %795 = vector.load %arg19[%c0_429, %c0_430] : memref<1x1xf32, #tpu.memory_space<vmem>>, vector<1x1xf32>
    %796 = vector.broadcast %795 : vector<1x1xf32> to vector<8x1xf32>
    %797 = arith.addf %794, %796 : vector<8x1xf32>
    %cst_431 = arith.constant 0.000000e+00 : f32
    %798 = vector.broadcast %cst_431 : f32 to vector<8x1xf32>
    %799 = arith.subf %798, %797 : vector<8x1xf32>
    %800 = math.exp %799 : vector<8x1xf32>
    %cst_432 = arith.constant 1.000000e+00 : f32
    %801 = vector.broadcast %cst_432 : f32 to vector<8x1xf32>
    %802 = arith.addf %801, %800 : vector<8x1xf32>
    %cst_433 = arith.constant 1.000000e+00 : f32
    %803 = vector.broadcast %cst_433 : f32 to vector<8x1xf32>
    %804 = arith.divf %803, %802 : vector<8x1xf32>
    %c0_434 = arith.constant 0 : index
    %c0_435 = arith.constant 0 : index
    %805 = vector.load %arg21[%c0_434, %c0_435] : memref<8x128xf32, #tpu.memory_space<vmem>>, vector<8x128xf32>
    tpu.vector_store %arg21[%c0_434, %c0_435], %769 {strides = array<i32>} : memref<8x128xf32, #tpu.memory_space<vmem>>, vector<8x128xf32>,
    %c0_436 = arith.constant 0 : index
    %c0_437 = arith.constant 0 : index
    %806 = vector.load %arg22[%c0_436, %c0_437] : memref<8x128xf32, #tpu.memory_space<vmem>>, vector<8x128xf32>
    tpu.vector_store %arg22[%c0_436, %c0_437], %712 {strides = array<i32>} : memref<8x128xf32, #tpu.memory_space<vmem>>, vector<8x128xf32>,
    %807 = tpu.concatenate %164, %324, %484, %644, %804 in 1 : vector<8x1xf32>, vector<8x1xf32>, vector<8x1xf32>, vector<8x1xf32>, vector<8x1xf32> -> vector<8x5xf32>
    %c0_438 = arith.constant 0 : index
    %c0_439 = arith.constant 0 : index
    %c0_440 = arith.constant 0 : index
    %808 = vector.load %arg20[%c0_438, %c0_439, %c0_440] : memref<1x8x5xf32, #tpu.memory_space<vmem>>, vector<1x8x5xf32>
    %809 = vector.shape_cast %808 : vector<1x8x5xf32> to vector<8x5xf32>
    %810 = vector.shape_cast %807 : vector<8x5xf32> to vector<1x8x5xf32>
    tpu.vector_store %arg20[%c0_438, %c0_439, %c0_440], %810 {strides = array<i32>} : memref<1x8x5xf32, #tpu.memory_space<vmem>>, vector<1x8x5xf32>,
    return
  }
  func.func @transform_0(%arg0: i32, %arg1: i32) -> (i32, i32, i32) {
    %c0_i32 = arith.constant 0 : i32
    %c0_i32_0 = arith.constant 0 : i32
    return %arg1, %arg0, %c0_i32 : i32, i32, i32
  }
  func.func @transform_1(%arg0: i32, %arg1: i32) -> (i32, i32) {
    %c0_i32 = arith.constant 0 : i32
    %c0_i32_0 = arith.constant 0 : i32
    %c0_i32_1 = arith.constant 0 : i32
    return %c0_i32, %c0_i32_0 : i32, i32
  }
  func.func @transform_2(%arg0: i32, %arg1: i32) -> (i32, i32) {
    %c0_i32 = arith.constant 0 : i32
    %c0_i32_0 = arith.constant 0 : i32
    %c0_i32_1 = arith.constant 0 : i32
    return %c0_i32, %c0_i32_0 : i32, i32
  }
  func.func @transform_3(%arg0: i32, %arg1: i32) -> (i32, i32) {
    %c0_i32 = arith.constant 0 : i32
    %c0_i32_0 = arith.constant 0 : i32
    %c0_i32_1 = arith.constant 0 : i32
    return %c0_i32, %c0_i32_0 : i32, i32
  }
  func.func @transform_4(%arg0: i32, %arg1: i32) -> (i32, i32) {
    %c0_i32 = arith.constant 0 : i32
    %c0_i32_0 = arith.constant 0 : i32
    %c0_i32_1 = arith.constant 0 : i32
    return %c0_i32, %c0_i32_0 : i32, i32
  }
  func.func @transform_5(%arg0: i32, %arg1: i32) -> (i32, i32) {
    %c0_i32 = arith.constant 0 : i32
    %c0_i32_0 = arith.constant 0 : i32
    %c0_i32_1 = arith.constant 0 : i32
    return %c0_i32, %c0_i32_0 : i32, i32
  }
  func.func @transform_6(%arg0: i32, %arg1: i32) -> (i32, i32) {
    %c0_i32 = arith.constant 0 : i32
    %c0_i32_0 = arith.constant 0 : i32
    %c0_i32_1 = arith.constant 0 : i32
    return %c0_i32, %c0_i32_0 : i32, i32
  }
  func.func @transform_7(%arg0: i32, %arg1: i32) -> (i32, i32) {
    %c0_i32 = arith.constant 0 : i32
    %c0_i32_0 = arith.constant 0 : i32
    %c0_i32_1 = arith.constant 0 : i32
    return %c0_i32, %c0_i32_0 : i32, i32
  }
  func.func @transform_8(%arg0: i32, %arg1: i32) -> (i32, i32) {
    %c0_i32 = arith.constant 0 : i32
    %c0_i32_0 = arith.constant 0 : i32
    %c0_i32_1 = arith.constant 0 : i32
    return %c0_i32, %c0_i32_0 : i32, i32
  }
  func.func @transform_9(%arg0: i32, %arg1: i32) -> (i32, i32) {
    %c0_i32 = arith.constant 0 : i32
    %c0_i32_0 = arith.constant 0 : i32
    %c0_i32_1 = arith.constant 0 : i32
    return %c0_i32, %c0_i32_0 : i32, i32
  }
  func.func @transform_10(%arg0: i32, %arg1: i32) -> (i32, i32) {
    %c0_i32 = arith.constant 0 : i32
    %c0_i32_0 = arith.constant 0 : i32
    %c0_i32_1 = arith.constant 0 : i32
    return %c0_i32, %c0_i32_0 : i32, i32
  }
  func.func @transform_11(%arg0: i32, %arg1: i32) -> (i32, i32) {
    %c0_i32 = arith.constant 0 : i32
    %c0_i32_0 = arith.constant 0 : i32
    %c0_i32_1 = arith.constant 0 : i32
    return %c0_i32, %c0_i32_0 : i32, i32
  }
  func.func @transform_12(%arg0: i32, %arg1: i32) -> (i32, i32) {
    %c0_i32 = arith.constant 0 : i32
    %c0_i32_0 = arith.constant 0 : i32
    %c0_i32_1 = arith.constant 0 : i32
    return %c0_i32, %c0_i32_0 : i32, i32
  }
  func.func @transform_13(%arg0: i32, %arg1: i32) -> (i32, i32) {
    %c0_i32 = arith.constant 0 : i32
    %c0_i32_0 = arith.constant 0 : i32
    %c0_i32_1 = arith.constant 0 : i32
    return %c0_i32, %c0_i32_0 : i32, i32
  }
  func.func @transform_14(%arg0: i32, %arg1: i32) -> (i32, i32) {
    %c0_i32 = arith.constant 0 : i32
    %c0_i32_0 = arith.constant 0 : i32
    %c0_i32_1 = arith.constant 0 : i32
    return %c0_i32, %c0_i32_0 : i32, i32
  }
  func.func @transform_15(%arg0: i32, %arg1: i32) -> (i32, i32) {
    %c0_i32 = arith.constant 0 : i32
    %c0_i32_0 = arith.constant 0 : i32
    %c0_i32_1 = arith.constant 0 : i32
    return %c0_i32, %c0_i32_0 : i32, i32
  }
  func.func @transform_16(%arg0: i32, %arg1: i32) -> (i32, i32) {
    %c0_i32 = arith.constant 0 : i32
    %c0_i32_0 = arith.constant 0 : i32
    %c0_i32_1 = arith.constant 0 : i32
    return %c0_i32, %c0_i32_0 : i32, i32
  }
  func.func @transform_17(%arg0: i32, %arg1: i32) -> (i32, i32) {
    %c0_i32 = arith.constant 0 : i32
    %c0_i32_0 = arith.constant 0 : i32
    %c0_i32_1 = arith.constant 0 : i32
    return %c0_i32, %c0_i32_0 : i32, i32
  }
  func.func @transform_18(%arg0: i32, %arg1: i32) -> (i32, i32, i32) {
    %c0_i32 = arith.constant 0 : i32
    %c0_i32_0 = arith.constant 0 : i32
    return %arg1, %arg0, %c0_i32 : i32, i32, i32
  }
}

</mosaic_0001>

<llo_original>
// kernel: tpu_custom_call.1
$region0: #{tpu_custom_call.1}
  #allocation0 [shape = 'u32[]', space=smem, size = 0x4, offset = 0x4, fixed_abs, tag = 'smem constant byte address 0x4 - core index']
  #allocation1 [shape = 'u32[72,128]{1,0:T(1,128)}', space=vmem, size = 0x9000, scoped, tag = 'internal scratch']
  #allocation2 [shape = 'f32[8,128]{1,0:T(8,128)}', space=vmem, size = 0x1000, scoped, tag = 'scratch operand']
  #allocation3 [shape = 'f32[8,128]{1,0:T(8,128)}', space=vmem, size = 0x1000, scoped, tag = 'scratch operand']
  #allocation4 [shape = 'f32[4,8,128]{2,1,0:T(8,128)}', space=vmem, size = 0x4000, scoped, tag = 'scratch operand']
  #allocation5 [shape = 'f32[4,8,128]{2,1,0:T(8,128)}', space=vmem, size = 0x4000, scoped, tag = 'scratch operand']
  #allocation6 [shape = 'f32[1,1]{1,0:T(1,128)S(1)}', space=vmem, size = 0x200, scoped, tag = 'scoped memory for tpu_custom_call.1']
  %s0 = inlined_call_operand.hbm [shape: f32[10,8,33], index: 0, kind: input, shape index: {}]
  %s1 = inlined_call_operand.hbm [shape: f32[128,768], index: 1, kind: input, shape index: {}]
  %s2 = inlined_call_operand.hbm [shape: f32[16,768], index: 2, kind: input, shape index: {}]
  %s3 = inlined_call_operand.vmem [shape: f32[1,128], index: 3, kind: input, shape index: {}]
  %s4 = inlined_call_operand.vmem [shape: f32[1,128], index: 4, kind: input, shape index: {}]
  %s5 = inlined_call_operand.hbm [shape: f32[128,640], index: 5, kind: input, shape index: {}]
  %s6 = inlined_call_operand.vmem [shape: f32[1,640], index: 6, kind: input, shape index: {}]
  %s7 = inlined_call_operand.hbm [shape: f32[128,128], index: 7, kind: input, shape index: {}]
  %s8 = inlined_call_operand.hbm [shape: f32[128,128], index: 8, kind: input, shape index: {}]
  %s9 = inlined_call_operand.hbm [shape: f32[128,128], index: 9, kind: input, shape index: {}]
  %s10 = inlined_call_operand.vmem [shape: f32[1,128], index: 10, kind: input, shape index: {}]
  %s11 = inlined_call_operand.vmem [shape: f32[1,128], index: 11, kind: input, shape index: {}]
  %s12 = inlined_call_operand.hbm [shape: f32[128,128], index: 12, kind: input, shape index: {}]
  %s13 = inlined_call_operand.hbm [shape: f32[128,128], index: 13, kind: input, shape index: {}]
  %s14 = inlined_call_operand.hbm [shape: f32[16,128], index: 14, kind: input, shape index: {}]
  %s15 = inlined_call_operand.vmem [shape: f32[1,128], index: 15, kind: input, shape index: {}]
  %s16 = inlined_call_operand.vmem [shape: f32[1,128], index: 16, kind: input, shape index: {}]
  %s17 = inlined_call_operand.<no memory space> [shape: f32[1,1], index: 17, kind: input, shape index: {}]
  %s18 = inlined_call_operand.vmem [shape: f32[2,8,5], index: 18, kind: output, shape index: {}]
  %s19 = sld [smem:[#allocation0]]
  $region149: #{tpu_custom_call.1} parent=0
    _
  %s21 = ssub.s32 1, %s19
  %s22 = scalar_select 0, %s21, %s19
  %v23 = vstv %s17
  %24 = vst [vmem:[#allocation6] sm:$0x1] %v23
  $region1: #{tpu_custom_call.1} parent=0
    #allocation7 [shape = 'u8[40960]{0}', space=vmem, size = 0xa000, scoped, tag = 'input window, operand 0']
    #allocation8 [shape = 's32[2]{0}', space=sflag, size = 0x8, scoped, tag = 'scoped memory for tpu_custom_call.1']
    #allocation9 [shape = 'u8[393216]{0}', space=vmem, size = 0x60000, scoped, tag = 'input window, operand 1, single buffered']
    #allocation10 [shape = 's32[1]{0}', space=sflag, size = 0x4, scoped, tag = 'scoped memory for tpu_custom_call.1']
    #allocation11 [shape = 'u8[49152]{0}', space=vmem, size = 0xc000, scoped, tag = 'input window, operand 2, single buffered']
    #allocation12 [shape = 'u8[327680]{0}', space=vmem, size = 0x50000, scoped, tag = 'input window, operand 5, single buffered']
    #allocation13 [shape = 's32[1]{0}', space=sflag, size = 0x4, scoped, tag = 'scoped memory for tpu_custom_call.1']
    #allocation14 [shape = 'u8[65536]{0}', space=vmem, size = 0x10000, scoped, tag = 'input window, operand 7, single buffered']
    #allocation15 [shape = 'u8[65536]{0}', space=vmem, size = 0x10000, scoped, tag = 'input window, operand 8, single buffered']
    #allocation16 [shape = 's32[1]{0}', space=sflag, size = 0x4, scoped, tag = 'scoped memory for tpu_custom_call.1']
    #allocation17 [shape = 'u8[65536]{0}', space=vmem, size = 0x10000, scoped, tag = 'input window, operand 9, single buffered']
    #allocation18 [shape = 'u8[65536]{0}', space=vmem, size = 0x10000, scoped, tag = 'input window, operand 12, single buffered']
    #allocation19 [shape = 's32[1]{0}', space=sflag, size = 0x4, scoped, tag = 'scoped memory for tpu_custom_call.1']
    #allocation20 [shape = 'u8[65536]{0}', space=vmem, size = 0x10000, scoped, tag = 'input window, operand 13, single buffered']
    #allocation21 [shape = 'u8[8192]{0}', space=vmem, size = 0x2000, scoped, tag = 'input window, operand 14, single buffered']
    #allocation22 [shape = 's32[1]{0}', space=sflag, size = 0x4, scoped, tag = 'scoped memory for tpu_custom_call.1']
    %25 = vsyncpa [#allocation8], 0
    %s26 = scalar_lea.sflag [#allocation8], 1
    %27 = vsyncpa %s26, 0
    %28 = vsyncpa [#allocation10], 0
    %29 = vsyncpa [#allocation13], 0
    %30 = vsyncpa [#allocation16], 0
    %31 = vsyncpa [#allocation19], 0
    %32 = vsyncpa [#allocation22], 0
    loop: start=0, step=1, limit=4
    $region2: #{tpu_custom_call.1} parent=1 // loop_pre_header
      _
    $region3: #{tpu_custom_call.1} parent=1 // loop_header
      %s34 = sphi 0, %s38
      %p35 = scmp.ge.s32.totalorder %s34, 4
      %s41 = sphi 0, %s53
      %s42 = sphi 0, %s49
      %s43 = sphi 0, %s41
      %s44 = sphi 0, %s42
      %s45 = sphi 0, %s43
      %s46 = sphi 0, %s44
      %s58 = sphi 0, %s60
      %s61 = sphi 0, %s58
      %s62 = sphi 0, %s61
      %s78 = sphi 0, %s62
      %s82 = sphi 0, %s82
      %s84 = sphi 0, %s82
      %s85 = sphi 0, %s84
      %s99 = sphi 0, %s85
      %s103 = sphi 0, %s103
      %s105 = sphi 0, %s103
      %s106 = sphi 0, %s105
      %s120 = sphi 0, %s106
      %s124 = sphi 0, %s124
      %s126 = sphi 0, %s124
      %s127 = sphi 0, %s126
      %s141 = sphi 0, %s127
      %s145 = sphi 0, %s145
      %s147 = sphi 0, %s145
      %s148 = sphi 0, %s147
      %s162 = sphi 0, %s148
      %s166 = sphi 0, %s166
      %s168 = sphi 0, %s166
      %s169 = sphi 0, %s168
      %s183 = sphi 0, %s169
      %s187 = sphi 0, %s187
      %s189 = sphi 0, %s187
      %s190 = sphi 0, %s189
      %s204 = sphi 0, %s190
      %s208 = sphi 0, %s208
      %s210 = sphi 0, %s208
      %s211 = sphi 0, %s210
      %s225 = sphi 0, %s211
      %s229 = sphi 0, %s229
      %s231 = sphi 0, %s229
      %s232 = sphi 0, %s231
      %s246 = sphi 0, %s232
      %s250 = sphi 0, %s250
      %s252 = sphi 0, %s250
      %s253 = sphi 0, %s252
      %s267 = sphi 0, %s253
      %s271 = sphi 0, %s271
      %s273 = sphi 0, %s271
      %s274 = sphi 0, %s273
      %s288 = sphi 0, %s274
      %s292 = sphi 0, %s292
      %s294 = sphi 0, %s292
      %s295 = sphi 0, %s294
      %s309 = sphi 0, %s295
      %s313 = sphi 0, %s313
      %s315 = sphi 0, %s313
      %s316 = sphi 0, %s315
      %s330 = sphi 0, %s316
      %s334 = sphi 0, %s334
      %s336 = sphi 0, %s334
      %s337 = sphi 0, %s336
      %s351 = sphi 0, %s337
      %s355 = sphi 0, %s355
      %s357 = sphi 0, %s355
      %s358 = sphi 0, %s357
      %s372 = sphi 0, %s358
      %s376 = sphi 0, %s376
      %s378 = sphi 0, %s376
      %s379 = sphi 0, %s378
      %s393 = sphi 0, %s379
      %s397 = sphi 0, %s397
      %s399 = sphi 0, %s397
      %s400 = sphi 0, %s399
      %s414 = sphi 0, %s400
      %s418 = sphi 0, %s418
      %s420 = sphi 0, %s418
      %s421 = sphi 0, %s420
      %s435 = sphi 0, %s421
      %s443 = sphi 0, %s445
      %s446 = sphi 0, %s443
      %s447 = sphi 0, %s446
      %s463 = sphi 0, %s447
    $region4: #{tpu_custom_call.1} parent=1 // loop_header_branch
      %37 = sbr.rel (%p35) target = $region8
    $region5: #{tpu_custom_call.1} parent=1 // loop_body
      %s39 = ssub.s32 %s34, 1
      %s40 = ssub.s32 %s34, 2
      %s47 = sadd.s32 1, %s42
      %p48 = scmp.ge.s32.totalorder %s47, 2
      %s49 = scalar_select %p48, 0, %s47
      %s50 = sadd.s32 1, %s41
      %s51 = scalar_select %p48, %s50, %s41
      %p52 = scmp.ge.s32.totalorder %s51, 1
      %s53 = scalar_select %p52, 0, %s51
      %s54 = ssub.s32 %s42, %s49
      %s55 = ssub.s32 %s41, %s53
      %s56 = sor.u32 %s54, %s55
      %p57 = scmp.eq.s32.totalorder %s56, 0
      %s59 = sadd.s32 %s58, 1
      %s60 = scalar_select %p57, %s58, %s59
      %p63 = pneg %p57
      %p64 = scmp.eq.s32.totalorder %s34, 1
      %p65 = por %p63, %p64
      %p66 = scmp.ne.s32.totalorder %s58, %s61
      %p67 = scmp.eq.s32.totalorder %s34, 0
      %p68 = por %p66, %p67
      %p69 = scmp.ne.s32.totalorder %s58, %s61
      %p70 = scmp.eq.s32.totalorder %s39, 1
      %p71 = por %p69, %p70
      %p72 = scmp.ne.s32.totalorder %s61, %s62
      %p73 = scmp.eq.s32.totalorder %s39, 0
      %p74 = por %p72, %p73
      %p75 = scmp.ne.s32.totalorder %s61, %s62
      %p76 = scmp.eq.s32.totalorder %s40, 1
      %p77 = por %p75, %p76
      %p79 = scmp.ne.s32.totalorder %s62, %s78
      %p80 = scmp.eq.s32.totalorder %s40, 0
      %p81 = por %p79, %p80
      %s83 = sadd.s32 %s82, 1
      %p86 = scmp.eq.s32.totalorder %s34, 1
      %p87 = scmp.ne.s32.totalorder %s82, %s84
      %p88 = scmp.eq.s32.totalorder %s34, 0
      %p89 = por %p87, %p88
      %p90 = scmp.ne.s32.totalorder %s82, %s84
      %p91 = scmp.eq.s32.totalorder %s39, 1
      %p92 = por %p90, %p91
      %p93 = scmp.ne.s32.totalorder %s84, %s85
      %p94 = scmp.eq.s32.totalorder %s39, 0
      %p95 = por %p93, %p94
      %p96 = scmp.ne.s32.totalorder %s84, %s85
      %p97 = scmp.eq.s32.totalorder %s40, 1
      %p98 = por %p96, %p97
      %p100 = scmp.ne.s32.totalorder %s85, %s99
      %p101 = scmp.eq.s32.totalorder %s40, 0
      %p102 = por %p100, %p101
      %s104 = sadd.s32 %s103, 1
      %p107 = scmp.eq.s32.totalorder %s34, 1
      %p108 = scmp.ne.s32.totalorder %s103, %s105
      %p109 = scmp.eq.s32.totalorder %s34, 0
      %p110 = por %p108, %p109
      %p111 = scmp.ne.s32.totalorder %s103, %s105
      %p112 = scmp.eq.s32.totalorder %s39, 1
      %p113 = por %p111, %p112
      %p114 = scmp.ne.s32.totalorder %s105, %s106
      %p115 = scmp.eq.s32.totalorder %s39, 0
      %p116 = por %p114, %p115
      %p117 = scmp.ne.s32.totalorder %s105, %s106
      %p118 = scmp.eq.s32.totalorder %s40, 1
      %p119 = por %p117, %p118
      %p121 = scmp.ne.s32.totalorder %s106, %s120
      %p122 = scmp.eq.s32.totalorder %s40, 0
      %p123 = por %p121, %p122
      %s125 = sadd.s32 %s124, 1
      %p128 = scmp.eq.s32.totalorder %s34, 1
      %p129 = scmp.ne.s32.totalorder %s124, %s126
      %p130 = scmp.eq.s32.totalorder %s34, 0
      %p131 = por %p129, %p130
      %p132 = scmp.ne.s32.totalorder %s124, %s126
      %p133 = scmp.eq.s32.totalorder %s39, 1
      %p134 = por %p132, %p133
      %p135 = scmp.ne.s32.totalorder %s126, %s127
      %p136 = scmp.eq.s32.totalorder %s39, 0
      %p137 = por %p135, %p136
      %p138 = scmp.ne.s32.totalorder %s126, %s127
      %p139 = scmp.eq.s32.totalorder %s40, 1
      %p140 = por %p138, %p139
      %p142 = scmp.ne.s32.totalorder %s127, %s141
      %p143 = scmp.eq.s32.totalorder %s40, 0
      %p144 = por %p142, %p143
      %s146 = sadd.s32 %s145, 1
      %p149 = scmp.eq.s32.totalorder %s34, 1
      %p150 = scmp.ne.s32.totalorder %s145, %s147
      %p151 = scmp.eq.s32.totalorder %s34, 0
      %p152 = por %p150, %p151
      %p153 = scmp.ne.s32.totalorder %s145, %s147
      %p154 = scmp.eq.s32.totalorder %s39, 1
      %p155 = por %p153, %p154
      %p156 = scmp.ne.s32.totalorder %s147, %s148
      %p157 = scmp.eq.s32.totalorder %s39, 0
      %p158 = por %p156, %p157
      %p159 = scmp.ne.s32.totalorder %s147, %s148
      %p160 = scmp.eq.s32.totalorder %s40, 1
      %p161 = por %p159, %p160
      %p163 = scmp.ne.s32.totalorder %s148, %s162
      %p164 = scmp.eq.s32.totalorder %s40, 0
      %p165 = por %p163, %p164
      %s167 = sadd.s32 %s166, 1
      %p170 = scmp.eq.s32.totalorder %s34, 1
      %p171 = scmp.ne.s32.totalorder %s166, %s168
      %p172 = scmp.eq.s32.totalorder %s34, 0
      %p173 = por %p171, %p172
      %p174 = scmp.ne.s32.totalorder %s166, %s168
      %p175 = scmp.eq.s32.totalorder %s39, 1
      %p176 = por %p174, %p175
      %p177 = scmp.ne.s32.totalorder %s168, %s169
      %p178 = scmp.eq.s32.totalorder %s39, 0
      %p179 = por %p177, %p178
      %p180 = scmp.ne.s32.totalorder %s168, %s169
      %p181 = scmp.eq.s32.totalorder %s40, 1
      %p182 = por %p180, %p181
      %p184 = scmp.ne.s32.totalorder %s169, %s183
      %p185 = scmp.eq.s32.totalorder %s40, 0
      %p186 = por %p184, %p185
      %s188 = sadd.s32 %s187, 1
      %p191 = scmp.eq.s32.totalorder %s34, 1
      %p192 = scmp.ne.s32.totalorder %s187, %s189
      %p193 = scmp.eq.s32.totalorder %s34, 0
      %p194 = por %p192, %p193
      %p195 = scmp.ne.s32.totalorder %s187, %s189
      %p196 = scmp.eq.s32.totalorder %s39, 1
      %p197 = por %p195, %p196
      %p198 = scmp.ne.s32.totalorder %s189, %s190
      %p199 = scmp.eq.s32.totalorder %s39, 0
      %p200 = por %p198, %p199
      %p201 = scmp.ne.s32.totalorder %s189, %s190
      %p202 = scmp.eq.s32.totalorder %s40, 1
      %p203 = por %p201, %p202
      %p205 = scmp.ne.s32.totalorder %s190, %s204
      %p206 = scmp.eq.s32.totalorder %s40, 0
      %p207 = por %p205, %p206
      %s209 = sadd.s32 %s208, 1
      %p212 = scmp.eq.s32.totalorder %s34, 1
      %p213 = scmp.ne.s32.totalorder %s208, %s210
      %p214 = scmp.eq.s32.totalorder %s34, 0
      %p215 = por %p213, %p214
      %p216 = scmp.ne.s32.totalorder %s208, %s210
      %p217 = scmp.eq.s32.totalorder %s39, 1
      %p218 = por %p216, %p217
      %p219 = scmp.ne.s32.totalorder %s210, %s211
      %p220 = scmp.eq.s32.totalorder %s39, 0
      %p221 = por %p219, %p220
      %p222 = scmp.ne.s32.totalorder %s210, %s211
      %p223 = scmp.eq.s32.totalorder %s40, 1
      %p224 = por %p222, %p223
      %p226 = scmp.ne.s32.totalorder %s211, %s225
      %p227 = scmp.eq.s32.totalorder %s40, 0
      %p228 = por %p226, %p227
      %s230 = sadd.s32 %s229, 1
      %p233 = scmp.eq.s32.totalorder %s34, 1
      %p234 = scmp.ne.s32.totalorder %s229, %s231
      %p235 = scmp.eq.s32.totalorder %s34, 0
      %p236 = por %p234, %p235
      %p237 = scmp.ne.s32.totalorder %s229, %s231
      %p238 = scmp.eq.s32.totalorder %s39, 1
      %p239 = por %p237, %p238
      %p240 = scmp.ne.s32.totalorder %s231, %s232
      %p241 = scmp.eq.s32.totalorder %s39, 0
      %p242 = por %p240, %p241
      %p243 = scmp.ne.s32.totalorder %s231, %s232
      %p244 = scmp.eq.s32.totalorder %s40, 1
      %p245 = por %p243, %p244
      %p247 = scmp.ne.s32.totalorder %s232, %s246
      %p248 = scmp.eq.s32.totalorder %s40, 0
      %p249 = por %p247, %p248
      %s251 = sadd.s32 %s250, 1
      %p254 = scmp.eq.s32.totalorder %s34, 1
      %p255 = scmp.ne.s32.totalorder %s250, %s252
      %p256 = scmp.eq.s32.totalorder %s34, 0
      %p257 = por %p255, %p256
      %p258 = scmp.ne.s32.totalorder %s250, %s252
      %p259 = scmp.eq.s32.totalorder %s39, 1
      %p260 = por %p258, %p259
      %p261 = scmp.ne.s32.totalorder %s252, %s253
      %p262 = scmp.eq.s32.totalorder %s39, 0
      %p263 = por %p261, %p262
      %p264 = scmp.ne.s32.totalorder %s252, %s253
      %p265 = scmp.eq.s32.totalorder %s40, 1
      %p266 = por %p264, %p265
      %p268 = scmp.ne.s32.totalorder %s253, %s267
      %p269 = scmp.eq.s32.totalorder %s40, 0
      %p270 = por %p268, %p269
      %s272 = sadd.s32 %s271, 1
      %p275 = scmp.eq.s32.totalorder %s34, 1
      %p276 = scmp.ne.s32.totalorder %s271, %s273
      %p277 = scmp.eq.s32.totalorder %s34, 0
      %p278 = por %p276, %p277
      %p279 = scmp.ne.s32.totalorder %s271, %s273
      %p280 = scmp.eq.s32.totalorder %s39, 1
      %p281 = por %p279, %p280
      %p282 = scmp.ne.s32.totalorder %s273, %s274
      %p283 = scmp.eq.s32.totalorder %s39, 0
      %p284 = por %p282, %p283
      %p285 = scmp.ne.s32.totalorder %s273, %s274
      %p286 = scmp.eq.s32.totalorder %s40, 1
      %p287 = por %p285, %p286
      %p289 = scmp.ne.s32.totalorder %s274, %s288
      %p290 = scmp.eq.s32.totalorder %s40, 0
      %p291 = por %p289, %p290
      %s293 = sadd.s32 %s292, 1
      %p296 = scmp.eq.s32.totalorder %s34, 1
      %p297 = scmp.ne.s32.totalorder %s292, %s294
      %p298 = scmp.eq.s32.totalorder %s34, 0
      %p299 = por %p297, %p298
      %p300 = scmp.ne.s32.totalorder %s292, %s294
      %p301 = scmp.eq.s32.totalorder %s39, 1
      %p302 = por %p300, %p301
      %p303 = scmp.ne.s32.totalorder %s294, %s295
      %p304 = scmp.eq.s32.totalorder %s39, 0
      %p305 = por %p303, %p304
      %p306 = scmp.ne.s32.totalorder %s294, %s295
      %p307 = scmp.eq.s32.totalorder %s40, 1
      %p308 = por %p306, %p307
      %p310 = scmp.ne.s32.totalorder %s295, %s309
      %p311 = scmp.eq.s32.totalorder %s40, 0
      %p312 = por %p310, %p311
      %s314 = sadd.s32 %s313, 1
      %p317 = scmp.eq.s32.totalorder %s34, 1
      %p318 = scmp.ne.s32.totalorder %s313, %s315
      %p319 = scmp.eq.s32.totalorder %s34, 0
      %p320 = por %p318, %p319
      %p321 = scmp.ne.s32.totalorder %s313, %s315
      %p322 = scmp.eq.s32.totalorder %s39, 1
      %p323 = por %p321, %p322
      %p324 = scmp.ne.s32.totalorder %s315, %s316
      %p325 = scmp.eq.s32.totalorder %s39, 0
      %p326 = por %p324, %p325
      %p327 = scmp.ne.s32.totalorder %s315, %s316
      %p328 = scmp.eq.s32.totalorder %s40, 1
      %p329 = por %p327, %p328
      %p331 = scmp.ne.s32.totalorder %s316, %s330
      %p332 = scmp.eq.s32.totalorder %s40, 0
      %p333 = por %p331, %p332
      %s335 = sadd.s32 %s334, 1
      %p338 = scmp.eq.s32.totalorder %s34, 1
      %p339 = scmp.ne.s32.totalorder %s334, %s336
      %p340 = scmp.eq.s32.totalorder %s34, 0
      %p341 = por %p339, %p340
      %p342 = scmp.ne.s32.totalorder %s334, %s336
      %p343 = scmp.eq.s32.totalorder %s39, 1
      %p344 = por %p342, %p343
      %p345 = scmp.ne.s32.totalorder %s336, %s337
      %p346 = scmp.eq.s32.totalorder %s39, 0
      %p347 = por %p345, %p346
      %p348 = scmp.ne.s32.totalorder %s336, %s337
      %p349 = scmp.eq.s32.totalorder %s40, 1
      %p350 = por %p348, %p349
      %p352 = scmp.ne.s32.totalorder %s337, %s351
      %p353 = scmp.eq.s32.totalorder %s40, 0
      %p354 = por %p352, %p353
      %s356 = sadd.s32 %s355, 1
      %p359 = scmp.eq.s32.totalorder %s34, 1
      %p360 = scmp.ne.s32.totalorder %s355, %s357
      %p361 = scmp.eq.s32.totalorder %s34, 0
      %p362 = por %p360, %p361
      %p363 = scmp.ne.s32.totalorder %s355, %s357
      %p364 = scmp.eq.s32.totalorder %s39, 1
      %p365 = por %p363, %p364
      %p366 = scmp.ne.s32.totalorder %s357, %s358
      %p367 = scmp.eq.s32.totalorder %s39, 0
      %p368 = por %p366, %p367
      %p369 = scmp.ne.s32.totalorder %s357, %s358
      %p370 = scmp.eq.s32.totalorder %s40, 1
      %p371 = por %p369, %p370
      %p373 = scmp.ne.s32.totalorder %s358, %s372
      %p374 = scmp.eq.s32.totalorder %s40, 0
      %p375 = por %p373, %p374
      %s377 = sadd.s32 %s376, 1
      %p380 = scmp.eq.s32.totalorder %s34, 1
      %p381 = scmp.ne.s32.totalorder %s376, %s378
      %p382 = scmp.eq.s32.totalorder %s34, 0
      %p383 = por %p381, %p382
      %p384 = scmp.ne.s32.totalorder %s376, %s378
      %p385 = scmp.eq.s32.totalorder %s39, 1
      %p386 = por %p384, %p385
      %p387 = scmp.ne.s32.totalorder %s378, %s379
      %p388 = scmp.eq.s32.totalorder %s39, 0
      %p389 = por %p387, %p388
      %p390 = scmp.ne.s32.totalorder %s378, %s379
      %p391 = scmp.eq.s32.totalorder %s40, 1
      %p392 = por %p390, %p391
      %p394 = scmp.ne.s32.totalorder %s379, %s393
      %p395 = scmp.eq.s32.totalorder %s40, 0
      %p396 = por %p394, %p395
      %s398 = sadd.s32 %s397, 1
      %p401 = scmp.eq.s32.totalorder %s34, 1
      %p402 = scmp.ne.s32.totalorder %s397, %s399
      %p403 = scmp.eq.s32.totalorder %s34, 0
      %p404 = por %p402, %p403
      %p405 = scmp.ne.s32.totalorder %s397, %s399
      %p406 = scmp.eq.s32.totalorder %s39, 1
      %p407 = por %p405, %p406
      %p408 = scmp.ne.s32.totalorder %s399, %s400
      %p409 = scmp.eq.s32.totalorder %s39, 0
      %p410 = por %p408, %p409
      %p411 = scmp.ne.s32.totalorder %s399, %s400
      %p412 = scmp.eq.s32.totalorder %s40, 1
      %p413 = por %p411, %p412
      %p415 = scmp.ne.s32.totalorder %s400, %s414
      %p416 = scmp.eq.s32.totalorder %s40, 0
      %p417 = por %p415, %p416
      %s419 = sadd.s32 %s418, 1
      %p422 = scmp.eq.s32.totalorder %s34, 1
      %p423 = scmp.ne.s32.totalorder %s418, %s420
      %p424 = scmp.eq.s32.totalorder %s34, 0
      %p425 = por %p423, %p424
      %p426 = scmp.ne.s32.totalorder %s418, %s420
      %p427 = scmp.eq.s32.totalorder %s39, 1
      %p428 = por %p426, %p427
      %p429 = scmp.ne.s32.totalorder %s420, %s421
      %p430 = scmp.eq.s32.totalorder %s39, 0
      %p431 = por %p429, %p430
      %p432 = scmp.ne.s32.totalorder %s420, %s421
      %p433 = scmp.eq.s32.totalorder %s40, 1
      %p434 = por %p432, %p433
      %p436 = scmp.ne.s32.totalorder %s421, %s435
      %p437 = scmp.eq.s32.totalorder %s40, 0
      %p438 = por %p436, %p437
      %s439 = ssub.s32 %s42, %s49
      %s440 = ssub.s32 %s41, %s53
      %s441 = sor.u32 %s439, %s440
      %p442 = scmp.eq.s32.totalorder %s441, 0
      %s444 = sadd.s32 %s443, 1
      %s445 = scalar_select %p442, %s443, %s444
      %p448 = pneg %p442
      %p449 = scmp.eq.s32.totalorder %s34, 1
      %p450 = por %p448, %p449
      %p451 = scmp.ne.s32.totalorder %s443, %s446
      %p452 = scmp.eq.s32.totalorder %s34, 0
      %p453 = por %p451, %p452
      %p454 = scmp.ne.s32.totalorder %s443, %s446
      %p455 = scmp.eq.s32.totalorder %s39, 1
      %p456 = por %p454, %p455
      %p457 = scmp.ne.s32.totalorder %s446, %s447
      %p458 = scmp.eq.s32.totalorder %s39, 0
      %p459 = por %p457, %p458
      %p460 = scmp.ne.s32.totalorder %s446, %s447
      %p461 = scmp.eq.s32.totalorder %s40, 1
      %p462 = por %p460, %p461
      %p464 = scmp.ne.s32.totalorder %s447, %s463
      %p465 = scmp.eq.s32.totalorder %s40, 0
      %p466 = por %p464, %p465
      %p467 = scmp.le.s32.totalorder 1, %s34
      %p468 = scmp.lt.s32.totalorder %s34, 3
      %p469 = pnand %p467, %p468
      %p470 = pneg %p469
      // Predicated region
      $region9: #{tpu_custom_call.1} parent=5 // pred_check
        _
      $region10: #{tpu_custom_call.1} parent=5 // pred_check_branch
        %472 = sbr.rel (%p469) target = $region12
      $region11: #{tpu_custom_call.1} parent=5 // pred_region
        %s473 = ssub.s32 %s34, 1
        // Predicated region
        $region13: #{tpu_custom_call.1} parent=11 // pred_check
          %p474 = pneg %p95
        $region14: #{tpu_custom_call.1} parent=11 // pred_check_branch
          %476 = sbr.rel (%p474) target = $region16
        $region15: #{tpu_custom_call.1} parent=11 // pred_region
          %478 = vsyncadd [#allocation10], 0
          %s479 = sshll.u32 %s1, 4
          %s480 = int_to_ptr.hbm [resolvable:$true] %s479
          %s481 = sshll.u32 [#allocation9], 4
          %s482 = int_to_ptr.vmem [resolvable:$true] %s481
          %487 = dma.hbm_to_vmem [thread:$0]  %s480, 12288, %s482, [#allocation10], 768, 768, 48
        $region16: #{tpu_custom_call.1} parent=11 // pred_fallthru
          _
        // Predicated region
        $region17: #{tpu_custom_call.1} parent=11 // pred_check
          %p488 = pneg %p116
        $region18: #{tpu_custom_call.1} parent=11 // pred_check_branch
          %490 = sbr.rel (%p488) target = $region20
        $region19: #{tpu_custom_call.1} parent=11 // pred_region
          %492 = vsyncadd [#allocation10], 0
          %s493 = sshll.u32 %s2, 4
          %s494 = int_to_ptr.hbm [resolvable:$true] %s493
          %s495 = sshll.u32 [#allocation11], 4
          %s496 = int_to_ptr.vmem [resolvable:$true] %s495
          %501 = dma.hbm_to_vmem [thread:$0]  %s494, 1536, %s496, [#allocation10], 768, 768, 48
        $region20: #{tpu_custom_call.1} parent=11 // pred_fallthru
          _
        // Predicated region
        $region21: #{tpu_custom_call.1} parent=11 // pred_check
          %p502 = pneg %p137
        $region22: #{tpu_custom_call.1} parent=11 // pred_check_branch
          %504 = sbr.rel (%p502) target = $region24
        $region23: #{tpu_custom_call.1} parent=11 // pred_region
          _
        $region24: #{tpu_custom_call.1} parent=11 // pred_fallthru
          _
        // Predicated region
        $region25: #{tpu_custom_call.1} parent=11 // pred_check
          %p505 = pneg %p158
        $region26: #{tpu_custom_call.1} parent=11 // pred_check_branch
          %507 = sbr.rel (%p505) target = $region28
        $region27: #{tpu_custom_call.1} parent=11 // pred_region
          _
        $region28: #{tpu_custom_call.1} parent=11 // pred_fallthru
          _
        // Predicated region
        $region29: #{tpu_custom_call.1} parent=11 // pred_check
          %p508 = pneg %p179
        $region30: #{tpu_custom_call.1} parent=11 // pred_check_branch
          %510 = sbr.rel (%p508) target = $region32
        $region31: #{tpu_custom_call.1} parent=11 // pred_region
          %512 = vsyncadd [#allocation13], 0
          %s513 = sshll.u32 %s5, 4
          %s514 = int_to_ptr.hbm [resolvable:$true] %s513
          %s515 = sshll.u32 [#allocation12], 4
          %s516 = int_to_ptr.vmem [resolvable:$true] %s515
          %521 = dma.hbm_to_vmem [thread:$0]  %s514, 10240, %s516, [#allocation13], 640, 640, 40
        $region32: #{tpu_custom_call.1} parent=11 // pred_fallthru
          _
        // Predicated region
        $region33: #{tpu_custom_call.1} parent=11 // pred_check
          %p522 = pneg %p200
        $region34: #{tpu_custom_call.1} parent=11 // pred_check_branch
          %524 = sbr.rel (%p522) target = $region36
        $region35: #{tpu_custom_call.1} parent=11 // pred_region
          _
        $region36: #{tpu_custom_call.1} parent=11 // pred_fallthru
          _
        // Predicated region
        $region37: #{tpu_custom_call.1} parent=11 // pred_check
          %p525 = pneg %p221
        $region38: #{tpu_custom_call.1} parent=11 // pred_check_branch
          %527 = sbr.rel (%p525) target = $region40
        $region39: #{tpu_custom_call.1} parent=11 // pred_region
          %529 = vsyncadd [#allocation13], 0
          %s530 = sshll.u32 %s7, 4
          %s531 = int_to_ptr.hbm [resolvable:$true] %s530
          %s532 = sshll.u32 [#allocation14], 4
          %s533 = int_to_ptr.vmem [resolvable:$true] %s532
          %538 = dma.hbm_to_vmem [thread:$0]  %s531, 2048, %s533, [#allocation13], 128, 128, 8
        $region40: #{tpu_custom_call.1} parent=11 // pred_fallthru
          _
        // Predicated region
        $region41: #{tpu_custom_call.1} parent=11 // pred_check
          %p539 = pneg %p242
        $region42: #{tpu_custom_call.1} parent=11 // pred_check_branch
          %541 = sbr.rel (%p539) target = $region44
        $region43: #{tpu_custom_call.1} parent=11 // pred_region
          %543 = vsyncadd [#allocation16], 0
          %s544 = sshll.u32 %s8, 4
          %s545 = int_to_ptr.hbm [resolvable:$true] %s544
          %s546 = sshll.u32 [#allocation15], 4
          %s547 = int_to_ptr.vmem [resolvable:$true] %s546
          %552 = dma.hbm_to_vmem [thread:$0]  %s545, 2048, %s547, [#allocation16], 128, 128, 8
        $region44: #{tpu_custom_call.1} parent=11 // pred_fallthru
          _
        // Predicated region
        $region45: #{tpu_custom_call.1} parent=11 // pred_check
          %p553 = pneg %p263
        $region46: #{tpu_custom_call.1} parent=11 // pred_check_branch
          %555 = sbr.rel (%p553) target = $region48
        $region47: #{tpu_custom_call.1} parent=11 // pred_region
          %557 = vsyncadd [#allocation16], 0
          %s558 = sshll.u32 %s9, 4
          %s559 = int_to_ptr.hbm [resolvable:$true] %s558
          %s560 = sshll.u32 [#allocation17], 4
          %s561 = int_to_ptr.vmem [resolvable:$true] %s560
          %566 = dma.hbm_to_vmem [thread:$0]  %s559, 2048, %s561, [#allocation16], 128, 128, 8
        $region48: #{tpu_custom_call.1} parent=11 // pred_fallthru
          _
        // Predicated region
        $region49: #{tpu_custom_call.1} parent=11 // pred_check
          %p567 = pneg %p284
        $region50: #{tpu_custom_call.1} parent=11 // pred_check_branch
          %569 = sbr.rel (%p567) target = $region52
        $region51: #{tpu_custom_call.1} parent=11 // pred_region
          _
        $region52: #{tpu_custom_call.1} parent=11 // pred_fallthru
          _
        // Predicated region
        $region53: #{tpu_custom_call.1} parent=11 // pred_check
          %p570 = pneg %p305
        $region54: #{tpu_custom_call.1} parent=11 // pred_check_branch
          %572 = sbr.rel (%p570) target = $region56
        $region55: #{tpu_custom_call.1} parent=11 // pred_region
          _
        $region56: #{tpu_custom_call.1} parent=11 // pred_fallthru
          _
        // Predicated region
        $region57: #{tpu_custom_call.1} parent=11 // pred_check
          %p573 = pneg %p326
        $region58: #{tpu_custom_call.1} parent=11 // pred_check_branch
          %575 = sbr.rel (%p573) target = $region60
        $region59: #{tpu_custom_call.1} parent=11 // pred_region
          %577 = vsyncadd [#allocation19], 0
          %s578 = sshll.u32 %s12, 4
          %s579 = int_to_ptr.hbm [resolvable:$true] %s578
          %s580 = sshll.u32 [#allocation18], 4
          %s581 = int_to_ptr.vmem [resolvable:$true] %s580
          %586 = dma.hbm_to_vmem [thread:$0]  %s579, 2048, %s581, [#allocation19], 128, 128, 8
        $region60: #{tpu_custom_call.1} parent=11 // pred_fallthru
          _
        // Predicated region
        $region61: #{tpu_custom_call.1} parent=11 // pred_check
          %p587 = pneg %p347
        $region62: #{tpu_custom_call.1} parent=11 // pred_check_branch
          %589 = sbr.rel (%p587) target = $region64
        $region63: #{tpu_custom_call.1} parent=11 // pred_region
          %591 = vsyncadd [#allocation19], 0
          %s592 = sshll.u32 %s13, 4
          %s593 = int_to_ptr.hbm [resolvable:$true] %s592
          %s594 = sshll.u32 [#allocation20], 4
          %s595 = int_to_ptr.vmem [resolvable:$true] %s594
          %600 = dma.hbm_to_vmem [thread:$0]  %s593, 2048, %s595, [#allocation19], 128, 128, 8
        $region64: #{tpu_custom_call.1} parent=11 // pred_fallthru
          _
        // Predicated region
        $region65: #{tpu_custom_call.1} parent=11 // pred_check
          %p601 = pneg %p368
        $region66: #{tpu_custom_call.1} parent=11 // pred_check_branch
          %603 = sbr.rel (%p601) target = $region68
        $region67: #{tpu_custom_call.1} parent=11 // pred_region
          %605 = vsyncadd [#allocation22], 0
          %s606 = sshll.u32 %s14, 4
          %s607 = int_to_ptr.hbm [resolvable:$true] %s606
          %s608 = sshll.u32 [#allocation21], 4
          %s609 = int_to_ptr.vmem [resolvable:$true] %s608
          %614 = dma.hbm_to_vmem [thread:$0]  %s607, 256, %s609, [#allocation22], 128, 128, 8
        $region68: #{tpu_custom_call.1} parent=11 // pred_fallthru
          _
        // Predicated region
        $region69: #{tpu_custom_call.1} parent=11 // pred_check
          %p615 = pneg %p389
        $region70: #{tpu_custom_call.1} parent=11 // pred_check_branch
          %617 = sbr.rel (%p615) target = $region72
        $region71: #{tpu_custom_call.1} parent=11 // pred_region
          _
        $region72: #{tpu_custom_call.1} parent=11 // pred_fallthru
          _
        // Predicated region
        $region73: #{tpu_custom_call.1} parent=11 // pred_check
          %p618 = pneg %p410
        $region74: #{tpu_custom_call.1} parent=11 // pred_check_branch
          %620 = sbr.rel (%p618) target = $region76
        $region75: #{tpu_custom_call.1} parent=11 // pred_region
          _
        $region76: #{tpu_custom_call.1} parent=11 // pred_fallthru
          _
        // Predicated region
        $region77: #{tpu_custom_call.1} parent=11 // pred_check
          %p621 = pneg %p431
        $region78: #{tpu_custom_call.1} parent=11 // pred_check_branch
          %623 = sbr.rel (%p621) target = $region80
        $region79: #{tpu_custom_call.1} parent=11 // pred_region
          _
        $region80: #{tpu_custom_call.1} parent=11 // pred_fallthru
          _
      $region12: #{tpu_custom_call.1} parent=5 // pred_fallthru
        _
      %p624 = scmp.lt.s32.totalorder %s34, 2
      // Predicated region
      $region81: #{tpu_custom_call.1} parent=5 // pred_check
        %p625 = pneg %p624
      $region82: #{tpu_custom_call.1} parent=5 // pred_check_branch
        %627 = sbr.rel (%p625) target = $region84
      $region83: #{tpu_custom_call.1} parent=5 // pred_region
        // Predicated region
        $region85: #{tpu_custom_call.1} parent=83 // pred_check
          %p628 = pneg %p68
        $region86: #{tpu_custom_call.1} parent=83 // pred_check_branch
          %630 = sbr.rel (%p628) target = $region88
        $region87: #{tpu_custom_call.1} parent=83 // pred_region
          %s631 = sand.u32 %s58, 1
          %s632 = scalar_lea.sflag [#allocation8], %s631
          %s633 = sand.u32 %s58, 1
          %s634 = smul.addr %s633, 40
          %s635 = scalar_lea.vmem [#allocation7], %s634
          %s636 = smul.u32 5, %s42
          %638 = vsyncadd %s632, 0
          %s639 = sadd.s32 %s41, %s636
          %s640 = smul.addr %s639, 8
          %s641 = scalar_lea.hbm %s0, %s640
          %s642 = sshll.u32 %s641, 4
          %s643 = int_to_ptr.hbm [resolvable:$true] %s642
          %s644 = sshll.u32 %s635, 4
          %s645 = int_to_ptr.vmem [resolvable:$true] %s644
          %650 = dma.hbm_to_vmem [thread:$0]  %s643, 640, %s645, %s632, 128, 128, 8
        $region88: #{tpu_custom_call.1} parent=83 // pred_fallthru
          _
      $region84: #{tpu_custom_call.1} parent=5 // pred_fallthru
        _
      %p651 = scmp.le.s32.totalorder 1, %s34
      %p652 = scmp.lt.s32.totalorder %s34, 3
      %p653 = pnand %p651, %p652
      %p654 = pneg %p653
      // Predicated region
      $region89: #{tpu_custom_call.1} parent=5 // pred_check
        _
      $region90: #{tpu_custom_call.1} parent=5 // pred_check_branch
        %656 = sbr.rel (%p653) target = $region92
      $region91: #{tpu_custom_call.1} parent=5 // pred_region
        %s657 = ssub.s32 %s34, 1
        %s658 = sand.u32 %s61, 1
        %s659 = scalar_lea.sflag [#allocation8], %s658
        %s660 = sand.u32 %s61, 1
        %s661 = smul.addr %s660, 40
        %s662 = scalar_lea.vmem [#allocation7], %s661
        // Predicated region
        $region93: #{tpu_custom_call.1} parent=91 // pred_check
          %p663 = pneg %p74
        $region94: #{tpu_custom_call.1} parent=91 // pred_check_branch
          %665 = sbr.rel (%p663) target = $region96
        $region95: #{tpu_custom_call.1} parent=91 // pred_region
          %667 = dma.done %s659, 640
        $region96: #{tpu_custom_call.1} parent=91 // pred_fallthru
          _
        // Predicated region
        $region97: #{tpu_custom_call.1} parent=91 // pred_check
          %p668 = pneg %p95
        $region98: #{tpu_custom_call.1} parent=91 // pred_check_branch
          %670 = sbr.rel (%p668) target = $region100
        $region99: #{tpu_custom_call.1} parent=91 // pred_region
          %672 = dma.done [#allocation10], 12288
        $region100: #{tpu_custom_call.1} parent=91 // pred_fallthru
          _
        // Predicated region
        $region101: #{tpu_custom_call.1} parent=91 // pred_check
          %p673 = pneg %p116
        $region102: #{tpu_custom_call.1} parent=91 // pred_check_branch
          %675 = sbr.rel (%p673) target = $region104
        $region103: #{tpu_custom_call.1} parent=91 // pred_region
          %677 = dma.done [#allocation10], 1536
        $region104: #{tpu_custom_call.1} parent=91 // pred_fallthru
          _
        // Predicated region
        $region105: #{tpu_custom_call.1} parent=91 // pred_check
          %p678 = pneg %p179
        $region106: #{tpu_custom_call.1} parent=91 // pred_check_branch
          %680 = sbr.rel (%p678) target = $region108
        $region107: #{tpu_custom_call.1} parent=91 // pred_region
          %682 = dma.done [#allocation13], 10240
        $region108: #{tpu_custom_call.1} parent=91 // pred_fallthru
          _
        // Predicated region
        $region109: #{tpu_custom_call.1} parent=91 // pred_check
          %p683 = pneg %p221
        $region110: #{tpu_custom_call.1} parent=91 // pred_check_branch
          %685 = sbr.rel (%p683) target = $region112
        $region111: #{tpu_custom_call.1} parent=91 // pred_region
          %687 = dma.done [#allocation13], 2048
        $region112: #{tpu_custom_call.1} parent=91 // pred_fallthru
          _
        // Predicated region
        $region113: #{tpu_custom_call.1} parent=91 // pred_check
          %p688 = pneg %p242
        $region114: #{tpu_custom_call.1} parent=91 // pred_check_branch
          %690 = sbr.rel (%p688) target = $region116
        $region115: #{tpu_custom_call.1} parent=91 // pred_region
          %692 = dma.done [#allocation16], 2048
        $region116: #{tpu_custom_call.1} parent=91 // pred_fallthru
          _
        // Predicated region
        $region117: #{tpu_custom_call.1} parent=91 // pred_check
          %p693 = pneg %p263
        $region118: #{tpu_custom_call.1} parent=91 // pred_check_branch
          %695 = sbr.rel (%p693) target = $region120
        $region119: #{tpu_custom_call.1} parent=91 // pred_region
          %697 = dma.done [#allocation16], 2048
        $region120: #{tpu_custom_call.1} parent=91 // pred_fallthru
          _
        // Predicated region
        $region121: #{tpu_custom_call.1} parent=91 // pred_check
          %p698 = pneg %p326
        $region122: #{tpu_custom_call.1} parent=91 // pred_check_branch
          %700 = sbr.rel (%p698) target = $region124
        $region123: #{tpu_custom_call.1} parent=91 // pred_region
          %702 = dma.done [#allocation19], 2048
        $region124: #{tpu_custom_call.1} parent=91 // pred_fallthru
          _
        // Predicated region
        $region125: #{tpu_custom_call.1} parent=91 // pred_check
          %p703 = pneg %p347
        $region126: #{tpu_custom_call.1} parent=91 // pred_check_branch
          %705 = sbr.rel (%p703) target = $region128
        $region127: #{tpu_custom_call.1} parent=91 // pred_region
          %707 = dma.done [#allocation19], 2048
        $region128: #{tpu_custom_call.1} parent=91 // pred_fallthru
          _
        // Predicated region
        $region129: #{tpu_custom_call.1} parent=91 // pred_check
          %p708 = pneg %p368
        $region130: #{tpu_custom_call.1} parent=91 // pred_check_branch
          %710 = sbr.rel (%p708) target = $region132
        $region131: #{tpu_custom_call.1} parent=91 // pred_region
          %712 = dma.done [#allocation22], 256
        $region132: #{tpu_custom_call.1} parent=91 // pred_fallthru
          _
        %s713 = sand.u32 %s61, 1
        %s714 = scalar_lea.sflag [#allocation8], %s713
        %s715 = sand.u32 %s61, 1
        %s716 = smul.addr %s715, 40
        %s717 = scalar_lea.vmem [#allocation7], %s716
        %p718 = pneg %p74
        %p719 = pneg %p71
        %p720 = pneg %p95
        %p721 = pneg %p92
        %p722 = pneg %p116
        %p723 = pneg %p113
        %p724 = pneg %p137
        %p725 = pneg %p134
        %p726 = pneg %p158
        %p727 = pneg %p155
        %p728 = pneg %p179
        %p729 = pneg %p176
        %p730 = pneg %p200
        %p731 = pneg %p197
        %p732 = pneg %p221
        %p733 = pneg %p218
        %p734 = pneg %p242
        %p735 = pneg %p239
        %p736 = pneg %p263
        %p737 = pneg %p260
        %p738 = pneg %p284
        %p739 = pneg %p281
        %p740 = pneg %p305
        %p741 = pneg %p302
        %p742 = pneg %p326
        %p743 = pneg %p323
        %p744 = pneg %p347
        %p745 = pneg %p344
        %p746 = pneg %p368
        %p747 = pneg %p365
        %p748 = pneg %p389
        %p749 = pneg %p386
        %p750 = pneg %p410
        %p751 = pneg %p407
        %p752 = pneg %p431
        %p753 = pneg %p428
        %p754 = pneg %p459
        %p755 = pneg %p456
        %p756 = scmp.lt.s32.totalorder %s44, 1
        %s757 = scalar_select %p756, %s44, 1
        %p758 = scmp.lt.s32.totalorder %s43, 0
        %s759 = scalar_select %p758, %s43, 0
        %s760 = sadd.s32 %s759, %s757
        %s761 = smul.addr %s760, 8
        %s762 = scalar_lea.vmem %s18, %s761
        %s763 = smul.u32 5, %s44
        %p764 = scmp.lt.s32.totalorder %s44, 1
        %s765 = scalar_select %p764, %s44, 1
        %p766 = scmp.lt.s32.totalorder %s43, 0
        %s767 = scalar_select %p766, %s43, 0
        %s768 = sadd.s32 %s767, %s765
        %s769 = smul.addr %s768, 8
        %s770 = scalar_lea.vmem %s18, %s769
        %p771 = scmp.eq.s32.totalorder %s44, 0
        // Predicated region
        $region133: #{tpu_custom_call.1} parent=91 // pred_check
          %p772 = pneg %p771
        $region134: #{tpu_custom_call.1} parent=91 // pred_check_branch
          %774 = sbr.rel (%p772) target = $region136
        $region135: #{tpu_custom_call.1} parent=91 // pred_region
          %775 = vst [vmem:[#allocation2] sm:$0xff] 0.0
          %776 = vst [vmem:[#allocation3] sm:$0xff] 0.0
          %777 = vst [vmem:[#allocation4] sm:$0xff] 0.0
          %778 = vst [vmem:[#allocation4 + $0x8] sm:$0xff] 0.0
          %779 = vst [vmem:[#allocation4 + $0x10] sm:$0xff] 0.0
          %780 = vst [vmem:[#allocation4 + $0x18] sm:$0xff] 0.0
          %781 = vst [vmem:[#allocation5] sm:$0xff] 0.0
          %782 = vst [vmem:[#allocation5 + $0x8] sm:$0xff] 0.0
          %783 = vst [vmem:[#allocation5 + $0x10] sm:$0xff] 0.0
          %784 = vst [vmem:[#allocation5 + $0x18] sm:$0xff] 0.0
        $region136: #{tpu_custom_call.1} parent=91 // pred_fallthru
          _
        %v785 = vld [vmem:[#allocation2] sm:$0xff]
        %v786 = vld [vmem:[#allocation3] sm:$0xff]
        %s787 = smul.u32 %s44, 5
        %v788 = vld [vmem:[%s662] sm:$0xff]
        %v789 = vld [vmem:[#allocation9] sm:$0xff]
        %v790 = vld [vmem:[#allocation9 + $0x8] sm:$0xff]
        %v791 = vld [vmem:[#allocation9 + $0x10] sm:$0xff]
        %v792 = vld [vmem:[#allocation9 + $0x18] sm:$0xff]
        %v793 = vld [vmem:[#allocation9 + $0x20] sm:$0xff]
        %v794 = vld [vmem:[#allocation9 + $0x28] sm:$0xff]
        %v795 = vld [vmem:[#allocation9 + $0x30] sm:$0xff]
        %v796 = vld [vmem:[#allocation9 + $0x38] sm:$0xff]
        %v797 = vld [vmem:[#allocation9 + $0x40] sm:$0xff]
        %v798 = vld [vmem:[#allocation9 + $0x48] sm:$0xff]
        %v799 = vld [vmem:[#allocation9 + $0x50] sm:$0xff]
        %v800 = vld [vmem:[#allocation9 + $0x58] sm:$0xff]
        %v801 = vld [vmem:[#allocation9 + $0x60] sm:$0xff]
        %v802 = vld [vmem:[#allocation9 + $0x68] sm:$0xff]
        %v803 = vld [vmem:[#allocation9 + $0x70] sm:$0xff]
        %v804 = vld [vmem:[#allocation9 + $0x78] sm:$0xff]
        %v805 = vld [vmem:[#allocation9 + $0x80] sm:$0xff]
        %v806 = vld [vmem:[#allocation9 + $0x88] sm:$0xff]
        %v807 = vld [vmem:[#allocation9 + $0x90] sm:$0xff]
        %v808 = vld [vmem:[#allocation9 + $0x98] sm:$0xff]
        %v809 = vld [vmem:[#allocation9 + $0xa0] sm:$0xff]
        %v810 = vld [vmem:[#allocation9 + $0xa8] sm:$0xff]
        %v811 = vld [vmem:[#allocation9 + $0xb0] sm:$0xff]
        %v812 = vld [vmem:[#allocation9 + $0xb8] sm:$0xff]
        %v813 = vld [vmem:[#allocation9 + $0xc0] sm:$0xff]
        %v814 = vld [vmem:[#allocation9 + $0xc8] sm:$0xff]
        %v815 = vld [vmem:[#allocation9 + $0xd0] sm:$0xff]
        %v816 = vld [vmem:[#allocation9 + $0xd8] sm:$0xff]
        %v817 = vld [vmem:[#allocation9 + $0xe0] sm:$0xff]
        %v818 = vld [vmem:[#allocation9 + $0xe8] sm:$0xff]
        %v819 = vld [vmem:[#allocation9 + $0xf0] sm:$0xff]
        %v820 = vld [vmem:[#allocation9 + $0xf8] sm:$0xff]
        %v821 = vld [vmem:[#allocation9 + $0x100] sm:$0xff]
        %v822 = vld [vmem:[#allocation9 + $0x108] sm:$0xff]
        %v823 = vld [vmem:[#allocation9 + $0x110] sm:$0xff]
        %v824 = vld [vmem:[#allocation9 + $0x118] sm:$0xff]
        %v825 = vld [vmem:[#allocation9 + $0x120] sm:$0xff]
        %v826 = vld [vmem:[#allocation9 + $0x128] sm:$0xff]
        %v827 = vld [vmem:[#allocation9 + $0x130] sm:$0xff]
        %v828 = vld [vmem:[#allocation9 + $0x138] sm:$0xff]
        %v829 = vld [vmem:[#allocation9 + $0x140] sm:$0xff]
        %v830 = vld [vmem:[#allocation9 + $0x148] sm:$0xff]
        %v831 = vld [vmem:[#allocation9 + $0x150] sm:$0xff]
        %v832 = vld [vmem:[#allocation9 + $0x158] sm:$0xff]
        %v833 = vld [vmem:[#allocation9 + $0x160] sm:$0xff]
        %v834 = vld [vmem:[#allocation9 + $0x168] sm:$0xff]
        %v835 = vld [vmem:[#allocation9 + $0x170] sm:$0xff]
        %v836 = vld [vmem:[#allocation9 + $0x178] sm:$0xff]
        %v837 = vld [vmem:[#allocation9 + $0x180] sm:$0xff]
        %v838 = vld [vmem:[#allocation9 + $0x188] sm:$0xff]
        %v839 = vld [vmem:[#allocation9 + $0x190] sm:$0xff]
        %v840 = vld [vmem:[#allocation9 + $0x198] sm:$0xff]
        %v841 = vld [vmem:[#allocation9 + $0x1a0] sm:$0xff]
        %v842 = vld [vmem:[#allocation9 + $0x1a8] sm:$0xff]
        %v843 = vld [vmem:[#allocation9 + $0x1b0] sm:$0xff]
        %v844 = vld [vmem:[#allocation9 + $0x1b8] sm:$0xff]
        %v845 = vld [vmem:[#allocation9 + $0x1c0] sm:$0xff]
        %v846 = vld [vmem:[#allocation9 + $0x1c8] sm:$0xff]
        %v847 = vld [vmem:[#allocation9 + $0x1d0] sm:$0xff]
        %v848 = vld [vmem:[#allocation9 + $0x1d8] sm:$0xff]
        %v849 = vld [vmem:[#allocation9 + $0x1e0] sm:$0xff]
        %v850 = vld [vmem:[#allocation9 + $0x1e8] sm:$0xff]
        %v851 = vld [vmem:[#allocation9 + $0x1f0] sm:$0xff]
        %v852 = vld [vmem:[#allocation9 + $0x1f8] sm:$0xff]
        %v853 = vld [vmem:[#allocation9 + $0x200] sm:$0xff]
        %v854 = vld [vmem:[#allocation9 + $0x208] sm:$0xff]
        %v855 = vld [vmem:[#allocation9 + $0x210] sm:$0xff]
        %v856 = vld [vmem:[#allocation9 + $0x218] sm:$0xff]
        %v857 = vld [vmem:[#allocation9 + $0x220] sm:$0xff]
        %v858 = vld [vmem:[#allocation9 + $0x228] sm:$0xff]
        %v859 = vld [vmem:[#allocation9 + $0x230] sm:$0xff]
        %v860 = vld [vmem:[#allocation9 + $0x238] sm:$0xff]
        %v861 = vld [vmem:[#allocation9 + $0x240] sm:$0xff]
        %v862 = vld [vmem:[#allocation9 + $0x248] sm:$0xff]
        %v863 = vld [vmem:[#allocation9 + $0x250] sm:$0xff]
        %v864 = vld [vmem:[#allocation9 + $0x258] sm:$0xff]
        %v865 = vld [vmem:[#allocation9 + $0x260] sm:$0xff]
        %v866 = vld [vmem:[#allocation9 + $0x268] sm:$0xff]
        %v867 = vld [vmem:[#allocation9 + $0x270] sm:$0xff]
        %v868 = vld [vmem:[#allocation9 + $0x278] sm:$0xff]
        %v869 = vld [vmem:[#allocation9 + $0x280] sm:$0xff]
        %v870 = vld [vmem:[#allocation9 + $0x288] sm:$0xff]
        %v871 = vld [vmem:[#allocation9 + $0x290] sm:$0xff]
        %v872 = vld [vmem:[#allocation9 + $0x298] sm:$0xff]
        %v873 = vld [vmem:[#allocation9 + $0x2a0] sm:$0xff]
        %v874 = vld [vmem:[#allocation9 + $0x2a8] sm:$0xff]
        %v875 = vld [vmem:[#allocation9 + $0x2b0] sm:$0xff]
        %v876 = vld [vmem:[#allocation9 + $0x2b8] sm:$0xff]
        %v877 = vld [vmem:[#allocation9 + $0x2c0] sm:$0xff]
        %v878 = vld [vmem:[#allocation9 + $0x2c8] sm:$0xff]
        %v879 = vld [vmem:[#allocation9 + $0x2d0] sm:$0xff]
        %v880 = vld [vmem:[#allocation9 + $0x2d8] sm:$0xff]
        %v881 = vld [vmem:[#allocation9 + $0x2e0] sm:$0xff]
        %v882 = vld [vmem:[#allocation9 + $0x2e8] sm:$0xff]
        %v883 = vld [vmem:[#allocation9 + $0x2f0] sm:$0xff]
        %v884 = vld [vmem:[#allocation9 + $0x2f8] sm:$0xff]
        %v885 = vld [vmem:[#allocation11] sm:$0xff]
        %v886 = vld [vmem:[#allocation11 + $0x8] sm:$0xff]
        %v887 = vld [vmem:[#allocation11 + $0x10] sm:$0xff]
        %v888 = vld [vmem:[#allocation11 + $0x18] sm:$0xff]
        %v889 = vld [vmem:[#allocation11 + $0x20] sm:$0xff]
        %v890 = vld [vmem:[#allocation11 + $0x28] sm:$0xff]
        %v891 = vld [vmem:[#allocation11 + $0x30] sm:$0xff]
        %v892 = vld [vmem:[#allocation11 + $0x38] sm:$0xff]
        %v893 = vld [vmem:[#allocation11 + $0x40] sm:$0xff]
        %v894 = vld [vmem:[#allocation11 + $0x48] sm:$0xff]
        %v895 = vld [vmem:[#allocation11 + $0x50] sm:$0xff]
        %v896 = vld [vmem:[#allocation11 + $0x58] sm:$0xff]
        %vm897 = vcmask 130048
        %v899 = vsel %vm897, %v788, 0
        %901 = vmatpush.msra.mxu0 0.0
        %902 = vmatpush.msra.mxu0 0.0
        %903 = vmatpush.msra.mxu0 0.0
        %904 = vmatpush.msra.mxu0 0.0
        %905 = vmatpush.msra.mxu0 0.0
        %906 = vmatpush.msra.mxu0 0.0
        %907 = vmatpush.msra.mxu0 0.0
        %908 = vmatpush.msra.mxu0 0.0
        %909 = vmatpush.msra.mxu0 0.0
        %910 = vmatpush.msra.mxu0 0.0
        %911 = vmatpush.msra.mxu0 0.0
        %912 = vmatpush.msra.mxu0 0.0
        %913 = vmatpush.msra.mxu0 0.0
        %914 = vmatpush.msra.mxu0 0.0
        %915 = vmatpush.msra.mxu0 %v891
        %916 = vmatpush.msra.mxu0 %v885
        %917 = vmatmul.f32.gmra.mxu0 %v899
        %v918 = vpop.f32.mrf.mxu0
        %v919 = vadd.f32 0.0, %v918
        %920 = vdwg.mxu0
        %921 = vmatpush.msra.mxu0 0.0
        %922 = vmatpush.msra.mxu0 0.0
        %923 = vmatpush.msra.mxu0 0.0
        %924 = vmatpush.msra.mxu0 0.0
        %925 = vmatpush.msra.mxu0 0.0
        %926 = vmatpush.msra.mxu0 0.0
        %927 = vmatpush.msra.mxu0 0.0
        %928 = vmatpush.msra.mxu0 0.0
        %929 = vmatpush.msra.mxu0 0.0
        %930 = vmatpush.msra.mxu0 0.0
        %931 = vmatpush.msra.mxu0 0.0
        %932 = vmatpush.msra.mxu0 0.0
        %933 = vmatpush.msra.mxu0 0.0
        %934 = vmatpush.msra.mxu0 0.0
        %935 = vmatpush.msra.mxu0 %v892
        %936 = vmatpush.msra.mxu0 %v886
        %937 = vmatmul.f32.gmra.mxu0 %v899
        %v938 = vpop.f32.mrf.mxu0
        %v939 = vadd.f32 0.0, %v938
        %940 = vdwg.mxu0
        %941 = vmatpush.msra.mxu0 0.0
        %942 = vmatpush.msra.mxu0 0.0
        %943 = vmatpush.msra.mxu0 0.0
        %944 = vmatpush.msra.mxu0 0.0
        %945 = vmatpush.msra.mxu0 0.0
        %946 = vmatpush.msra.mxu0 0.0
        %947 = vmatpush.msra.mxu0 0.0
        %948 = vmatpush.msra.mxu0 0.0
        %949 = vmatpush.msra.mxu0 0.0
        %950 = vmatpush.msra.mxu0 0.0
        %951 = vmatpush.msra.mxu0 0.0
        %952 = vmatpush.msra.mxu0 0.0
        %953 = vmatpush.msra.mxu0 0.0
        %954 = vmatpush.msra.mxu0 0.0
        %955 = vmatpush.msra.mxu0 %v893
        %956 = vmatpush.msra.mxu0 %v887
        %957 = vmatmul.f32.gmra.mxu0 %v899
        %v958 = vpop.f32.mrf.mxu0
        %v959 = vadd.f32 0.0, %v958
        %960 = vdwg.mxu0
        %961 = vmatpush.msra.mxu0 0.0
        %962 = vmatpush.msra.mxu0 0.0
        %963 = vmatpush.msra.mxu0 0.0
        %964 = vmatpush.msra.mxu0 0.0
        %965 = vmatpush.msra.mxu0 0.0
        %966 = vmatpush.msra.mxu0 0.0
        %967 = vmatpush.msra.mxu0 0.0
        %968 = vmatpush.msra.mxu0 0.0
        %969 = vmatpush.msra.mxu0 0.0
        %970 = vmatpush.msra.mxu0 0.0
        %971 = vmatpush.msra.mxu0 0.0
        %972 = vmatpush.msra.mxu0 0.0
        %973 = vmatpush.msra.mxu0 0.0
        %974 = vmatpush.msra.mxu0 0.0
        %975 = vmatpush.msra.mxu0 %v894
        %976 = vmatpush.msra.mxu0 %v888
        %977 = vmatmul.f32.gmra.mxu0 %v899
        %v978 = vpop.f32.mrf.mxu0
        %v979 = vadd.f32 0.0, %v978
        %980 = vdwg.mxu0
        %981 = vmatpush.msra.mxu0 0.0
        %982 = vmatpush.msra.mxu0 0.0
        %983 = vmatpush.msra.mxu0 0.0
        %984 = vmatpush.msra.mxu0 0.0
        %985 = vmatpush.msra.mxu0 0.0
        %986 = vmatpush.msra.mxu0 0.0
        %987 = vmatpush.msra.mxu0 0.0
        %988 = vmatpush.msra.mxu0 0.0
        %989 = vmatpush.msra.mxu0 0.0
        %990 = vmatpush.msra.mxu0 0.0
        %991 = vmatpush.msra.mxu0 0.0
        %992 = vmatpush.msra.mxu0 0.0
        %993 = vmatpush.msra.mxu0 0.0
        %994 = vmatpush.msra.mxu0 0.0
        %995 = vmatpush.msra.mxu0 %v895
        %996 = vmatpush.msra.mxu0 %v889
        %997 = vmatmul.f32.gmra.mxu0 %v899
        %v998 = vpop.f32.mrf.mxu0
        %v999 = vadd.f32 0.0, %v998
        %1000 = vdwg.mxu0
        %1001 = vmatpush.msra.mxu0 0.0
        %1002 = vmatpush.msra.mxu0 0.0
        %1003 = vmatpush.msra.mxu0 0.0
        %1004 = vmatpush.msra.mxu0 0.0
        %1005 = vmatpush.msra.mxu0 0.0
        %1006 = vmatpush.msra.mxu0 0.0
        %1007 = vmatpush.msra.mxu0 0.0
        %1008 = vmatpush.msra.mxu0 0.0
        %1009 = vmatpush.msra.mxu0 0.0
        %1010 = vmatpush.msra.mxu0 0.0
        %1011 = vmatpush.msra.mxu0 0.0
        %1012 = vmatpush.msra.mxu0 0.0
        %1013 = vmatpush.msra.mxu0 0.0
        %1014 = vmatpush.msra.mxu0 0.0
        %1015 = vmatpush.msra.mxu0 %v896
        %1016 = vmatpush.msra.mxu0 %v890
        %1017 = vmatmul.f32.gmra.mxu0 %v899
        %v1018 = vpop.f32.mrf.mxu0
        %v1019 = vadd.f32 0.0, %v1018
        %1020 = vdwg.mxu0
        %1021 = vmatpush.msra.mxu0 %v879
        %1022 = vmatpush.msra.mxu0 %v873
        %1023 = vmatpush.msra.mxu0 %v867
        %1024 = vmatpush.msra.mxu0 %v861
        %1025 = vmatpush.msra.mxu0 %v855
        %1026 = vmatpush.msra.mxu0 %v849
        %1027 = vmatpush.msra.mxu0 %v843
        %1028 = vmatpush.msra.mxu0 %v837
        %1029 = vmatpush.msra.mxu0 %v831
        %1030 = vmatpush.msra.mxu0 %v825
        %1031 = vmatpush.msra.mxu0 %v819
        %1032 = vmatpush.msra.mxu0 %v813
        %1033 = vmatpush.msra.mxu0 %v807
        %1034 = vmatpush.msra.mxu0 %v801
        %1035 = vmatpush.msra.mxu0 %v795
        %1036 = vmatpush.msra.mxu0 %v789
        %1037 = vmatmul.f32.gmra.mxu0 %v785
        %v1038 = vpop.f32.mrf.mxu0
        %v1039 = vadd.f32 %v919, %v1038
        %1040 = vdwg.mxu0
        %1041 = vmatpush.msra.mxu0 %v880
        %1042 = vmatpush.msra.mxu0 %v874
        %1043 = vmatpush.msra.mxu0 %v868
        %1044 = vmatpush.msra.mxu0 %v862
        %1045 = vmatpush.msra.mxu0 %v856
        %1046 = vmatpush.msra.mxu0 %v850
        %1047 = vmatpush.msra.mxu0 %v844
        %1048 = vmatpush.msra.mxu0 %v838
        %1049 = vmatpush.msra.mxu0 %v832
        %1050 = vmatpush.msra.mxu0 %v826
        %1051 = vmatpush.msra.mxu0 %v820
        %1052 = vmatpush.msra.mxu0 %v814
        %1053 = vmatpush.msra.mxu0 %v808
        %1054 = vmatpush.msra.mxu0 %v802
        %1055 = vmatpush.msra.mxu0 %v796
        %1056 = vmatpush.msra.mxu0 %v790
        %1057 = vmatmul.f32.gmra.mxu0 %v785
        %v1058 = vpop.f32.mrf.mxu0
        %v1059 = vadd.f32 %v939, %v1058
        %1060 = vdwg.mxu0
        %1061 = vmatpush.msra.mxu0 %v881
        %1062 = vmatpush.msra.mxu0 %v875
        %1063 = vmatpush.msra.mxu0 %v869
        %1064 = vmatpush.msra.mxu0 %v863
        %1065 = vmatpush.msra.mxu0 %v857
        %1066 = vmatpush.msra.mxu0 %v851
        %1067 = vmatpush.msra.mxu0 %v845
        %1068 = vmatpush.msra.mxu0 %v839
        %1069 = vmatpush.msra.mxu0 %v833
        %1070 = vmatpush.msra.mxu0 %v827
        %1071 = vmatpush.msra.mxu0 %v821
        %1072 = vmatpush.msra.mxu0 %v815
        %1073 = vmatpush.msra.mxu0 %v809
        %1074 = vmatpush.msra.mxu0 %v803
        %1075 = vmatpush.msra.mxu0 %v797
        %1076 = vmatpush.msra.mxu0 %v791
        %1077 = vmatmul.f32.gmra.mxu0 %v785
        %v1078 = vpop.f32.mrf.mxu0
        %v1079 = vadd.f32 %v959, %v1078
        %1080 = vdwg.mxu0
        %1081 = vmatpush.msra.mxu0 %v882
        %1082 = vmatpush.msra.mxu0 %v876
        %1083 = vmatpush.msra.mxu0 %v870
        %1084 = vmatpush.msra.mxu0 %v864
        %1085 = vmatpush.msra.mxu0 %v858
        %1086 = vmatpush.msra.mxu0 %v852
        %1087 = vmatpush.msra.mxu0 %v846
        %1088 = vmatpush.msra.mxu0 %v840
        %1089 = vmatpush.msra.mxu0 %v834
        %1090 = vmatpush.msra.mxu0 %v828
        %1091 = vmatpush.msra.mxu0 %v822
        %1092 = vmatpush.msra.mxu0 %v816
        %1093 = vmatpush.msra.mxu0 %v810
        %1094 = vmatpush.msra.mxu0 %v804
        %1095 = vmatpush.msra.mxu0 %v798
        %1096 = vmatpush.msra.mxu0 %v792
        %1097 = vmatmul.f32.gmra.mxu0 %v785
        %v1098 = vpop.f32.mrf.mxu0
        %v1099 = vadd.f32 %v979, %v1098
        %1100 = vdwg.mxu0
        %1101 = vmatpush.msra.mxu0 %v883
        %1102 = vmatpush.msra.mxu0 %v877
        %1103 = vmatpush.msra.mxu0 %v871
        %1104 = vmatpush.msra.mxu0 %v865
        %1105 = vmatpush.msra.mxu0 %v859
        %1106 = vmatpush.msra.mxu0 %v853
        %1107 = vmatpush.msra.mxu0 %v847
        %1108 = vmatpush.msra.mxu0 %v841
        %1109 = vmatpush.msra.mxu0 %v835
        %1110 = vmatpush.msra.mxu0 %v829
        %1111 = vmatpush.msra.mxu0 %v823
        %1112 = vmatpush.msra.mxu0 %v817
        %1113 = vmatpush.msra.mxu0 %v811
        %1114 = vmatpush.msra.mxu0 %v805
        %1115 = vmatpush.msra.mxu0 %v799
        %1116 = vmatpush.msra.mxu0 %v793
        %1117 = vmatmul.f32.gmra.mxu0 %v785
        %v1118 = vpop.f32.mrf.mxu0
        %v1119 = vadd.f32 %v999, %v1118
        %1120 = vdwg.mxu0
        %1121 = vmatpush.msra.mxu0 %v884
        %1122 = vmatpush.msra.mxu0 %v878
        %1123 = vmatpush.msra.mxu0 %v872
        %1124 = vmatpush.msra.mxu0 %v866
        %1125 = vmatpush.msra.mxu0 %v860
        %1126 = vmatpush.msra.mxu0 %v854
        %1127 = vmatpush.msra.mxu0 %v848
        %1128 = vmatpush.msra.mxu0 %v842
        %1129 = vmatpush.msra.mxu0 %v836
        %1130 = vmatpush.msra.mxu0 %v830
        %1131 = vmatpush.msra.mxu0 %v824
        %1132 = vmatpush.msra.mxu0 %v818
        %1133 = vmatpush.msra.mxu0 %v812
        %1134 = vmatpush.msra.mxu0 %v806
        %1135 = vmatpush.msra.mxu0 %v800
        %1136 = vmatpush.msra.mxu0 %v794
        %1137 = vmatmul.f32.gmra.mxu0 %v785
        %v1138 = vpop.f32.mrf.mxu0
        %v1139 = vadd.f32 %v1019, %v1138
        %1140 = vdwg.mxu0
        %v1141 = vld [vmem:[%s3] sm:$0x1]
        %1142 = vset.pattern.permute.xlu0 32
        %1143 = vperm.xlu0 %1142, %v788
        %v1144 = vpop.permute.xlu0 %1143
        %v1147 = vperm.slane %v1141, 0
        %v1149 = vmul.f32 %v1144, %v1147
        %v1150 = vadd.f32 %v1039, %v1149
        %v1151 = vld [vmem:[%s4] sm:$0x1]
        %v1153 = vperm.slane %v1151, 0
        %v1155 = vadd.f32 %v1150, %v1153
        %v1156 = vtanh.pop %v1155
        %v1157 = vld [vmem:[#allocation12] sm:$0xff]
        %v1158 = vld [vmem:[#allocation12 + $0x8] sm:$0xff]
        %v1159 = vld [vmem:[#allocation12 + $0x10] sm:$0xff]
        %v1160 = vld [vmem:[#allocation12 + $0x18] sm:$0xff]
        %v1161 = vld [vmem:[#allocation12 + $0x20] sm:$0xff]
        %v1162 = vld [vmem:[#allocation12 + $0x28] sm:$0xff]
        %v1163 = vld [vmem:[#allocation12 + $0x30] sm:$0xff]
        %v1164 = vld [vmem:[#allocation12 + $0x38] sm:$0xff]
        %v1165 = vld [vmem:[#allocation12 + $0x40] sm:$0xff]
        %v1166 = vld [vmem:[#allocation12 + $0x48] sm:$0xff]
        %v1167 = vld [vmem:[#allocation12 + $0x50] sm:$0xff]
        %v1168 = vld [vmem:[#allocation12 + $0x58] sm:$0xff]
        %v1169 = vld [vmem:[#allocation12 + $0x60] sm:$0xff]
        %v1170 = vld [vmem:[#allocation12 + $0x68] sm:$0xff]
        %v1171 = vld [vmem:[#allocation12 + $0x70] sm:$0xff]
        %v1172 = vld [vmem:[#allocation12 + $0x78] sm:$0xff]
        %v1173 = vld [vmem:[#allocation12 + $0x80] sm:$0xff]
        %v1174 = vld [vmem:[#allocation12 + $0x88] sm:$0xff]
        %v1175 = vld [vmem:[#allocation12 + $0x90] sm:$0xff]
        %v1176 = vld [vmem:[#allocation12 + $0x98] sm:$0xff]
        %v1177 = vld [vmem:[#allocation12 + $0xa0] sm:$0xff]
        %v1178 = vld [vmem:[#allocation12 + $0xa8] sm:$0xff]
        %v1179 = vld [vmem:[#allocation12 + $0xb0] sm:$0xff]
        %v1180 = vld [vmem:[#allocation12 + $0xb8] sm:$0xff]
        %v1181 = vld [vmem:[#allocation12 + $0xc0] sm:$0xff]
        %v1182 = vld [vmem:[#allocation12 + $0xc8] sm:$0xff]
        %v1183 = vld [vmem:[#allocation12 + $0xd0] sm:$0xff]
        %v1184 = vld [vmem:[#allocation12 + $0xd8] sm:$0xff]
        %v1185 = vld [vmem:[#allocation12 + $0xe0] sm:$0xff]
        %v1186 = vld [vmem:[#allocation12 + $0xe8] sm:$0xff]
        %v1187 = vld [vmem:[#allocation12 + $0xf0] sm:$0xff]
        %v1188 = vld [vmem:[#allocation12 + $0xf8] sm:$0xff]
        %v1189 = vld [vmem:[#allocation12 + $0x100] sm:$0xff]
        %v1190 = vld [vmem:[#allocation12 + $0x108] sm:$0xff]
        %v1191 = vld [vmem:[#allocation12 + $0x110] sm:$0xff]
        %v1192 = vld [vmem:[#allocation12 + $0x118] sm:$0xff]
        %v1193 = vld [vmem:[#allocation12 + $0x120] sm:$0xff]
        %v1194 = vld [vmem:[#allocation12 + $0x128] sm:$0xff]
        %v1195 = vld [vmem:[#allocation12 + $0x130] sm:$0xff]
        %v1196 = vld [vmem:[#allocation12 + $0x138] sm:$0xff]
        %v1197 = vld [vmem:[#allocation12 + $0x140] sm:$0xff]
        %v1198 = vld [vmem:[#allocation12 + $0x148] sm:$0xff]
        %v1199 = vld [vmem:[#allocation12 + $0x150] sm:$0xff]
        %v1200 = vld [vmem:[#allocation12 + $0x158] sm:$0xff]
        %v1201 = vld [vmem:[#allocation12 + $0x160] sm:$0xff]
        %v1202 = vld [vmem:[#allocation12 + $0x168] sm:$0xff]
        %v1203 = vld [vmem:[#allocation12 + $0x170] sm:$0xff]
        %v1204 = vld [vmem:[#allocation12 + $0x178] sm:$0xff]
        %v1205 = vld [vmem:[#allocation12 + $0x180] sm:$0xff]
        %v1206 = vld [vmem:[#allocation12 + $0x188] sm:$0xff]
        %v1207 = vld [vmem:[#allocation12 + $0x190] sm:$0xff]
        %v1208 = vld [vmem:[#allocation12 + $0x198] sm:$0xff]
        %v1209 = vld [vmem:[#allocation12 + $0x1a0] sm:$0xff]
        %v1210 = vld [vmem:[#allocation12 + $0x1a8] sm:$0xff]
        %v1211 = vld [vmem:[#allocation12 + $0x1b0] sm:$0xff]
        %v1212 = vld [vmem:[#allocation12 + $0x1b8] sm:$0xff]
        %v1213 = vld [vmem:[#allocation12 + $0x1c0] sm:$0xff]
        %v1214 = vld [vmem:[#allocation12 + $0x1c8] sm:$0xff]
        %v1215 = vld [vmem:[#allocation12 + $0x1d0] sm:$0xff]
        %v1216 = vld [vmem:[#allocation12 + $0x1d8] sm:$0xff]
        %v1217 = vld [vmem:[#allocation12 + $0x1e0] sm:$0xff]
        %v1218 = vld [vmem:[#allocation12 + $0x1e8] sm:$0xff]
        %v1219 = vld [vmem:[#allocation12 + $0x1f0] sm:$0xff]
        %v1220 = vld [vmem:[#allocation12 + $0x1f8] sm:$0xff]
        %v1221 = vld [vmem:[#allocation12 + $0x200] sm:$0xff]
        %v1222 = vld [vmem:[#allocation12 + $0x208] sm:$0xff]
        %v1223 = vld [vmem:[#allocation12 + $0x210] sm:$0xff]
        %v1224 = vld [vmem:[#allocation12 + $0x218] sm:$0xff]
        %v1225 = vld [vmem:[#allocation12 + $0x220] sm:$0xff]
        %v1226 = vld [vmem:[#allocation12 + $0x228] sm:$0xff]
        %v1227 = vld [vmem:[#allocation12 + $0x230] sm:$0xff]
        %v1228 = vld [vmem:[#allocation12 + $0x238] sm:$0xff]
        %v1229 = vld [vmem:[#allocation12 + $0x240] sm:$0xff]
        %v1230 = vld [vmem:[#allocation12 + $0x248] sm:$0xff]
        %v1231 = vld [vmem:[#allocation12 + $0x250] sm:$0xff]
        %v1232 = vld [vmem:[#allocation12 + $0x258] sm:$0xff]
        %v1233 = vld [vmem:[#allocation12 + $0x260] sm:$0xff]
        %v1234 = vld [vmem:[#allocation12 + $0x268] sm:$0xff]
        %v1235 = vld [vmem:[#allocation12 + $0x270] sm:$0xff]
        %v1236 = vld [vmem:[#allocation12 + $0x278] sm:$0xff]
        %1237 = vmatpush.msra.mxu0 %v1232
        %1238 = vmatpush.msra.mxu0 %v1227
        %1239 = vmatpush.msra.mxu0 %v1222
        %1240 = vmatpush.msra.mxu0 %v1217
        %1241 = vmatpush.msra.mxu0 %v1212
        %1242 = vmatpush.msra.mxu0 %v1207
        %1243 = vmatpush.msra.mxu0 %v1202
        %1244 = vmatpush.msra.mxu0 %v1197
        %1245 = vmatpush.msra.mxu0 %v1192
        %1246 = vmatpush.msra.mxu0 %v1187
        %1247 = vmatpush.msra.mxu0 %v1182
        %1248 = vmatpush.msra.mxu0 %v1177
        %1249 = vmatpush.msra.mxu0 %v1172
        %1250 = vmatpush.msra.mxu0 %v1167
        %1251 = vmatpush.msra.mxu0 %v1162
        %1252 = vmatpush.msra.mxu0 %v1157
        %1253 = vmatmul.f32.gmra.mxu0 %v1156
        %v1254 = vpop.f32.mrf.mxu0
        %v1255 = vadd.f32 0.0, %v1254
        %1256 = vdwg.mxu0
        %1257 = vmatpush.msra.mxu0 %v1233
        %1258 = vmatpush.msra.mxu0 %v1228
        %1259 = vmatpush.msra.mxu0 %v1223
        %1260 = vmatpush.msra.mxu0 %v1218
        %1261 = vmatpush.msra.mxu0 %v1213
        %1262 = vmatpush.msra.mxu0 %v1208
        %1263 = vmatpush.msra.mxu0 %v1203
        %1264 = vmatpush.msra.mxu0 %v1198
        %1265 = vmatpush.msra.mxu0 %v1193
        %1266 = vmatpush.msra.mxu0 %v1188
        %1267 = vmatpush.msra.mxu0 %v1183
        %1268 = vmatpush.msra.mxu0 %v1178
        %1269 = vmatpush.msra.mxu0 %v1173
        %1270 = vmatpush.msra.mxu0 %v1168
        %1271 = vmatpush.msra.mxu0 %v1163
        %1272 = vmatpush.msra.mxu0 %v1158
        %1273 = vmatmul.f32.gmra.mxu0 %v1156
        %v1274 = vpop.f32.mrf.mxu0
        %v1275 = vadd.f32 0.0, %v1274
        %1276 = vdwg.mxu0
        %1277 = vmatpush.msra.mxu0 %v1234
        %1278 = vmatpush.msra.mxu0 %v1229
        %1279 = vmatpush.msra.mxu0 %v1224
        %1280 = vmatpush.msra.mxu0 %v1219
        %1281 = vmatpush.msra.mxu0 %v1214
        %1282 = vmatpush.msra.mxu0 %v1209
        %1283 = vmatpush.msra.mxu0 %v1204
        %1284 = vmatpush.msra.mxu0 %v1199
        %1285 = vmatpush.msra.mxu0 %v1194
        %1286 = vmatpush.msra.mxu0 %v1189
        %1287 = vmatpush.msra.mxu0 %v1184
        %1288 = vmatpush.msra.mxu0 %v1179
        %1289 = vmatpush.msra.mxu0 %v1174
        %1290 = vmatpush.msra.mxu0 %v1169
        %1291 = vmatpush.msra.mxu0 %v1164
        %1292 = vmatpush.msra.mxu0 %v1159
        %1293 = vmatmul.f32.gmra.mxu0 %v1156
        %v1294 = vpop.f32.mrf.mxu0
        %v1295 = vadd.f32 0.0, %v1294
        %1296 = vdwg.mxu0
        %1297 = vmatpush.msra.mxu0 %v1235
        %1298 = vmatpush.msra.mxu0 %v1230
        %1299 = vmatpush.msra.mxu0 %v1225
        %1300 = vmatpush.msra.mxu0 %v1220
        %1301 = vmatpush.msra.mxu0 %v1215
        %1302 = vmatpush.msra.mxu0 %v1210
        %1303 = vmatpush.msra.mxu0 %v1205
        %1304 = vmatpush.msra.mxu0 %v1200
        %1305 = vmatpush.msra.mxu0 %v1195
        %1306 = vmatpush.msra.mxu0 %v1190
        %1307 = vmatpush.msra.mxu0 %v1185
        %1308 = vmatpush.msra.mxu0 %v1180
        %1309 = vmatpush.msra.mxu0 %v1175
        %1310 = vmatpush.msra.mxu0 %v1170
        %1311 = vmatpush.msra.mxu0 %v1165
        %1312 = vmatpush.msra.mxu0 %v1160
        %1313 = vmatmul.f32.gmra.mxu0 %v1156
        %v1314 = vpop.f32.mrf.mxu0
        %v1315 = vadd.f32 0.0, %v1314
        %1316 = vdwg.mxu0
        %1317 = vmatpush.msra.mxu0 %v1236
        %1318 = vmatpush.msra.mxu0 %v1231
        %1319 = vmatpush.msra.mxu0 %v1226
        %1320 = vmatpush.msra.mxu0 %v1221
        %1321 = vmatpush.msra.mxu0 %v1216
        %1322 = vmatpush.msra.mxu0 %v1211
        %1323 = vmatpush.msra.mxu0 %v1206
        %1324 = vmatpush.msra.mxu0 %v1201
        %1325 = vmatpush.msra.mxu0 %v1196
        %1326 = vmatpush.msra.mxu0 %v1191
        %1327 = vmatpush.msra.mxu0 %v1186
        %1328 = vmatpush.msra.mxu0 %v1181
        %1329 = vmatpush.msra.mxu0 %v1176
        %1330 = vmatpush.msra.mxu0 %v1171
        %1331 = vmatpush.msra.mxu0 %v1166
        %1332 = vmatpush.msra.mxu0 %v1161
        %1333 = vmatmul.f32.gmra.mxu0 %v1156
        %v1334 = vpop.f32.mrf.mxu0
        %v1335 = vadd.f32 0.0, %v1334
        %1336 = vdwg.mxu0
        %v1337 = vadd.f32 %v1059, %v1255
        %v1338 = vadd.f32 %v1079, %v1275
        %v1339 = vadd.f32 %v1099, %v1295
        %v1340 = vadd.f32 %v1119, %v1315
        %v1341 = vadd.f32 %v1139, %v1335
        %v1342 = vld [vmem:[%s6] sm:$0x1f]
        %v1344 = vperm.slane %v1342, 0
        %v1345 = vperm.slane %v1342, 1
        %v1346 = vperm.slane %v1342, 2
        %v1347 = vperm.slane %v1342, 3
        %v1348 = vperm.slane %v1342, 4
        %v1354 = vadd.f32 %v1337, %v1344
        %v1355 = vadd.f32 %v1338, %v1345
        %v1356 = vadd.f32 %v1339, %v1346
        %v1357 = vadd.f32 %v1340, %v1347
        %v1358 = vadd.f32 %v1341, %v1348
        %v1359 = vsub.f32 0.0, %v1354
        %v1360 = vmul.f32 %v1359, 1.442695
        %v1361 = vpow.pop %v1360
        %v1362 = vadd.f32 %v1361, 1.0
        %v1363 = vrcp.pop %v1362
        %v1364 = vmul.f32 %v1362, %v1363
        %v1365 = vsub.f32 1.0, %v1364
        %v1366 = vmul.f32 %v1363, %v1365
        %v1367 = vadd.f32 %v1363, %v1366
        %vm1368 = vweird.f32 %v1362
        %vm1369 = vweird.f32 %v1363
        %vm1370 = vmor %vm1368, %vm1369
        %v1371 = vsel %vm1370, %v1363, %v1367
        %v1372 = vand.u32 2147483647, %v1362
        %vm1373 = vcmp.eq.f32.partialorder %v1372, 8.507059e+37
        %v1374 = vand.u32 %v1362, 2147483648
        %v1375 = vor.u32 1.1754944e-38, %v1374
        %v1376 = vsel %vm1373, %v1375, %v1371
        %v1377 = vmul.f32 1.0, %v1376
        %v1378 = vsub.f32 0.0, %v1355
        %v1379 = vmul.f32 %v1378, 1.442695
        %v1380 = vpow.pop %v1379
        %v1381 = vadd.f32 %v1380, 1.0
        %v1382 = vrcp.pop %v1381
        %v1383 = vmul.f32 %v1381, %v1382
        %v1384 = vsub.f32 1.0, %v1383
        %v1385 = vmul.f32 %v1382, %v1384
        %v1386 = vadd.f32 %v1382, %v1385
        %vm1387 = vweird.f32 %v1381
        %vm1388 = vweird.f32 %v1382
        %vm1389 = vmor %vm1387, %vm1388
        %v1390 = vsel %vm1389, %v1382, %v1386
        %v1391 = vand.u32 2147483647, %v1381
        %vm1392 = vcmp.eq.f32.partialorder %v1391, 8.507059e+37
        %v1393 = vand.u32 %v1381, 2147483648
        %v1394 = vor.u32 1.1754944e-38, %v1393
        %v1395 = vsel %vm1392, %v1394, %v1390
        %v1396 = vmul.f32 1.0, %v1395
        %v1397 = vsub.f32 0.0, %v1356
        %v1398 = vmul.f32 %v1397, 1.442695
        %v1399 = vpow.pop %v1398
        %v1400 = vadd.f32 %v1399, 1.0
        %v1401 = vrcp.pop %v1400
        %v1402 = vmul.f32 %v1400, %v1401
        %v1403 = vsub.f32 1.0, %v1402
        %v1404 = vmul.f32 %v1401, %v1403
        %v1405 = vadd.f32 %v1401, %v1404
        %vm1406 = vweird.f32 %v1400
        %vm1407 = vweird.f32 %v1401
        %vm1408 = vmor %vm1406, %vm1407
        %v1409 = vsel %vm1408, %v1401, %v1405
        %v1410 = vand.u32 2147483647, %v1400
        %vm1411 = vcmp.eq.f32.partialorder %v1410, 8.507059e+37
        %v1412 = vand.u32 %v1400, 2147483648
        %v1413 = vor.u32 1.1754944e-38, %v1412
        %v1414 = vsel %vm1411, %v1413, %v1409
        %v1415 = vmul.f32 1.0, %v1414
        %v1416 = vtanh.pop %v1357
        %v1417 = vsub.f32 0.0, %v1358
        %v1418 = vmul.f32 %v1417, 1.442695
        %v1419 = vpow.pop %v1418
        %v1420 = vadd.f32 %v1419, 1.0
        %v1421 = vrcp.pop %v1420
        %v1422 = vmul.f32 %v1420, %v1421
        %v1423 = vsub.f32 1.0, %v1422
        %v1424 = vmul.f32 %v1421, %v1423
        %v1425 = vadd.f32 %v1421, %v1424
        %vm1426 = vweird.f32 %v1420
        %vm1427 = vweird.f32 %v1421
        %vm1428 = vmor %vm1426, %vm1427
        %v1429 = vsel %vm1428, %v1421, %v1425
        %v1430 = vand.u32 2147483647, %v1420
        %vm1431 = vcmp.eq.f32.partialorder %v1430, 8.507059e+37
        %v1432 = vand.u32 %v1420, 2147483648
        %v1433 = vor.u32 1.1754944e-38, %v1432
        %v1434 = vsel %vm1431, %v1433, %v1429
        %v1435 = vmul.f32 1.0, %v1434
        %v1436 = vmul.f32 %v1377, %v786
        %v1437 = vmul.f32 %v1396, %v1416
        %v1438 = vadd.f32 %v1436, %v1437
        %v1439 = vmul.f32 %v1415, %v1156
        %v1440 = vadd.f32 %v1438, %v1439
        %v1441 = vtanh.pop %v1440
        %v1442 = vmul.f32 %v1435, %v1441
        %v1443 = vld [vmem:[#allocation14] sm:$0xff]
        %v1444 = vld [vmem:[#allocation14 + $0x8] sm:$0xff]
        %v1445 = vld [vmem:[#allocation14 + $0x10] sm:$0xff]
        %v1446 = vld [vmem:[#allocation14 + $0x18] sm:$0xff]
        %v1447 = vld [vmem:[#allocation14 + $0x20] sm:$0xff]
        %v1448 = vld [vmem:[#allocation14 + $0x28] sm:$0xff]
        %v1449 = vld [vmem:[#allocation14 + $0x30] sm:$0xff]
        %v1450 = vld [vmem:[#allocation14 + $0x38] sm:$0xff]
        %v1451 = vld [vmem:[#allocation14 + $0x40] sm:$0xff]
        %v1452 = vld [vmem:[#allocation14 + $0x48] sm:$0xff]
        %v1453 = vld [vmem:[#allocation14 + $0x50] sm:$0xff]
        %v1454 = vld [vmem:[#allocation14 + $0x58] sm:$0xff]
        %v1455 = vld [vmem:[#allocation14 + $0x60] sm:$0xff]
        %v1456 = vld [vmem:[#allocation14 + $0x68] sm:$0xff]
        %v1457 = vld [vmem:[#allocation14 + $0x70] sm:$0xff]
        %v1458 = vld [vmem:[#allocation14 + $0x78] sm:$0xff]
        %v1459 = vld [vmem:[#allocation15] sm:$0xff]
        %v1460 = vld [vmem:[#allocation15 + $0x8] sm:$0xff]
        %v1461 = vld [vmem:[#allocation15 + $0x10] sm:$0xff]
        %v1462 = vld [vmem:[#allocation15 + $0x18] sm:$0xff]
        %v1463 = vld [vmem:[#allocation15 + $0x20] sm:$0xff]
        %v1464 = vld [vmem:[#allocation15 + $0x28] sm:$0xff]
        %v1465 = vld [vmem:[#allocation15 + $0x30] sm:$0xff]
        %v1466 = vld [vmem:[#allocation15 + $0x38] sm:$0xff]
        %v1467 = vld [vmem:[#allocation15 + $0x40] sm:$0xff]
        %v1468 = vld [vmem:[#allocation15 + $0x48] sm:$0xff]
        %v1469 = vld [vmem:[#allocation15 + $0x50] sm:$0xff]
        %v1470 = vld [vmem:[#allocation15 + $0x58] sm:$0xff]
        %v1471 = vld [vmem:[#allocation15 + $0x60] sm:$0xff]
        %v1472 = vld [vmem:[#allocation15 + $0x68] sm:$0xff]
        %v1473 = vld [vmem:[#allocation15 + $0x70] sm:$0xff]
        %v1474 = vld [vmem:[#allocation15 + $0x78] sm:$0xff]
        %1475 = vmatpush.msra.mxu0 %v1474
        %1476 = vmatpush.msra.mxu0 %v1473
        %1477 = vmatpush.msra.mxu0 %v1472
        %1478 = vmatpush.msra.mxu0 %v1471
        %1479 = vmatpush.msra.mxu0 %v1470
        %1480 = vmatpush.msra.mxu0 %v1469
        %1481 = vmatpush.msra.mxu0 %v1468
        %1482 = vmatpush.msra.mxu0 %v1467
        %1483 = vmatpush.msra.mxu0 %v1466
        %1484 = vmatpush.msra.mxu0 %v1465
        %1485 = vmatpush.msra.mxu0 %v1464
        %1486 = vmatpush.msra.mxu0 %v1463
        %1487 = vmatpush.msra.mxu0 %v1462
        %1488 = vmatpush.msra.mxu0 %v1461
        %1489 = vmatpush.msra.mxu0 %v1460
        %1490 = vmatpush.msra.mxu0 %v1459
        %1491 = vmatmul.f32.gmra.mxu0 %v1440
        %v1492 = vpop.f32.mrf.mxu0
        %v1493 = vadd.f32 0.0, %v1492
        %1494 = vdwg.mxu0
        %1495 = vmatpush.msra.mxu0 %v1458
        %1496 = vmatpush.msra.mxu0 %v1457
        %1497 = vmatpush.msra.mxu0 %v1456
        %1498 = vmatpush.msra.mxu0 %v1455
        %1499 = vmatpush.msra.mxu0 %v1454
        %1500 = vmatpush.msra.mxu0 %v1453
        %1501 = vmatpush.msra.mxu0 %v1452
        %1502 = vmatpush.msra.mxu0 %v1451
        %1503 = vmatpush.msra.mxu0 %v1450
        %1504 = vmatpush.msra.mxu0 %v1449
        %1505 = vmatpush.msra.mxu0 %v1448
        %1506 = vmatpush.msra.mxu0 %v1447
        %1507 = vmatpush.msra.mxu0 %v1446
        %1508 = vmatpush.msra.mxu0 %v1445
        %1509 = vmatpush.msra.mxu0 %v1444
        %1510 = vmatpush.msra.mxu0 %v1443
        %1511 = vmatmul.f32.gmra.mxu0 %v1442
        %v1512 = vpop.f32.mrf.mxu0
        %v1513 = vadd.f32 %v1493, %v1512
        %1514 = vdwg.mxu0
        %v1515 = vld [vmem:[#allocation5] sm:$0xff]
        %v1516 = vld [vmem:[#allocation5 + $0x8] sm:$0xff]
        %v1517 = vld [vmem:[#allocation5 + $0x10] sm:$0xff]
        %v1518 = vld [vmem:[#allocation5 + $0x18] sm:$0xff]
        %v1519 = vadd.f32 %v1513, %v1515
        %v1520 = vadd.f32 %v1513, %v1516
        %v1521 = vadd.f32 %v1513, %v1517
        %v1522 = vadd.f32 %v1513, %v1518
        %v1523 = vld [vmem:[%s10] sm:$0x1]
        %v1525 = vperm.slane %v1523, 0
        %v1527 = vadd.f32 %v1519, %v1525
        %v1528 = vadd.f32 %v1520, %v1525
        %v1529 = vadd.f32 %v1521, %v1525
        %v1530 = vadd.f32 %v1522, %v1525
        %v1531 = vtanh.pop %v1527
        %v1532 = vtanh.pop %v1528
        %v1533 = vtanh.pop %v1529
        %v1534 = vtanh.pop %v1530
        %v1535 = vld [vmem:[%s11] sm:$0x1]
        %v1537 = vperm.slane %v1535, 0
        %v1539 = vmul.f32 %v1531, %v1537
        %v1540 = vmul.f32 %v1532, %v1537
        %v1541 = vmul.f32 %v1533, %v1537
        %v1542 = vmul.f32 %v1534, %v1537
        %1543 = vadd.xlane.f32.xlu0 %v1539
        %v1544 = vpop.xlane.xlu0 %1543
        %1545 = vadd.xlane.f32.xlu0 %v1540
        %v1546 = vpop.xlane.xlu0 %1545
        %1547 = vadd.xlane.f32.xlu0 %v1541
        %v1548 = vpop.xlane.xlu0 %1547
        %1549 = vadd.xlane.f32.xlu0 %v1542
        %v1550 = vpop.xlane.xlu0 %1549
        %p1551 = scmp.lt.s32.totalorder %s787, 4
        %s1552 = scalar_select %p1551, %s787, 4
        %v1553 = vstv %s1552
        %vm1554 = vcmp.gt.s32.totalorder %v1553, 0
        %vm1555 = vcmp.gt.s32.totalorder %v1553, 1
        %vm1556 = vcmp.gt.s32.totalorder %v1553, 2
        %vm1557 = vcmp.gt.s32.totalorder %v1553, 3
        %v1558 = vsel %vm1554, %v1544, -1e+30
        %v1559 = vsel %vm1555, %v1546, -1e+30
        %v1560 = vsel %vm1556, %v1548, -1e+30
        %v1561 = vsel %vm1557, %v1550, -1e+30
        %v1562 = vmax.f32 %v1558, %v1559
        %v1563 = vmax.f32 %v1560, %v1561
        %v1564 = vmax.f32 %v1562, %v1563
        %v1565 = vsub.f32 %v1544, %v1564
        %v1566 = vsub.f32 %v1546, %v1564
        %v1567 = vsub.f32 %v1548, %v1564
        %v1568 = vsub.f32 %v1550, %v1564
        %v1569 = vsel %vm1554, %v1565, -1e+30
        %v1570 = vsel %vm1555, %v1566, -1e+30
        %v1571 = vsel %vm1556, %v1567, -1e+30
        %v1572 = vsel %vm1557, %v1568, -1e+30
        %v1573 = vmul.f32 %v1569, 1.442695
        %v1574 = vpow.pop %v1573
        %v1575 = vmul.f32 %v1570, 1.442695
        %v1576 = vpow.pop %v1575
        %v1577 = vmul.f32 %v1571, 1.442695
        %v1578 = vpow.pop %v1577
        %v1579 = vmul.f32 %v1572, 1.442695
        %v1580 = vpow.pop %v1579
        %v1581 = vadd.f32 %v1574, %v1576
        %v1582 = vadd.f32 %v1581, %v1578
        %v1583 = vadd.f32 %v1582, %v1580
        %v1584 = vmax.f32 %v1583, 1e-30
        %v1585 = vrcp.pop %v1584
        %v1586 = vmul.f32 %v1584, %v1585
        %v1587 = vsub.f32 1.0, %v1586
        %v1588 = vmul.f32 %v1585, %v1587
        %v1589 = vadd.f32 %v1585, %v1588
        %vm1590 = vweird.f32 %v1584
        %vm1591 = vweird.f32 %v1585
        %vm1592 = vmor %vm1590, %vm1591
        %v1593 = vsel %vm1592, %v1585, %v1589
        %v1594 = vand.u32 2147483647, %v1584
        %vm1595 = vcmp.eq.f32.partialorder %v1594, 8.507059e+37
        %v1596 = vand.u32 %v1584, 2147483648
        %v1597 = vor.u32 1.1754944e-38, %v1596
        %v1598 = vsel %vm1595, %v1597, %v1593
        %v1599 = vmul.f32 %v1574, %v1598
        %v1600 = vmul.f32 %v1576, %v1598
        %v1601 = vmul.f32 %v1578, %v1598
        %v1602 = vmul.f32 %v1580, %v1598
        %v1603 = vld [vmem:[#allocation4] sm:$0xff]
        %v1604 = vld [vmem:[#allocation4 + $0x8] sm:$0xff]
        %v1605 = vld [vmem:[#allocation4 + $0x10] sm:$0xff]
        %v1606 = vld [vmem:[#allocation4 + $0x18] sm:$0xff]
        %v1607 = vmul.f32 %v1599, %v1603
        %v1608 = vmul.f32 %v1600, %v1604
        %v1609 = vmul.f32 %v1601, %v1605
        %v1610 = vmul.f32 %v1602, %v1606
        %v1611 = vadd.f32 %v1607, %v1608
        %v1612 = vadd.f32 %v1611, %v1609
        %v1613 = vadd.f32 %v1612, %v1610
        %v1614 = vld [vmem:[#allocation18] sm:$0xff]
        %v1615 = vld [vmem:[#allocation18 + $0x8] sm:$0xff]
        %v1616 = vld [vmem:[#allocation18 + $0x10] sm:$0xff]
        %v1617 = vld [vmem:[#allocation18 + $0x18] sm:$0xff]
        %v1618 = vld [vmem:[#allocation18 + $0x20] sm:$0xff]
        %v1619 = vld [vmem:[#allocation18 + $0x28] sm:$0xff]
        %v1620 = vld [vmem:[#allocation18 + $0x30] sm:$0xff]
        %v1621 = vld [vmem:[#allocation18 + $0x38] sm:$0xff]
        %v1622 = vld [vmem:[#allocation18 + $0x40] sm:$0xff]
        %v1623 = vld [vmem:[#allocation18 + $0x48] sm:$0xff]
        %v1624 = vld [vmem:[#allocation18 + $0x50] sm:$0xff]
        %v1625 = vld [vmem:[#allocation18 + $0x58] sm:$0xff]
        %v1626 = vld [vmem:[#allocation18 + $0x60] sm:$0xff]
        %v1627 = vld [vmem:[#allocation18 + $0x68] sm:$0xff]
        %v1628 = vld [vmem:[#allocation18 + $0x70] sm:$0xff]
        %v1629 = vld [vmem:[#allocation18 + $0x78] sm:$0xff]
        %v1630 = vld [vmem:[#allocation20] sm:$0xff]
        %v1631 = vld [vmem:[#allocation20 + $0x8] sm:$0xff]
        %v1632 = vld [vmem:[#allocation20 + $0x10] sm:$0xff]
        %v1633 = vld [vmem:[#allocation20 + $0x18] sm:$0xff]
        %v1634 = vld [vmem:[#allocation20 + $0x20] sm:$0xff]
        %v1635 = vld [vmem:[#allocation20 + $0x28] sm:$0xff]
        %v1636 = vld [vmem:[#allocation20 + $0x30] sm:$0xff]
        %v1637 = vld [vmem:[#allocation20 + $0x38] sm:$0xff]
        %v1638 = vld [vmem:[#allocation20 + $0x40] sm:$0xff]
        %v1639 = vld [vmem:[#allocation20 + $0x48] sm:$0xff]
        %v1640 = vld [vmem:[#allocation20 + $0x50] sm:$0xff]
        %v1641 = vld [vmem:[#allocation20 + $0x58] sm:$0xff]
        %v1642 = vld [vmem:[#allocation20 + $0x60] sm:$0xff]
        %v1643 = vld [vmem:[#allocation20 + $0x68] sm:$0xff]
        %v1644 = vld [vmem:[#allocation20 + $0x70] sm:$0xff]
        %v1645 = vld [vmem:[#allocation20 + $0x78] sm:$0xff]
        %1646 = vmatpush.msra.mxu0 %v1645
        %1647 = vmatpush.msra.mxu0 %v1644
        %1648 = vmatpush.msra.mxu0 %v1643
        %1649 = vmatpush.msra.mxu0 %v1642
        %1650 = vmatpush.msra.mxu0 %v1641
        %1651 = vmatpush.msra.mxu0 %v1640
        %1652 = vmatpush.msra.mxu0 %v1639
        %1653 = vmatpush.msra.mxu0 %v1638
        %1654 = vmatpush.msra.mxu0 %v1637
        %1655 = vmatpush.msra.mxu0 %v1636
        %1656 = vmatpush.msra.mxu0 %v1635
        %1657 = vmatpush.msra.mxu0 %v1634
        %1658 = vmatpush.msra.mxu0 %v1633
        %1659 = vmatpush.msra.mxu0 %v1632
        %1660 = vmatpush.msra.mxu0 %v1631
        %1661 = vmatpush.msra.mxu0 %v1630
        %1662 = vmatmul.f32.gmra.mxu0 %v1613
        %v1663 = vpop.f32.mrf.mxu0
        %v1664 = vadd.f32 0.0, %v1663
        %1665 = vdwg.mxu0
        %1666 = vmatpush.msra.mxu0 %v1629
        %1667 = vmatpush.msra.mxu0 %v1628
        %1668 = vmatpush.msra.mxu0 %v1627
        %1669 = vmatpush.msra.mxu0 %v1626
        %1670 = vmatpush.msra.mxu0 %v1625
        %1671 = vmatpush.msra.mxu0 %v1624
        %1672 = vmatpush.msra.mxu0 %v1623
        %1673 = vmatpush.msra.mxu0 %v1622
        %1674 = vmatpush.msra.mxu0 %v1621
        %1675 = vmatpush.msra.mxu0 %v1620
        %1676 = vmatpush.msra.mxu0 %v1619
        %1677 = vmatpush.msra.mxu0 %v1618
        %1678 = vmatpush.msra.mxu0 %v1617
        %1679 = vmatpush.msra.mxu0 %v1616
        %1680 = vmatpush.msra.mxu0 %v1615
        %1681 = vmatpush.msra.mxu0 %v1614
        %1682 = vmatmul.f32.gmra.mxu0 %v1442
        %v1683 = vpop.f32.mrf.mxu0
        %v1684 = vadd.f32 %v1664, %v1683
        %1685 = vdwg.mxu0
        %v1686 = vld [vmem:[#allocation21] sm:$0xff]
        %v1687 = vld [vmem:[#allocation21 + $0x8] sm:$0xff]
        %1688 = vrot.lane.b32.xlu0 %v788, 112
        %v1689 = vpop.permute.xlu0 %1688
        %v1690 = vsel %vm897, %v1689, 0
        %1692 = vmatpush.msra.mxu0 0.0
        %1693 = vmatpush.msra.mxu0 0.0
        %1694 = vmatpush.msra.mxu0 0.0
        %1695 = vmatpush.msra.mxu0 0.0
        %1696 = vmatpush.msra.mxu0 0.0
        %1697 = vmatpush.msra.mxu0 0.0
        %1698 = vmatpush.msra.mxu0 0.0
        %1699 = vmatpush.msra.mxu0 0.0
        %1700 = vmatpush.msra.mxu0 0.0
        %1701 = vmatpush.msra.mxu0 0.0
        %1702 = vmatpush.msra.mxu0 0.0
        %1703 = vmatpush.msra.mxu0 0.0
        %1704 = vmatpush.msra.mxu0 0.0
        %1705 = vmatpush.msra.mxu0 0.0
        %1706 = vmatpush.msra.mxu0 %v1687
        %1707 = vmatpush.msra.mxu0 %v1686
        %1708 = vmatmul.f32.gmra.mxu0 %v1690
        %v1709 = vpop.f32.mrf.mxu0
        %v1710 = vadd.f32 0.0, %v1709
        %1711 = vdwg.mxu0
        %v1712 = vadd.f32 %v1684, %v1710
        %v1713 = vld [vmem:[%s15] sm:$0x1]
        %v1715 = vperm.slane %v1713, 0
        %v1717 = vadd.f32 %v1712, %v1715
        %v1718 = vtanh.pop %v1717
        %p1719 = scmp.lt.s32.totalorder %s787, 0
        %s1720 = ssub.s32 0, %s787
        %s1721 = scalar_select %p1719, %s1720, %s787
        %s1722 = sand.u32 %s1721, 3
        %s1723 = ssub.s32 0, %s1722
        %s1724 = scalar_select %p1719, %s1723, %s1722
        %p1725 = scmp.ne.s32.totalorder %s1724, 0
        %p1726 = scmp.lt.s32.totalorder %s1724, 0
        %p1727 = pnand %p1726, %p1725
        %p1728 = pneg %p1727
        %s1729 = sadd.s32 %s1724, 4
        %s1730 = scalar_select %p1728, %s1729, %s1724
        %s1731 = smul.u32 %s1730, 8
        %s1732 = scalar_lea.vmem [#allocation4], %s1731
        %1733 = vst [vmem:[%s1732] sm:$0xff] %v1718
        %v1734 = vld [vmem:[#allocation17] sm:$0xff]
        %v1735 = vld [vmem:[#allocation17 + $0x8] sm:$0xff]
        %v1736 = vld [vmem:[#allocation17 + $0x10] sm:$0xff]
        %v1737 = vld [vmem:[#allocation17 + $0x18] sm:$0xff]
        %v1738 = vld [vmem:[#allocation17 + $0x20] sm:$0xff]
        %v1739 = vld [vmem:[#allocation17 + $0x28] sm:$0xff]
        %v1740 = vld [vmem:[#allocation17 + $0x30] sm:$0xff]
        %v1741 = vld [vmem:[#allocation17 + $0x38] sm:$0xff]
        %v1742 = vld [vmem:[#allocation17 + $0x40] sm:$0xff]
        %v1743 = vld [vmem:[#allocation17 + $0x48] sm:$0xff]
        %v1744 = vld [vmem:[#allocation17 + $0x50] sm:$0xff]
        %v1745 = vld [vmem:[#allocation17 + $0x58] sm:$0xff]
        %v1746 = vld [vmem:[#allocation17 + $0x60] sm:$0xff]
        %v1747 = vld [vmem:[#allocation17 + $0x68] sm:$0xff]
        %v1748 = vld [vmem:[#allocation17 + $0x70] sm:$0xff]
        %v1749 = vld [vmem:[#allocation17 + $0x78] sm:$0xff]
        %1750 = vmatpush.msra.mxu0 %v1749
        %1751 = vmatpush.msra.mxu0 %v1748
        %1752 = vmatpush.msra.mxu0 %v1747
        %1753 = vmatpush.msra.mxu0 %v1746
        %1754 = vmatpush.msra.mxu0 %v1745
        %1755 = vmatpush.msra.mxu0 %v1744
        %1756 = vmatpush.msra.mxu0 %v1743
        %1757 = vmatpush.msra.mxu0 %v1742
        %1758 = vmatpush.msra.mxu0 %v1741
        %1759 = vmatpush.msra.mxu0 %v1740
        %1760 = vmatpush.msra.mxu0 %v1739
        %1761 = vmatpush.msra.mxu0 %v1738
        %1762 = vmatpush.msra.mxu0 %v1737
        %1763 = vmatpush.msra.mxu0 %v1736
        %1764 = vmatpush.msra.mxu0 %v1735
        %1765 = vmatpush.msra.mxu0 %v1734
        %1766 = vmatmul.f32.gmra.mxu0 %v1718
        %v1767 = vpop.f32.mrf.mxu0
        %v1768 = vadd.f32 0.0, %v1767
        %1769 = vdwg.mxu0
        %s1770 = scalar_lea.vmem [#allocation5], %s1731
        %1771 = vst [vmem:[%s1770] sm:$0xff] %v1768
        %v1772 = vld [vmem:[%s16] sm:$0x1]
        %v1774 = vperm.slane %v1772, 0
        %v1776 = vmul.f32 %v1718, %v1774
        %1777 = vadd.xlane.f32.xlu0 %v1776
        %v1778 = vpop.xlane.xlu0 %1777
        %v1779 = vld [vmem:[#allocation6] sm:$0x1]
        %v1781 = vperm.slane %v1779, 0
        %v1783 = vadd.f32 %v1778, %v1781
        %v1784 = vsub.f32 0.0, %v1783
        %v1785 = vmul.f32 %v1784, 1.442695
        %v1786 = vpow.pop %v1785
        %v1787 = vadd.f32 %v1786, 1.0
        %v1788 = vrcp.pop %v1787
        %v1789 = vmul.f32 %v1787, %v1788
        %v1790 = vsub.f32 1.0, %v1789
        %v1791 = vmul.f32 %v1788, %v1790
        %v1792 = vadd.f32 %v1788, %v1791
        %vm1793 = vweird.f32 %v1787
        %vm1794 = vweird.f32 %v1788
        %vm1795 = vmor %vm1793, %vm1794
        %v1796 = vsel %vm1795, %v1788, %v1792
        %v1797 = vand.u32 2147483647, %v1787
        %vm1798 = vcmp.eq.f32.partialorder %v1797, 8.507059e+37
        %v1799 = vand.u32 %v1787, 2147483648
        %v1800 = vor.u32 1.1754944e-38, %v1799
        %v1801 = vsel %vm1798, %v1800, %v1796
        %v1802 = vmul.f32 1.0, %v1801
        %s1803 = sadd.s32 %s787, 1
        %s1804 = scalar_lea.vmem %s662, 8 [#allocation7]
        %v1805 = vld [vmem:[%s1804] sm:$0xff]
        %v1806 = vld [vmem:[#allocation9] sm:$0xff]
        %v1807 = vld [vmem:[#allocation9 + $0x8] sm:$0xff]
        %v1808 = vld [vmem:[#allocation9 + $0x10] sm:$0xff]
        %v1809 = vld [vmem:[#allocation9 + $0x18] sm:$0xff]
        %v1810 = vld [vmem:[#allocation9 + $0x20] sm:$0xff]
        %v1811 = vld [vmem:[#allocation9 + $0x28] sm:$0xff]
        %v1812 = vld [vmem:[#allocation9 + $0x30] sm:$0xff]
        %v1813 = vld [vmem:[#allocation9 + $0x38] sm:$0xff]
        %v1814 = vld [vmem:[#allocation9 + $0x40] sm:$0xff]
        %v1815 = vld [vmem:[#allocation9 + $0x48] sm:$0xff]
        %v1816 = vld [vmem:[#allocation9 + $0x50] sm:$0xff]
        %v1817 = vld [vmem:[#allocation9 + $0x58] sm:$0xff]
        %v1818 = vld [vmem:[#allocation9 + $0x60] sm:$0xff]
        %v1819 = vld [vmem:[#allocation9 + $0x68] sm:$0xff]
        %v1820 = vld [vmem:[#allocation9 + $0x70] sm:$0xff]
        %v1821 = vld [vmem:[#allocation9 + $0x78] sm:$0xff]
        %v1822 = vld [vmem:[#allocation9 + $0x80] sm:$0xff]
        %v1823 = vld [vmem:[#allocation9 + $0x88] sm:$0xff]
        %v1824 = vld [vmem:[#allocation9 + $0x90] sm:$0xff]
        %v1825 = vld [vmem:[#allocation9 + $0x98] sm:$0xff]
        %v1826 = vld [vmem:[#allocation9 + $0xa0] sm:$0xff]
        %v1827 = vld [vmem:[#allocation9 + $0xa8] sm:$0xff]
        %v1828 = vld [vmem:[#allocation9 + $0xb0] sm:$0xff]
        %v1829 = vld [vmem:[#allocation9 + $0xb8] sm:$0xff]
        %v1830 = vld [vmem:[#allocation9 + $0xc0] sm:$0xff]
        %v1831 = vld [vmem:[#allocation9 + $0xc8] sm:$0xff]
        %v1832 = vld [vmem:[#allocation9 + $0xd0] sm:$0xff]
        %v1833 = vld [vmem:[#allocation9 + $0xd8] sm:$0xff]
        %v1834 = vld [vmem:[#allocation9 + $0xe0] sm:$0xff]
        %v1835 = vld [vmem:[#allocation9 + $0xe8] sm:$0xff]
        %v1836 = vld [vmem:[#allocation9 + $0xf0] sm:$0xff]
        %v1837 = vld [vmem:[#allocation9 + $0xf8] sm:$0xff]
        %v1838 = vld [vmem:[#allocation9 + $0x100] sm:$0xff]
        %v1839 = vld [vmem:[#allocation9 + $0x108] sm:$0xff]
        %v1840 = vld [vmem:[#allocation9 + $0x110] sm:$0xff]
        %v1841 = vld [vmem:[#allocation9 + $0x118] sm:$0xff]
        %v1842 = vld [vmem:[#allocation9 + $0x120] sm:$0xff]
        %v1843 = vld [vmem:[#allocation9 + $0x128] sm:$0xff]
        %v1844 = vld [vmem:[#allocation9 + $0x130] sm:$0xff]
        %v1845 = vld [vmem:[#allocation9 + $0x138] sm:$0xff]
        %v1846 = vld [vmem:[#allocation9 + $0x140] sm:$0xff]
        %v1847 = vld [vmem:[#allocation9 + $0x148] sm:$0xff]
        %v1848 = vld [vmem:[#allocation9 + $0x150] sm:$0xff]
        %v1849 = vld [vmem:[#allocation9 + $0x158] sm:$0xff]
        %v1850 = vld [vmem:[#allocation9 + $0x160] sm:$0xff]
        %v1851 = vld [vmem:[#allocation9 + $0x168] sm:$0xff]
        %v1852 = vld [vmem:[#allocation9 + $0x170] sm:$0xff]
        %v1853 = vld [vmem:[#allocation9 + $0x178] sm:$0xff]
        %v1854 = vld [vmem:[#allocation9 + $0x180] sm:$0xff]
        %v1855 = vld [vmem:[#allocation9 + $0x188] sm:$0xff]
        %v1856 = vld [vmem:[#allocation9 + $0x190] sm:$0xff]
        %v1857 = vld [vmem:[#allocation9 + $0x198] sm:$0xff]
        %v1858 = vld [vmem:[#allocation9 + $0x1a0] sm:$0xff]
        %v1859 = vld [vmem:[#allocation9 + $0x1a8] sm:$0xff]
        %v1860 = vld [vmem:[#allocation9 + $0x1b0] sm:$0xff]
        %v1861 = vld [vmem:[#allocation9 + $0x1b8] sm:$0xff]
        %v1862 = vld [vmem:[#allocation9 + $0x1c0] sm:$0xff]
        %v1863 = vld [vmem:[#allocation9 + $0x1c8] sm:$0xff]
        %v1864 = vld [vmem:[#allocation9 + $0x1d0] sm:$0xff]
        %v1865 = vld [vmem:[#allocation9 + $0x1d8] sm:$0xff]
        %v1866 = vld [vmem:[#allocation9 + $0x1e0] sm:$0xff]
        %v1867 = vld [vmem:[#allocation9 + $0x1e8] sm:$0xff]
        %v1868 = vld [vmem:[#allocation9 + $0x1f0] sm:$0xff]
        %v1869 = vld [vmem:[#allocation9 + $0x1f8] sm:$0xff]
        %v1870 = vld [vmem:[#allocation9 + $0x200] sm:$0xff]
        %v1871 = vld [vmem:[#allocation9 + $0x208] sm:$0xff]
        %v1872 = vld [vmem:[#allocation9 + $0x210] sm:$0xff]
        %v1873 = vld [vmem:[#allocation9 + $0x218] sm:$0xff]
        %v1874 = vld [vmem:[#allocation9 + $0x220] sm:$0xff]
        %v1875 = vld [vmem:[#allocation9 + $0x228] sm:$0xff]
        %v1876 = vld [vmem:[#allocation9 + $0x230] sm:$0xff]
        %v1877 = vld [vmem:[#allocation9 + $0x238] sm:$0xff]
        %v1878 = vld [vmem:[#allocation9 + $0x240] sm:$0xff]
        %v1879 = vld [vmem:[#allocation9 + $0x248] sm:$0xff]
        %v1880 = vld [vmem:[#allocation9 + $0x250] sm:$0xff]
        %v1881 = vld [vmem:[#allocation9 + $0x258] sm:$0xff]
        %v1882 = vld [vmem:[#allocation9 + $0x260] sm:$0xff]
        %v1883 = vld [vmem:[#allocation9 + $0x268] sm:$0xff]
        %v1884 = vld [vmem:[#allocation9 + $0x270] sm:$0xff]
        %v1885 = vld [vmem:[#allocation9 + $0x278] sm:$0xff]
        %v1886 = vld [vmem:[#allocation9 + $0x280] sm:$0xff]
        %v1887 = vld [vmem:[#allocation9 + $0x288] sm:$0xff]
        %v1888 = vld [vmem:[#allocation9 + $0x290] sm:$0xff]
        %v1889 = vld [vmem:[#allocation9 + $0x298] sm:$0xff]
        %v1890 = vld [vmem:[#allocation9 + $0x2a0] sm:$0xff]
        %v1891 = vld [vmem:[#allocation9 + $0x2a8] sm:$0xff]
        %v1892 = vld [vmem:[#allocation9 + $0x2b0] sm:$0xff]
        %v1893 = vld [vmem:[#allocation9 + $0x2b8] sm:$0xff]
        %v1894 = vld [vmem:[#allocation9 + $0x2c0] sm:$0xff]
        %v1895 = vld [vmem:[#allocation9 + $0x2c8] sm:$0xff]
        %v1896 = vld [vmem:[#allocation9 + $0x2d0] sm:$0xff]
        %v1897 = vld [vmem:[#allocation9 + $0x2d8] sm:$0xff]
        %v1898 = vld [vmem:[#allocation9 + $0x2e0] sm:$0xff]
        %v1899 = vld [vmem:[#allocation9 + $0x2e8] sm:$0xff]
        %v1900 = vld [vmem:[#allocation9 + $0x2f0] sm:$0xff]
        %v1901 = vld [vmem:[#allocation9 + $0x2f8] sm:$0xff]
        %v1902 = vld [vmem:[#allocation11] sm:$0xff]
        %v1903 = vld [vmem:[#allocation11 + $0x8] sm:$0xff]
        %v1904 = vld [vmem:[#allocation11 + $0x10] sm:$0xff]
        %v1905 = vld [vmem:[#allocation11 + $0x18] sm:$0xff]
        %v1906 = vld [vmem:[#allocation11 + $0x20] sm:$0xff]
        %v1907 = vld [vmem:[#allocation11 + $0x28] sm:$0xff]
        %v1908 = vld [vmem:[#allocation11 + $0x30] sm:$0xff]
        %v1909 = vld [vmem:[#allocation11 + $0x38] sm:$0xff]
        %v1910 = vld [vmem:[#allocation11 + $0x40] sm:$0xff]
        %v1911 = vld [vmem:[#allocation11 + $0x48] sm:$0xff]
        %v1912 = vld [vmem:[#allocation11 + $0x50] sm:$0xff]
        %v1913 = vld [vmem:[#allocation11 + $0x58] sm:$0xff]
        %v1915 = vsel %vm897, %v1805, 0
        %1917 = vmatpush.msra.mxu0 0.0
        %1918 = vmatpush.msra.mxu0 0.0
        %1919 = vmatpush.msra.mxu0 0.0
        %1920 = vmatpush.msra.mxu0 0.0
        %1921 = vmatpush.msra.mxu0 0.0
        %1922 = vmatpush.msra.mxu0 0.0
        %1923 = vmatpush.msra.mxu0 0.0
        %1924 = vmatpush.msra.mxu0 0.0
        %1925 = vmatpush.msra.mxu0 0.0
        %1926 = vmatpush.msra.mxu0 0.0
        %1927 = vmatpush.msra.mxu0 0.0
        %1928 = vmatpush.msra.mxu0 0.0
        %1929 = vmatpush.msra.mxu0 0.0
        %1930 = vmatpush.msra.mxu0 0.0
        %1931 = vmatpush.msra.mxu0 %v1908
        %1932 = vmatpush.msra.mxu0 %v1902
        %1933 = vmatmul.f32.gmra.mxu0 %v1915
        %v1934 = vpop.f32.mrf.mxu0
        %v1935 = vadd.f32 0.0, %v1934
        %1936 = vdwg.mxu0
        %1937 = vmatpush.msra.mxu0 0.0
        %1938 = vmatpush.msra.mxu0 0.0
        %1939 = vmatpush.msra.mxu0 0.0
        %1940 = vmatpush.msra.mxu0 0.0
        %1941 = vmatpush.msra.mxu0 0.0
        %1942 = vmatpush.msra.mxu0 0.0
        %1943 = vmatpush.msra.mxu0 0.0
        %1944 = vmatpush.msra.mxu0 0.0
        %1945 = vmatpush.msra.mxu0 0.0
        %1946 = vmatpush.msra.mxu0 0.0
        %1947 = vmatpush.msra.mxu0 0.0
        %1948 = vmatpush.msra.mxu0 0.0
        %1949 = vmatpush.msra.mxu0 0.0
        %1950 = vmatpush.msra.mxu0 0.0
        %1951 = vmatpush.msra.mxu0 %v1909
        %1952 = vmatpush.msra.mxu0 %v1903
        %1953 = vmatmul.f32.gmra.mxu0 %v1915
        %v1954 = vpop.f32.mrf.mxu0
        %v1955 = vadd.f32 0.0, %v1954
        %1956 = vdwg.mxu0
        %1957 = vmatpush.msra.mxu0 0.0
        %1958 = vmatpush.msra.mxu0 0.0
        %1959 = vmatpush.msra.mxu0 0.0
        %1960 = vmatpush.msra.mxu0 0.0
        %1961 = vmatpush.msra.mxu0 0.0
        %1962 = vmatpush.msra.mxu0 0.0
        %1963 = vmatpush.msra.mxu0 0.0
        %1964 = vmatpush.msra.mxu0 0.0
        %1965 = vmatpush.msra.mxu0 0.0
        %1966 = vmatpush.msra.mxu0 0.0
        %1967 = vmatpush.msra.mxu0 0.0
        %1968 = vmatpush.msra.mxu0 0.0
        %1969 = vmatpush.msra.mxu0 0.0
        %1970 = vmatpush.msra.mxu0 0.0
        %1971 = vmatpush.msra.mxu0 %v1910
        %1972 = vmatpush.msra.mxu0 %v1904
        %1973 = vmatmul.f32.gmra.mxu0 %v1915
        %v1974 = vpop.f32.mrf.mxu0
        %v1975 = vadd.f32 0.0, %v1974
        %1976 = vdwg.mxu0
        %1977 = vmatpush.msra.mxu0 0.0
        %1978 = vmatpush.msra.mxu0 0.0
        %1979 = vmatpush.msra.mxu0 0.0
        %1980 = vmatpush.msra.mxu0 0.0
        %1981 = vmatpush.msra.mxu0 0.0
        %1982 = vmatpush.msra.mxu0 0.0
        %1983 = vmatpush.msra.mxu0 0.0
        %1984 = vmatpush.msra.mxu0 0.0
        %1985 = vmatpush.msra.mxu0 0.0
        %1986 = vmatpush.msra.mxu0 0.0
        %1987 = vmatpush.msra.mxu0 0.0
        %1988 = vmatpush.msra.mxu0 0.0
        %1989 = vmatpush.msra.mxu0 0.0
        %1990 = vmatpush.msra.mxu0 0.0
        %1991 = vmatpush.msra.mxu0 %v1911
        %1992 = vmatpush.msra.mxu0 %v1905
        %1993 = vmatmul.f32.gmra.mxu0 %v1915
        %v1994 = vpop.f32.mrf.mxu0
        %v1995 = vadd.f32 0.0, %v1994
        %1996 = vdwg.mxu0
        %1997 = vmatpush.msra.mxu0 0.0
        %1998 = vmatpush.msra.mxu0 0.0
        %1999 = vmatpush.msra.mxu0 0.0
        %2000 = vmatpush.msra.mxu0 0.0
        %2001 = vmatpush.msra.mxu0 0.0
        %2002 = vmatpush.msra.mxu0 0.0
        %2003 = vmatpush.msra.mxu0 0.0
        %2004 = vmatpush.msra.mxu0 0.0
        %2005 = vmatpush.msra.mxu0 0.0
        %2006 = vmatpush.msra.mxu0 0.0
        %2007 = vmatpush.msra.mxu0 0.0
        %2008 = vmatpush.msra.mxu0 0.0
        %2009 = vmatpush.msra.mxu0 0.0
        %2010 = vmatpush.msra.mxu0 0.0
        %2011 = vmatpush.msra.mxu0 %v1912
        %2012 = vmatpush.msra.mxu0 %v1906
        %2013 = vmatmul.f32.gmra.mxu0 %v1915
        %v2014 = vpop.f32.mrf.mxu0
        %v2015 = vadd.f32 0.0, %v2014
        %2016 = vdwg.mxu0
        %2017 = vmatpush.msra.mxu0 0.0
        %2018 = vmatpush.msra.mxu0 0.0
        %2019 = vmatpush.msra.mxu0 0.0
        %2020 = vmatpush.msra.mxu0 0.0
        %2021 = vmatpush.msra.mxu0 0.0
        %2022 = vmatpush.msra.mxu0 0.0
        %2023 = vmatpush.msra.mxu0 0.0
        %2024 = vmatpush.msra.mxu0 0.0
        %2025 = vmatpush.msra.mxu0 0.0
        %2026 = vmatpush.msra.mxu0 0.0
        %2027 = vmatpush.msra.mxu0 0.0
        %2028 = vmatpush.msra.mxu0 0.0
        %2029 = vmatpush.msra.mxu0 0.0
        %2030 = vmatpush.msra.mxu0 0.0
        %2031 = vmatpush.msra.mxu0 %v1913
        %2032 = vmatpush.msra.mxu0 %v1907
        %2033 = vmatmul.f32.gmra.mxu0 %v1915
        %v2034 = vpop.f32.mrf.mxu0
        %v2035 = vadd.f32 0.0, %v2034
        %2036 = vdwg.mxu0
        %2037 = vmatpush.msra.mxu0 %v1896
        %2038 = vmatpush.msra.mxu0 %v1890
        %2039 = vmatpush.msra.mxu0 %v1884
        %2040 = vmatpush.msra.mxu0 %v1878
        %2041 = vmatpush.msra.mxu0 %v1872
        %2042 = vmatpush.msra.mxu0 %v1866
        %2043 = vmatpush.msra.mxu0 %v1860
        %2044 = vmatpush.msra.mxu0 %v1854
        %2045 = vmatpush.msra.mxu0 %v1848
        %2046 = vmatpush.msra.mxu0 %v1842
        %2047 = vmatpush.msra.mxu0 %v1836
        %2048 = vmatpush.msra.mxu0 %v1830
        %2049 = vmatpush.msra.mxu0 %v1824
        %2050 = vmatpush.msra.mxu0 %v1818
        %2051 = vmatpush.msra.mxu0 %v1812
        %2052 = vmatpush.msra.mxu0 %v1806
        %2053 = vmatmul.f32.gmra.mxu0 %v1718
        %v2054 = vpop.f32.mrf.mxu0
        %v2055 = vadd.f32 %v1935, %v2054
        %2056 = vdwg.mxu0
        %2057 = vmatpush.msra.mxu0 %v1897
        %2058 = vmatpush.msra.mxu0 %v1891
        %2059 = vmatpush.msra.mxu0 %v1885
        %2060 = vmatpush.msra.mxu0 %v1879
        %2061 = vmatpush.msra.mxu0 %v1873
        %2062 = vmatpush.msra.mxu0 %v1867
        %2063 = vmatpush.msra.mxu0 %v1861
        %2064 = vmatpush.msra.mxu0 %v1855
        %2065 = vmatpush.msra.mxu0 %v1849
        %2066 = vmatpush.msra.mxu0 %v1843
        %2067 = vmatpush.msra.mxu0 %v1837
        %2068 = vmatpush.msra.mxu0 %v1831
        %2069 = vmatpush.msra.mxu0 %v1825
        %2070 = vmatpush.msra.mxu0 %v1819
        %2071 = vmatpush.msra.mxu0 %v1813
        %2072 = vmatpush.msra.mxu0 %v1807
        %2073 = vmatmul.f32.gmra.mxu0 %v1718
        %v2074 = vpop.f32.mrf.mxu0
        %v2075 = vadd.f32 %v1955, %v2074
        %2076 = vdwg.mxu0
        %2077 = vmatpush.msra.mxu0 %v1898
        %2078 = vmatpush.msra.mxu0 %v1892
        %2079 = vmatpush.msra.mxu0 %v1886
        %2080 = vmatpush.msra.mxu0 %v1880
        %2081 = vmatpush.msra.mxu0 %v1874
        %2082 = vmatpush.msra.mxu0 %v1868
        %2083 = vmatpush.msra.mxu0 %v1862
        %2084 = vmatpush.msra.mxu0 %v1856
        %2085 = vmatpush.msra.mxu0 %v1850
        %2086 = vmatpush.msra.mxu0 %v1844
        %2087 = vmatpush.msra.mxu0 %v1838
        %2088 = vmatpush.msra.mxu0 %v1832
        %2089 = vmatpush.msra.mxu0 %v1826
        %2090 = vmatpush.msra.mxu0 %v1820
        %2091 = vmatpush.msra.mxu0 %v1814
        %2092 = vmatpush.msra.mxu0 %v1808
        %2093 = vmatmul.f32.gmra.mxu0 %v1718
        %v2094 = vpop.f32.mrf.mxu0
        %v2095 = vadd.f32 %v1975, %v2094
        %2096 = vdwg.mxu0
        %2097 = vmatpush.msra.mxu0 %v1899
        %2098 = vmatpush.msra.mxu0 %v1893
        %2099 = vmatpush.msra.mxu0 %v1887
        %2100 = vmatpush.msra.mxu0 %v1881
        %2101 = vmatpush.msra.mxu0 %v1875
        %2102 = vmatpush.msra.mxu0 %v1869
        %2103 = vmatpush.msra.mxu0 %v1863
        %2104 = vmatpush.msra.mxu0 %v1857
        %2105 = vmatpush.msra.mxu0 %v1851
        %2106 = vmatpush.msra.mxu0 %v1845
        %2107 = vmatpush.msra.mxu0 %v1839
        %2108 = vmatpush.msra.mxu0 %v1833
        %2109 = vmatpush.msra.mxu0 %v1827
        %2110 = vmatpush.msra.mxu0 %v1821
        %2111 = vmatpush.msra.mxu0 %v1815
        %2112 = vmatpush.msra.mxu0 %v1809
        %2113 = vmatmul.f32.gmra.mxu0 %v1718
        %v2114 = vpop.f32.mrf.mxu0
        %v2115 = vadd.f32 %v1995, %v2114
        %2116 = vdwg.mxu0
        %2117 = vmatpush.msra.mxu0 %v1900
        %2118 = vmatpush.msra.mxu0 %v1894
        %2119 = vmatpush.msra.mxu0 %v1888
        %2120 = vmatpush.msra.mxu0 %v1882
        %2121 = vmatpush.msra.mxu0 %v1876
        %2122 = vmatpush.msra.mxu0 %v1870
        %2123 = vmatpush.msra.mxu0 %v1864
        %2124 = vmatpush.msra.mxu0 %v1858
        %2125 = vmatpush.msra.mxu0 %v1852
        %2126 = vmatpush.msra.mxu0 %v1846
        %2127 = vmatpush.msra.mxu0 %v1840
        %2128 = vmatpush.msra.mxu0 %v1834
        %2129 = vmatpush.msra.mxu0 %v1828
        %2130 = vmatpush.msra.mxu0 %v1822
        %2131 = vmatpush.msra.mxu0 %v1816
        %2132 = vmatpush.msra.mxu0 %v1810
        %2133 = vmatmul.f32.gmra.mxu0 %v1718
        %v2134 = vpop.f32.mrf.mxu0
        %v2135 = vadd.f32 %v2015, %v2134
        %2136 = vdwg.mxu0
        %2137 = vmatpush.msra.mxu0 %v1901
        %2138 = vmatpush.msra.mxu0 %v1895
        %2139 = vmatpush.msra.mxu0 %v1889
        %2140 = vmatpush.msra.mxu0 %v1883
        %2141 = vmatpush.msra.mxu0 %v1877
        %2142 = vmatpush.msra.mxu0 %v1871
        %2143 = vmatpush.msra.mxu0 %v1865
        %2144 = vmatpush.msra.mxu0 %v1859
        %2145 = vmatpush.msra.mxu0 %v1853
        %2146 = vmatpush.msra.mxu0 %v1847
        %2147 = vmatpush.msra.mxu0 %v1841
        %2148 = vmatpush.msra.mxu0 %v1835
        %2149 = vmatpush.msra.mxu0 %v1829
        %2150 = vmatpush.msra.mxu0 %v1823
        %2151 = vmatpush.msra.mxu0 %v1817
        %2152 = vmatpush.msra.mxu0 %v1811
        %2153 = vmatmul.f32.gmra.mxu0 %v1718
        %v2154 = vpop.f32.mrf.mxu0
        %v2155 = vadd.f32 %v2035, %v2154
        %2156 = vdwg.mxu0
        %v2157 = vld [vmem:[%s3] sm:$0x1]
        %2158 = vset.pattern.permute.xlu0 32
        %2159 = vperm.xlu0 %2158, %v1805
        %v2160 = vpop.permute.xlu0 %2159
        %v2163 = vperm.slane %v2157, 0
        %v2165 = vmul.f32 %v2160, %v2163
        %v2166 = vadd.f32 %v2055, %v2165
        %v2167 = vld [vmem:[%s4] sm:$0x1]
        %v2169 = vperm.slane %v2167, 0
        %v2171 = vadd.f32 %v2166, %v2169
        %v2172 = vtanh.pop %v2171
        %v2173 = vld [vmem:[#allocation12] sm:$0xff]
        %v2174 = vld [vmem:[#allocation12 + $0x8] sm:$0xff]
        %v2175 = vld [vmem:[#allocation12 + $0x10] sm:$0xff]
        %v2176 = vld [vmem:[#allocation12 + $0x18] sm:$0xff]
        %v2177 = vld [vmem:[#allocation12 + $0x20] sm:$0xff]
        %v2178 = vld [vmem:[#allocation12 + $0x28] sm:$0xff]
        %v2179 = vld [vmem:[#allocation12 + $0x30] sm:$0xff]
        %v2180 = vld [vmem:[#allocation12 + $0x38] sm:$0xff]
        %v2181 = vld [vmem:[#allocation12 + $0x40] sm:$0xff]
        %v2182 = vld [vmem:[#allocation12 + $0x48] sm:$0xff]
        %v2183 = vld [vmem:[#allocation12 + $0x50] sm:$0xff]
        %v2184 = vld [vmem:[#allocation12 + $0x58] sm:$0xff]
        %v2185 = vld [vmem:[#allocation12 + $0x60] sm:$0xff]
        %v2186 = vld [vmem:[#allocation12 + $0x68] sm:$0xff]
        %v2187 = vld [vmem:[#allocation12 + $0x70] sm:$0xff]
        %v2188 = vld [vmem:[#allocation12 + $0x78] sm:$0xff]
        %v2189 = vld [vmem:[#allocation12 + $0x80] sm:$0xff]
        %v2190 = vld [vmem:[#allocation12 + $0x88] sm:$0xff]
        %v2191 = vld [vmem:[#allocation12 + $0x90] sm:$0xff]
        %v2192 = vld [vmem:[#allocation12 + $0x98] sm:$0xff]
        %v2193 = vld [vmem:[#allocation12 + $0xa0] sm:$0xff]
        %v2194 = vld [vmem:[#allocation12 + $0xa8] sm:$0xff]
        %v2195 = vld [vmem:[#allocation12 + $0xb0] sm:$0xff]
        %v2196 = vld [vmem:[#allocation12 + $0xb8] sm:$0xff]
        %v2197 = vld [vmem:[#allocation12 + $0xc0] sm:$0xff]
        %v2198 = vld [vmem:[#allocation12 + $0xc8] sm:$0xff]
        %v2199 = vld [vmem:[#allocation12 + $0xd0] sm:$0xff]
        %v2200 = vld [vmem:[#allocation12 + $0xd8] sm:$0xff]
        %v2201 = vld [vmem:[#allocation12 + $0xe0] sm:$0xff]
        %v2202 = vld [vmem:[#allocation12 + $0xe8] sm:$0xff]
        %v2203 = vld [vmem:[#allocation12 + $0xf0] sm:$0xff]
        %v2204 = vld [vmem:[#allocation12 + $0xf8] sm:$0xff]
        %v2205 = vld [vmem:[#allocation12 + $0x100] sm:$0xff]
        %v2206 = vld [vmem:[#allocation12 + $0x108] sm:$0xff]
        %v2207 = vld [vmem:[#allocation12 + $0x110] sm:$0xff]
        %v2208 = vld [vmem:[#allocation12 + $0x118] sm:$0xff]
        %v2209 = vld [vmem:[#allocation12 + $0x120] sm:$0xff]
        %v2210 = vld [vmem:[#allocation12 + $0x128] sm:$0xff]
        %v2211 = vld [vmem:[#allocation12 + $0x130] sm:$0xff]
        %v2212 = vld [vmem:[#allocation12 + $0x138] sm:$0xff]
        %v2213 = vld [vmem:[#allocation12 + $0x140] sm:$0xff]
        %v2214 = vld [vmem:[#allocation12 + $0x148] sm:$0xff]
        %v2215 = vld [vmem:[#allocation12 + $0x150] sm:$0xff]
        %v2216 = vld [vmem:[#allocation12 + $0x158] sm:$0xff]
        %v2217 = vld [vmem:[#allocation12 + $0x160] sm:$0xff]
        %v2218 = vld [vmem:[#allocation12 + $0x168] sm:$0xff]
        %v2219 = vld [vmem:[#allocation12 + $0x170] sm:$0xff]
        %v2220 = vld [vmem:[#allocation12 + $0x178] sm:$0xff]
        %v2221 = vld [vmem:[#allocation12 + $0x180] sm:$0xff]
        %v2222 = vld [vmem:[#allocation12 + $0x188] sm:$0xff]
        %v2223 = vld [vmem:[#allocation12 + $0x190] sm:$0xff]
        %v2224 = vld [vmem:[#allocation12 + $0x198] sm:$0xff]
        %v2225 = vld [vmem:[#allocation12 + $0x1a0] sm:$0xff]
        %v2226 = vld [vmem:[#allocation12 + $0x1a8] sm:$0xff]
        %v2227 = vld [vmem:[#allocation12 + $0x1b0] sm:$0xff]
        %v2228 = vld [vmem:[#allocation12 + $0x1b8] sm:$0xff]
        %v2229 = vld [vmem:[#allocation12 + $0x1c0] sm:$0xff]
        %v2230 = vld [vmem:[#allocation12 + $0x1c8] sm:$0xff]
        %v2231 = vld [vmem:[#allocation12 + $0x1d0] sm:$0xff]
        %v2232 = vld [vmem:[#allocation12 + $0x1d8] sm:$0xff]
        %v2233 = vld [vmem:[#allocation12 + $0x1e0] sm:$0xff]
        %v2234 = vld [vmem:[#allocation12 + $0x1e8] sm:$0xff]
        %v2235 = vld [vmem:[#allocation12 + $0x1f0] sm:$0xff]
        %v2236 = vld [vmem:[#allocation12 + $0x1f8] sm:$0xff]
        %v2237 = vld [vmem:[#allocation12 + $0x200] sm:$0xff]
        %v2238 = vld [vmem:[#allocation12 + $0x208] sm:$0xff]
        %v2239 = vld [vmem:[#allocation12 + $0x210] sm:$0xff]
        %v2240 = vld [vmem:[#allocation12 + $0x218] sm:$0xff]
        %v2241 = vld [vmem:[#allocation12 + $0x220] sm:$0xff]
        %v2242 = vld [vmem:[#allocation12 + $0x228] sm:$0xff]
        %v2243 = vld [vmem:[#allocation12 + $0x230] sm:$0xff]
        %v2244 = vld [vmem:[#allocation12 + $0x238] sm:$0xff]
        %v2245 = vld [vmem:[#allocation12 + $0x240] sm:$0xff]
        %v2246 = vld [vmem:[#allocation12 + $0x248] sm:$0xff]
        %v2247 = vld [vmem:[#allocation12 + $0x250] sm:$0xff]
        %v2248 = vld [vmem:[#allocation12 + $0x258] sm:$0xff]
        %v2249 = vld [vmem:[#allocation12 + $0x260] sm:$0xff]
        %v2250 = vld [vmem:[#allocation12 + $0x268] sm:$0xff]
        %v2251 = vld [vmem:[#allocation12 + $0x270] sm:$0xff]
        %v2252 = vld [vmem:[#allocation12 + $0x278] sm:$0xff]
        %2253 = vmatpush.msra.mxu0 %v2248
        %2254 = vmatpush.msra.mxu0 %v2243
        %2255 = vmatpush.msra.mxu0 %v2238
        %2256 = vmatpush.msra.mxu0 %v2233
        %2257 = vmatpush.msra.mxu0 %v2228
        %2258 = vmatpush.msra.mxu0 %v2223
        %2259 = vmatpush.msra.mxu0 %v2218
        %2260 = vmatpush.msra.mxu0 %v2213
        %2261 = vmatpush.msra.mxu0 %v2208
        %2262 = vmatpush.msra.mxu0 %v2203
        %2263 = vmatpush.msra.mxu0 %v2198
        %2264 = vmatpush.msra.mxu0 %v2193
        %2265 = vmatpush.msra.mxu0 %v2188
        %2266 = vmatpush.msra.mxu0 %v2183
        %2267 = vmatpush.msra.mxu0 %v2178
        %2268 = vmatpush.msra.mxu0 %v2173
        %2269 = vmatmul.f32.gmra.mxu0 %v2172
        %v2270 = vpop.f32.mrf.mxu0
        %v2271 = vadd.f32 0.0, %v2270
        %2272 = vdwg.mxu0
        %2273 = vmatpush.msra.mxu0 %v2249
        %2274 = vmatpush.msra.mxu0 %v2244
        %2275 = vmatpush.msra.mxu0 %v2239
        %2276 = vmatpush.msra.mxu0 %v2234
        %2277 = vmatpush.msra.mxu0 %v2229
        %2278 = vmatpush.msra.mxu0 %v2224
        %2279 = vmatpush.msra.mxu0 %v2219
        %2280 = vmatpush.msra.mxu0 %v2214
        %2281 = vmatpush.msra.mxu0 %v2209
        %2282 = vmatpush.msra.mxu0 %v2204
        %2283 = vmatpush.msra.mxu0 %v2199
        %2284 = vmatpush.msra.mxu0 %v2194
        %2285 = vmatpush.msra.mxu0 %v2189
        %2286 = vmatpush.msra.mxu0 %v2184
        %2287 = vmatpush.msra.mxu0 %v2179
        %2288 = vmatpush.msra.mxu0 %v2174
        %2289 = vmatmul.f32.gmra.mxu0 %v2172
        %v2290 = vpop.f32.mrf.mxu0
        %v2291 = vadd.f32 0.0, %v2290
        %2292 = vdwg.mxu0
        %2293 = vmatpush.msra.mxu0 %v2250
        %2294 = vmatpush.msra.mxu0 %v2245
        %2295 = vmatpush.msra.mxu0 %v2240
        %2296 = vmatpush.msra.mxu0 %v2235
        %2297 = vmatpush.msra.mxu0 %v2230
        %2298 = vmatpush.msra.mxu0 %v2225
        %2299 = vmatpush.msra.mxu0 %v2220
        %2300 = vmatpush.msra.mxu0 %v2215
        %2301 = vmatpush.msra.mxu0 %v2210
        %2302 = vmatpush.msra.mxu0 %v2205
        %2303 = vmatpush.msra.mxu0 %v2200
        %2304 = vmatpush.msra.mxu0 %v2195
        %2305 = vmatpush.msra.mxu0 %v2190
        %2306 = vmatpush.msra.mxu0 %v2185
        %2307 = vmatpush.msra.mxu0 %v2180
        %2308 = vmatpush.msra.mxu0 %v2175
        %2309 = vmatmul.f32.gmra.mxu0 %v2172
        %v2310 = vpop.f32.mrf.mxu0
        %v2311 = vadd.f32 0.0, %v2310
        %2312 = vdwg.mxu0
        %2313 = vmatpush.msra.mxu0 %v2251
        %2314 = vmatpush.msra.mxu0 %v2246
        %2315 = vmatpush.msra.mxu0 %v2241
        %2316 = vmatpush.msra.mxu0 %v2236
        %2317 = vmatpush.msra.mxu0 %v2231
        %2318 = vmatpush.msra.mxu0 %v2226
        %2319 = vmatpush.msra.mxu0 %v2221
        %2320 = vmatpush.msra.mxu0 %v2216
        %2321 = vmatpush.msra.mxu0 %v2211
        %2322 = vmatpush.msra.mxu0 %v2206
        %2323 = vmatpush.msra.mxu0 %v2201
        %2324 = vmatpush.msra.mxu0 %v2196
        %2325 = vmatpush.msra.mxu0 %v2191
        %2326 = vmatpush.msra.mxu0 %v2186
        %2327 = vmatpush.msra.mxu0 %v2181
        %2328 = vmatpush.msra.mxu0 %v2176
        %2329 = vmatmul.f32.gmra.mxu0 %v2172
        %v2330 = vpop.f32.mrf.mxu0
        %v2331 = vadd.f32 0.0, %v2330
        %2332 = vdwg.mxu0
        %2333 = vmatpush.msra.mxu0 %v2252
        %2334 = vmatpush.msra.mxu0 %v2247
        %2335 = vmatpush.msra.mxu0 %v2242
        %2336 = vmatpush.msra.mxu0 %v2237
        %2337 = vmatpush.msra.mxu0 %v2232
        %2338 = vmatpush.msra.mxu0 %v2227
        %2339 = vmatpush.msra.mxu0 %v2222
        %2340 = vmatpush.msra.mxu0 %v2217
        %2341 = vmatpush.msra.mxu0 %v2212
        %2342 = vmatpush.msra.mxu0 %v2207
        %2343 = vmatpush.msra.mxu0 %v2202
        %2344 = vmatpush.msra.mxu0 %v2197
        %2345 = vmatpush.msra.mxu0 %v2192
        %2346 = vmatpush.msra.mxu0 %v2187
        %2347 = vmatpush.msra.mxu0 %v2182
        %2348 = vmatpush.msra.mxu0 %v2177
        %2349 = vmatmul.f32.gmra.mxu0 %v2172
        %v2350 = vpop.f32.mrf.mxu0
        %v2351 = vadd.f32 0.0, %v2350
        %2352 = vdwg.mxu0
        %v2353 = vadd.f32 %v2075, %v2271
        %v2354 = vadd.f32 %v2095, %v2291
        %v2355 = vadd.f32 %v2115, %v2311
        %v2356 = vadd.f32 %v2135, %v2331
        %v2357 = vadd.f32 %v2155, %v2351
        %v2358 = vld [vmem:[%s6] sm:$0x1f]
        %v2360 = vperm.slane %v2358, 0
        %v2361 = vperm.slane %v2358, 1
        %v2362 = vperm.slane %v2358, 2
        %v2363 = vperm.slane %v2358, 3
        %v2364 = vperm.slane %v2358, 4
        %v2370 = vadd.f32 %v2353, %v2360
        %v2371 = vadd.f32 %v2354, %v2361
        %v2372 = vadd.f32 %v2355, %v2362
        %v2373 = vadd.f32 %v2356, %v2363
        %v2374 = vadd.f32 %v2357, %v2364
        %v2375 = vsub.f32 0.0, %v2370
        %v2376 = vmul.f32 %v2375, 1.442695
        %v2377 = vpow.pop %v2376
        %v2378 = vadd.f32 %v2377, 1.0
        %v2379 = vrcp.pop %v2378
        %v2380 = vmul.f32 %v2378, %v2379
        %v2381 = vsub.f32 1.0, %v2380
        %v2382 = vmul.f32 %v2379, %v2381
        %v2383 = vadd.f32 %v2379, %v2382
        %vm2384 = vweird.f32 %v2378
        %vm2385 = vweird.f32 %v2379
        %vm2386 = vmor %vm2384, %vm2385
        %v2387 = vsel %vm2386, %v2379, %v2383
        %v2388 = vand.u32 2147483647, %v2378
        %vm2389 = vcmp.eq.f32.partialorder %v2388, 8.507059e+37
        %v2390 = vand.u32 %v2378, 2147483648
        %v2391 = vor.u32 1.1754944e-38, %v2390
        %v2392 = vsel %vm2389, %v2391, %v2387
        %v2393 = vmul.f32 1.0, %v2392
        %v2394 = vsub.f32 0.0, %v2371
        %v2395 = vmul.f32 %v2394, 1.442695
        %v2396 = vpow.pop %v2395
        %v2397 = vadd.f32 %v2396, 1.0
        %v2398 = vrcp.pop %v2397
        %v2399 = vmul.f32 %v2397, %v2398
        %v2400 = vsub.f32 1.0, %v2399
        %v2401 = vmul.f32 %v2398, %v2400
        %v2402 = vadd.f32 %v2398, %v2401
        %vm2403 = vweird.f32 %v2397
        %vm2404 = vweird.f32 %v2398
        %vm2405 = vmor %vm2403, %vm2404
        %v2406 = vsel %vm2405, %v2398, %v2402
        %v2407 = vand.u32 2147483647, %v2397
        %vm2408 = vcmp.eq.f32.partialorder %v2407, 8.507059e+37
        %v2409 = vand.u32 %v2397, 2147483648
        %v2410 = vor.u32 1.1754944e-38, %v2409
        %v2411 = vsel %vm2408, %v2410, %v2406
        %v2412 = vmul.f32 1.0, %v2411
        %v2413 = vsub.f32 0.0, %v2372
        %v2414 = vmul.f32 %v2413, 1.442695
        %v2415 = vpow.pop %v2414
        %v2416 = vadd.f32 %v2415, 1.0
        %v2417 = vrcp.pop %v2416
        %v2418 = vmul.f32 %v2416, %v2417
        %v2419 = vsub.f32 1.0, %v2418
        %v2420 = vmul.f32 %v2417, %v2419
        %v2421 = vadd.f32 %v2417, %v2420
        %vm2422 = vweird.f32 %v2416
        %vm2423 = vweird.f32 %v2417
        %vm2424 = vmor %vm2422, %vm2423
        %v2425 = vsel %vm2424, %v2417, %v2421
        %v2426 = vand.u32 2147483647, %v2416
        %vm2427 = vcmp.eq.f32.partialorder %v2426, 8.507059e+37
        %v2428 = vand.u32 %v2416, 2147483648
        %v2429 = vor.u32 1.1754944e-38, %v2428
        %v2430 = vsel %vm2427, %v2429, %v2425
        %v2431 = vmul.f32 1.0, %v2430
        %v2432 = vtanh.pop %v2373
        %v2433 = vsub.f32 0.0, %v2374
        %v2434 = vmul.f32 %v2433, 1.442695
        %v2435 = vpow.pop %v2434
        %v2436 = vadd.f32 %v2435, 1.0
        %v2437 = vrcp.pop %v2436
        %v2438 = vmul.f32 %v2436, %v2437
        %v2439 = vsub.f32 1.0, %v2438
        %v2440 = vmul.f32 %v2437, %v2439
        %v2441 = vadd.f32 %v2437, %v2440
        %vm2442 = vweird.f32 %v2436
        %vm2443 = vweird.f32 %v2437
        %vm2444 = vmor %vm2442, %vm2443
        %v2445 = vsel %vm2444, %v2437, %v2441
        %v2446 = vand.u32 2147483647, %v2436
        %vm2447 = vcmp.eq.f32.partialorder %v2446, 8.507059e+37
        %v2448 = vand.u32 %v2436, 2147483648
        %v2449 = vor.u32 1.1754944e-38, %v2448
        %v2450 = vsel %vm2447, %v2449, %v2445
        %v2451 = vmul.f32 1.0, %v2450
        %v2452 = vmul.f32 %v2393, %v1440
        %v2453 = vmul.f32 %v2412, %v2432
        %v2454 = vadd.f32 %v2452, %v2453
        %v2455 = vmul.f32 %v2431, %v2172
        %v2456 = vadd.f32 %v2454, %v2455
        %v2457 = vtanh.pop %v2456
        %v2458 = vmul.f32 %v2451, %v2457
        %v2459 = vld [vmem:[#allocation14] sm:$0xff]
        %v2460 = vld [vmem:[#allocation14 + $0x8] sm:$0xff]
        %v2461 = vld [vmem:[#allocation14 + $0x10] sm:$0xff]
        %v2462 = vld [vmem:[#allocation14 + $0x18] sm:$0xff]
        %v2463 = vld [vmem:[#allocation14 + $0x20] sm:$0xff]
        %v2464 = vld [vmem:[#allocation14 + $0x28] sm:$0xff]
        %v2465 = vld [vmem:[#allocation14 + $0x30] sm:$0xff]
        %v2466 = vld [vmem:[#allocation14 + $0x38] sm:$0xff]
        %v2467 = vld [vmem:[#allocation14 + $0x40] sm:$0xff]
        %v2468 = vld [vmem:[#allocation14 + $0x48] sm:$0xff]
        %v2469 = vld [vmem:[#allocation14 + $0x50] sm:$0xff]
        %v2470 = vld [vmem:[#allocation14 + $0x58] sm:$0xff]
        %v2471 = vld [vmem:[#allocation14 + $0x60] sm:$0xff]
        %v2472 = vld [vmem:[#allocation14 + $0x68] sm:$0xff]
        %v2473 = vld [vmem:[#allocation14 + $0x70] sm:$0xff]
        %v2474 = vld [vmem:[#allocation14 + $0x78] sm:$0xff]
        %v2475 = vld [vmem:[#allocation15] sm:$0xff]
        %v2476 = vld [vmem:[#allocation15 + $0x8] sm:$0xff]
        %v2477 = vld [vmem:[#allocation15 + $0x10] sm:$0xff]
        %v2478 = vld [vmem:[#allocation15 + $0x18] sm:$0xff]
        %v2479 = vld [vmem:[#allocation15 + $0x20] sm:$0xff]
        %v2480 = vld [vmem:[#allocation15 + $0x28] sm:$0xff]
        %v2481 = vld [vmem:[#allocation15 + $0x30] sm:$0xff]
        %v2482 = vld [vmem:[#allocation15 + $0x38] sm:$0xff]
        %v2483 = vld [vmem:[#allocation15 + $0x40] sm:$0xff]
        %v2484 = vld [vmem:[#allocation15 + $0x48] sm:$0xff]
        %v2485 = vld [vmem:[#allocation15 + $0x50] sm:$0xff]
        %v2486 = vld [vmem:[#allocation15 + $0x58] sm:$0xff]
        %v2487 = vld [vmem:[#allocation15 + $0x60] sm:$0xff]
        %v2488 = vld [vmem:[#allocation15 + $0x68] sm:$0xff]
        %v2489 = vld [vmem:[#allocation15 + $0x70] sm:$0xff]
        %v2490 = vld [vmem:[#allocation15 + $0x78] sm:$0xff]
        %2491 = vmatpush.msra.mxu0 %v2490
        %2492 = vmatpush.msra.mxu0 %v2489
        %2493 = vmatpush.msra.mxu0 %v2488
        %2494 = vmatpush.msra.mxu0 %v2487
        %2495 = vmatpush.msra.mxu0 %v2486
        %2496 = vmatpush.msra.mxu0 %v2485
        %2497 = vmatpush.msra.mxu0 %v2484
        %2498 = vmatpush.msra.mxu0 %v2483
        %2499 = vmatpush.msra.mxu0 %v2482
        %2500 = vmatpush.msra.mxu0 %v2481
        %2501 = vmatpush.msra.mxu0 %v2480
        %2502 = vmatpush.msra.mxu0 %v2479
        %2503 = vmatpush.msra.mxu0 %v2478
        %2504 = vmatpush.msra.mxu0 %v2477
        %2505 = vmatpush.msra.mxu0 %v2476
        %2506 = vmatpush.msra.mxu0 %v2475
        %2507 = vmatmul.f32.gmra.mxu0 %v2456
        %v2508 = vpop.f32.mrf.mxu0
        %v2509 = vadd.f32 0.0, %v2508
        %2510 = vdwg.mxu0
        %2511 = vmatpush.msra.mxu0 %v2474
        %2512 = vmatpush.msra.mxu0 %v2473
        %2513 = vmatpush.msra.mxu0 %v2472
        %2514 = vmatpush.msra.mxu0 %v2471
        %2515 = vmatpush.msra.mxu0 %v2470
        %2516 = vmatpush.msra.mxu0 %v2469
        %2517 = vmatpush.msra.mxu0 %v2468
        %2518 = vmatpush.msra.mxu0 %v2467
        %2519 = vmatpush.msra.mxu0 %v2466
        %2520 = vmatpush.msra.mxu0 %v2465
        %2521 = vmatpush.msra.mxu0 %v2464
        %2522 = vmatpush.msra.mxu0 %v2463
        %2523 = vmatpush.msra.mxu0 %v2462
        %2524 = vmatpush.msra.mxu0 %v2461
        %2525 = vmatpush.msra.mxu0 %v2460
        %2526 = vmatpush.msra.mxu0 %v2459
        %2527 = vmatmul.f32.gmra.mxu0 %v2458
        %v2528 = vpop.f32.mrf.mxu0
        %v2529 = vadd.f32 %v2509, %v2528
        %2530 = vdwg.mxu0
        %v2531 = vld [vmem:[#allocation5] sm:$0xff]
        %v2532 = vld [vmem:[#allocation5 + $0x8] sm:$0xff]
        %v2533 = vld [vmem:[#allocation5 + $0x10] sm:$0xff]
        %v2534 = vld [vmem:[#allocation5 + $0x18] sm:$0xff]
        %v2535 = vadd.f32 %v2529, %v2531
        %v2536 = vadd.f32 %v2529, %v2532
        %v2537 = vadd.f32 %v2529, %v2533
        %v2538 = vadd.f32 %v2529, %v2534
        %v2539 = vld [vmem:[%s10] sm:$0x1]
        %v2541 = vperm.slane %v2539, 0
        %v2543 = vadd.f32 %v2535, %v2541
        %v2544 = vadd.f32 %v2536, %v2541
        %v2545 = vadd.f32 %v2537, %v2541
        %v2546 = vadd.f32 %v2538, %v2541
        %v2547 = vtanh.pop %v2543
        %v2548 = vtanh.pop %v2544
        %v2549 = vtanh.pop %v2545
        %v2550 = vtanh.pop %v2546
        %v2551 = vld [vmem:[%s11] sm:$0x1]
        %v2553 = vperm.slane %v2551, 0
        %v2555 = vmul.f32 %v2547, %v2553
        %v2556 = vmul.f32 %v2548, %v2553
        %v2557 = vmul.f32 %v2549, %v2553
        %v2558 = vmul.f32 %v2550, %v2553
        %2559 = vadd.xlane.f32.xlu0 %v2555
        %v2560 = vpop.xlane.xlu0 %2559
        %2561 = vadd.xlane.f32.xlu0 %v2556
        %v2562 = vpop.xlane.xlu0 %2561
        %2563 = vadd.xlane.f32.xlu0 %v2557
        %v2564 = vpop.xlane.xlu0 %2563
        %2565 = vadd.xlane.f32.xlu0 %v2558
        %v2566 = vpop.xlane.xlu0 %2565
        %p2567 = scmp.lt.s32.totalorder %s1803, 4
        %s2568 = scalar_select %p2567, %s1803, 4
        %v2569 = vstv %s2568
        %vm2570 = vcmp.gt.s32.totalorder %v2569, 0
        %vm2571 = vcmp.gt.s32.totalorder %v2569, 1
        %vm2572 = vcmp.gt.s32.totalorder %v2569, 2
        %vm2573 = vcmp.gt.s32.totalorder %v2569, 3
        %v2574 = vsel %vm2570, %v2560, -1e+30
        %v2575 = vsel %vm2571, %v2562, -1e+30
        %v2576 = vsel %vm2572, %v2564, -1e+30
        %v2577 = vsel %vm2573, %v2566, -1e+30
        %v2578 = vmax.f32 %v2574, %v2575
        %v2579 = vmax.f32 %v2576, %v2577
        %v2580 = vmax.f32 %v2578, %v2579
        %v2581 = vsub.f32 %v2560, %v2580
        %v2582 = vsub.f32 %v2562, %v2580
        %v2583 = vsub.f32 %v2564, %v2580
        %v2584 = vsub.f32 %v2566, %v2580
        %v2585 = vsel %vm2570, %v2581, -1e+30
        %v2586 = vsel %vm2571, %v2582, -1e+30
        %v2587 = vsel %vm2572, %v2583, -1e+30
        %v2588 = vsel %vm2573, %v2584, -1e+30
        %v2589 = vmul.f32 %v2585, 1.442695
        %v2590 = vpow.pop %v2589
        %v2591 = vmul.f32 %v2586, 1.442695
        %v2592 = vpow.pop %v2591
        %v2593 = vmul.f32 %v2587, 1.442695
        %v2594 = vpow.pop %v2593
        %v2595 = vmul.f32 %v2588, 1.442695
        %v2596 = vpow.pop %v2595
        %v2597 = vadd.f32 %v2590, %v2592
        %v2598 = vadd.f32 %v2597, %v2594
        %v2599 = vadd.f32 %v2598, %v2596
        %v2600 = vmax.f32 %v2599, 1e-30
        %v2601 = vrcp.pop %v2600
        %v2602 = vmul.f32 %v2600, %v2601
        %v2603 = vsub.f32 1.0, %v2602
        %v2604 = vmul.f32 %v2601, %v2603
        %v2605 = vadd.f32 %v2601, %v2604
        %vm2606 = vweird.f32 %v2600
        %vm2607 = vweird.f32 %v2601
        %vm2608 = vmor %vm2606, %vm2607
        %v2609 = vsel %vm2608, %v2601, %v2605
        %v2610 = vand.u32 2147483647, %v2600
        %vm2611 = vcmp.eq.f32.partialorder %v2610, 8.507059e+37
        %v2612 = vand.u32 %v2600, 2147483648
        %v2613 = vor.u32 1.1754944e-38, %v2612
        %v2614 = vsel %vm2611, %v2613, %v2609
        %v2615 = vmul.f32 %v2590, %v2614
        %v2616 = vmul.f32 %v2592, %v2614
        %v2617 = vmul.f32 %v2594, %v2614
        %v2618 = vmul.f32 %v2596, %v2614
        %v2619 = vld [vmem:[#allocation4] sm:$0xff]
        %v2620 = vld [vmem:[#allocation4 + $0x8] sm:$0xff]
        %v2621 = vld [vmem:[#allocation4 + $0x10] sm:$0xff]
        %v2622 = vld [vmem:[#allocation4 + $0x18] sm:$0xff]
        %v2623 = vmul.f32 %v2615, %v2619
        %v2624 = vmul.f32 %v2616, %v2620
        %v2625 = vmul.f32 %v2617, %v2621
        %v2626 = vmul.f32 %v2618, %v2622
        %v2627 = vadd.f32 %v2623, %v2624
        %v2628 = vadd.f32 %v2627, %v2625
        %v2629 = vadd.f32 %v2628, %v2626
        %v2630 = vld [vmem:[#allocation18] sm:$0xff]
        %v2631 = vld [vmem:[#allocation18 + $0x8] sm:$0xff]
        %v2632 = vld [vmem:[#allocation18 + $0x10] sm:$0xff]
        %v2633 = vld [vmem:[#allocation18 + $0x18] sm:$0xff]
        %v2634 = vld [vmem:[#allocation18 + $0x20] sm:$0xff]
        %v2635 = vld [vmem:[#allocation18 + $0x28] sm:$0xff]
        %v2636 = vld [vmem:[#allocation18 + $0x30] sm:$0xff]
        %v2637 = vld [vmem:[#allocation18 + $0x38] sm:$0xff]
        %v2638 = vld [vmem:[#allocation18 + $0x40] sm:$0xff]
        %v2639 = vld [vmem:[#allocation18 + $0x48] sm:$0xff]
        %v2640 = vld [vmem:[#allocation18 + $0x50] sm:$0xff]
        %v2641 = vld [vmem:[#allocation18 + $0x58] sm:$0xff]
        %v2642 = vld [vmem:[#allocation18 + $0x60] sm:$0xff]
        %v2643 = vld [vmem:[#allocation18 + $0x68] sm:$0xff]
        %v2644 = vld [vmem:[#allocation18 + $0x70] sm:$0xff]
        %v2645 = vld [vmem:[#allocation18 + $0x78] sm:$0xff]
        %v2646 = vld [vmem:[#allocation20] sm:$0xff]
        %v2647 = vld [vmem:[#allocation20 + $0x8] sm:$0xff]
        %v2648 = vld [vmem:[#allocation20 + $0x10] sm:$0xff]
        %v2649 = vld [vmem:[#allocation20 + $0x18] sm:$0xff]
        %v2650 = vld [vmem:[#allocation20 + $0x20] sm:$0xff]
        %v2651 = vld [vmem:[#allocation20 + $0x28] sm:$0xff]
        %v2652 = vld [vmem:[#allocation20 + $0x30] sm:$0xff]
        %v2653 = vld [vmem:[#allocation20 + $0x38] sm:$0xff]
        %v2654 = vld [vmem:[#allocation20 + $0x40] sm:$0xff]
        %v2655 = vld [vmem:[#allocation20 + $0x48] sm:$0xff]
        %v2656 = vld [vmem:[#allocation20 + $0x50] sm:$0xff]
        %v2657 = vld [vmem:[#allocation20 + $0x58] sm:$0xff]
        %v2658 = vld [vmem:[#allocation20 + $0x60] sm:$0xff]
        %v2659 = vld [vmem:[#allocation20 + $0x68] sm:$0xff]
        %v2660 = vld [vmem:[#allocation20 + $0x70] sm:$0xff]
        %v2661 = vld [vmem:[#allocation20 + $0x78] sm:$0xff]
        %2662 = vmatpush.msra.mxu0 %v2661
        %2663 = vmatpush.msra.mxu0 %v2660
        %2664 = vmatpush.msra.mxu0 %v2659
        %2665 = vmatpush.msra.mxu0 %v2658
        %2666 = vmatpush.msra.mxu0 %v2657
        %2667 = vmatpush.msra.mxu0 %v2656
        %2668 = vmatpush.msra.mxu0 %v2655
        %2669 = vmatpush.msra.mxu0 %v2654
        %2670 = vmatpush.msra.mxu0 %v2653
        %2671 = vmatpush.msra.mxu0 %v2652
        %2672 = vmatpush.msra.mxu0 %v2651
        %2673 = vmatpush.msra.mxu0 %v2650
        %2674 = vmatpush.msra.mxu0 %v2649
        %2675 = vmatpush.msra.mxu0 %v2648
        %2676 = vmatpush.msra.mxu0 %v2647
        %2677 = vmatpush.msra.mxu0 %v2646
        %2678 = vmatmul.f32.gmra.mxu0 %v2629
        %v2679 = vpop.f32.mrf.mxu0
        %v2680 = vadd.f32 0.0, %v2679
        %2681 = vdwg.mxu0
        %2682 = vmatpush.msra.mxu0 %v2645
        %2683 = vmatpush.msra.mxu0 %v2644
        %2684 = vmatpush.msra.mxu0 %v2643
        %2685 = vmatpush.msra.mxu0 %v2642
        %2686 = vmatpush.msra.mxu0 %v2641
        %2687 = vmatpush.msra.mxu0 %v2640
        %2688 = vmatpush.msra.mxu0 %v2639
        %2689 = vmatpush.msra.mxu0 %v2638
        %2690 = vmatpush.msra.mxu0 %v2637
        %2691 = vmatpush.msra.mxu0 %v2636
        %2692 = vmatpush.msra.mxu0 %v2635
        %2693 = vmatpush.msra.mxu0 %v2634
        %2694 = vmatpush.msra.mxu0 %v2633
        %2695 = vmatpush.msra.mxu0 %v2632
        %2696 = vmatpush.msra.mxu0 %v2631
        %2697 = vmatpush.msra.mxu0 %v2630
        %2698 = vmatmul.f32.gmra.mxu0 %v2458
        %v2699 = vpop.f32.mrf.mxu0
        %v2700 = vadd.f32 %v2680, %v2699
        %2701 = vdwg.mxu0
        %v2702 = vld [vmem:[#allocation21] sm:$0xff]
        %v2703 = vld [vmem:[#allocation21 + $0x8] sm:$0xff]
        %2704 = vrot.lane.b32.xlu0 %v1805, 112
        %v2705 = vpop.permute.xlu0 %2704
        %v2706 = vsel %vm897, %v2705, 0
        %2708 = vmatpush.msra.mxu0 0.0
        %2709 = vmatpush.msra.mxu0 0.0
        %2710 = vmatpush.msra.mxu0 0.0
        %2711 = vmatpush.msra.mxu0 0.0
        %2712 = vmatpush.msra.mxu0 0.0
        %2713 = vmatpush.msra.mxu0 0.0
        %2714 = vmatpush.msra.mxu0 0.0
        %2715 = vmatpush.msra.mxu0 0.0
        %2716 = vmatpush.msra.mxu0 0.0
        %2717 = vmatpush.msra.mxu0 0.0
        %2718 = vmatpush.msra.mxu0 0.0
        %2719 = vmatpush.msra.mxu0 0.0
        %2720 = vmatpush.msra.mxu0 0.0
        %2721 = vmatpush.msra.mxu0 0.0
        %2722 = vmatpush.msra.mxu0 %v2703
        %2723 = vmatpush.msra.mxu0 %v2702
        %2724 = vmatmul.f32.gmra.mxu0 %v2706
        %v2725 = vpop.f32.mrf.mxu0
        %v2726 = vadd.f32 0.0, %v2725
        %2727 = vdwg.mxu0
        %v2728 = vadd.f32 %v2700, %v2726
        %v2729 = vld [vmem:[%s15] sm:$0x1]
        %v2731 = vperm.slane %v2729, 0
        %v2733 = vadd.f32 %v2728, %v2731
        %v2734 = vtanh.pop %v2733
        %p2735 = scmp.lt.s32.totalorder %s1803, 0
        %s2736 = ssub.s32 0, %s1803
        %s2737 = scalar_select %p2735, %s2736, %s1803
        %s2738 = sand.u32 %s2737, 3
        %s2739 = ssub.s32 0, %s2738
        %s2740 = scalar_select %p2735, %s2739, %s2738
        %p2741 = scmp.ne.s32.totalorder %s2740, 0
        %p2742 = scmp.lt.s32.totalorder %s2740, 0
        %p2743 = pnand %p2742, %p2741
        %p2744 = pneg %p2743
        %s2745 = sadd.s32 %s2740, 4
        %s2746 = scalar_select %p2744, %s2745, %s2740
        %s2747 = smul.u32 %s2746, 8
        %s2748 = scalar_lea.vmem [#allocation4], %s2747
        %2749 = vst [vmem:[%s2748] sm:$0xff] %v2734
        %v2750 = vld [vmem:[#allocation17] sm:$0xff]
        %v2751 = vld [vmem:[#allocation17 + $0x8] sm:$0xff]
        %v2752 = vld [vmem:[#allocation17 + $0x10] sm:$0xff]
        %v2753 = vld [vmem:[#allocation17 + $0x18] sm:$0xff]
        %v2754 = vld [vmem:[#allocation17 + $0x20] sm:$0xff]
        %v2755 = vld [vmem:[#allocation17 + $0x28] sm:$0xff]
        %v2756 = vld [vmem:[#allocation17 + $0x30] sm:$0xff]
        %v2757 = vld [vmem:[#allocation17 + $0x38] sm:$0xff]
        %v2758 = vld [vmem:[#allocation17 + $0x40] sm:$0xff]
        %v2759 = vld [vmem:[#allocation17 + $0x48] sm:$0xff]
        %v2760 = vld [vmem:[#allocation17 + $0x50] sm:$0xff]
        %v2761 = vld [vmem:[#allocation17 + $0x58] sm:$0xff]
        %v2762 = vld [vmem:[#allocation17 + $0x60] sm:$0xff]
        %v2763 = vld [vmem:[#allocation17 + $0x68] sm:$0xff]
        %v2764 = vld [vmem:[#allocation17 + $0x70] sm:$0xff]
        %v2765 = vld [vmem:[#allocation17 + $0x78] sm:$0xff]
        %2766 = vmatpush.msra.mxu0 %v2765
        %2767 = vmatpush.msra.mxu0 %v2764
        %2768 = vmatpush.msra.mxu0 %v2763
        %2769 = vmatpush.msra.mxu0 %v2762
        %2770 = vmatpush.msra.mxu0 %v2761
        %2771 = vmatpush.msra.mxu0 %v2760
        %2772 = vmatpush.msra.mxu0 %v2759
        %2773 = vmatpush.msra.mxu0 %v2758
        %2774 = vmatpush.msra.mxu0 %v2757
        %2775 = vmatpush.msra.mxu0 %v2756
        %2776 = vmatpush.msra.mxu0 %v2755
        %2777 = vmatpush.msra.mxu0 %v2754
        %2778 = vmatpush.msra.mxu0 %v2753
        %2779 = vmatpush.msra.mxu0 %v2752
        %2780 = vmatpush.msra.mxu0 %v2751
        %2781 = vmatpush.msra.mxu0 %v2750
        %2782 = vmatmul.f32.gmra.mxu0 %v2734
        %v2783 = vpop.f32.mrf.mxu0
        %v2784 = vadd.f32 0.0, %v2783
        %2785 = vdwg.mxu0
        %s2786 = scalar_lea.vmem [#allocation5], %s2747
        %2787 = vst [vmem:[%s2786] sm:$0xff] %v2784
        %v2788 = vld [vmem:[%s16] sm:$0x1]
        %v2790 = vperm.slane %v2788, 0
        %v2792 = vmul.f32 %v2734, %v2790
        %2793 = vadd.xlane.f32.xlu0 %v2792
        %v2794 = vpop.xlane.xlu0 %2793
        %v2795 = vld [vmem:[#allocation6] sm:$0x1]
        %v2797 = vperm.slane %v2795, 0
        %v2799 = vadd.f32 %v2794, %v2797
        %v2800 = vsub.f32 0.0, %v2799
        %v2801 = vmul.f32 %v2800, 1.442695
        %v2802 = vpow.pop %v2801
        %v2803 = vadd.f32 %v2802, 1.0
        %v2804 = vrcp.pop %v2803
        %v2805 = vmul.f32 %v2803, %v2804
        %v2806 = vsub.f32 1.0, %v2805
        %v2807 = vmul.f32 %v2804, %v2806
        %v2808 = vadd.f32 %v2804, %v2807
        %vm2809 = vweird.f32 %v2803
        %vm2810 = vweird.f32 %v2804
        %vm2811 = vmor %vm2809, %vm2810
        %v2812 = vsel %vm2811, %v2804, %v2808
        %v2813 = vand.u32 2147483647, %v2803
        %vm2814 = vcmp.eq.f32.partialorder %v2813, 8.507059e+37
        %v2815 = vand.u32 %v2803, 2147483648
        %v2816 = vor.u32 1.1754944e-38, %v2815
        %v2817 = vsel %vm2814, %v2816, %v2812
        %v2818 = vmul.f32 1.0, %v2817
        %s2819 = sadd.s32 %s787, 2
        %s2820 = scalar_lea.vmem %s662, 16 [#allocation7]
        %v2821 = vld [vmem:[%s2820] sm:$0xff]
        %v2822 = vld [vmem:[#allocation9] sm:$0xff]
        %v2823 = vld [vmem:[#allocation9 + $0x8] sm:$0xff]
        %v2824 = vld [vmem:[#allocation9 + $0x10] sm:$0xff]
        %v2825 = vld [vmem:[#allocation9 + $0x18] sm:$0xff]
        %v2826 = vld [vmem:[#allocation9 + $0x20] sm:$0xff]
        %v2827 = vld [vmem:[#allocation9 + $0x28] sm:$0xff]
        %v2828 = vld [vmem:[#allocation9 + $0x30] sm:$0xff]
        %v2829 = vld [vmem:[#allocation9 + $0x38] sm:$0xff]
        %v2830 = vld [vmem:[#allocation9 + $0x40] sm:$0xff]
        %v2831 = vld [vmem:[#allocation9 + $0x48] sm:$0xff]
        %v2832 = vld [vmem:[#allocation9 + $0x50] sm:$0xff]
        %v2833 = vld [vmem:[#allocation9 + $0x58] sm:$0xff]
        %v2834 = vld [vmem:[#allocation9 + $0x60] sm:$0xff]
        %v2835 = vld [vmem:[#allocation9 + $0x68] sm:$0xff]
        %v2836 = vld [vmem:[#allocation9 + $0x70] sm:$0xff]
        %v2837 = vld [vmem:[#allocation9 + $0x78] sm:$0xff]
        %v2838 = vld [vmem:[#allocation9 + $0x80] sm:$0xff]
        %v2839 = vld [vmem:[#allocation9 + $0x88] sm:$0xff]
        %v2840 = vld [vmem:[#allocation9 + $0x90] sm:$0xff]
        %v2841 = vld [vmem:[#allocation9 + $0x98] sm:$0xff]
        %v2842 = vld [vmem:[#allocation9 + $0xa0] sm:$0xff]
        %v2843 = vld [vmem:[#allocation9 + $0xa8] sm:$0xff]
        %v2844 = vld [vmem:[#allocation9 + $0xb0] sm:$0xff]
        %v2845 = vld [vmem:[#allocation9 + $0xb8] sm:$0xff]
        %v2846 = vld [vmem:[#allocation9 + $0xc0] sm:$0xff]
        %v2847 = vld [vmem:[#allocation9 + $0xc8] sm:$0xff]
        %v2848 = vld [vmem:[#allocation9 + $0xd0] sm:$0xff]
        %v2849 = vld [vmem:[#allocation9 + $0xd8] sm:$0xff]
        %v2850 = vld [vmem:[#allocation9 + $0xe0] sm:$0xff]
        %v2851 = vld [vmem:[#allocation9 + $0xe8] sm:$0xff]
        %v2852 = vld [vmem:[#allocation9 + $0xf0] sm:$0xff]
        %v2853 = vld [vmem:[#allocation9 + $0xf8] sm:$0xff]
        %v2854 = vld [vmem:[#allocation9 + $0x100] sm:$0xff]
        %v2855 = vld [vmem:[#allocation9 + $0x108] sm:$0xff]
        %v2856 = vld [vmem:[#allocation9 + $0x110] sm:$0xff]
        %v2857 = vld [vmem:[#allocation9 + $0x118] sm:$0xff]
        %v2858 = vld [vmem:[#allocation9 + $0x120] sm:$0xff]
        %v2859 = vld [vmem:[#allocation9 + $0x128] sm:$0xff]
        %v2860 = vld [vmem:[#allocation9 + $0x130] sm:$0xff]
        %v2861 = vld [vmem:[#allocation9 + $0x138] sm:$0xff]
        %v2862 = vld [vmem:[#allocation9 + $0x140] sm:$0xff]
        %v2863 = vld [vmem:[#allocation9 + $0x148] sm:$0xff]
        %v2864 = vld [vmem:[#allocation9 + $0x150] sm:$0xff]
        %v2865 = vld [vmem:[#allocation9 + $0x158] sm:$0xff]
        %v2866 = vld [vmem:[#allocation9 + $0x160] sm:$0xff]
        %v2867 = vld [vmem:[#allocation9 + $0x168] sm:$0xff]
        %v2868 = vld [vmem:[#allocation9 + $0x170] sm:$0xff]
        %v2869 = vld [vmem:[#allocation9 + $0x178] sm:$0xff]
        %v2870 = vld [vmem:[#allocation9 + $0x180] sm:$0xff]
        %v2871 = vld [vmem:[#allocation9 + $0x188] sm:$0xff]
        %v2872 = vld [vmem:[#allocation9 + $0x190] sm:$0xff]
        %v2873 = vld [vmem:[#allocation9 + $0x198] sm:$0xff]
        %v2874 = vld [vmem:[#allocation9 + $0x1a0] sm:$0xff]
        %v2875 = vld [vmem:[#allocation9 + $0x1a8] sm:$0xff]
        %v2876 = vld [vmem:[#allocation9 + $0x1b0] sm:$0xff]
        %v2877 = vld [vmem:[#allocation9 + $0x1b8] sm:$0xff]
        %v2878 = vld [vmem:[#allocation9 + $0x1c0] sm:$0xff]
        %v2879 = vld [vmem:[#allocation9 + $0x1c8] sm:$0xff]
        %v2880 = vld [vmem:[#allocation9 + $0x1d0] sm:$0xff]
        %v2881 = vld [vmem:[#allocation9 + $0x1d8] sm:$0xff]
        %v2882 = vld [vmem:[#allocation9 + $0x1e0] sm:$0xff]
        %v2883 = vld [vmem:[#allocation9 + $0x1e8] sm:$0xff]
        %v2884 = vld [vmem:[#allocation9 + $0x1f0] sm:$0xff]
        %v2885 = vld [vmem:[#allocation9 + $0x1f8] sm:$0xff]
        %v2886 = vld [vmem:[#allocation9 + $0x200] sm:$0xff]
        %v2887 = vld [vmem:[#allocation9 + $0x208] sm:$0xff]
        %v2888 = vld [vmem:[#allocation9 + $0x210] sm:$0xff]
        %v2889 = vld [vmem:[#allocation9 + $0x218] sm:$0xff]
        %v2890 = vld [vmem:[#allocation9 + $0x220] sm:$0xff]
        %v2891 = vld [vmem:[#allocation9 + $0x228] sm:$0xff]
        %v2892 = vld [vmem:[#allocation9 + $0x230] sm:$0xff]
        %v2893 = vld [vmem:[#allocation9 + $0x238] sm:$0xff]
        %v2894 = vld [vmem:[#allocation9 + $0x240] sm:$0xff]
        %v2895 = vld [vmem:[#allocation9 + $0x248] sm:$0xff]
        %v2896 = vld [vmem:[#allocation9 + $0x250] sm:$0xff]
        %v2897 = vld [vmem:[#allocation9 + $0x258] sm:$0xff]
        %v2898 = vld [vmem:[#allocation9 + $0x260] sm:$0xff]
        %v2899 = vld [vmem:[#allocation9 + $0x268] sm:$0xff]
        %v2900 = vld [vmem:[#allocation9 + $0x270] sm:$0xff]
        %v2901 = vld [vmem:[#allocation9 + $0x278] sm:$0xff]
        %v2902 = vld [vmem:[#allocation9 + $0x280] sm:$0xff]
        %v2903 = vld [vmem:[#allocation9 + $0x288] sm:$0xff]
        %v2904 = vld [vmem:[#allocation9 + $0x290] sm:$0xff]
        %v2905 = vld [vmem:[#allocation9 + $0x298] sm:$0xff]
        %v2906 = vld [vmem:[#allocation9 + $0x2a0] sm:$0xff]
        %v2907 = vld [vmem:[#allocation9 + $0x2a8] sm:$0xff]
        %v2908 = vld [vmem:[#allocation9 + $0x2b0] sm:$0xff]
        %v2909 = vld [vmem:[#allocation9 + $0x2b8] sm:$0xff]
        %v2910 = vld [vmem:[#allocation9 + $0x2c0] sm:$0xff]
        %v2911 = vld [vmem:[#allocation9 + $0x2c8] sm:$0xff]
        %v2912 = vld [vmem:[#allocation9 + $0x2d0] sm:$0xff]
        %v2913 = vld [vmem:[#allocation9 + $0x2d8] sm:$0xff]
        %v2914 = vld [vmem:[#allocation9 + $0x2e0] sm:$0xff]
        %v2915 = vld [vmem:[#allocation9 + $0x2e8] sm:$0xff]
        %v2916 = vld [vmem:[#allocation9 + $0x2f0] sm:$0xff]
        %v2917 = vld [vmem:[#allocation9 + $0x2f8] sm:$0xff]
        %v2918 = vld [vmem:[#allocation11] sm:$0xff]
        %v2919 = vld [vmem:[#allocation11 + $0x8] sm:$0xff]
        %v2920 = vld [vmem:[#allocation11 + $0x10] sm:$0xff]
        %v2921 = vld [vmem:[#allocation11 + $0x18] sm:$0xff]
        %v2922 = vld [vmem:[#allocation11 + $0x20] sm:$0xff]
        %v2923 = vld [vmem:[#allocation11 + $0x28] sm:$0xff]
        %v2924 = vld [vmem:[#allocation11 + $0x30] sm:$0xff]
        %v2925 = vld [vmem:[#allocation11 + $0x38] sm:$0xff]
        %v2926 = vld [vmem:[#allocation11 + $0x40] sm:$0xff]
        %v2927 = vld [vmem:[#allocation11 + $0x48] sm:$0xff]
        %v2928 = vld [vmem:[#allocation11 + $0x50] sm:$0xff]
        %v2929 = vld [vmem:[#allocation11 + $0x58] sm:$0xff]
        %v2931 = vsel %vm897, %v2821, 0
        %2933 = vmatpush.msra.mxu0 0.0
        %2934 = vmatpush.msra.mxu0 0.0
        %2935 = vmatpush.msra.mxu0 0.0
        %2936 = vmatpush.msra.mxu0 0.0
        %2937 = vmatpush.msra.mxu0 0.0
        %2938 = vmatpush.msra.mxu0 0.0
        %2939 = vmatpush.msra.mxu0 0.0
        %2940 = vmatpush.msra.mxu0 0.0
        %2941 = vmatpush.msra.mxu0 0.0
        %2942 = vmatpush.msra.mxu0 0.0
        %2943 = vmatpush.msra.mxu0 0.0
        %2944 = vmatpush.msra.mxu0 0.0
        %2945 = vmatpush.msra.mxu0 0.0
        %2946 = vmatpush.msra.mxu0 0.0
        %2947 = vmatpush.msra.mxu0 %v2924
        %2948 = vmatpush.msra.mxu0 %v2918
        %2949 = vmatmul.f32.gmra.mxu0 %v2931
        %v2950 = vpop.f32.mrf.mxu0
        %v2951 = vadd.f32 0.0, %v2950
        %2952 = vdwg.mxu0
        %2953 = vmatpush.msra.mxu0 0.0
        %2954 = vmatpush.msra.mxu0 0.0
        %2955 = vmatpush.msra.mxu0 0.0
        %2956 = vmatpush.msra.mxu0 0.0
        %2957 = vmatpush.msra.mxu0 0.0
        %2958 = vmatpush.msra.mxu0 0.0
        %2959 = vmatpush.msra.mxu0 0.0
        %2960 = vmatpush.msra.mxu0 0.0
        %2961 = vmatpush.msra.mxu0 0.0
        %2962 = vmatpush.msra.mxu0 0.0
        %2963 = vmatpush.msra.mxu0 0.0
        %2964 = vmatpush.msra.mxu0 0.0
        %2965 = vmatpush.msra.mxu0 0.0
        %2966 = vmatpush.msra.mxu0 0.0
        %2967 = vmatpush.msra.mxu0 %v2925
        %2968 = vmatpush.msra.mxu0 %v2919
        %2969 = vmatmul.f32.gmra.mxu0 %v2931
        %v2970 = vpop.f32.mrf.mxu0
        %v2971 = vadd.f32 0.0, %v2970
        %2972 = vdwg.mxu0
        %2973 = vmatpush.msra.mxu0 0.0
        %2974 = vmatpush.msra.mxu0 0.0
        %2975 = vmatpush.msra.mxu0 0.0
        %2976 = vmatpush.msra.mxu0 0.0
        %2977 = vmatpush.msra.mxu0 0.0
        %2978 = vmatpush.msra.mxu0 0.0
        %2979 = vmatpush.msra.mxu0 0.0
        %2980 = vmatpush.msra.mxu0 0.0
        %2981 = vmatpush.msra.mxu0 0.0
        %2982 = vmatpush.msra.mxu0 0.0
        %2983 = vmatpush.msra.mxu0 0.0
        %2984 = vmatpush.msra.mxu0 0.0
        %2985 = vmatpush.msra.mxu0 0.0
        %2986 = vmatpush.msra.mxu0 0.0
        %2987 = vmatpush.msra.mxu0 %v2926
        %2988 = vmatpush.msra.mxu0 %v2920
        %2989 = vmatmul.f32.gmra.mxu0 %v2931
        %v2990 = vpop.f32.mrf.mxu0
        %v2991 = vadd.f32 0.0, %v2990
        %2992 = vdwg.mxu0
        %2993 = vmatpush.msra.mxu0 0.0
        %2994 = vmatpush.msra.mxu0 0.0
        %2995 = vmatpush.msra.mxu0 0.0
        %2996 = vmatpush.msra.mxu0 0.0
        %2997 = vmatpush.msra.mxu0 0.0
        %2998 = vmatpush.msra.mxu0 0.0
        %2999 = vmatpush.msra.mxu0 0.0
        %3000 = vmatpush.msra.mxu0 0.0
        %3001 = vmatpush.msra.mxu0 0.0
        %3002 = vmatpush.msra.mxu0 0.0
        %3003 = vmatpush.msra.mxu0 0.0
        %3004 = vmatpush.msra.mxu0 0.0
        %3005 = vmatpush.msra.mxu0 0.0
        %3006 = vmatpush.msra.mxu0 0.0
        %3007 = vmatpush.msra.mxu0 %v2927
        %3008 = vmatpush.msra.mxu0 %v2921
        %3009 = vmatmul.f32.gmra.mxu0 %v2931
        %v3010 = vpop.f32.mrf.mxu0
        %v3011 = vadd.f32 0.0, %v3010
        %3012 = vdwg.mxu0
        %3013 = vmatpush.msra.mxu0 0.0
        %3014 = vmatpush.msra.mxu0 0.0
        %3015 = vmatpush.msra.mxu0 0.0
        %3016 = vmatpush.msra.mxu0 0.0
        %3017 = vmatpush.msra.mxu0 0.0
        %3018 = vmatpush.msra.mxu0 0.0
        %3019 = vmatpush.msra.mxu0 0.0
        %3020 = vmatpush.msra.mxu0 0.0
        %3021 = vmatpush.msra.mxu0 0.0
        %3022 = vmatpush.msra.mxu0 0.0
        %3023 = vmatpush.msra.mxu0 0.0
        %3024 = vmatpush.msra.mxu0 0.0
        %3025 = vmatpush.msra.mxu0 0.0
        %3026 = vmatpush.msra.mxu0 0.0
        %3027 = vmatpush.msra.mxu0 %v2928
        %3028 = vmatpush.msra.mxu0 %v2922
        %3029 = vmatmul.f32.gmra.mxu0 %v2931
        %v3030 = vpop.f32.mrf.mxu0
        %v3031 = vadd.f32 0.0, %v3030
        %3032 = vdwg.mxu0
        %3033 = vmatpush.msra.mxu0 0.0
        %3034 = vmatpush.msra.mxu0 0.0
        %3035 = vmatpush.msra.mxu0 0.0
        %3036 = vmatpush.msra.mxu0 0.0
        %3037 = vmatpush.msra.mxu0 0.0
        %3038 = vmatpush.msra.mxu0 0.0
        %3039 = vmatpush.msra.mxu0 0.0
        %3040 = vmatpush.msra.mxu0 0.0
        %3041 = vmatpush.msra.mxu0 0.0
        %3042 = vmatpush.msra.mxu0 0.0
        %3043 = vmatpush.msra.mxu0 0.0
        %3044 = vmatpush.msra.mxu0 0.0
        %3045 = vmatpush.msra.mxu0 0.0
        %3046 = vmatpush.msra.mxu0 0.0
        %3047 = vmatpush.msra.mxu0 %v2929
        %3048 = vmatpush.msra.mxu0 %v2923
        %3049 = vmatmul.f32.gmra.mxu0 %v2931
        %v3050 = vpop.f32.mrf.mxu0
        %v3051 = vadd.f32 0.0, %v3050
        %3052 = vdwg.mxu0
        %3053 = vmatpush.msra.mxu0 %v2912
        %3054 = vmatpush.msra.mxu0 %v2906
        %3055 = vmatpush.msra.mxu0 %v2900
        %3056 = vmatpush.msra.mxu0 %v2894
        %3057 = vmatpush.msra.mxu0 %v2888
        %3058 = vmatpush.msra.mxu0 %v2882
        %3059 = vmatpush.msra.mxu0 %v2876
        %3060 = vmatpush.msra.mxu0 %v2870
        %3061 = vmatpush.msra.mxu0 %v2864
        %3062 = vmatpush.msra.mxu0 %v2858
        %3063 = vmatpush.msra.mxu0 %v2852
        %3064 = vmatpush.msra.mxu0 %v2846
        %3065 = vmatpush.msra.mxu0 %v2840
        %3066 = vmatpush.msra.mxu0 %v2834
        %3067 = vmatpush.msra.mxu0 %v2828
        %3068 = vmatpush.msra.mxu0 %v2822
        %3069 = vmatmul.f32.gmra.mxu0 %v2734
        %v3070 = vpop.f32.mrf.mxu0
        %v3071 = vadd.f32 %v2951, %v3070
        %3072 = vdwg.mxu0
        %3073 = vmatpush.msra.mxu0 %v2913
        %3074 = vmatpush.msra.mxu0 %v2907
        %3075 = vmatpush.msra.mxu0 %v2901
        %3076 = vmatpush.msra.mxu0 %v2895
        %3077 = vmatpush.msra.mxu0 %v2889
        %3078 = vmatpush.msra.mxu0 %v2883
        %3079 = vmatpush.msra.mxu0 %v2877
        %3080 = vmatpush.msra.mxu0 %v2871
        %3081 = vmatpush.msra.mxu0 %v2865
        %3082 = vmatpush.msra.mxu0 %v2859
        %3083 = vmatpush.msra.mxu0 %v2853
        %3084 = vmatpush.msra.mxu0 %v2847
        %3085 = vmatpush.msra.mxu0 %v2841
        %3086 = vmatpush.msra.mxu0 %v2835
        %3087 = vmatpush.msra.mxu0 %v2829
        %3088 = vmatpush.msra.mxu0 %v2823
        %3089 = vmatmul.f32.gmra.mxu0 %v2734
        %v3090 = vpop.f32.mrf.mxu0
        %v3091 = vadd.f32 %v2971, %v3090
        %3092 = vdwg.mxu0
        %3093 = vmatpush.msra.mxu0 %v2914
        %3094 = vmatpush.msra.mxu0 %v2908
        %3095 = vmatpush.msra.mxu0 %v2902
        %3096 = vmatpush.msra.mxu0 %v2896
        %3097 = vmatpush.msra.mxu0 %v2890
        %3098 = vmatpush.msra.mxu0 %v2884
        %3099 = vmatpush.msra.mxu0 %v2878
        %3100 = vmatpush.msra.mxu0 %v2872
        %3101 = vmatpush.msra.mxu0 %v2866
        %3102 = vmatpush.msra.mxu0 %v2860
        %3103 = vmatpush.msra.mxu0 %v2854
        %3104 = vmatpush.msra.mxu0 %v2848
        %3105 = vmatpush.msra.mxu0 %v2842
        %3106 = vmatpush.msra.mxu0 %v2836
        %3107 = vmatpush.msra.mxu0 %v2830
        %3108 = vmatpush.msra.mxu0 %v2824
        %3109 = vmatmul.f32.gmra.mxu0 %v2734
        %v3110 = vpop.f32.mrf.mxu0
        %v3111 = vadd.f32 %v2991, %v3110
        %3112 = vdwg.mxu0
        %3113 = vmatpush.msra.mxu0 %v2915
        %3114 = vmatpush.msra.mxu0 %v2909
        %3115 = vmatpush.msra.mxu0 %v2903
        %3116 = vmatpush.msra.mxu0 %v2897
        %3117 = vmatpush.msra.mxu0 %v2891
        %3118 = vmatpush.msra.mxu0 %v2885
        %3119 = vmatpush.msra.mxu0 %v2879
        %3120 = vmatpush.msra.mxu0 %v2873
        %3121 = vmatpush.msra.mxu0 %v2867
        %3122 = vmatpush.msra.mxu0 %v2861
        %3123 = vmatpush.msra.mxu0 %v2855
        %3124 = vmatpush.msra.mxu0 %v2849
        %3125 = vmatpush.msra.mxu0 %v2843
        %3126 = vmatpush.msra.mxu0 %v2837
        %3127 = vmatpush.msra.mxu0 %v2831
        %3128 = vmatpush.msra.mxu0 %v2825
        %3129 = vmatmul.f32.gmra.mxu0 %v2734
        %v3130 = vpop.f32.mrf.mxu0
        %v3131 = vadd.f32 %v3011, %v3130
        %3132 = vdwg.mxu0
        %3133 = vmatpush.msra.mxu0 %v2916
        %3134 = vmatpush.msra.mxu0 %v2910
        %3135 = vmatpush.msra.mxu0 %v2904
        %3136 = vmatpush.msra.mxu0 %v2898
        %3137 = vmatpush.msra.mxu0 %v2892
        %3138 = vmatpush.msra.mxu0 %v2886
        %3139 = vmatpush.msra.mxu0 %v2880
        %3140 = vmatpush.msra.mxu0 %v2874
        %3141 = vmatpush.msra.mxu0 %v2868
        %3142 = vmatpush.msra.mxu0 %v2862
        %3143 = vmatpush.msra.mxu0 %v2856
        %3144 = vmatpush.msra.mxu0 %v2850
        %3145 = vmatpush.msra.mxu0 %v2844
        %3146 = vmatpush.msra.mxu0 %v2838
        %3147 = vmatpush.msra.mxu0 %v2832
        %3148 = vmatpush.msra.mxu0 %v2826
        %3149 = vmatmul.f32.gmra.mxu0 %v2734
        %v3150 = vpop.f32.mrf.mxu0
        %v3151 = vadd.f32 %v3031, %v3150
        %3152 = vdwg.mxu0
        %3153 = vmatpush.msra.mxu0 %v2917
        %3154 = vmatpush.msra.mxu0 %v2911
        %3155 = vmatpush.msra.mxu0 %v2905
        %3156 = vmatpush.msra.mxu0 %v2899
        %3157 = vmatpush.msra.mxu0 %v2893
        %3158 = vmatpush.msra.mxu0 %v2887
        %3159 = vmatpush.msra.mxu0 %v2881
        %3160 = vmatpush.msra.mxu0 %v2875
        %3161 = vmatpush.msra.mxu0 %v2869
        %3162 = vmatpush.msra.mxu0 %v2863
        %3163 = vmatpush.msra.mxu0 %v2857
        %3164 = vmatpush.msra.mxu0 %v2851
        %3165 = vmatpush.msra.mxu0 %v2845
        %3166 = vmatpush.msra.mxu0 %v2839
        %3167 = vmatpush.msra.mxu0 %v2833
        %3168 = vmatpush.msra.mxu0 %v2827
        %3169 = vmatmul.f32.gmra.mxu0 %v2734
        %v3170 = vpop.f32.mrf.mxu0
        %v3171 = vadd.f32 %v3051, %v3170
        %3172 = vdwg.mxu0
        %v3173 = vld [vmem:[%s3] sm:$0x1]
        %3174 = vset.pattern.permute.xlu0 32
        %3175 = vperm.xlu0 %3174, %v2821
        %v3176 = vpop.permute.xlu0 %3175
        %v3179 = vperm.slane %v3173, 0
        %v3181 = vmul.f32 %v3176, %v3179
        %v3182 = vadd.f32 %v3071, %v3181
        %v3183 = vld [vmem:[%s4] sm:$0x1]
        %v3185 = vperm.slane %v3183, 0
        %v3187 = vadd.f32 %v3182, %v3185
        %v3188 = vtanh.pop %v3187
        %v3189 = vld [vmem:[#allocation12] sm:$0xff]
        %v3190 = vld [vmem:[#allocation12 + $0x8] sm:$0xff]
        %v3191 = vld [vmem:[#allocation12 + $0x10] sm:$0xff]
        %v3192 = vld [vmem:[#allocation12 + $0x18] sm:$0xff]
        %v3193 = vld [vmem:[#allocation12 + $0x20] sm:$0xff]
        %v3194 = vld [vmem:[#allocation12 + $0x28] sm:$0xff]
        %v3195 = vld [vmem:[#allocation12 + $0x30] sm:$0xff]
        %v3196 = vld [vmem:[#allocation12 + $0x38] sm:$0xff]
        %v3197 = vld [vmem:[#allocation12 + $0x40] sm:$0xff]
        %v3198 = vld [vmem:[#allocation12 + $0x48] sm:$0xff]
        %v3199 = vld [vmem:[#allocation12 + $0x50] sm:$0xff]
        %v3200 = vld [vmem:[#allocation12 + $0x58] sm:$0xff]
        %v3201 = vld [vmem:[#allocation12 + $0x60] sm:$0xff]
        %v3202 = vld [vmem:[#allocation12 + $0x68] sm:$0xff]
        %v3203 = vld [vmem:[#allocation12 + $0x70] sm:$0xff]
        %v3204 = vld [vmem:[#allocation12 + $0x78] sm:$0xff]
        %v3205 = vld [vmem:[#allocation12 + $0x80] sm:$0xff]
        %v3206 = vld [vmem:[#allocation12 + $0x88] sm:$0xff]
        %v3207 = vld [vmem:[#allocation12 + $0x90] sm:$0xff]
        %v3208 = vld [vmem:[#allocation12 + $0x98] sm:$0xff]
        %v3209 = vld [vmem:[#allocation12 + $0xa0] sm:$0xff]
        %v3210 = vld [vmem:[#allocation12 + $0xa8] sm:$0xff]
        %v3211 = vld [vmem:[#allocation12 + $0xb0] sm:$0xff]
        %v3212 = vld [vmem:[#allocation12 + $0xb8] sm:$0xff]
        %v3213 = vld [vmem:[#allocation12 + $0xc0] sm:$0xff]
        %v3214 = vld [vmem:[#allocation12 + $0xc8] sm:$0xff]
        %v3215 = vld [vmem:[#allocation12 + $0xd0] sm:$0xff]
        %v3216 = vld [vmem:[#allocation12 + $0xd8] sm:$0xff]
        %v3217 = vld [vmem:[#allocation12 + $0xe0] sm:$0xff]
        %v3218 = vld [vmem:[#allocation12 + $0xe8] sm:$0xff]
        %v3219 = vld [vmem:[#allocation12 + $0xf0] sm:$0xff]
        %v3220 = vld [vmem:[#allocation12 + $0xf8] sm:$0xff]
        %v3221 = vld [vmem:[#allocation12 + $0x100] sm:$0xff]
        %v3222 = vld [vmem:[#allocation12 + $0x108] sm:$0xff]
        %v3223 = vld [vmem:[#allocation12 + $0x110] sm:$0xff]
        %v3224 = vld [vmem:[#allocation12 + $0x118] sm:$0xff]
        %v3225 = vld [vmem:[#allocation12 + $0x120] sm:$0xff]
        %v3226 = vld [vmem:[#allocation12 + $0x128] sm:$0xff]
        %v3227 = vld [vmem:[#allocation12 + $0x130] sm:$0xff]
        %v3228 = vld [vmem:[#allocation12 + $0x138] sm:$0xff]
        %v3229 = vld [vmem:[#allocation12 + $0x140] sm:$0xff]
        %v3230 = vld [vmem:[#allocation12 + $0x148] sm:$0xff]
        %v3231 = vld [vmem:[#allocation12 + $0x150] sm:$0xff]
        %v3232 = vld [vmem:[#allocation12 + $0x158] sm:$0xff]
        %v3233 = vld [vmem:[#allocation12 + $0x160] sm:$0xff]
        %v3234 = vld [vmem:[#allocation12 + $0x168] sm:$0xff]
        %v3235 = vld [vmem:[#allocation12 + $0x170] sm:$0xff]
        %v3236 = vld [vmem:[#allocation12 + $0x178] sm:$0xff]
        %v3237 = vld [vmem:[#allocation12 + $0x180] sm:$0xff]
        %v3238 = vld [vmem:[#allocation12 + $0x188] sm:$0xff]
        %v3239 = vld [vmem:[#allocation12 + $0x190] sm:$0xff]
        %v3240 = vld [vmem:[#allocation12 + $0x198] sm:$0xff]
        %v3241 = vld [vmem:[#allocation12 + $0x1a0] sm:$0xff]
        %v3242 = vld [vmem:[#allocation12 + $0x1a8] sm:$0xff]
        %v3243 = vld [vmem:[#allocation12 + $0x1b0] sm:$0xff]
        %v3244 = vld [vmem:[#allocation12 + $0x1b8] sm:$0xff]
        %v3245 = vld [vmem:[#allocation12 + $0x1c0] sm:$0xff]
        %v3246 = vld [vmem:[#allocation12 + $0x1c8] sm:$0xff]
        %v3247 = vld [vmem:[#allocation12 + $0x1d0] sm:$0xff]
        %v3248 = vld [vmem:[#allocation12 + $0x1d8] sm:$0xff]
        %v3249 = vld [vmem:[#allocation12 + $0x1e0] sm:$0xff]
        %v3250 = vld [vmem:[#allocation12 + $0x1e8] sm:$0xff]
        %v3251 = vld [vmem:[#allocation12 + $0x1f0] sm:$0xff]
        %v3252 = vld [vmem:[#allocation12 + $0x1f8] sm:$0xff]
        %v3253 = vld [vmem:[#allocation12 + $0x200] sm:$0xff]
        %v3254 = vld [vmem:[#allocation12 + $0x208] sm:$0xff]
        %v3255 = vld [vmem:[#allocation12 + $0x210] sm:$0xff]
        %v3256 = vld [vmem:[#allocation12 + $0x218] sm:$0xff]
        %v3257 = vld [vmem:[#allocation12 + $0x220] sm:$0xff]
        %v3258 = vld [vmem:[#allocation12 + $0x228] sm:$0xff]
        %v3259 = vld [vmem:[#allocation12 + $0x230] sm:$0xff]
        %v3260 = vld [vmem:[#allocation12 + $0x238] sm:$0xff]
        %v3261 = vld [vmem:[#allocation12 + $0x240] sm:$0xff]
        %v3262 = vld [vmem:[#allocation12 + $0x248] sm:$0xff]
        %v3263 = vld [vmem:[#allocation12 + $0x250] sm:$0xff]
        %v3264 = vld [vmem:[#allocation12 + $0x258] sm:$0xff]
        %v3265 = vld [vmem:[#allocation12 + $0x260] sm:$0xff]
        %v3266 = vld [vmem:[#allocation12 + $0x268] sm:$0xff]
        %v3267 = vld [vmem:[#allocation12 + $0x270] sm:$0xff]
        %v3268 = vld [vmem:[#allocation12 + $0x278] sm:$0xff]
        %3269 = vmatpush.msra.mxu0 %v3264
        %3270 = vmatpush.msra.mxu0 %v3259
        %3271 = vmatpush.msra.mxu0 %v3254
        %3272 = vmatpush.msra.mxu0 %v3249
        %3273 = vmatpush.msra.mxu0 %v3244
        %3274 = vmatpush.msra.mxu0 %v3239
        %3275 = vmatpush.msra.mxu0 %v3234
        %3276 = vmatpush.msra.mxu0 %v3229
        %3277 = vmatpush.msra.mxu0 %v3224
        %3278 = vmatpush.msra.mxu0 %v3219
        %3279 = vmatpush.msra.mxu0 %v3214
        %3280 = vmatpush.msra.mxu0 %v3209
        %3281 = vmatpush.msra.mxu0 %v3204
        %3282 = vmatpush.msra.mxu0 %v3199
        %3283 = vmatpush.msra.mxu0 %v3194
        %3284 = vmatpush.msra.mxu0 %v3189
        %3285 = vmatmul.f32.gmra.mxu0 %v3188
        %v3286 = vpop.f32.mrf.mxu0
        %v3287 = vadd.f32 0.0, %v3286
        %3288 = vdwg.mxu0
        %3289 = vmatpush.msra.mxu0 %v3265
        %3290 = vmatpush.msra.mxu0 %v3260
        %3291 = vmatpush.msra.mxu0 %v3255
        %3292 = vmatpush.msra.mxu0 %v3250
        %3293 = vmatpush.msra.mxu0 %v3245
        %3294 = vmatpush.msra.mxu0 %v3240
        %3295 = vmatpush.msra.mxu0 %v3235
        %3296 = vmatpush.msra.mxu0 %v3230
        %3297 = vmatpush.msra.mxu0 %v3225
        %3298 = vmatpush.msra.mxu0 %v3220
        %3299 = vmatpush.msra.mxu0 %v3215
        %3300 = vmatpush.msra.mxu0 %v3210
        %3301 = vmatpush.msra.mxu0 %v3205
        %3302 = vmatpush.msra.mxu0 %v3200
        %3303 = vmatpush.msra.mxu0 %v3195
        %3304 = vmatpush.msra.mxu0 %v3190
        %3305 = vmatmul.f32.gmra.mxu0 %v3188
        %v3306 = vpop.f32.mrf.mxu0
        %v3307 = vadd.f32 0.0, %v3306
        %3308 = vdwg.mxu0
        %3309 = vmatpush.msra.mxu0 %v3266
        %3310 = vmatpush.msra.mxu0 %v3261
        %3311 = vmatpush.msra.mxu0 %v3256
        %3312 = vmatpush.msra.mxu0 %v3251
        %3313 = vmatpush.msra.mxu0 %v3246
        %3314 = vmatpush.msra.mxu0 %v3241
        %3315 = vmatpush.msra.mxu0 %v3236
        %3316 = vmatpush.msra.mxu0 %v3231
        %3317 = vmatpush.msra.mxu0 %v3226
        %3318 = vmatpush.msra.mxu0 %v3221
        %3319 = vmatpush.msra.mxu0 %v3216
        %3320 = vmatpush.msra.mxu0 %v3211
        %3321 = vmatpush.msra.mxu0 %v3206
        %3322 = vmatpush.msra.mxu0 %v3201
        %3323 = vmatpush.msra.mxu0 %v3196
        %3324 = vmatpush.msra.mxu0 %v3191
        %3325 = vmatmul.f32.gmra.mxu0 %v3188
        %v3326 = vpop.f32.mrf.mxu0
        %v3327 = vadd.f32 0.0, %v3326
        %3328 = vdwg.mxu0
        %3329 = vmatpush.msra.mxu0 %v3267
        %3330 = vmatpush.msra.mxu0 %v3262
        %3331 = vmatpush.msra.mxu0 %v3257
        %3332 = vmatpush.msra.mxu0 %v3252
        %3333 = vmatpush.msra.mxu0 %v3247
        %3334 = vmatpush.msra.mxu0 %v3242
        %3335 = vmatpush.msra.mxu0 %v3237
        %3336 = vmatpush.msra.mxu0 %v3232
        %3337 = vmatpush.msra.mxu0 %v3227
        %3338 = vmatpush.msra.mxu0 %v3222
        %3339 = vmatpush.msra.mxu0 %v3217
        %3340 = vmatpush.msra.mxu0 %v3212
        %3341 = vmatpush.msra.mxu0 %v3207
        %3342 = vmatpush.msra.mxu0 %v3202
        %3343 = vmatpush.msra.mxu0 %v3197
        %3344 = vmatpush.msra.mxu0 %v3192
        %3345 = vmatmul.f32.gmra.mxu0 %v3188
        %v3346 = vpop.f32.mrf.mxu0
        %v3347 = vadd.f32 0.0, %v3346
        %3348 = vdwg.mxu0
        %3349 = vmatpush.msra.mxu0 %v3268
        %3350 = vmatpush.msra.mxu0 %v3263
        %3351 = vmatpush.msra.mxu0 %v3258
        %3352 = vmatpush.msra.mxu0 %v3253
        %3353 = vmatpush.msra.mxu0 %v3248
        %3354 = vmatpush.msra.mxu0 %v3243
        %3355 = vmatpush.msra.mxu0 %v3238
        %3356 = vmatpush.msra.mxu0 %v3233
        %3357 = vmatpush.msra.mxu0 %v3228
        %3358 = vmatpush.msra.mxu0 %v3223
        %3359 = vmatpush.msra.mxu0 %v3218
        %3360 = vmatpush.msra.mxu0 %v3213
        %3361 = vmatpush.msra.mxu0 %v3208
        %3362 = vmatpush.msra.mxu0 %v3203
        %3363 = vmatpush.msra.mxu0 %v3198
        %3364 = vmatpush.msra.mxu0 %v3193
        %3365 = vmatmul.f32.gmra.mxu0 %v3188
        %v3366 = vpop.f32.mrf.mxu0
        %v3367 = vadd.f32 0.0, %v3366
        %3368 = vdwg.mxu0
        %v3369 = vadd.f32 %v3091, %v3287
        %v3370 = vadd.f32 %v3111, %v3307
        %v3371 = vadd.f32 %v3131, %v3327
        %v3372 = vadd.f32 %v3151, %v3347
        %v3373 = vadd.f32 %v3171, %v3367
        %v3374 = vld [vmem:[%s6] sm:$0x1f]
        %v3376 = vperm.slane %v3374, 0
        %v3377 = vperm.slane %v3374, 1
        %v3378 = vperm.slane %v3374, 2
        %v3379 = vperm.slane %v3374, 3
        %v3380 = vperm.slane %v3374, 4
        %v3386 = vadd.f32 %v3369, %v3376
        %v3387 = vadd.f32 %v3370, %v3377
        %v3388 = vadd.f32 %v3371, %v3378
        %v3389 = vadd.f32 %v3372, %v3379
        %v3390 = vadd.f32 %v3373, %v3380
        %v3391 = vsub.f32 0.0, %v3386
        %v3392 = vmul.f32 %v3391, 1.442695
        %v3393 = vpow.pop %v3392
        %v3394 = vadd.f32 %v3393, 1.0
        %v3395 = vrcp.pop %v3394
        %v3396 = vmul.f32 %v3394, %v3395
        %v3397 = vsub.f32 1.0, %v3396
        %v3398 = vmul.f32 %v3395, %v3397
        %v3399 = vadd.f32 %v3395, %v3398
        %vm3400 = vweird.f32 %v3394
        %vm3401 = vweird.f32 %v3395
        %vm3402 = vmor %vm3400, %vm3401
        %v3403 = vsel %vm3402, %v3395, %v3399
        %v3404 = vand.u32 2147483647, %v3394
        %vm3405 = vcmp.eq.f32.partialorder %v3404, 8.507059e+37
        %v3406 = vand.u32 %v3394, 2147483648
        %v3407 = vor.u32 1.1754944e-38, %v3406
        %v3408 = vsel %vm3405, %v3407, %v3403
        %v3409 = vmul.f32 1.0, %v3408
        %v3410 = vsub.f32 0.0, %v3387
        %v3411 = vmul.f32 %v3410, 1.442695
        %v3412 = vpow.pop %v3411
        %v3413 = vadd.f32 %v3412, 1.0
        %v3414 = vrcp.pop %v3413
        %v3415 = vmul.f32 %v3413, %v3414
        %v3416 = vsub.f32 1.0, %v3415
        %v3417 = vmul.f32 %v3414, %v3416
        %v3418 = vadd.f32 %v3414, %v3417
        %vm3419 = vweird.f32 %v3413
        %vm3420 = vweird.f32 %v3414
        %vm3421 = vmor %vm3419, %vm3420
        %v3422 = vsel %vm3421, %v3414, %v3418
        %v3423 = vand.u32 2147483647, %v3413
        %vm3424 = vcmp.eq.f32.partialorder %v3423, 8.507059e+37
        %v3425 = vand.u32 %v3413, 2147483648
        %v3426 = vor.u32 1.1754944e-38, %v3425
        %v3427 = vsel %vm3424, %v3426, %v3422
        %v3428 = vmul.f32 1.0, %v3427
        %v3429 = vsub.f32 0.0, %v3388
        %v3430 = vmul.f32 %v3429, 1.442695
        %v3431 = vpow.pop %v3430
        %v3432 = vadd.f32 %v3431, 1.0
        %v3433 = vrcp.pop %v3432
        %v3434 = vmul.f32 %v3432, %v3433
        %v3435 = vsub.f32 1.0, %v3434
        %v3436 = vmul.f32 %v3433, %v3435
        %v3437 = vadd.f32 %v3433, %v3436
        %vm3438 = vweird.f32 %v3432
        %vm3439 = vweird.f32 %v3433
        %vm3440 = vmor %vm3438, %vm3439
        %v3441 = vsel %vm3440, %v3433, %v3437
        %v3442 = vand.u32 2147483647, %v3432
        %vm3443 = vcmp.eq.f32.partialorder %v3442, 8.507059e+37
        %v3444 = vand.u32 %v3432, 2147483648
        %v3445 = vor.u32 1.1754944e-38, %v3444
        %v3446 = vsel %vm3443, %v3445, %v3441
        %v3447 = vmul.f32 1.0, %v3446
        %v3448 = vtanh.pop %v3389
        %v3449 = vsub.f32 0.0, %v3390
        %v3450 = vmul.f32 %v3449, 1.442695
        %v3451 = vpow.pop %v3450
        %v3452 = vadd.f32 %v3451, 1.0
        %v3453 = vrcp.pop %v3452
        %v3454 = vmul.f32 %v3452, %v3453
        %v3455 = vsub.f32 1.0, %v3454
        %v3456 = vmul.f32 %v3453, %v3455
        %v3457 = vadd.f32 %v3453, %v3456
        %vm3458 = vweird.f32 %v3452
        %vm3459 = vweird.f32 %v3453
        %vm3460 = vmor %vm3458, %vm3459
        %v3461 = vsel %vm3460, %v3453, %v3457
        %v3462 = vand.u32 2147483647, %v3452
        %vm3463 = vcmp.eq.f32.partialorder %v3462, 8.507059e+37
        %v3464 = vand.u32 %v3452, 2147483648
        %v3465 = vor.u32 1.1754944e-38, %v3464
        %v3466 = vsel %vm3463, %v3465, %v3461
        %v3467 = vmul.f32 1.0, %v3466
        %v3468 = vmul.f32 %v3409, %v2456
        %v3469 = vmul.f32 %v3428, %v3448
        %v3470 = vadd.f32 %v3468, %v3469
        %v3471 = vmul.f32 %v3447, %v3188
        %v3472 = vadd.f32 %v3470, %v3471
        %v3473 = vtanh.pop %v3472
        %v3474 = vmul.f32 %v3467, %v3473
        %v3475 = vld [vmem:[#allocation14] sm:$0xff]
        %v3476 = vld [vmem:[#allocation14 + $0x8] sm:$0xff]
        %v3477 = vld [vmem:[#allocation14 + $0x10] sm:$0xff]
        %v3478 = vld [vmem:[#allocation14 + $0x18] sm:$0xff]
        %v3479 = vld [vmem:[#allocation14 + $0x20] sm:$0xff]
        %v3480 = vld [vmem:[#allocation14 + $0x28] sm:$0xff]
        %v3481 = vld [vmem:[#allocation14 + $0x30] sm:$0xff]
        %v3482 = vld [vmem:[#allocation14 + $0x38] sm:$0xff]
        %v3483 = vld [vmem:[#allocation14 + $0x40] sm:$0xff]
        %v3484 = vld [vmem:[#allocation14 + $0x48] sm:$0xff]
        %v3485 = vld [vmem:[#allocation14 + $0x50] sm:$0xff]
        %v3486 = vld [vmem:[#allocation14 + $0x58] sm:$0xff]
        %v3487 = vld [vmem:[#allocation14 + $0x60] sm:$0xff]
        %v3488 = vld [vmem:[#allocation14 + $0x68] sm:$0xff]
        %v3489 = vld [vmem:[#allocation14 + $0x70] sm:$0xff]
        %v3490 = vld [vmem:[#allocation14 + $0x78] sm:$0xff]
        %v3491 = vld [vmem:[#allocation15] sm:$0xff]
        %v3492 = vld [vmem:[#allocation15 + $0x8] sm:$0xff]
        %v3493 = vld [vmem:[#allocation15 + $0x10] sm:$0xff]
        %v3494 = vld [vmem:[#allocation15 + $0x18] sm:$0xff]
        %v3495 = vld [vmem:[#allocation15 + $0x20] sm:$0xff]
        %v3496 = vld [vmem:[#allocation15 + $0x28] sm:$0xff]
        %v3497 = vld [vmem:[#allocation15 + $0x30] sm:$0xff]
        %v3498 = vld [vmem:[#allocation15 + $0x38] sm:$0xff]
        %v3499 = vld [vmem:[#allocation15 + $0x40] sm:$0xff]
        %v3500 = vld [vmem:[#allocation15 + $0x48] sm:$0xff]
        %v3501 = vld [vmem:[#allocation15 + $0x50] sm:$0xff]
        %v3502 = vld [vmem:[#allocation15 + $0x58] sm:$0xff]
        %v3503 = vld [vmem:[#allocation15 + $0x60] sm:$0xff]
        %v3504 = vld [vmem:[#allocation15 + $0x68] sm:$0xff]
        %v3505 = vld [vmem:[#allocation15 + $0x70] sm:$0xff]
        %v3506 = vld [vmem:[#allocation15 + $0x78] sm:$0xff]
        %3507 = vmatpush.msra.mxu0 %v3506
        %3508 = vmatpush.msra.mxu0 %v3505
        %3509 = vmatpush.msra.mxu0 %v3504
        %3510 = vmatpush.msra.mxu0 %v3503
        %3511 = vmatpush.msra.mxu0 %v3502
        %3512 = vmatpush.msra.mxu0 %v3501
        %3513 = vmatpush.msra.mxu0 %v3500
        %3514 = vmatpush.msra.mxu0 %v3499
        %3515 = vmatpush.msra.mxu0 %v3498
        %3516 = vmatpush.msra.mxu0 %v3497
        %3517 = vmatpush.msra.mxu0 %v3496
        %3518 = vmatpush.msra.mxu0 %v3495
        %3519 = vmatpush.msra.mxu0 %v3494
        %3520 = vmatpush.msra.mxu0 %v3493
        %3521 = vmatpush.msra.mxu0 %v3492
        %3522 = vmatpush.msra.mxu0 %v3491
        %3523 = vmatmul.f32.gmra.mxu0 %v3472
        %v3524 = vpop.f32.mrf.mxu0
        %v3525 = vadd.f32 0.0, %v3524
        %3526 = vdwg.mxu0
        %3527 = vmatpush.msra.mxu0 %v3490
        %3528 = vmatpush.msra.mxu0 %v3489
        %3529 = vmatpush.msra.mxu0 %v3488
        %3530 = vmatpush.msra.mxu0 %v3487
        %3531 = vmatpush.msra.mxu0 %v3486
        %3532 = vmatpush.msra.mxu0 %v3485
        %3533 = vmatpush.msra.mxu0 %v3484
        %3534 = vmatpush.msra.mxu0 %v3483
        %3535 = vmatpush.msra.mxu0 %v3482
        %3536 = vmatpush.msra.mxu0 %v3481
        %3537 = vmatpush.msra.mxu0 %v3480
        %3538 = vmatpush.msra.mxu0 %v3479
        %3539 = vmatpush.msra.mxu0 %v3478
        %3540 = vmatpush.msra.mxu0 %v3477
        %3541 = vmatpush.msra.mxu0 %v3476
        %3542 = vmatpush.msra.mxu0 %v3475
        %3543 = vmatmul.f32.gmra.mxu0 %v3474
        %v3544 = vpop.f32.mrf.mxu0
        %v3545 = vadd.f32 %v3525, %v3544
        %3546 = vdwg.mxu0
        %v3547 = vld [vmem:[#allocation5] sm:$0xff]
        %v3548 = vld [vmem:[#allocation5 + $0x8] sm:$0xff]
        %v3549 = vld [vmem:[#allocation5 + $0x10] sm:$0xff]
        %v3550 = vld [vmem:[#allocation5 + $0x18] sm:$0xff]
        %v3551 = vadd.f32 %v3545, %v3547
        %v3552 = vadd.f32 %v3545, %v3548
        %v3553 = vadd.f32 %v3545, %v3549
        %v3554 = vadd.f32 %v3545, %v3550
        %v3555 = vld [vmem:[%s10] sm:$0x1]
        %v3557 = vperm.slane %v3555, 0
        %v3559 = vadd.f32 %v3551, %v3557
        %v3560 = vadd.f32 %v3552, %v3557
        %v3561 = vadd.f32 %v3553, %v3557
        %v3562 = vadd.f32 %v3554, %v3557
        %v3563 = vtanh.pop %v3559
        %v3564 = vtanh.pop %v3560
        %v3565 = vtanh.pop %v3561
        %v3566 = vtanh.pop %v3562
        %v3567 = vld [vmem:[%s11] sm:$0x1]
        %v3569 = vperm.slane %v3567, 0
        %v3571 = vmul.f32 %v3563, %v3569
        %v3572 = vmul.f32 %v3564, %v3569
        %v3573 = vmul.f32 %v3565, %v3569
        %v3574 = vmul.f32 %v3566, %v3569
        %3575 = vadd.xlane.f32.xlu0 %v3571
        %v3576 = vpop.xlane.xlu0 %3575
        %3577 = vadd.xlane.f32.xlu0 %v3572
        %v3578 = vpop.xlane.xlu0 %3577
        %3579 = vadd.xlane.f32.xlu0 %v3573
        %v3580 = vpop.xlane.xlu0 %3579
        %3581 = vadd.xlane.f32.xlu0 %v3574
        %v3582 = vpop.xlane.xlu0 %3581
        %p3583 = scmp.lt.s32.totalorder %s2819, 4
        %s3584 = scalar_select %p3583, %s2819, 4
        %v3585 = vstv %s3584
        %vm3586 = vcmp.gt.s32.totalorder %v3585, 0
        %vm3587 = vcmp.gt.s32.totalorder %v3585, 1
        %vm3588 = vcmp.gt.s32.totalorder %v3585, 2
        %vm3589 = vcmp.gt.s32.totalorder %v3585, 3
        %v3590 = vsel %vm3586, %v3576, -1e+30
        %v3591 = vsel %vm3587, %v3578, -1e+30
        %v3592 = vsel %vm3588, %v3580, -1e+30
        %v3593 = vsel %vm3589, %v3582, -1e+30
        %v3594 = vmax.f32 %v3590, %v3591
        %v3595 = vmax.f32 %v3592, %v3593
        %v3596 = vmax.f32 %v3594, %v3595
        %v3597 = vsub.f32 %v3576, %v3596
        %v3598 = vsub.f32 %v3578, %v3596
        %v3599 = vsub.f32 %v3580, %v3596
        %v3600 = vsub.f32 %v3582, %v3596
        %v3601 = vsel %vm3586, %v3597, -1e+30
        %v3602 = vsel %vm3587, %v3598, -1e+30
        %v3603 = vsel %vm3588, %v3599, -1e+30
        %v3604 = vsel %vm3589, %v3600, -1e+30
        %v3605 = vmul.f32 %v3601, 1.442695
        %v3606 = vpow.pop %v3605
        %v3607 = vmul.f32 %v3602, 1.442695
        %v3608 = vpow.pop %v3607
        %v3609 = vmul.f32 %v3603, 1.442695
        %v3610 = vpow.pop %v3609
        %v3611 = vmul.f32 %v3604, 1.442695
        %v3612 = vpow.pop %v3611
        %v3613 = vadd.f32 %v3606, %v3608
        %v3614 = vadd.f32 %v3613, %v3610
        %v3615 = vadd.f32 %v3614, %v3612
        %v3616 = vmax.f32 %v3615, 1e-30
        %v3617 = vrcp.pop %v3616
        %v3618 = vmul.f32 %v3616, %v3617
        %v3619 = vsub.f32 1.0, %v3618
        %v3620 = vmul.f32 %v3617, %v3619
        %v3621 = vadd.f32 %v3617, %v3620
        %vm3622 = vweird.f32 %v3616
        %vm3623 = vweird.f32 %v3617
        %vm3624 = vmor %vm3622, %vm3623
        %v3625 = vsel %vm3624, %v3617, %v3621
        %v3626 = vand.u32 2147483647, %v3616
        %vm3627 = vcmp.eq.f32.partialorder %v3626, 8.507059e+37
        %v3628 = vand.u32 %v3616, 2147483648
        %v3629 = vor.u32 1.1754944e-38, %v3628
        %v3630 = vsel %vm3627, %v3629, %v3625
        %v3631 = vmul.f32 %v3606, %v3630
        %v3632 = vmul.f32 %v3608, %v3630
        %v3633 = vmul.f32 %v3610, %v3630
        %v3634 = vmul.f32 %v3612, %v3630
        %v3635 = vld [vmem:[#allocation4] sm:$0xff]
        %v3636 = vld [vmem:[#allocation4 + $0x8] sm:$0xff]
        %v3637 = vld [vmem:[#allocation4 + $0x10] sm:$0xff]
        %v3638 = vld [vmem:[#allocation4 + $0x18] sm:$0xff]
        %v3639 = vmul.f32 %v3631, %v3635
        %v3640 = vmul.f32 %v3632, %v3636
        %v3641 = vmul.f32 %v3633, %v3637
        %v3642 = vmul.f32 %v3634, %v3638
        %v3643 = vadd.f32 %v3639, %v3640
        %v3644 = vadd.f32 %v3643, %v3641
        %v3645 = vadd.f32 %v3644, %v3642
        %v3646 = vld [vmem:[#allocation18] sm:$0xff]
        %v3647 = vld [vmem:[#allocation18 + $0x8] sm:$0xff]
        %v3648 = vld [vmem:[#allocation18 + $0x10] sm:$0xff]
        %v3649 = vld [vmem:[#allocation18 + $0x18] sm:$0xff]
        %v3650 = vld [vmem:[#allocation18 + $0x20] sm:$0xff]
        %v3651 = vld [vmem:[#allocation18 + $0x28] sm:$0xff]
        %v3652 = vld [vmem:[#allocation18 + $0x30] sm:$0xff]
        %v3653 = vld [vmem:[#allocation18 + $0x38] sm:$0xff]
        %v3654 = vld [vmem:[#allocation18 + $0x40] sm:$0xff]
        %v3655 = vld [vmem:[#allocation18 + $0x48] sm:$0xff]
        %v3656 = vld [vmem:[#allocation18 + $0x50] sm:$0xff]
        %v3657 = vld [vmem:[#allocation18 + $0x58] sm:$0xff]
        %v3658 = vld [vmem:[#allocation18 + $0x60] sm:$0xff]
        %v3659 = vld [vmem:[#allocation18 + $0x68] sm:$0xff]
        %v3660 = vld [vmem:[#allocation18 + $0x70] sm:$0xff]
        %v3661 = vld [vmem:[#allocation18 + $0x78] sm:$0xff]
        %v3662 = vld [vmem:[#allocation20] sm:$0xff]
        %v3663 = vld [vmem:[#allocation20 + $0x8] sm:$0xff]
        %v3664 = vld [vmem:[#allocation20 + $0x10] sm:$0xff]
        %v3665 = vld [vmem:[#allocation20 + $0x18] sm:$0xff]
        %v3666 = vld [vmem:[#allocation20 + $0x20] sm:$0xff]
        %v3667 = vld [vmem:[#allocation20 + $0x28] sm:$0xff]
        %v3668 = vld [vmem:[#allocation20 + $0x30] sm:$0xff]
        %v3669 = vld [vmem:[#allocation20 + $0x38] sm:$0xff]
        %v3670 = vld [vmem:[#allocation20 + $0x40] sm:$0xff]
        %v3671 = vld [vmem:[#allocation20 + $0x48] sm:$0xff]
        %v3672 = vld [vmem:[#allocation20 + $0x50] sm:$0xff]
        %v3673 = vld [vmem:[#allocation20 + $0x58] sm:$0xff]
        %v3674 = vld [vmem:[#allocation20 + $0x60] sm:$0xff]
        %v3675 = vld [vmem:[#allocation20 + $0x68] sm:$0xff]
        %v3676 = vld [vmem:[#allocation20 + $0x70] sm:$0xff]
        %v3677 = vld [vmem:[#allocation20 + $0x78] sm:$0xff]
        %3678 = vmatpush.msra.mxu0 %v3677
        %3679 = vmatpush.msra.mxu0 %v3676
        %3680 = vmatpush.msra.mxu0 %v3675
        %3681 = vmatpush.msra.mxu0 %v3674
        %3682 = vmatpush.msra.mxu0 %v3673
        %3683 = vmatpush.msra.mxu0 %v3672
        %3684 = vmatpush.msra.mxu0 %v3671
        %3685 = vmatpush.msra.mxu0 %v3670
        %3686 = vmatpush.msra.mxu0 %v3669
        %3687 = vmatpush.msra.mxu0 %v3668
        %3688 = vmatpush.msra.mxu0 %v3667
        %3689 = vmatpush.msra.mxu0 %v3666
        %3690 = vmatpush.msra.mxu0 %v3665
        %3691 = vmatpush.msra.mxu0 %v3664
        %3692 = vmatpush.msra.mxu0 %v3663
        %3693 = vmatpush.msra.mxu0 %v3662
        %3694 = vmatmul.f32.gmra.mxu0 %v3645
        %v3695 = vpop.f32.mrf.mxu0
        %v3696 = vadd.f32 0.0, %v3695
        %3697 = vdwg.mxu0
        %3698 = vmatpush.msra.mxu0 %v3661
        %3699 = vmatpush.msra.mxu0 %v3660
        %3700 = vmatpush.msra.mxu0 %v3659
        %3701 = vmatpush.msra.mxu0 %v3658
        %3702 = vmatpush.msra.mxu0 %v3657
        %3703 = vmatpush.msra.mxu0 %v3656
        %3704 = vmatpush.msra.mxu0 %v3655
        %3705 = vmatpush.msra.mxu0 %v3654
        %3706 = vmatpush.msra.mxu0 %v3653
        %3707 = vmatpush.msra.mxu0 %v3652
        %3708 = vmatpush.msra.mxu0 %v3651
        %3709 = vmatpush.msra.mxu0 %v3650
        %3710 = vmatpush.msra.mxu0 %v3649
        %3711 = vmatpush.msra.mxu0 %v3648
        %3712 = vmatpush.msra.mxu0 %v3647
        %3713 = vmatpush.msra.mxu0 %v3646
        %3714 = vmatmul.f32.gmra.mxu0 %v3474
        %v3715 = vpop.f32.mrf.mxu0
        %v3716 = vadd.f32 %v3696, %v3715
        %3717 = vdwg.mxu0
        %v3718 = vld [vmem:[#allocation21] sm:$0xff]
        %v3719 = vld [vmem:[#allocation21 + $0x8] sm:$0xff]
        %3720 = vrot.lane.b32.xlu0 %v2821, 112
        %v3721 = vpop.permute.xlu0 %3720
        %v3722 = vsel %vm897, %v3721, 0
        %3724 = vmatpush.msra.mxu0 0.0
        %3725 = vmatpush.msra.mxu0 0.0
        %3726 = vmatpush.msra.mxu0 0.0
        %3727 = vmatpush.msra.mxu0 0.0
        %3728 = vmatpush.msra.mxu0 0.0
        %3729 = vmatpush.msra.mxu0 0.0
        %3730 = vmatpush.msra.mxu0 0.0
        %3731 = vmatpush.msra.mxu0 0.0
        %3732 = vmatpush.msra.mxu0 0.0
        %3733 = vmatpush.msra.mxu0 0.0
        %3734 = vmatpush.msra.mxu0 0.0
        %3735 = vmatpush.msra.mxu0 0.0
        %3736 = vmatpush.msra.mxu0 0.0
        %3737 = vmatpush.msra.mxu0 0.0
        %3738 = vmatpush.msra.mxu0 %v3719
        %3739 = vmatpush.msra.mxu0 %v3718
        %3740 = vmatmul.f32.gmra.mxu0 %v3722
        %v3741 = vpop.f32.mrf.mxu0
        %v3742 = vadd.f32 0.0, %v3741
        %3743 = vdwg.mxu0
        %v3744 = vadd.f32 %v3716, %v3742
        %v3745 = vld [vmem:[%s15] sm:$0x1]
        %v3747 = vperm.slane %v3745, 0
        %v3749 = vadd.f32 %v3744, %v3747
        %v3750 = vtanh.pop %v3749
        %p3751 = scmp.lt.s32.totalorder %s2819, 0
        %s3752 = ssub.s32 0, %s2819
        %s3753 = scalar_select %p3751, %s3752, %s2819
        %s3754 = sand.u32 %s3753, 3
        %s3755 = ssub.s32 0, %s3754
        %s3756 = scalar_select %p3751, %s3755, %s3754
        %p3757 = scmp.ne.s32.totalorder %s3756, 0
        %p3758 = scmp.lt.s32.totalorder %s3756, 0
        %p3759 = pnand %p3758, %p3757
        %p3760 = pneg %p3759
        %s3761 = sadd.s32 %s3756, 4
        %s3762 = scalar_select %p3760, %s3761, %s3756
        %s3763 = smul.u32 %s3762, 8
        %s3764 = scalar_lea.vmem [#allocation4], %s3763
        %3765 = vst [vmem:[%s3764] sm:$0xff] %v3750
        %v3766 = vld [vmem:[#allocation17] sm:$0xff]
        %v3767 = vld [vmem:[#allocation17 + $0x8] sm:$0xff]
        %v3768 = vld [vmem:[#allocation17 + $0x10] sm:$0xff]
        %v3769 = vld [vmem:[#allocation17 + $0x18] sm:$0xff]
        %v3770 = vld [vmem:[#allocation17 + $0x20] sm:$0xff]
        %v3771 = vld [vmem:[#allocation17 + $0x28] sm:$0xff]
        %v3772 = vld [vmem:[#allocation17 + $0x30] sm:$0xff]
        %v3773 = vld [vmem:[#allocation17 + $0x38] sm:$0xff]
        %v3774 = vld [vmem:[#allocation17 + $0x40] sm:$0xff]
        %v3775 = vld [vmem:[#allocation17 + $0x48] sm:$0xff]
        %v3776 = vld [vmem:[#allocation17 + $0x50] sm:$0xff]
        %v3777 = vld [vmem:[#allocation17 + $0x58] sm:$0xff]
        %v3778 = vld [vmem:[#allocation17 + $0x60] sm:$0xff]
        %v3779 = vld [vmem:[#allocation17 + $0x68] sm:$0xff]
        %v3780 = vld [vmem:[#allocation17 + $0x70] sm:$0xff]
        %v3781 = vld [vmem:[#allocation17 + $0x78] sm:$0xff]
        %3782 = vmatpush.msra.mxu0 %v3781
        %3783 = vmatpush.msra.mxu0 %v3780
        %3784 = vmatpush.msra.mxu0 %v3779
        %3785 = vmatpush.msra.mxu0 %v3778
        %3786 = vmatpush.msra.mxu0 %v3777
        %3787 = vmatpush.msra.mxu0 %v3776
        %3788 = vmatpush.msra.mxu0 %v3775
        %3789 = vmatpush.msra.mxu0 %v3774
        %3790 = vmatpush.msra.mxu0 %v3773
        %3791 = vmatpush.msra.mxu0 %v3772
        %3792 = vmatpush.msra.mxu0 %v3771
        %3793 = vmatpush.msra.mxu0 %v3770
        %3794 = vmatpush.msra.mxu0 %v3769
        %3795 = vmatpush.msra.mxu0 %v3768
        %3796 = vmatpush.msra.mxu0 %v3767
        %3797 = vmatpush.msra.mxu0 %v3766
        %3798 = vmatmul.f32.gmra.mxu0 %v3750
        %v3799 = vpop.f32.mrf.mxu0
        %v3800 = vadd.f32 0.0, %v3799
        %3801 = vdwg.mxu0
        %s3802 = scalar_lea.vmem [#allocation5], %s3763
        %3803 = vst [vmem:[%s3802] sm:$0xff] %v3800
        %v3804 = vld [vmem:[%s16] sm:$0x1]
        %v3806 = vperm.slane %v3804, 0
        %v3808 = vmul.f32 %v3750, %v3806
        %3809 = vadd.xlane.f32.xlu0 %v3808
        %v3810 = vpop.xlane.xlu0 %3809
        %v3811 = vld [vmem:[#allocation6] sm:$0x1]
        %v3813 = vperm.slane %v3811, 0
        %v3815 = vadd.f32 %v3810, %v3813
        %v3816 = vsub.f32 0.0, %v3815
        %v3817 = vmul.f32 %v3816, 1.442695
        %v3818 = vpow.pop %v3817
        %v3819 = vadd.f32 %v3818, 1.0
        %v3820 = vrcp.pop %v3819
        %v3821 = vmul.f32 %v3819, %v3820
        %v3822 = vsub.f32 1.0, %v3821
        %v3823 = vmul.f32 %v3820, %v3822
        %v3824 = vadd.f32 %v3820, %v3823
        %vm3825 = vweird.f32 %v3819
        %vm3826 = vweird.f32 %v3820
        %vm3827 = vmor %vm3825, %vm3826
        %v3828 = vsel %vm3827, %v3820, %v3824
        %v3829 = vand.u32 2147483647, %v3819
        %vm3830 = vcmp.eq.f32.partialorder %v3829, 8.507059e+37
        %v3831 = vand.u32 %v3819, 2147483648
        %v3832 = vor.u32 1.1754944e-38, %v3831
        %v3833 = vsel %vm3830, %v3832, %v3828
        %v3834 = vmul.f32 1.0, %v3833
        %s3835 = sadd.s32 %s787, 3
        %s3836 = scalar_lea.vmem %s662, 24 [#allocation7]
        %v3837 = vld [vmem:[%s3836] sm:$0xff]
        %v3838 = vld [vmem:[#allocation9] sm:$0xff]
        %v3839 = vld [vmem:[#allocation9 + $0x8] sm:$0xff]
        %v3840 = vld [vmem:[#allocation9 + $0x10] sm:$0xff]
        %v3841 = vld [vmem:[#allocation9 + $0x18] sm:$0xff]
        %v3842 = vld [vmem:[#allocation9 + $0x20] sm:$0xff]
        %v3843 = vld [vmem:[#allocation9 + $0x28] sm:$0xff]
        %v3844 = vld [vmem:[#allocation9 + $0x30] sm:$0xff]
        %v3845 = vld [vmem:[#allocation9 + $0x38] sm:$0xff]
        %v3846 = vld [vmem:[#allocation9 + $0x40] sm:$0xff]
        %v3847 = vld [vmem:[#allocation9 + $0x48] sm:$0xff]
        %v3848 = vld [vmem:[#allocation9 + $0x50] sm:$0xff]
        %v3849 = vld [vmem:[#allocation9 + $0x58] sm:$0xff]
        %v3850 = vld [vmem:[#allocation9 + $0x60] sm:$0xff]
        %v3851 = vld [vmem:[#allocation9 + $0x68] sm:$0xff]
        %v3852 = vld [vmem:[#allocation9 + $0x70] sm:$0xff]
        %v3853 = vld [vmem:[#allocation9 + $0x78] sm:$0xff]
        %v3854 = vld [vmem:[#allocation9 + $0x80] sm:$0xff]
        %v3855 = vld [vmem:[#allocation9 + $0x88] sm:$0xff]
        %v3856 = vld [vmem:[#allocation9 + $0x90] sm:$0xff]
        %v3857 = vld [vmem:[#allocation9 + $0x98] sm:$0xff]
        %v3858 = vld [vmem:[#allocation9 + $0xa0] sm:$0xff]
        %v3859 = vld [vmem:[#allocation9 + $0xa8] sm:$0xff]
        %v3860 = vld [vmem:[#allocation9 + $0xb0] sm:$0xff]
        %v3861 = vld [vmem:[#allocation9 + $0xb8] sm:$0xff]
        %v3862 = vld [vmem:[#allocation9 + $0xc0] sm:$0xff]
        %v3863 = vld [vmem:[#allocation9 + $0xc8] sm:$0xff]
        %v3864 = vld [vmem:[#allocation9 + $0xd0] sm:$0xff]
        %v3865 = vld [vmem:[#allocation9 + $0xd8] sm:$0xff]
        %v3866 = vld [vmem:[#allocation9 + $0xe0] sm:$0xff]
        %v3867 = vld [vmem:[#allocation9 + $0xe8] sm:$0xff]
        %v3868 = vld [vmem:[#allocation9 + $0xf0] sm:$0xff]
        %v3869 = vld [vmem:[#allocation9 + $0xf8] sm:$0xff]
        %v3870 = vld [vmem:[#allocation9 + $0x100] sm:$0xff]
        %v3871 = vld [vmem:[#allocation9 + $0x108] sm:$0xff]
        %v3872 = vld [vmem:[#allocation9 + $0x110] sm:$0xff]
        %v3873 = vld [vmem:[#allocation9 + $0x118] sm:$0xff]
        %v3874 = vld [vmem:[#allocation9 + $0x120] sm:$0xff]
        %v3875 = vld [vmem:[#allocation9 + $0x128] sm:$0xff]
        %v3876 = vld [vmem:[#allocation9 + $0x130] sm:$0xff]
        %v3877 = vld [vmem:[#allocation9 + $0x138] sm:$0xff]
        %v3878 = vld [vmem:[#allocation9 + $0x140] sm:$0xff]
        %v3879 = vld [vmem:[#allocation9 + $0x148] sm:$0xff]
        %v3880 = vld [vmem:[#allocation9 + $0x150] sm:$0xff]
        %v3881 = vld [vmem:[#allocation9 + $0x158] sm:$0xff]
        %v3882 = vld [vmem:[#allocation9 + $0x160] sm:$0xff]
        %v3883 = vld [vmem:[#allocation9 + $0x168] sm:$0xff]
        %v3884 = vld [vmem:[#allocation9 + $0x170] sm:$0xff]
        %v3885 = vld [vmem:[#allocation9 + $0x178] sm:$0xff]
        %v3886 = vld [vmem:[#allocation9 + $0x180] sm:$0xff]
        %v3887 = vld [vmem:[#allocation9 + $0x188] sm:$0xff]
        %v3888 = vld [vmem:[#allocation9 + $0x190] sm:$0xff]
        %v3889 = vld [vmem:[#allocation9 + $0x198] sm:$0xff]
        %v3890 = vld [vmem:[#allocation9 + $0x1a0] sm:$0xff]
        %v3891 = vld [vmem:[#allocation9 + $0x1a8] sm:$0xff]
        %v3892 = vld [vmem:[#allocation9 + $0x1b0] sm:$0xff]
        %v3893 = vld [vmem:[#allocation9 + $0x1b8] sm:$0xff]
        %v3894 = vld [vmem:[#allocation9 + $0x1c0] sm:$0xff]
        %v3895 = vld [vmem:[#allocation9 + $0x1c8] sm:$0xff]
        %v3896 = vld [vmem:[#allocation9 + $0x1d0] sm:$0xff]
        %v3897 = vld [vmem:[#allocation9 + $0x1d8] sm:$0xff]
        %v3898 = vld [vmem:[#allocation9 + $0x1e0] sm:$0xff]
        %v3899 = vld [vmem:[#allocation9 + $0x1e8] sm:$0xff]
        %v3900 = vld [vmem:[#allocation9 + $0x1f0] sm:$0xff]
        %v3901 = vld [vmem:[#allocation9 + $0x1f8] sm:$0xff]
        %v3902 = vld [vmem:[#allocation9 + $0x200] sm:$0xff]
        %v3903 = vld [vmem:[#allocation9 + $0x208] sm:$0xff]
        %v3904 = vld [vmem:[#allocation9 + $0x210] sm:$0xff]
        %v3905 = vld [vmem:[#allocation9 + $0x218] sm:$0xff]
        %v3906 = vld [vmem:[#allocation9 + $0x220] sm:$0xff]
        %v3907 = vld [vmem:[#allocation9 + $0x228] sm:$0xff]
        %v3908 = vld [vmem:[#allocation9 + $0x230] sm:$0xff]
        %v3909 = vld [vmem:[#allocation9 + $0x238] sm:$0xff]
        %v3910 = vld [vmem:[#allocation9 + $0x240] sm:$0xff]
        %v3911 = vld [vmem:[#allocation9 + $0x248] sm:$0xff]
        %v3912 = vld [vmem:[#allocation9 + $0x250] sm:$0xff]
        %v3913 = vld [vmem:[#allocation9 + $0x258] sm:$0xff]
        %v3914 = vld [vmem:[#allocation9 + $0x260] sm:$0xff]
        %v3915 = vld [vmem:[#allocation9 + $0x268] sm:$0xff]
        %v3916 = vld [vmem:[#allocation9 + $0x270] sm:$0xff]
        %v3917 = vld [vmem:[#allocation9 + $0x278] sm:$0xff]
        %v3918 = vld [vmem:[#allocation9 + $0x280] sm:$0xff]
        %v3919 = vld [vmem:[#allocation9 + $0x288] sm:$0xff]
        %v3920 = vld [vmem:[#allocation9 + $0x290] sm:$0xff]
        %v3921 = vld [vmem:[#allocation9 + $0x298] sm:$0xff]
        %v3922 = vld [vmem:[#allocation9 + $0x2a0] sm:$0xff]
        %v3923 = vld [vmem:[#allocation9 + $0x2a8] sm:$0xff]
        %v3924 = vld [vmem:[#allocation9 + $0x2b0] sm:$0xff]
        %v3925 = vld [vmem:[#allocation9 + $0x2b8] sm:$0xff]
        %v3926 = vld [vmem:[#allocation9 + $0x2c0] sm:$0xff]
        %v3927 = vld [vmem:[#allocation9 + $0x2c8] sm:$0xff]
        %v3928 = vld [vmem:[#allocation9 + $0x2d0] sm:$0xff]
        %v3929 = vld [vmem:[#allocation9 + $0x2d8] sm:$0xff]
        %v3930 = vld [vmem:[#allocation9 + $0x2e0] sm:$0xff]
        %v3931 = vld [vmem:[#allocation9 + $0x2e8] sm:$0xff]
        %v3932 = vld [vmem:[#allocation9 + $0x2f0] sm:$0xff]
        %v3933 = vld [vmem:[#allocation9 + $0x2f8] sm:$0xff]
        %v3934 = vld [vmem:[#allocation11] sm:$0xff]
        %v3935 = vld [vmem:[#allocation11 + $0x8] sm:$0xff]
        %v3936 = vld [vmem:[#allocation11 + $0x10] sm:$0xff]
        %v3937 = vld [vmem:[#allocation11 + $0x18] sm:$0xff]
        %v3938 = vld [vmem:[#allocation11 + $0x20] sm:$0xff]
        %v3939 = vld [vmem:[#allocation11 + $0x28] sm:$0xff]
        %v3940 = vld [vmem:[#allocation11 + $0x30] sm:$0xff]
        %v3941 = vld [vmem:[#allocation11 + $0x38] sm:$0xff]
        %v3942 = vld [vmem:[#allocation11 + $0x40] sm:$0xff]
        %v3943 = vld [vmem:[#allocation11 + $0x48] sm:$0xff]
        %v3944 = vld [vmem:[#allocation11 + $0x50] sm:$0xff]
        %v3945 = vld [vmem:[#allocation11 + $0x58] sm:$0xff]
        %v3947 = vsel %vm897, %v3837, 0
        %3949 = vmatpush.msra.mxu0 0.0
        %3950 = vmatpush.msra.mxu0 0.0
        %3951 = vmatpush.msra.mxu0 0.0
        %3952 = vmatpush.msra.mxu0 0.0
        %3953 = vmatpush.msra.mxu0 0.0
        %3954 = vmatpush.msra.mxu0 0.0
        %3955 = vmatpush.msra.mxu0 0.0
        %3956 = vmatpush.msra.mxu0 0.0
        %3957 = vmatpush.msra.mxu0 0.0
        %3958 = vmatpush.msra.mxu0 0.0
        %3959 = vmatpush.msra.mxu0 0.0
        %3960 = vmatpush.msra.mxu0 0.0
        %3961 = vmatpush.msra.mxu0 0.0
        %3962 = vmatpush.msra.mxu0 0.0
        %3963 = vmatpush.msra.mxu0 %v3940
        %3964 = vmatpush.msra.mxu0 %v3934
        %3965 = vmatmul.f32.gmra.mxu0 %v3947
        %v3966 = vpop.f32.mrf.mxu0
        %v3967 = vadd.f32 0.0, %v3966
        %3968 = vdwg.mxu0
        %3969 = vmatpush.msra.mxu0 0.0
        %3970 = vmatpush.msra.mxu0 0.0
        %3971 = vmatpush.msra.mxu0 0.0
        %3972 = vmatpush.msra.mxu0 0.0
        %3973 = vmatpush.msra.mxu0 0.0
        %3974 = vmatpush.msra.mxu0 0.0
        %3975 = vmatpush.msra.mxu0 0.0
        %3976 = vmatpush.msra.mxu0 0.0
        %3977 = vmatpush.msra.mxu0 0.0
        %3978 = vmatpush.msra.mxu0 0.0
        %3979 = vmatpush.msra.mxu0 0.0
        %3980 = vmatpush.msra.mxu0 0.0
        %3981 = vmatpush.msra.mxu0 0.0
        %3982 = vmatpush.msra.mxu0 0.0
        %3983 = vmatpush.msra.mxu0 %v3941
        %3984 = vmatpush.msra.mxu0 %v3935
        %3985 = vmatmul.f32.gmra.mxu0 %v3947
        %v3986 = vpop.f32.mrf.mxu0
        %v3987 = vadd.f32 0.0, %v3986
        %3988 = vdwg.mxu0
        %3989 = vmatpush.msra.mxu0 0.0
        %3990 = vmatpush.msra.mxu0 0.0
        %3991 = vmatpush.msra.mxu0 0.0
        %3992 = vmatpush.msra.mxu0 0.0
        %3993 = vmatpush.msra.mxu0 0.0
        %3994 = vmatpush.msra.mxu0 0.0
        %3995 = vmatpush.msra.mxu0 0.0
        %3996 = vmatpush.msra.mxu0 0.0
        %3997 = vmatpush.msra.mxu0 0.0
        %3998 = vmatpush.msra.mxu0 0.0
        %3999 = vmatpush.msra.mxu0 0.0
        %4000 = vmatpush.msra.mxu0 0.0
        %4001 = vmatpush.msra.mxu0 0.0
        %4002 = vmatpush.msra.mxu0 0.0
        %4003 = vmatpush.msra.mxu0 %v3942
        %4004 = vmatpush.msra.mxu0 %v3936
        %4005 = vmatmul.f32.gmra.mxu0 %v3947
        %v4006 = vpop.f32.mrf.mxu0
        %v4007 = vadd.f32 0.0, %v4006
        %4008 = vdwg.mxu0
        %4009 = vmatpush.msra.mxu0 0.0
        %4010 = vmatpush.msra.mxu0 0.0
        %4011 = vmatpush.msra.mxu0 0.0
        %4012 = vmatpush.msra.mxu0 0.0
        %4013 = vmatpush.msra.mxu0 0.0
        %4014 = vmatpush.msra.mxu0 0.0
        %4015 = vmatpush.msra.mxu0 0.0
        %4016 = vmatpush.msra.mxu0 0.0
        %4017 = vmatpush.msra.mxu0 0.0
        %4018 = vmatpush.msra.mxu0 0.0
        %4019 = vmatpush.msra.mxu0 0.0
        %4020 = vmatpush.msra.mxu0 0.0
        %4021 = vmatpush.msra.mxu0 0.0
        %4022 = vmatpush.msra.mxu0 0.0
        %4023 = vmatpush.msra.mxu0 %v3943
        %4024 = vmatpush.msra.mxu0 %v3937
        %4025 = vmatmul.f32.gmra.mxu0 %v3947
        %v4026 = vpop.f32.mrf.mxu0
        %v4027 = vadd.f32 0.0, %v4026
        %4028 = vdwg.mxu0
        %4029 = vmatpush.msra.mxu0 0.0
        %4030 = vmatpush.msra.mxu0 0.0
        %4031 = vmatpush.msra.mxu0 0.0
        %4032 = vmatpush.msra.mxu0 0.0
        %4033 = vmatpush.msra.mxu0 0.0
        %4034 = vmatpush.msra.mxu0 0.0
        %4035 = vmatpush.msra.mxu0 0.0
        %4036 = vmatpush.msra.mxu0 0.0
        %4037 = vmatpush.msra.mxu0 0.0
        %4038 = vmatpush.msra.mxu0 0.0
        %4039 = vmatpush.msra.mxu0 0.0
        %4040 = vmatpush.msra.mxu0 0.0
        %4041 = vmatpush.msra.mxu0 0.0
        %4042 = vmatpush.msra.mxu0 0.0
        %4043 = vmatpush.msra.mxu0 %v3944
        %4044 = vmatpush.msra.mxu0 %v3938
        %4045 = vmatmul.f32.gmra.mxu0 %v3947
        %v4046 = vpop.f32.mrf.mxu0
        %v4047 = vadd.f32 0.0, %v4046
        %4048 = vdwg.mxu0
        %4049 = vmatpush.msra.mxu0 0.0
        %4050 = vmatpush.msra.mxu0 0.0
        %4051 = vmatpush.msra.mxu0 0.0
        %4052 = vmatpush.msra.mxu0 0.0
        %4053 = vmatpush.msra.mxu0 0.0
        %4054 = vmatpush.msra.mxu0 0.0
        %4055 = vmatpush.msra.mxu0 0.0
        %4056 = vmatpush.msra.mxu0 0.0
        %4057 = vmatpush.msra.mxu0 0.0
        %4058 = vmatpush.msra.mxu0 0.0
        %4059 = vmatpush.msra.mxu0 0.0
        %4060 = vmatpush.msra.mxu0 0.0
        %4061 = vmatpush.msra.mxu0 0.0
        %4062 = vmatpush.msra.mxu0 0.0
        %4063 = vmatpush.msra.mxu0 %v3945
        %4064 = vmatpush.msra.mxu0 %v3939
        %4065 = vmatmul.f32.gmra.mxu0 %v3947
        %v4066 = vpop.f32.mrf.mxu0
        %v4067 = vadd.f32 0.0, %v4066
        %4068 = vdwg.mxu0
        %4069 = vmatpush.msra.mxu0 %v3928
        %4070 = vmatpush.msra.mxu0 %v3922
        %4071 = vmatpush.msra.mxu0 %v3916
        %4072 = vmatpush.msra.mxu0 %v3910
        %4073 = vmatpush.msra.mxu0 %v3904
        %4074 = vmatpush.msra.mxu0 %v3898
        %4075 = vmatpush.msra.mxu0 %v3892
        %4076 = vmatpush.msra.mxu0 %v3886
        %4077 = vmatpush.msra.mxu0 %v3880
        %4078 = vmatpush.msra.mxu0 %v3874
        %4079 = vmatpush.msra.mxu0 %v3868
        %4080 = vmatpush.msra.mxu0 %v3862
        %4081 = vmatpush.msra.mxu0 %v3856
        %4082 = vmatpush.msra.mxu0 %v3850
        %4083 = vmatpush.msra.mxu0 %v3844
        %4084 = vmatpush.msra.mxu0 %v3838
        %4085 = vmatmul.f32.gmra.mxu0 %v3750
        %v4086 = vpop.f32.mrf.mxu0
        %v4087 = vadd.f32 %v3967, %v4086
        %4088 = vdwg.mxu0
        %4089 = vmatpush.msra.mxu0 %v3929
        %4090 = vmatpush.msra.mxu0 %v3923
        %4091 = vmatpush.msra.mxu0 %v3917
        %4092 = vmatpush.msra.mxu0 %v3911
        %4093 = vmatpush.msra.mxu0 %v3905
        %4094 = vmatpush.msra.mxu0 %v3899
        %4095 = vmatpush.msra.mxu0 %v3893
        %4096 = vmatpush.msra.mxu0 %v3887
        %4097 = vmatpush.msra.mxu0 %v3881
        %4098 = vmatpush.msra.mxu0 %v3875
        %4099 = vmatpush.msra.mxu0 %v3869
        %4100 = vmatpush.msra.mxu0 %v3863
        %4101 = vmatpush.msra.mxu0 %v3857
        %4102 = vmatpush.msra.mxu0 %v3851
        %4103 = vmatpush.msra.mxu0 %v3845
        %4104 = vmatpush.msra.mxu0 %v3839
        %4105 = vmatmul.f32.gmra.mxu0 %v3750
        %v4106 = vpop.f32.mrf.mxu0
        %v4107 = vadd.f32 %v3987, %v4106
        %4108 = vdwg.mxu0
        %4109 = vmatpush.msra.mxu0 %v3930
        %4110 = vmatpush.msra.mxu0 %v3924
        %4111 = vmatpush.msra.mxu0 %v3918
        %4112 = vmatpush.msra.mxu0 %v3912
        %4113 = vmatpush.msra.mxu0 %v3906
        %4114 = vmatpush.msra.mxu0 %v3900
        %4115 = vmatpush.msra.mxu0 %v3894
        %4116 = vmatpush.msra.mxu0 %v3888
        %4117 = vmatpush.msra.mxu0 %v3882
        %4118 = vmatpush.msra.mxu0 %v3876
        %4119 = vmatpush.msra.mxu0 %v3870
        %4120 = vmatpush.msra.mxu0 %v3864
        %4121 = vmatpush.msra.mxu0 %v3858
        %4122 = vmatpush.msra.mxu0 %v3852
        %4123 = vmatpush.msra.mxu0 %v3846
        %4124 = vmatpush.msra.mxu0 %v3840
        %4125 = vmatmul.f32.gmra.mxu0 %v3750
        %v4126 = vpop.f32.mrf.mxu0
        %v4127 = vadd.f32 %v4007, %v4126
        %4128 = vdwg.mxu0
        %4129 = vmatpush.msra.mxu0 %v3931
        %4130 = vmatpush.msra.mxu0 %v3925
        %4131 = vmatpush.msra.mxu0 %v3919
        %4132 = vmatpush.msra.mxu0 %v3913
        %4133 = vmatpush.msra.mxu0 %v3907
        %4134 = vmatpush.msra.mxu0 %v3901
        %4135 = vmatpush.msra.mxu0 %v3895
        %4136 = vmatpush.msra.mxu0 %v3889
        %4137 = vmatpush.msra.mxu0 %v3883
        %4138 = vmatpush.msra.mxu0 %v3877
        %4139 = vmatpush.msra.mxu0 %v3871
        %4140 = vmatpush.msra.mxu0 %v3865
        %4141 = vmatpush.msra.mxu0 %v3859
        %4142 = vmatpush.msra.mxu0 %v3853
        %4143 = vmatpush.msra.mxu0 %v3847
        %4144 = vmatpush.msra.mxu0 %v3841
        %4145 = vmatmul.f32.gmra.mxu0 %v3750
        %v4146 = vpop.f32.mrf.mxu0
        %v4147 = vadd.f32 %v4027, %v4146
        %4148 = vdwg.mxu0
        %4149 = vmatpush.msra.mxu0 %v3932
        %4150 = vmatpush.msra.mxu0 %v3926
        %4151 = vmatpush.msra.mxu0 %v3920
        %4152 = vmatpush.msra.mxu0 %v3914
        %4153 = vmatpush.msra.mxu0 %v3908
        %4154 = vmatpush.msra.mxu0 %v3902
        %4155 = vmatpush.msra.mxu0 %v3896
        %4156 = vmatpush.msra.mxu0 %v3890
        %4157 = vmatpush.msra.mxu0 %v3884
        %4158 = vmatpush.msra.mxu0 %v3878
        %4159 = vmatpush.msra.mxu0 %v3872
        %4160 = vmatpush.msra.mxu0 %v3866
        %4161 = vmatpush.msra.mxu0 %v3860
        %4162 = vmatpush.msra.mxu0 %v3854
        %4163 = vmatpush.msra.mxu0 %v3848
        %4164 = vmatpush.msra.mxu0 %v3842
        %4165 = vmatmul.f32.gmra.mxu0 %v3750
        %v4166 = vpop.f32.mrf.mxu0
        %v4167 = vadd.f32 %v4047, %v4166
        %4168 = vdwg.mxu0
        %4169 = vmatpush.msra.mxu0 %v3933
        %4170 = vmatpush.msra.mxu0 %v3927
        %4171 = vmatpush.msra.mxu0 %v3921
        %4172 = vmatpush.msra.mxu0 %v3915
        %4173 = vmatpush.msra.mxu0 %v3909
        %4174 = vmatpush.msra.mxu0 %v3903
        %4175 = vmatpush.msra.mxu0 %v3897
        %4176 = vmatpush.msra.mxu0 %v3891
        %4177 = vmatpush.msra.mxu0 %v3885
        %4178 = vmatpush.msra.mxu0 %v3879
        %4179 = vmatpush.msra.mxu0 %v3873
        %4180 = vmatpush.msra.mxu0 %v3867
        %4181 = vmatpush.msra.mxu0 %v3861
        %4182 = vmatpush.msra.mxu0 %v3855
        %4183 = vmatpush.msra.mxu0 %v3849
        %4184 = vmatpush.msra.mxu0 %v3843
        %4185 = vmatmul.f32.gmra.mxu0 %v3750
        %v4186 = vpop.f32.mrf.mxu0
        %v4187 = vadd.f32 %v4067, %v4186
        %4188 = vdwg.mxu0
        %v4189 = vld [vmem:[%s3] sm:$0x1]
        %4190 = vset.pattern.permute.xlu0 32
        %4191 = vperm.xlu0 %4190, %v3837
        %v4192 = vpop.permute.xlu0 %4191
        %v4195 = vperm.slane %v4189, 0
        %v4197 = vmul.f32 %v4192, %v4195
        %v4198 = vadd.f32 %v4087, %v4197
        %v4199 = vld [vmem:[%s4] sm:$0x1]
        %v4201 = vperm.slane %v4199, 0
        %v4203 = vadd.f32 %v4198, %v4201
        %v4204 = vtanh.pop %v4203
        %v4205 = vld [vmem:[#allocation12] sm:$0xff]
        %v4206 = vld [vmem:[#allocation12 + $0x8] sm:$0xff]
        %v4207 = vld [vmem:[#allocation12 + $0x10] sm:$0xff]
        %v4208 = vld [vmem:[#allocation12 + $0x18] sm:$0xff]
        %v4209 = vld [vmem:[#allocation12 + $0x20] sm:$0xff]
        %v4210 = vld [vmem:[#allocation12 + $0x28] sm:$0xff]
        %v4211 = vld [vmem:[#allocation12 + $0x30] sm:$0xff]
        %v4212 = vld [vmem:[#allocation12 + $0x38] sm:$0xff]
        %v4213 = vld [vmem:[#allocation12 + $0x40] sm:$0xff]
        %v4214 = vld [vmem:[#allocation12 + $0x48] sm:$0xff]
        %v4215 = vld [vmem:[#allocation12 + $0x50] sm:$0xff]
        %v4216 = vld [vmem:[#allocation12 + $0x58] sm:$0xff]
        %v4217 = vld [vmem:[#allocation12 + $0x60] sm:$0xff]
        %v4218 = vld [vmem:[#allocation12 + $0x68] sm:$0xff]
        %v4219 = vld [vmem:[#allocation12 + $0x70] sm:$0xff]
        %v4220 = vld [vmem:[#allocation12 + $0x78] sm:$0xff]
        %v4221 = vld [vmem:[#allocation12 + $0x80] sm:$0xff]
        %v4222 = vld [vmem:[#allocation12 + $0x88] sm:$0xff]
        %v4223 = vld [vmem:[#allocation12 + $0x90] sm:$0xff]
        %v4224 = vld [vmem:[#allocation12 + $0x98] sm:$0xff]
        %v4225 = vld [vmem:[#allocation12 + $0xa0] sm:$0xff]
        %v4226 = vld [vmem:[#allocation12 + $0xa8] sm:$0xff]
        %v4227 = vld [vmem:[#allocation12 + $0xb0] sm:$0xff]
        %v4228 = vld [vmem:[#allocation12 + $0xb8] sm:$0xff]
        %v4229 = vld [vmem:[#allocation12 + $0xc0] sm:$0xff]
        %v4230 = vld [vmem:[#allocation12 + $0xc8] sm:$0xff]
        %v4231 = vld [vmem:[#allocation12 + $0xd0] sm:$0xff]
        %v4232 = vld [vmem:[#allocation12 + $0xd8] sm:$0xff]
        %v4233 = vld [vmem:[#allocation12 + $0xe0] sm:$0xff]
        %v4234 = vld [vmem:[#allocation12 + $0xe8] sm:$0xff]
        %v4235 = vld [vmem:[#allocation12 + $0xf0] sm:$0xff]
        %v4236 = vld [vmem:[#allocation12 + $0xf8] sm:$0xff]
        %v4237 = vld [vmem:[#allocation12 + $0x100] sm:$0xff]
        %v4238 = vld [vmem:[#allocation12 + $0x108] sm:$0xff]
        %v4239 = vld [vmem:[#allocation12 + $0x110] sm:$0xff]
        %v4240 = vld [vmem:[#allocation12 + $0x118] sm:$0xff]
        %v4241 = vld [vmem:[#allocation12 + $0x120] sm:$0xff]
        %v4242 = vld [vmem:[#allocation12 + $0x128] sm:$0xff]
        %v4243 = vld [vmem:[#allocation12 + $0x130] sm:$0xff]
        %v4244 = vld [vmem:[#allocation12 + $0x138] sm:$0xff]
        %v4245 = vld [vmem:[#allocation12 + $0x140] sm:$0xff]
        %v4246 = vld [vmem:[#allocation12 + $0x148] sm:$0xff]
        %v4247 = vld [vmem:[#allocation12 + $0x150] sm:$0xff]
        %v4248 = vld [vmem:[#allocation12 + $0x158] sm:$0xff]
        %v4249 = vld [vmem:[#allocation12 + $0x160] sm:$0xff]
        %v4250 = vld [vmem:[#allocation12 + $0x168] sm:$0xff]
        %v4251 = vld [vmem:[#allocation12 + $0x170] sm:$0xff]
        %v4252 = vld [vmem:[#allocation12 + $0x178] sm:$0xff]
        %v4253 = vld [vmem:[#allocation12 + $0x180] sm:$0xff]
        %v4254 = vld [vmem:[#allocation12 + $0x188] sm:$0xff]
        %v4255 = vld [vmem:[#allocation12 + $0x190] sm:$0xff]
        %v4256 = vld [vmem:[#allocation12 + $0x198] sm:$0xff]
        %v4257 = vld [vmem:[#allocation12 + $0x1a0] sm:$0xff]
        %v4258 = vld [vmem:[#allocation12 + $0x1a8] sm:$0xff]
        %v4259 = vld [vmem:[#allocation12 + $0x1b0] sm:$0xff]
        %v4260 = vld [vmem:[#allocation12 + $0x1b8] sm:$0xff]
        %v4261 = vld [vmem:[#allocation12 + $0x1c0] sm:$0xff]
        %v4262 = vld [vmem:[#allocation12 + $0x1c8] sm:$0xff]
        %v4263 = vld [vmem:[#allocation12 + $0x1d0] sm:$0xff]
        %v4264 = vld [vmem:[#allocation12 + $0x1d8] sm:$0xff]
        %v4265 = vld [vmem:[#allocation12 + $0x1e0] sm:$0xff]
        %v4266 = vld [vmem:[#allocation12 + $0x1e8] sm:$0xff]
        %v4267 = vld [vmem:[#allocation12 + $0x1f0] sm:$0xff]
        %v4268 = vld [vmem:[#allocation12 + $0x1f8] sm:$0xff]
        %v4269 = vld [vmem:[#allocation12 + $0x200] sm:$0xff]
        %v4270 = vld [vmem:[#allocation12 + $0x208] sm:$0xff]
        %v4271 = vld [vmem:[#allocation12 + $0x210] sm:$0xff]
        %v4272 = vld [vmem:[#allocation12 + $0x218] sm:$0xff]
        %v4273 = vld [vmem:[#allocation12 + $0x220] sm:$0xff]
        %v4274 = vld [vmem:[#allocation12 + $0x228] sm:$0xff]
        %v4275 = vld [vmem:[#allocation12 + $0x230] sm:$0xff]
        %v4276 = vld [vmem:[#allocation12 + $0x238] sm:$0xff]
        %v4277 = vld [vmem:[#allocation12 + $0x240] sm:$0xff]
        %v4278 = vld [vmem:[#allocation12 + $0x248] sm:$0xff]
        %v4279 = vld [vmem:[#allocation12 + $0x250] sm:$0xff]
        %v4280 = vld [vmem:[#allocation12 + $0x258] sm:$0xff]
        %v4281 = vld [vmem:[#allocation12 + $0x260] sm:$0xff]
        %v4282 = vld [vmem:[#allocation12 + $0x268] sm:$0xff]
        %v4283 = vld [vmem:[#allocation12 + $0x270] sm:$0xff]
        %v4284 = vld [vmem:[#allocation12 + $0x278] sm:$0xff]
        %4285 = vmatpush.msra.mxu0 %v4280
        %4286 = vmatpush.msra.mxu0 %v4275
        %4287 = vmatpush.msra.mxu0 %v4270
        %4288 = vmatpush.msra.mxu0 %v4265
        %4289 = vmatpush.msra.mxu0 %v4260
        %4290 = vmatpush.msra.mxu0 %v4255
        %4291 = vmatpush.msra.mxu0 %v4250
        %4292 = vmatpush.msra.mxu0 %v4245
        %4293 = vmatpush.msra.mxu0 %v4240
        %4294 = vmatpush.msra.mxu0 %v4235
        %4295 = vmatpush.msra.mxu0 %v4230
        %4296 = vmatpush.msra.mxu0 %v4225
        %4297 = vmatpush.msra.mxu0 %v4220
        %4298 = vmatpush.msra.mxu0 %v4215
        %4299 = vmatpush.msra.mxu0 %v4210
        %4300 = vmatpush.msra.mxu0 %v4205
        %4301 = vmatmul.f32.gmra.mxu0 %v4204
        %v4302 = vpop.f32.mrf.mxu0
        %v4303 = vadd.f32 0.0, %v4302
        %4304 = vdwg.mxu0
        %4305 = vmatpush.msra.mxu0 %v4281
        %4306 = vmatpush.msra.mxu0 %v4276
        %4307 = vmatpush.msra.mxu0 %v4271
        %4308 = vmatpush.msra.mxu0 %v4266
        %4309 = vmatpush.msra.mxu0 %v4261
        %4310 = vmatpush.msra.mxu0 %v4256
        %4311 = vmatpush.msra.mxu0 %v4251
        %4312 = vmatpush.msra.mxu0 %v4246
        %4313 = vmatpush.msra.mxu0 %v4241
        %4314 = vmatpush.msra.mxu0 %v4236
        %4315 = vmatpush.msra.mxu0 %v4231
        %4316 = vmatpush.msra.mxu0 %v4226
        %4317 = vmatpush.msra.mxu0 %v4221
        %4318 = vmatpush.msra.mxu0 %v4216
        %4319 = vmatpush.msra.mxu0 %v4211
        %4320 = vmatpush.msra.mxu0 %v4206
        %4321 = vmatmul.f32.gmra.mxu0 %v4204
        %v4322 = vpop.f32.mrf.mxu0
        %v4323 = vadd.f32 0.0, %v4322
        %4324 = vdwg.mxu0
        %4325 = vmatpush.msra.mxu0 %v4282
        %4326 = vmatpush.msra.mxu0 %v4277
        %4327 = vmatpush.msra.mxu0 %v4272
        %4328 = vmatpush.msra.mxu0 %v4267
        %4329 = vmatpush.msra.mxu0 %v4262
        %4330 = vmatpush.msra.mxu0 %v4257
        %4331 = vmatpush.msra.mxu0 %v4252
        %4332 = vmatpush.msra.mxu0 %v4247
        %4333 = vmatpush.msra.mxu0 %v4242
        %4334 = vmatpush.msra.mxu0 %v4237
        %4335 = vmatpush.msra.mxu0 %v4232
        %4336 = vmatpush.msra.mxu0 %v4227
        %4337 = vmatpush.msra.mxu0 %v4222
        %4338 = vmatpush.msra.mxu0 %v4217
        %4339 = vmatpush.msra.mxu0 %v4212
        %4340 = vmatpush.msra.mxu0 %v4207
        %4341 = vmatmul.f32.gmra.mxu0 %v4204
        %v4342 = vpop.f32.mrf.mxu0
        %v4343 = vadd.f32 0.0, %v4342
        %4344 = vdwg.mxu0
        %4345 = vmatpush.msra.mxu0 %v4283
        %4346 = vmatpush.msra.mxu0 %v4278
        %4347 = vmatpush.msra.mxu0 %v4273
        %4348 = vmatpush.msra.mxu0 %v4268
        %4349 = vmatpush.msra.mxu0 %v4263
        %4350 = vmatpush.msra.mxu0 %v4258
        %4351 = vmatpush.msra.mxu0 %v4253
        %4352 = vmatpush.msra.mxu0 %v4248
        %4353 = vmatpush.msra.mxu0 %v4243
        %4354 = vmatpush.msra.mxu0 %v4238
        %4355 = vmatpush.msra.mxu0 %v4233
        %4356 = vmatpush.msra.mxu0 %v4228
        %4357 = vmatpush.msra.mxu0 %v4223
        %4358 = vmatpush.msra.mxu0 %v4218
        %4359 = vmatpush.msra.mxu0 %v4213
        %4360 = vmatpush.msra.mxu0 %v4208
        %4361 = vmatmul.f32.gmra.mxu0 %v4204
        %v4362 = vpop.f32.mrf.mxu0
        %v4363 = vadd.f32 0.0, %v4362
        %4364 = vdwg.mxu0
        %4365 = vmatpush.msra.mxu0 %v4284
        %4366 = vmatpush.msra.mxu0 %v4279
        %4367 = vmatpush.msra.mxu0 %v4274
        %4368 = vmatpush.msra.mxu0 %v4269
        %4369 = vmatpush.msra.mxu0 %v4264
        %4370 = vmatpush.msra.mxu0 %v4259
        %4371 = vmatpush.msra.mxu0 %v4254
        %4372 = vmatpush.msra.mxu0 %v4249
        %4373 = vmatpush.msra.mxu0 %v4244
        %4374 = vmatpush.msra.mxu0 %v4239
        %4375 = vmatpush.msra.mxu0 %v4234
        %4376 = vmatpush.msra.mxu0 %v4229
        %4377 = vmatpush.msra.mxu0 %v4224
        %4378 = vmatpush.msra.mxu0 %v4219
        %4379 = vmatpush.msra.mxu0 %v4214
        %4380 = vmatpush.msra.mxu0 %v4209
        %4381 = vmatmul.f32.gmra.mxu0 %v4204
        %v4382 = vpop.f32.mrf.mxu0
        %v4383 = vadd.f32 0.0, %v4382
        %4384 = vdwg.mxu0
        %v4385 = vadd.f32 %v4107, %v4303
        %v4386 = vadd.f32 %v4127, %v4323
        %v4387 = vadd.f32 %v4147, %v4343
        %v4388 = vadd.f32 %v4167, %v4363
        %v4389 = vadd.f32 %v4187, %v4383
        %v4390 = vld [vmem:[%s6] sm:$0x1f]
        %v4392 = vperm.slane %v4390, 0
        %v4393 = vperm.slane %v4390, 1
        %v4394 = vperm.slane %v4390, 2
        %v4395 = vperm.slane %v4390, 3
        %v4396 = vperm.slane %v4390, 4
        %v4402 = vadd.f32 %v4385, %v4392
        %v4403 = vadd.f32 %v4386, %v4393
        %v4404 = vadd.f32 %v4387, %v4394
        %v4405 = vadd.f32 %v4388, %v4395
        %v4406 = vadd.f32 %v4389, %v4396
        %v4407 = vsub.f32 0.0, %v4402
        %v4408 = vmul.f32 %v4407, 1.442695
        %v4409 = vpow.pop %v4408
        %v4410 = vadd.f32 %v4409, 1.0
        %v4411 = vrcp.pop %v4410
        %v4412 = vmul.f32 %v4410, %v4411
        %v4413 = vsub.f32 1.0, %v4412
        %v4414 = vmul.f32 %v4411, %v4413
        %v4415 = vadd.f32 %v4411, %v4414
        %vm4416 = vweird.f32 %v4410
        %vm4417 = vweird.f32 %v4411
        %vm4418 = vmor %vm4416, %vm4417
        %v4419 = vsel %vm4418, %v4411, %v4415
        %v4420 = vand.u32 2147483647, %v4410
        %vm4421 = vcmp.eq.f32.partialorder %v4420, 8.507059e+37
        %v4422 = vand.u32 %v4410, 2147483648
        %v4423 = vor.u32 1.1754944e-38, %v4422
        %v4424 = vsel %vm4421, %v4423, %v4419
        %v4425 = vmul.f32 1.0, %v4424
        %v4426 = vsub.f32 0.0, %v4403
        %v4427 = vmul.f32 %v4426, 1.442695
        %v4428 = vpow.pop %v4427
        %v4429 = vadd.f32 %v4428, 1.0
        %v4430 = vrcp.pop %v4429
        %v4431 = vmul.f32 %v4429, %v4430
        %v4432 = vsub.f32 1.0, %v4431
        %v4433 = vmul.f32 %v4430, %v4432
        %v4434 = vadd.f32 %v4430, %v4433
        %vm4435 = vweird.f32 %v4429
        %vm4436 = vweird.f32 %v4430
        %vm4437 = vmor %vm4435, %vm4436
        %v4438 = vsel %vm4437, %v4430, %v4434
        %v4439 = vand.u32 2147483647, %v4429
        %vm4440 = vcmp.eq.f32.partialorder %v4439, 8.507059e+37
        %v4441 = vand.u32 %v4429, 2147483648
        %v4442 = vor.u32 1.1754944e-38, %v4441
        %v4443 = vsel %vm4440, %v4442, %v4438
        %v4444 = vmul.f32 1.0, %v4443
        %v4445 = vsub.f32 0.0, %v4404
        %v4446 = vmul.f32 %v4445, 1.442695
        %v4447 = vpow.pop %v4446
        %v4448 = vadd.f32 %v4447, 1.0
        %v4449 = vrcp.pop %v4448
        %v4450 = vmul.f32 %v4448, %v4449
        %v4451 = vsub.f32 1.0, %v4450
        %v4452 = vmul.f32 %v4449, %v4451
        %v4453 = vadd.f32 %v4449, %v4452
        %vm4454 = vweird.f32 %v4448
        %vm4455 = vweird.f32 %v4449
        %vm4456 = vmor %vm4454, %vm4455
        %v4457 = vsel %vm4456, %v4449, %v4453
        %v4458 = vand.u32 2147483647, %v4448
        %vm4459 = vcmp.eq.f32.partialorder %v4458, 8.507059e+37
        %v4460 = vand.u32 %v4448, 2147483648
        %v4461 = vor.u32 1.1754944e-38, %v4460
        %v4462 = vsel %vm4459, %v4461, %v4457
        %v4463 = vmul.f32 1.0, %v4462
        %v4464 = vtanh.pop %v4405
        %v4465 = vsub.f32 0.0, %v4406
        %v4466 = vmul.f32 %v4465, 1.442695
        %v4467 = vpow.pop %v4466
        %v4468 = vadd.f32 %v4467, 1.0
        %v4469 = vrcp.pop %v4468
        %v4470 = vmul.f32 %v4468, %v4469
        %v4471 = vsub.f32 1.0, %v4470
        %v4472 = vmul.f32 %v4469, %v4471
        %v4473 = vadd.f32 %v4469, %v4472
        %vm4474 = vweird.f32 %v4468
        %vm4475 = vweird.f32 %v4469
        %vm4476 = vmor %vm4474, %vm4475
        %v4477 = vsel %vm4476, %v4469, %v4473
        %v4478 = vand.u32 2147483647, %v4468
        %vm4479 = vcmp.eq.f32.partialorder %v4478, 8.507059e+37
        %v4480 = vand.u32 %v4468, 2147483648
        %v4481 = vor.u32 1.1754944e-38, %v4480
        %v4482 = vsel %vm4479, %v4481, %v4477
        %v4483 = vmul.f32 1.0, %v4482
        %v4484 = vmul.f32 %v4425, %v3472
        %v4485 = vmul.f32 %v4444, %v4464
        %v4486 = vadd.f32 %v4484, %v4485
        %v4487 = vmul.f32 %v4463, %v4204
        %v4488 = vadd.f32 %v4486, %v4487
        %v4489 = vtanh.pop %v4488
        %v4490 = vmul.f32 %v4483, %v4489
        %v4491 = vld [vmem:[#allocation14] sm:$0xff]
        %v4492 = vld [vmem:[#allocation14 + $0x8] sm:$0xff]
        %v4493 = vld [vmem:[#allocation14 + $0x10] sm:$0xff]
        %v4494 = vld [vmem:[#allocation14 + $0x18] sm:$0xff]
        %v4495 = vld [vmem:[#allocation14 + $0x20] sm:$0xff]
        %v4496 = vld [vmem:[#allocation14 + $0x28] sm:$0xff]
        %v4497 = vld [vmem:[#allocation14 + $0x30] sm:$0xff]
        %v4498 = vld [vmem:[#allocation14 + $0x38] sm:$0xff]
        %v4499 = vld [vmem:[#allocation14 + $0x40] sm:$0xff]
        %v4500 = vld [vmem:[#allocation14 + $0x48] sm:$0xff]
        %v4501 = vld [vmem:[#allocation14 + $0x50] sm:$0xff]
        %v4502 = vld [vmem:[#allocation14 + $0x58] sm:$0xff]
        %v4503 = vld [vmem:[#allocation14 + $0x60] sm:$0xff]
        %v4504 = vld [vmem:[#allocation14 + $0x68] sm:$0xff]
        %v4505 = vld [vmem:[#allocation14 + $0x70] sm:$0xff]
        %v4506 = vld [vmem:[#allocation14 + $0x78] sm:$0xff]
        %v4507 = vld [vmem:[#allocation15] sm:$0xff]
        %v4508 = vld [vmem:[#allocation15 + $0x8] sm:$0xff]
        %v4509 = vld [vmem:[#allocation15 + $0x10] sm:$0xff]
        %v4510 = vld [vmem:[#allocation15 + $0x18] sm:$0xff]
        %v4511 = vld [vmem:[#allocation15 + $0x20] sm:$0xff]
        %v4512 = vld [vmem:[#allocation15 + $0x28] sm:$0xff]
        %v4513 = vld [vmem:[#allocation15 + $0x30] sm:$0xff]
        %v4514 = vld [vmem:[#allocation15 + $0x38] sm:$0xff]
        %v4515 = vld [vmem:[#allocation15 + $0x40] sm:$0xff]
        %v4516 = vld [vmem:[#allocation15 + $0x48] sm:$0xff]
        %v4517 = vld [vmem:[#allocation15 + $0x50] sm:$0xff]
        %v4518 = vld [vmem:[#allocation15 + $0x58] sm:$0xff]
        %v4519 = vld [vmem:[#allocation15 + $0x60] sm:$0xff]
        %v4520 = vld [vmem:[#allocation15 + $0x68] sm:$0xff]
        %v4521 = vld [vmem:[#allocation15 + $0x70] sm:$0xff]
        %v4522 = vld [vmem:[#allocation15 + $0x78] sm:$0xff]
        %4523 = vmatpush.msra.mxu0 %v4522
        %4524 = vmatpush.msra.mxu0 %v4521
        %4525 = vmatpush.msra.mxu0 %v4520
        %4526 = vmatpush.msra.mxu0 %v4519
        %4527 = vmatpush.msra.mxu0 %v4518
        %4528 = vmatpush.msra.mxu0 %v4517
        %4529 = vmatpush.msra.mxu0 %v4516
        %4530 = vmatpush.msra.mxu0 %v4515
        %4531 = vmatpush.msra.mxu0 %v4514
        %4532 = vmatpush.msra.mxu0 %v4513
        %4533 = vmatpush.msra.mxu0 %v4512
        %4534 = vmatpush.msra.mxu0 %v4511
        %4535 = vmatpush.msra.mxu0 %v4510
        %4536 = vmatpush.msra.mxu0 %v4509
        %4537 = vmatpush.msra.mxu0 %v4508
        %4538 = vmatpush.msra.mxu0 %v4507
        %4539 = vmatmul.f32.gmra.mxu0 %v4488
        %v4540 = vpop.f32.mrf.mxu0
        %v4541 = vadd.f32 0.0, %v4540
        %4542 = vdwg.mxu0
        %4543 = vmatpush.msra.mxu0 %v4506
        %4544 = vmatpush.msra.mxu0 %v4505
        %4545 = vmatpush.msra.mxu0 %v4504
        %4546 = vmatpush.msra.mxu0 %v4503
        %4547 = vmatpush.msra.mxu0 %v4502
        %4548 = vmatpush.msra.mxu0 %v4501
        %4549 = vmatpush.msra.mxu0 %v4500
        %4550 = vmatpush.msra.mxu0 %v4499
        %4551 = vmatpush.msra.mxu0 %v4498
        %4552 = vmatpush.msra.mxu0 %v4497
        %4553 = vmatpush.msra.mxu0 %v4496
        %4554 = vmatpush.msra.mxu0 %v4495
        %4555 = vmatpush.msra.mxu0 %v4494
        %4556 = vmatpush.msra.mxu0 %v4493
        %4557 = vmatpush.msra.mxu0 %v4492
        %4558 = vmatpush.msra.mxu0 %v4491
        %4559 = vmatmul.f32.gmra.mxu0 %v4490
        %v4560 = vpop.f32.mrf.mxu0
        %v4561 = vadd.f32 %v4541, %v4560
        %4562 = vdwg.mxu0
        %v4563 = vld [vmem:[#allocation5] sm:$0xff]
        %v4564 = vld [vmem:[#allocation5 + $0x8] sm:$0xff]
        %v4565 = vld [vmem:[#allocation5 + $0x10] sm:$0xff]
        %v4566 = vld [vmem:[#allocation5 + $0x18] sm:$0xff]
        %v4567 = vadd.f32 %v4561, %v4563
        %v4568 = vadd.f32 %v4561, %v4564
        %v4569 = vadd.f32 %v4561, %v4565
        %v4570 = vadd.f32 %v4561, %v4566
        %v4571 = vld [vmem:[%s10] sm:$0x1]
        %v4573 = vperm.slane %v4571, 0
        %v4575 = vadd.f32 %v4567, %v4573
        %v4576 = vadd.f32 %v4568, %v4573
        %v4577 = vadd.f32 %v4569, %v4573
        %v4578 = vadd.f32 %v4570, %v4573
        %v4579 = vtanh.pop %v4575
        %v4580 = vtanh.pop %v4576
        %v4581 = vtanh.pop %v4577
        %v4582 = vtanh.pop %v4578
        %v4583 = vld [vmem:[%s11] sm:$0x1]
        %v4585 = vperm.slane %v4583, 0
        %v4587 = vmul.f32 %v4579, %v4585
        %v4588 = vmul.f32 %v4580, %v4585
        %v4589 = vmul.f32 %v4581, %v4585
        %v4590 = vmul.f32 %v4582, %v4585
        %4591 = vadd.xlane.f32.xlu0 %v4587
        %v4592 = vpop.xlane.xlu0 %4591
        %4593 = vadd.xlane.f32.xlu0 %v4588
        %v4594 = vpop.xlane.xlu0 %4593
        %4595 = vadd.xlane.f32.xlu0 %v4589
        %v4596 = vpop.xlane.xlu0 %4595
        %4597 = vadd.xlane.f32.xlu0 %v4590
        %v4598 = vpop.xlane.xlu0 %4597
        %p4599 = scmp.lt.s32.totalorder %s3835, 4
        %s4600 = scalar_select %p4599, %s3835, 4
        %v4601 = vstv %s4600
        %vm4602 = vcmp.gt.s32.totalorder %v4601, 0
        %vm4603 = vcmp.gt.s32.totalorder %v4601, 1
        %vm4604 = vcmp.gt.s32.totalorder %v4601, 2
        %vm4605 = vcmp.gt.s32.totalorder %v4601, 3
        %v4606 = vsel %vm4602, %v4592, -1e+30
        %v4607 = vsel %vm4603, %v4594, -1e+30
        %v4608 = vsel %vm4604, %v4596, -1e+30
        %v4609 = vsel %vm4605, %v4598, -1e+30
        %v4610 = vmax.f32 %v4606, %v4607
        %v4611 = vmax.f32 %v4608, %v4609
        %v4612 = vmax.f32 %v4610, %v4611
        %v4613 = vsub.f32 %v4592, %v4612
        %v4614 = vsub.f32 %v4594, %v4612
        %v4615 = vsub.f32 %v4596, %v4612
        %v4616 = vsub.f32 %v4598, %v4612
        %v4617 = vsel %vm4602, %v4613, -1e+30
        %v4618 = vsel %vm4603, %v4614, -1e+30
        %v4619 = vsel %vm4604, %v4615, -1e+30
        %v4620 = vsel %vm4605, %v4616, -1e+30
        %v4621 = vmul.f32 %v4617, 1.442695
        %v4622 = vpow.pop %v4621
        %v4623 = vmul.f32 %v4618, 1.442695
        %v4624 = vpow.pop %v4623
        %v4625 = vmul.f32 %v4619, 1.442695
        %v4626 = vpow.pop %v4625
        %v4627 = vmul.f32 %v4620, 1.442695
        %v4628 = vpow.pop %v4627
        %v4629 = vadd.f32 %v4622, %v4624
        %v4630 = vadd.f32 %v4629, %v4626
        %v4631 = vadd.f32 %v4630, %v4628
        %v4632 = vmax.f32 %v4631, 1e-30
        %v4633 = vrcp.pop %v4632
        %v4634 = vmul.f32 %v4632, %v4633
        %v4635 = vsub.f32 1.0, %v4634
        %v4636 = vmul.f32 %v4633, %v4635
        %v4637 = vadd.f32 %v4633, %v4636
        %vm4638 = vweird.f32 %v4632
        %vm4639 = vweird.f32 %v4633
        %vm4640 = vmor %vm4638, %vm4639
        %v4641 = vsel %vm4640, %v4633, %v4637
        %v4642 = vand.u32 2147483647, %v4632
        %vm4643 = vcmp.eq.f32.partialorder %v4642, 8.507059e+37
        %v4644 = vand.u32 %v4632, 2147483648
        %v4645 = vor.u32 1.1754944e-38, %v4644
        %v4646 = vsel %vm4643, %v4645, %v4641
        %v4647 = vmul.f32 %v4622, %v4646
        %v4648 = vmul.f32 %v4624, %v4646
        %v4649 = vmul.f32 %v4626, %v4646
        %v4650 = vmul.f32 %v4628, %v4646
        %v4651 = vld [vmem:[#allocation4] sm:$0xff]
        %v4652 = vld [vmem:[#allocation4 + $0x8] sm:$0xff]
        %v4653 = vld [vmem:[#allocation4 + $0x10] sm:$0xff]
        %v4654 = vld [vmem:[#allocation4 + $0x18] sm:$0xff]
        %v4655 = vmul.f32 %v4647, %v4651
        %v4656 = vmul.f32 %v4648, %v4652
        %v4657 = vmul.f32 %v4649, %v4653
        %v4658 = vmul.f32 %v4650, %v4654
        %v4659 = vadd.f32 %v4655, %v4656
        %v4660 = vadd.f32 %v4659, %v4657
        %v4661 = vadd.f32 %v4660, %v4658
        %v4662 = vld [vmem:[#allocation18] sm:$0xff]
        %v4663 = vld [vmem:[#allocation18 + $0x8] sm:$0xff]
        %v4664 = vld [vmem:[#allocation18 + $0x10] sm:$0xff]
        %v4665 = vld [vmem:[#allocation18 + $0x18] sm:$0xff]
        %v4666 = vld [vmem:[#allocation18 + $0x20] sm:$0xff]
        %v4667 = vld [vmem:[#allocation18 + $0x28] sm:$0xff]
        %v4668 = vld [vmem:[#allocation18 + $0x30] sm:$0xff]
        %v4669 = vld [vmem:[#allocation18 + $0x38] sm:$0xff]
        %v4670 = vld [vmem:[#allocation18 + $0x40] sm:$0xff]
        %v4671 = vld [vmem:[#allocation18 + $0x48] sm:$0xff]
        %v4672 = vld [vmem:[#allocation18 + $0x50] sm:$0xff]
        %v4673 = vld [vmem:[#allocation18 + $0x58] sm:$0xff]
        %v4674 = vld [vmem:[#allocation18 + $0x60] sm:$0xff]
        %v4675 = vld [vmem:[#allocation18 + $0x68] sm:$0xff]
        %v4676 = vld [vmem:[#allocation18 + $0x70] sm:$0xff]
        %v4677 = vld [vmem:[#allocation18 + $0x78] sm:$0xff]
        %v4678 = vld [vmem:[#allocation20] sm:$0xff]
        %v4679 = vld [vmem:[#allocation20 + $0x8] sm:$0xff]
        %v4680 = vld [vmem:[#allocation20 + $0x10] sm:$0xff]
        %v4681 = vld [vmem:[#allocation20 + $0x18] sm:$0xff]
        %v4682 = vld [vmem:[#allocation20 + $0x20] sm:$0xff]
        %v4683 = vld [vmem:[#allocation20 + $0x28] sm:$0xff]
        %v4684 = vld [vmem:[#allocation20 + $0x30] sm:$0xff]
        %v4685 = vld [vmem:[#allocation20 + $0x38] sm:$0xff]
        %v4686 = vld [vmem:[#allocation20 + $0x40] sm:$0xff]
        %v4687 = vld [vmem:[#allocation20 + $0x48] sm:$0xff]
        %v4688 = vld [vmem:[#allocation20 + $0x50] sm:$0xff]
        %v4689 = vld [vmem:[#allocation20 + $0x58] sm:$0xff]
        %v4690 = vld [vmem:[#allocation20 + $0x60] sm:$0xff]
        %v4691 = vld [vmem:[#allocation20 + $0x68] sm:$0xff]
        %v4692 = vld [vmem:[#allocation20 + $0x70] sm:$0xff]
        %v4693 = vld [vmem:[#allocation20 + $0x78] sm:$0xff]
        %4694 = vmatpush.msra.mxu0 %v4693
        %4695 = vmatpush.msra.mxu0 %v4692
        %4696 = vmatpush.msra.mxu0 %v4691
        %4697 = vmatpush.msra.mxu0 %v4690
        %4698 = vmatpush.msra.mxu0 %v4689
        %4699 = vmatpush.msra.mxu0 %v4688
        %4700 = vmatpush.msra.mxu0 %v4687
        %4701 = vmatpush.msra.mxu0 %v4686
        %4702 = vmatpush.msra.mxu0 %v4685
        %4703 = vmatpush.msra.mxu0 %v4684
        %4704 = vmatpush.msra.mxu0 %v4683
        %4705 = vmatpush.msra.mxu0 %v4682
        %4706 = vmatpush.msra.mxu0 %v4681
        %4707 = vmatpush.msra.mxu0 %v4680
        %4708 = vmatpush.msra.mxu0 %v4679
        %4709 = vmatpush.msra.mxu0 %v4678
        %4710 = vmatmul.f32.gmra.mxu0 %v4661
        %v4711 = vpop.f32.mrf.mxu0
        %v4712 = vadd.f32 0.0, %v4711
        %4713 = vdwg.mxu0
        %4714 = vmatpush.msra.mxu0 %v4677
        %4715 = vmatpush.msra.mxu0 %v4676
        %4716 = vmatpush.msra.mxu0 %v4675
        %4717 = vmatpush.msra.mxu0 %v4674
        %4718 = vmatpush.msra.mxu0 %v4673
        %4719 = vmatpush.msra.mxu0 %v4672
        %4720 = vmatpush.msra.mxu0 %v4671
        %4721 = vmatpush.msra.mxu0 %v4670
        %4722 = vmatpush.msra.mxu0 %v4669
        %4723 = vmatpush.msra.mxu0 %v4668
        %4724 = vmatpush.msra.mxu0 %v4667
        %4725 = vmatpush.msra.mxu0 %v4666
        %4726 = vmatpush.msra.mxu0 %v4665
        %4727 = vmatpush.msra.mxu0 %v4664
        %4728 = vmatpush.msra.mxu0 %v4663
        %4729 = vmatpush.msra.mxu0 %v4662
        %4730 = vmatmul.f32.gmra.mxu0 %v4490
        %v4731 = vpop.f32.mrf.mxu0
        %v4732 = vadd.f32 %v4712, %v4731
        %4733 = vdwg.mxu0
        %v4734 = vld [vmem:[#allocation21] sm:$0xff]
        %v4735 = vld [vmem:[#allocation21 + $0x8] sm:$0xff]
        %4736 = vrot.lane.b32.xlu0 %v3837, 112
        %v4737 = vpop.permute.xlu0 %4736
        %v4738 = vsel %vm897, %v4737, 0
        %4740 = vmatpush.msra.mxu0 0.0
        %4741 = vmatpush.msra.mxu0 0.0
        %4742 = vmatpush.msra.mxu0 0.0
        %4743 = vmatpush.msra.mxu0 0.0
        %4744 = vmatpush.msra.mxu0 0.0
        %4745 = vmatpush.msra.mxu0 0.0
        %4746 = vmatpush.msra.mxu0 0.0
        %4747 = vmatpush.msra.mxu0 0.0
        %4748 = vmatpush.msra.mxu0 0.0
        %4749 = vmatpush.msra.mxu0 0.0
        %4750 = vmatpush.msra.mxu0 0.0
        %4751 = vmatpush.msra.mxu0 0.0
        %4752 = vmatpush.msra.mxu0 0.0
        %4753 = vmatpush.msra.mxu0 0.0
        %4754 = vmatpush.msra.mxu0 %v4735
        %4755 = vmatpush.msra.mxu0 %v4734
        %4756 = vmatmul.f32.gmra.mxu0 %v4738
        %v4757 = vpop.f32.mrf.mxu0
        %v4758 = vadd.f32 0.0, %v4757
        %4759 = vdwg.mxu0
        %v4760 = vadd.f32 %v4732, %v4758
        %v4761 = vld [vmem:[%s15] sm:$0x1]
        %v4763 = vperm.slane %v4761, 0
        %v4765 = vadd.f32 %v4760, %v4763
        %v4766 = vtanh.pop %v4765
        %p4767 = scmp.lt.s32.totalorder %s3835, 0
        %s4768 = ssub.s32 0, %s3835
        %s4769 = scalar_select %p4767, %s4768, %s3835
        %s4770 = sand.u32 %s4769, 3
        %s4771 = ssub.s32 0, %s4770
        %s4772 = scalar_select %p4767, %s4771, %s4770
        %p4773 = scmp.ne.s32.totalorder %s4772, 0
        %p4774 = scmp.lt.s32.totalorder %s4772, 0
        %p4775 = pnand %p4774, %p4773
        %p4776 = pneg %p4775
        %s4777 = sadd.s32 %s4772, 4
        %s4778 = scalar_select %p4776, %s4777, %s4772
        %s4779 = smul.u32 %s4778, 8
        %s4780 = scalar_lea.vmem [#allocation4], %s4779
        %4781 = vst [vmem:[%s4780] sm:$0xff] %v4766
        %v4782 = vld [vmem:[#allocation17] sm:$0xff]
        %v4783 = vld [vmem:[#allocation17 + $0x8] sm:$0xff]
        %v4784 = vld [vmem:[#allocation17 + $0x10] sm:$0xff]
        %v4785 = vld [vmem:[#allocation17 + $0x18] sm:$0xff]
        %v4786 = vld [vmem:[#allocation17 + $0x20] sm:$0xff]
        %v4787 = vld [vmem:[#allocation17 + $0x28] sm:$0xff]
        %v4788 = vld [vmem:[#allocation17 + $0x30] sm:$0xff]
        %v4789 = vld [vmem:[#allocation17 + $0x38] sm:$0xff]
        %v4790 = vld [vmem:[#allocation17 + $0x40] sm:$0xff]
        %v4791 = vld [vmem:[#allocation17 + $0x48] sm:$0xff]
        %v4792 = vld [vmem:[#allocation17 + $0x50] sm:$0xff]
        %v4793 = vld [vmem:[#allocation17 + $0x58] sm:$0xff]
        %v4794 = vld [vmem:[#allocation17 + $0x60] sm:$0xff]
        %v4795 = vld [vmem:[#allocation17 + $0x68] sm:$0xff]
        %v4796 = vld [vmem:[#allocation17 + $0x70] sm:$0xff]
        %v4797 = vld [vmem:[#allocation17 + $0x78] sm:$0xff]
        %4798 = vmatpush.msra.mxu0 %v4797
        %4799 = vmatpush.msra.mxu0 %v4796
        %4800 = vmatpush.msra.mxu0 %v4795
        %4801 = vmatpush.msra.mxu0 %v4794
        %4802 = vmatpush.msra.mxu0 %v4793
        %4803 = vmatpush.msra.mxu0 %v4792
        %4804 = vmatpush.msra.mxu0 %v4791
        %4805 = vmatpush.msra.mxu0 %v4790
        %4806 = vmatpush.msra.mxu0 %v4789
        %4807 = vmatpush.msra.mxu0 %v4788
        %4808 = vmatpush.msra.mxu0 %v4787
        %4809 = vmatpush.msra.mxu0 %v4786
        %4810 = vmatpush.msra.mxu0 %v4785
        %4811 = vmatpush.msra.mxu0 %v4784
        %4812 = vmatpush.msra.mxu0 %v4783
        %4813 = vmatpush.msra.mxu0 %v4782
        %4814 = vmatmul.f32.gmra.mxu0 %v4766
        %v4815 = vpop.f32.mrf.mxu0
        %v4816 = vadd.f32 0.0, %v4815
        %4817 = vdwg.mxu0
        %s4818 = scalar_lea.vmem [#allocation5], %s4779
        %4819 = vst [vmem:[%s4818] sm:$0xff] %v4816
        %v4820 = vld [vmem:[%s16] sm:$0x1]
        %v4822 = vperm.slane %v4820, 0
        %v4824 = vmul.f32 %v4766, %v4822
        %4825 = vadd.xlane.f32.xlu0 %v4824
        %v4826 = vpop.xlane.xlu0 %4825
        %v4827 = vld [vmem:[#allocation6] sm:$0x1]
        %v4829 = vperm.slane %v4827, 0
        %v4831 = vadd.f32 %v4826, %v4829
        %v4832 = vsub.f32 0.0, %v4831
        %v4833 = vmul.f32 %v4832, 1.442695
        %v4834 = vpow.pop %v4833
        %v4835 = vadd.f32 %v4834, 1.0
        %v4836 = vrcp.pop %v4835
        %v4837 = vmul.f32 %v4835, %v4836
        %v4838 = vsub.f32 1.0, %v4837
        %v4839 = vmul.f32 %v4836, %v4838
        %v4840 = vadd.f32 %v4836, %v4839
        %vm4841 = vweird.f32 %v4835
        %vm4842 = vweird.f32 %v4836
        %vm4843 = vmor %vm4841, %vm4842
        %v4844 = vsel %vm4843, %v4836, %v4840
        %v4845 = vand.u32 2147483647, %v4835
        %vm4846 = vcmp.eq.f32.partialorder %v4845, 8.507059e+37
        %v4847 = vand.u32 %v4835, 2147483648
        %v4848 = vor.u32 1.1754944e-38, %v4847
        %v4849 = vsel %vm4846, %v4848, %v4844
        %v4850 = vmul.f32 1.0, %v4849
        %s4851 = sadd.s32 %s787, 4
        %s4852 = scalar_lea.vmem %s662, 32 [#allocation7]
        %v4853 = vld [vmem:[%s4852] sm:$0xff]
        %v4854 = vld [vmem:[#allocation9] sm:$0xff]
        %v4855 = vld [vmem:[#allocation9 + $0x8] sm:$0xff]
        %v4856 = vld [vmem:[#allocation9 + $0x10] sm:$0xff]
        %v4857 = vld [vmem:[#allocation9 + $0x18] sm:$0xff]
        %v4858 = vld [vmem:[#allocation9 + $0x20] sm:$0xff]
        %v4859 = vld [vmem:[#allocation9 + $0x28] sm:$0xff]
        %v4860 = vld [vmem:[#allocation9 + $0x30] sm:$0xff]
        %v4861 = vld [vmem:[#allocation9 + $0x38] sm:$0xff]
        %v4862 = vld [vmem:[#allocation9 + $0x40] sm:$0xff]
        %v4863 = vld [vmem:[#allocation9 + $0x48] sm:$0xff]
        %v4864 = vld [vmem:[#allocation9 + $0x50] sm:$0xff]
        %v4865 = vld [vmem:[#allocation9 + $0x58] sm:$0xff]
        %v4866 = vld [vmem:[#allocation9 + $0x60] sm:$0xff]
        %v4867 = vld [vmem:[#allocation9 + $0x68] sm:$0xff]
        %v4868 = vld [vmem:[#allocation9 + $0x70] sm:$0xff]
        %v4869 = vld [vmem:[#allocation9 + $0x78] sm:$0xff]
        %v4870 = vld [vmem:[#allocation9 + $0x80] sm:$0xff]
        %v4871 = vld [vmem:[#allocation9 + $0x88] sm:$0xff]
        %v4872 = vld [vmem:[#allocation9 + $0x90] sm:$0xff]
        %v4873 = vld [vmem:[#allocation9 + $0x98] sm:$0xff]
        %v4874 = vld [vmem:[#allocation9 + $0xa0] sm:$0xff]
        %v4875 = vld [vmem:[#allocation9 + $0xa8] sm:$0xff]
        %v4876 = vld [vmem:[#allocation9 + $0xb0] sm:$0xff]
        %v4877 = vld [vmem:[#allocation9 + $0xb8] sm:$0xff]
        %v4878 = vld [vmem:[#allocation9 + $0xc0] sm:$0xff]
        %v4879 = vld [vmem:[#allocation9 + $0xc8] sm:$0xff]
        %v4880 = vld [vmem:[#allocation9 + $0xd0] sm:$0xff]
        %v4881 = vld [vmem:[#allocation9 + $0xd8] sm:$0xff]
        %v4882 = vld [vmem:[#allocation9 + $0xe0] sm:$0xff]
        %v4883 = vld [vmem:[#allocation9 + $0xe8] sm:$0xff]
        %v4884 = vld [vmem:[#allocation9 + $0xf0] sm:$0xff]
        %v4885 = vld [vmem:[#allocation9 + $0xf8] sm:$0xff]
        %v4886 = vld [vmem:[#allocation9 + $0x100] sm:$0xff]
        %v4887 = vld [vmem:[#allocation9 + $0x108] sm:$0xff]
        %v4888 = vld [vmem:[#allocation9 + $0x110] sm:$0xff]
        %v4889 = vld [vmem:[#allocation9 + $0x118] sm:$0xff]
        %v4890 = vld [vmem:[#allocation9 + $0x120] sm:$0xff]
        %v4891 = vld [vmem:[#allocation9 + $0x128] sm:$0xff]
        %v4892 = vld [vmem:[#allocation9 + $0x130] sm:$0xff]
        %v4893 = vld [vmem:[#allocation9 + $0x138] sm:$0xff]
        %v4894 = vld [vmem:[#allocation9 + $0x140] sm:$0xff]
        %v4895 = vld [vmem:[#allocation9 + $0x148] sm:$0xff]
        %v4896 = vld [vmem:[#allocation9 + $0x150] sm:$0xff]
        %v4897 = vld [vmem:[#allocation9 + $0x158] sm:$0xff]
        %v4898 = vld [vmem:[#allocation9 + $0x160] sm:$0xff]
        %v4899 = vld [vmem:[#allocation9 + $0x168] sm:$0xff]
        %v4900 = vld [vmem:[#allocation9 + $0x170] sm:$0xff]
        %v4901 = vld [vmem:[#allocation9 + $0x178] sm:$0xff]
        %v4902 = vld [vmem:[#allocation9 + $0x180] sm:$0xff]
        %v4903 = vld [vmem:[#allocation9 + $0x188] sm:$0xff]
        %v4904 = vld [vmem:[#allocation9 + $0x190] sm:$0xff]
        %v4905 = vld [vmem:[#allocation9 + $0x198] sm:$0xff]
        %v4906 = vld [vmem:[#allocation9 + $0x1a0] sm:$0xff]
        %v4907 = vld [vmem:[#allocation9 + $0x1a8] sm:$0xff]
        %v4908 = vld [vmem:[#allocation9 + $0x1b0] sm:$0xff]
        %v4909 = vld [vmem:[#allocation9 + $0x1b8] sm:$0xff]
        %v4910 = vld [vmem:[#allocation9 + $0x1c0] sm:$0xff]
        %v4911 = vld [vmem:[#allocation9 + $0x1c8] sm:$0xff]
        %v4912 = vld [vmem:[#allocation9 + $0x1d0] sm:$0xff]
        %v4913 = vld [vmem:[#allocation9 + $0x1d8] sm:$0xff]
        %v4914 = vld [vmem:[#allocation9 + $0x1e0] sm:$0xff]
        %v4915 = vld [vmem:[#allocation9 + $0x1e8] sm:$0xff]
        %v4916 = vld [vmem:[#allocation9 + $0x1f0] sm:$0xff]
        %v4917 = vld [vmem:[#allocation9 + $0x1f8] sm:$0xff]
        %v4918 = vld [vmem:[#allocation9 + $0x200] sm:$0xff]
        %v4919 = vld [vmem:[#allocation9 + $0x208] sm:$0xff]
        %v4920 = vld [vmem:[#allocation9 + $0x210] sm:$0xff]
        %v4921 = vld [vmem:[#allocation9 + $0x218] sm:$0xff]
        %v4922 = vld [vmem:[#allocation9 + $0x220] sm:$0xff]
        %v4923 = vld [vmem:[#allocation9 + $0x228] sm:$0xff]
        %v4924 = vld [vmem:[#allocation9 + $0x230] sm:$0xff]
        %v4925 = vld [vmem:[#allocation9 + $0x238] sm:$0xff]
        %v4926 = vld [vmem:[#allocation9 + $0x240] sm:$0xff]
        %v4927 = vld [vmem:[#allocation9 + $0x248] sm:$0xff]
        %v4928 = vld [vmem:[#allocation9 + $0x250] sm:$0xff]
        %v4929 = vld [vmem:[#allocation9 + $0x258] sm:$0xff]
        %v4930 = vld [vmem:[#allocation9 + $0x260] sm:$0xff]
        %v4931 = vld [vmem:[#allocation9 + $0x268] sm:$0xff]
        %v4932 = vld [vmem:[#allocation9 + $0x270] sm:$0xff]
        %v4933 = vld [vmem:[#allocation9 + $0x278] sm:$0xff]
        %v4934 = vld [vmem:[#allocation9 + $0x280] sm:$0xff]
        %v4935 = vld [vmem:[#allocation9 + $0x288] sm:$0xff]
        %v4936 = vld [vmem:[#allocation9 + $0x290] sm:$0xff]
        %v4937 = vld [vmem:[#allocation9 + $0x298] sm:$0xff]
        %v4938 = vld [vmem:[#allocation9 + $0x2a0] sm:$0xff]
        %v4939 = vld [vmem:[#allocation9 + $0x2a8] sm:$0xff]
        %v4940 = vld [vmem:[#allocation9 + $0x2b0] sm:$0xff]
        %v4941 = vld [vmem:[#allocation9 + $0x2b8] sm:$0xff]
        %v4942 = vld [vmem:[#allocation9 + $0x2c0] sm:$0xff]
        %v4943 = vld [vmem:[#allocation9 + $0x2c8] sm:$0xff]
        %v4944 = vld [vmem:[#allocation9 + $0x2d0] sm:$0xff]
        %v4945 = vld [vmem:[#allocation9 + $0x2d8] sm:$0xff]
        %v4946 = vld [vmem:[#allocation9 + $0x2e0] sm:$0xff]
        %v4947 = vld [vmem:[#allocation9 + $0x2e8] sm:$0xff]
        %v4948 = vld [vmem:[#allocation9 + $0x2f0] sm:$0xff]
        %v4949 = vld [vmem:[#allocation9 + $0x2f8] sm:$0xff]
        %v4950 = vld [vmem:[#allocation11] sm:$0xff]
        %v4951 = vld [vmem:[#allocation11 + $0x8] sm:$0xff]
        %v4952 = vld [vmem:[#allocation11 + $0x10] sm:$0xff]
        %v4953 = vld [vmem:[#allocation11 + $0x18] sm:$0xff]
        %v4954 = vld [vmem:[#allocation11 + $0x20] sm:$0xff]
        %v4955 = vld [vmem:[#allocation11 + $0x28] sm:$0xff]
        %v4956 = vld [vmem:[#allocation11 + $0x30] sm:$0xff]
        %v4957 = vld [vmem:[#allocation11 + $0x38] sm:$0xff]
        %v4958 = vld [vmem:[#allocation11 + $0x40] sm:$0xff]
        %v4959 = vld [vmem:[#allocation11 + $0x48] sm:$0xff]
        %v4960 = vld [vmem:[#allocation11 + $0x50] sm:$0xff]
        %v4961 = vld [vmem:[#allocation11 + $0x58] sm:$0xff]
        %v4963 = vsel %vm897, %v4853, 0
        %4965 = vmatpush.msra.mxu0 0.0
        %4966 = vmatpush.msra.mxu0 0.0
        %4967 = vmatpush.msra.mxu0 0.0
        %4968 = vmatpush.msra.mxu0 0.0
        %4969 = vmatpush.msra.mxu0 0.0
        %4970 = vmatpush.msra.mxu0 0.0
        %4971 = vmatpush.msra.mxu0 0.0
        %4972 = vmatpush.msra.mxu0 0.0
        %4973 = vmatpush.msra.mxu0 0.0
        %4974 = vmatpush.msra.mxu0 0.0
        %4975 = vmatpush.msra.mxu0 0.0
        %4976 = vmatpush.msra.mxu0 0.0
        %4977 = vmatpush.msra.mxu0 0.0
        %4978 = vmatpush.msra.mxu0 0.0
        %4979 = vmatpush.msra.mxu0 %v4956
        %4980 = vmatpush.msra.mxu0 %v4950
        %4981 = vmatmul.f32.gmra.mxu0 %v4963
        %v4982 = vpop.f32.mrf.mxu0
        %v4983 = vadd.f32 0.0, %v4982
        %4984 = vdwg.mxu0
        %4985 = vmatpush.msra.mxu0 0.0
        %4986 = vmatpush.msra.mxu0 0.0
        %4987 = vmatpush.msra.mxu0 0.0
        %4988 = vmatpush.msra.mxu0 0.0
        %4989 = vmatpush.msra.mxu0 0.0
        %4990 = vmatpush.msra.mxu0 0.0
        %4991 = vmatpush.msra.mxu0 0.0
        %4992 = vmatpush.msra.mxu0 0.0
        %4993 = vmatpush.msra.mxu0 0.0
        %4994 = vmatpush.msra.mxu0 0.0
        %4995 = vmatpush.msra.mxu0 0.0
        %4996 = vmatpush.msra.mxu0 0.0
        %4997 = vmatpush.msra.mxu0 0.0
        %4998 = vmatpush.msra.mxu0 0.0
        %4999 = vmatpush.msra.mxu0 %v4957
        %5000 = vmatpush.msra.mxu0 %v4951
        %5001 = vmatmul.f32.gmra.mxu0 %v4963
        %v5002 = vpop.f32.mrf.mxu0
        %v5003 = vadd.f32 0.0, %v5002
        %5004 = vdwg.mxu0
        %5005 = vmatpush.msra.mxu0 0.0
        %5006 = vmatpush.msra.mxu0 0.0
        %5007 = vmatpush.msra.mxu0 0.0
        %5008 = vmatpush.msra.mxu0 0.0
        %5009 = vmatpush.msra.mxu0 0.0
        %5010 = vmatpush.msra.mxu0 0.0
        %5011 = vmatpush.msra.mxu0 0.0
        %5012 = vmatpush.msra.mxu0 0.0
        %5013 = vmatpush.msra.mxu0 0.0
        %5014 = vmatpush.msra.mxu0 0.0
        %5015 = vmatpush.msra.mxu0 0.0
        %5016 = vmatpush.msra.mxu0 0.0
        %5017 = vmatpush.msra.mxu0 0.0
        %5018 = vmatpush.msra.mxu0 0.0
        %5019 = vmatpush.msra.mxu0 %v4958
        %5020 = vmatpush.msra.mxu0 %v4952
        %5021 = vmatmul.f32.gmra.mxu0 %v4963
        %v5022 = vpop.f32.mrf.mxu0
        %v5023 = vadd.f32 0.0, %v5022
        %5024 = vdwg.mxu0
        %5025 = vmatpush.msra.mxu0 0.0
        %5026 = vmatpush.msra.mxu0 0.0
        %5027 = vmatpush.msra.mxu0 0.0
        %5028 = vmatpush.msra.mxu0 0.0
        %5029 = vmatpush.msra.mxu0 0.0
        %5030 = vmatpush.msra.mxu0 0.0
        %5031 = vmatpush.msra.mxu0 0.0
        %5032 = vmatpush.msra.mxu0 0.0
        %5033 = vmatpush.msra.mxu0 0.0
        %5034 = vmatpush.msra.mxu0 0.0
        %5035 = vmatpush.msra.mxu0 0.0
        %5036 = vmatpush.msra.mxu0 0.0
        %5037 = vmatpush.msra.mxu0 0.0
        %5038 = vmatpush.msra.mxu0 0.0
        %5039 = vmatpush.msra.mxu0 %v4959
        %5040 = vmatpush.msra.mxu0 %v4953
        %5041 = vmatmul.f32.gmra.mxu0 %v4963
        %v5042 = vpop.f32.mrf.mxu0
        %v5043 = vadd.f32 0.0, %v5042
        %5044 = vdwg.mxu0
        %5045 = vmatpush.msra.mxu0 0.0
        %5046 = vmatpush.msra.mxu0 0.0
        %5047 = vmatpush.msra.mxu0 0.0
        %5048 = vmatpush.msra.mxu0 0.0
        %5049 = vmatpush.msra.mxu0 0.0
        %5050 = vmatpush.msra.mxu0 0.0
        %5051 = vmatpush.msra.mxu0 0.0
        %5052 = vmatpush.msra.mxu0 0.0
        %5053 = vmatpush.msra.mxu0 0.0
        %5054 = vmatpush.msra.mxu0 0.0
        %5055 = vmatpush.msra.mxu0 0.0
        %5056 = vmatpush.msra.mxu0 0.0
        %5057 = vmatpush.msra.mxu0 0.0
        %5058 = vmatpush.msra.mxu0 0.0
        %5059 = vmatpush.msra.mxu0 %v4960
        %5060 = vmatpush.msra.mxu0 %v4954
        %5061 = vmatmul.f32.gmra.mxu0 %v4963
        %v5062 = vpop.f32.mrf.mxu0
        %v5063 = vadd.f32 0.0, %v5062
        %5064 = vdwg.mxu0
        %5065 = vmatpush.msra.mxu0 0.0
        %5066 = vmatpush.msra.mxu0 0.0
        %5067 = vmatpush.msra.mxu0 0.0
        %5068 = vmatpush.msra.mxu0 0.0
        %5069 = vmatpush.msra.mxu0 0.0
        %5070 = vmatpush.msra.mxu0 0.0
        %5071 = vmatpush.msra.mxu0 0.0
        %5072 = vmatpush.msra.mxu0 0.0
        %5073 = vmatpush.msra.mxu0 0.0
        %5074 = vmatpush.msra.mxu0 0.0
        %5075 = vmatpush.msra.mxu0 0.0
        %5076 = vmatpush.msra.mxu0 0.0
        %5077 = vmatpush.msra.mxu0 0.0
        %5078 = vmatpush.msra.mxu0 0.0
        %5079 = vmatpush.msra.mxu0 %v4961
        %5080 = vmatpush.msra.mxu0 %v4955
        %5081 = vmatmul.f32.gmra.mxu0 %v4963
        %v5082 = vpop.f32.mrf.mxu0
        %v5083 = vadd.f32 0.0, %v5082
        %5084 = vdwg.mxu0
        %5085 = vmatpush.msra.mxu0 %v4944
        %5086 = vmatpush.msra.mxu0 %v4938
        %5087 = vmatpush.msra.mxu0 %v4932
        %5088 = vmatpush.msra.mxu0 %v4926
        %5089 = vmatpush.msra.mxu0 %v4920
        %5090 = vmatpush.msra.mxu0 %v4914
        %5091 = vmatpush.msra.mxu0 %v4908
        %5092 = vmatpush.msra.mxu0 %v4902
        %5093 = vmatpush.msra.mxu0 %v4896
        %5094 = vmatpush.msra.mxu0 %v4890
        %5095 = vmatpush.msra.mxu0 %v4884
        %5096 = vmatpush.msra.mxu0 %v4878
        %5097 = vmatpush.msra.mxu0 %v4872
        %5098 = vmatpush.msra.mxu0 %v4866
        %5099 = vmatpush.msra.mxu0 %v4860
        %5100 = vmatpush.msra.mxu0 %v4854
        %5101 = vmatmul.f32.gmra.mxu0 %v4766
        %v5102 = vpop.f32.mrf.mxu0
        %v5103 = vadd.f32 %v4983, %v5102
        %5104 = vdwg.mxu0
        %5105 = vmatpush.msra.mxu0 %v4945
        %5106 = vmatpush.msra.mxu0 %v4939
        %5107 = vmatpush.msra.mxu0 %v4933
        %5108 = vmatpush.msra.mxu0 %v4927
        %5109 = vmatpush.msra.mxu0 %v4921
        %5110 = vmatpush.msra.mxu0 %v4915
        %5111 = vmatpush.msra.mxu0 %v4909
        %5112 = vmatpush.msra.mxu0 %v4903
        %5113 = vmatpush.msra.mxu0 %v4897
        %5114 = vmatpush.msra.mxu0 %v4891
        %5115 = vmatpush.msra.mxu0 %v4885
        %5116 = vmatpush.msra.mxu0 %v4879
        %5117 = vmatpush.msra.mxu0 %v4873
        %5118 = vmatpush.msra.mxu0 %v4867
        %5119 = vmatpush.msra.mxu0 %v4861
        %5120 = vmatpush.msra.mxu0 %v4855
        %5121 = vmatmul.f32.gmra.mxu0 %v4766
        %v5122 = vpop.f32.mrf.mxu0
        %v5123 = vadd.f32 %v5003, %v5122
        %5124 = vdwg.mxu0
        %5125 = vmatpush.msra.mxu0 %v4946
        %5126 = vmatpush.msra.mxu0 %v4940
        %5127 = vmatpush.msra.mxu0 %v4934
        %5128 = vmatpush.msra.mxu0 %v4928
        %5129 = vmatpush.msra.mxu0 %v4922
        %5130 = vmatpush.msra.mxu0 %v4916
        %5131 = vmatpush.msra.mxu0 %v4910
        %5132 = vmatpush.msra.mxu0 %v4904
        %5133 = vmatpush.msra.mxu0 %v4898
        %5134 = vmatpush.msra.mxu0 %v4892
        %5135 = vmatpush.msra.mxu0 %v4886
        %5136 = vmatpush.msra.mxu0 %v4880
        %5137 = vmatpush.msra.mxu0 %v4874
        %5138 = vmatpush.msra.mxu0 %v4868
        %5139 = vmatpush.msra.mxu0 %v4862
        %5140 = vmatpush.msra.mxu0 %v4856
        %5141 = vmatmul.f32.gmra.mxu0 %v4766
        %v5142 = vpop.f32.mrf.mxu0
        %v5143 = vadd.f32 %v5023, %v5142
        %5144 = vdwg.mxu0
        %5145 = vmatpush.msra.mxu0 %v4947
        %5146 = vmatpush.msra.mxu0 %v4941
        %5147 = vmatpush.msra.mxu0 %v4935
        %5148 = vmatpush.msra.mxu0 %v4929
        %5149 = vmatpush.msra.mxu0 %v4923
        %5150 = vmatpush.msra.mxu0 %v4917
        %5151 = vmatpush.msra.mxu0 %v4911
        %5152 = vmatpush.msra.mxu0 %v4905
        %5153 = vmatpush.msra.mxu0 %v4899
        %5154 = vmatpush.msra.mxu0 %v4893
        %5155 = vmatpush.msra.mxu0 %v4887
        %5156 = vmatpush.msra.mxu0 %v4881
        %5157 = vmatpush.msra.mxu0 %v4875
        %5158 = vmatpush.msra.mxu0 %v4869
        %5159 = vmatpush.msra.mxu0 %v4863
        %5160 = vmatpush.msra.mxu0 %v4857
        %5161 = vmatmul.f32.gmra.mxu0 %v4766
        %v5162 = vpop.f32.mrf.mxu0
        %v5163 = vadd.f32 %v5043, %v5162
        %5164 = vdwg.mxu0
        %5165 = vmatpush.msra.mxu0 %v4948
        %5166 = vmatpush.msra.mxu0 %v4942
        %5167 = vmatpush.msra.mxu0 %v4936
        %5168 = vmatpush.msra.mxu0 %v4930
        %5169 = vmatpush.msra.mxu0 %v4924
        %5170 = vmatpush.msra.mxu0 %v4918
        %5171 = vmatpush.msra.mxu0 %v4912
        %5172 = vmatpush.msra.mxu0 %v4906
        %5173 = vmatpush.msra.mxu0 %v4900
        %5174 = vmatpush.msra.mxu0 %v4894
        %5175 = vmatpush.msra.mxu0 %v4888
        %5176 = vmatpush.msra.mxu0 %v4882
        %5177 = vmatpush.msra.mxu0 %v4876
        %5178 = vmatpush.msra.mxu0 %v4870
        %5179 = vmatpush.msra.mxu0 %v4864
        %5180 = vmatpush.msra.mxu0 %v4858
        %5181 = vmatmul.f32.gmra.mxu0 %v4766
        %v5182 = vpop.f32.mrf.mxu0
        %v5183 = vadd.f32 %v5063, %v5182
        %5184 = vdwg.mxu0
        %5185 = vmatpush.msra.mxu0 %v4949
        %5186 = vmatpush.msra.mxu0 %v4943
        %5187 = vmatpush.msra.mxu0 %v4937
        %5188 = vmatpush.msra.mxu0 %v4931
        %5189 = vmatpush.msra.mxu0 %v4925
        %5190 = vmatpush.msra.mxu0 %v4919
        %5191 = vmatpush.msra.mxu0 %v4913
        %5192 = vmatpush.msra.mxu0 %v4907
        %5193 = vmatpush.msra.mxu0 %v4901
        %5194 = vmatpush.msra.mxu0 %v4895
        %5195 = vmatpush.msra.mxu0 %v4889
        %5196 = vmatpush.msra.mxu0 %v4883
        %5197 = vmatpush.msra.mxu0 %v4877
        %5198 = vmatpush.msra.mxu0 %v4871
        %5199 = vmatpush.msra.mxu0 %v4865
        %5200 = vmatpush.msra.mxu0 %v4859
        %5201 = vmatmul.f32.gmra.mxu0 %v4766
        %v5202 = vpop.f32.mrf.mxu0
        %v5203 = vadd.f32 %v5083, %v5202
        %5204 = vdwg.mxu0
        %v5205 = vld [vmem:[%s3] sm:$0x1]
        %5206 = vset.pattern.permute.xlu0 32
        %5207 = vperm.xlu0 %5206, %v4853
        %v5208 = vpop.permute.xlu0 %5207
        %v5211 = vperm.slane %v5205, 0
        %v5213 = vmul.f32 %v5208, %v5211
        %v5214 = vadd.f32 %v5103, %v5213
        %v5215 = vld [vmem:[%s4] sm:$0x1]
        %v5217 = vperm.slane %v5215, 0
        %v5219 = vadd.f32 %v5214, %v5217
        %v5220 = vtanh.pop %v5219
        %v5221 = vld [vmem:[#allocation12] sm:$0xff]
        %v5222 = vld [vmem:[#allocation12 + $0x8] sm:$0xff]
        %v5223 = vld [vmem:[#allocation12 + $0x10] sm:$0xff]
        %v5224 = vld [vmem:[#allocation12 + $0x18] sm:$0xff]
        %v5225 = vld [vmem:[#allocation12 + $0x20] sm:$0xff]
        %v5226 = vld [vmem:[#allocation12 + $0x28] sm:$0xff]
        %v5227 = vld [vmem:[#allocation12 + $0x30] sm:$0xff]
        %v5228 = vld [vmem:[#allocation12 + $0x38] sm:$0xff]
        %v5229 = vld [vmem:[#allocation12 + $0x40] sm:$0xff]
        %v5230 = vld [vmem:[#allocation12 + $0x48] sm:$0xff]
        %v5231 = vld [vmem:[#allocation12 + $0x50] sm:$0xff]
        %v5232 = vld [vmem:[#allocation12 + $0x58] sm:$0xff]
        %v5233 = vld [vmem:[#allocation12 + $0x60] sm:$0xff]
        %v5234 = vld [vmem:[#allocation12 + $0x68] sm:$0xff]
        %v5235 = vld [vmem:[#allocation12 + $0x70] sm:$0xff]
        %v5236 = vld [vmem:[#allocation12 + $0x78] sm:$0xff]
        %v5237 = vld [vmem:[#allocation12 + $0x80] sm:$0xff]
        %v5238 = vld [vmem:[#allocation12 + $0x88] sm:$0xff]
        %v5239 = vld [vmem:[#allocation12 + $0x90] sm:$0xff]
        %v5240 = vld [vmem:[#allocation12 + $0x98] sm:$0xff]
        %v5241 = vld [vmem:[#allocation12 + $0xa0] sm:$0xff]
        %v5242 = vld [vmem:[#allocation12 + $0xa8] sm:$0xff]
        %v5243 = vld [vmem:[#allocation12 + $0xb0] sm:$0xff]
        %v5244 = vld [vmem:[#allocation12 + $0xb8] sm:$0xff]
        %v5245 = vld [vmem:[#allocation12 + $0xc0] sm:$0xff]
        %v5246 = vld [vmem:[#allocation12 + $0xc8] sm:$0xff]
        %v5247 = vld [vmem:[#allocation12 + $0xd0] sm:$0xff]
        %v5248 = vld [vmem:[#allocation12 + $0xd8] sm:$0xff]
        %v5249 = vld [vmem:[#allocation12 + $0xe0] sm:$0xff]
        %v5250 = vld [vmem:[#allocation12 + $0xe8] sm:$0xff]
        %v5251 = vld [vmem:[#allocation12 + $0xf0] sm:$0xff]
        %v5252 = vld [vmem:[#allocation12 + $0xf8] sm:$0xff]
        %v5253 = vld [vmem:[#allocation12 + $0x100] sm:$0xff]
        %v5254 = vld [vmem:[#allocation12 + $0x108] sm:$0xff]
        %v5255 = vld [vmem:[#allocation12 + $0x110] sm:$0xff]
        %v5256 = vld [vmem:[#allocation12 + $0x118] sm:$0xff]
        %v5257 = vld [vmem:[#allocation12 + $0x120] sm:$0xff]
        %v5258 = vld [vmem:[#allocation12 + $0x128] sm:$0xff]
        %v5259 = vld [vmem:[#allocation12 + $0x130] sm:$0xff]
        %v5260 = vld [vmem:[#allocation12 + $0x138] sm:$0xff]
        %v5261 = vld [vmem:[#allocation12 + $0x140] sm:$0xff]
        %v5262 = vld [vmem:[#allocation12 + $0x148] sm:$0xff]
        %v5263 = vld [vmem:[#allocation12 + $0x150] sm:$0xff]
        %v5264 = vld [vmem:[#allocation12 + $0x158] sm:$0xff]
        %v5265 = vld [vmem:[#allocation12 + $0x160] sm:$0xff]
        %v5266 = vld [vmem:[#allocation12 + $0x168] sm:$0xff]
        %v5267 = vld [vmem:[#allocation12 + $0x170] sm:$0xff]
        %v5268 = vld [vmem:[#allocation12 + $0x178] sm:$0xff]
        %v5269 = vld [vmem:[#allocation12 + $0x180] sm:$0xff]
        %v5270 = vld [vmem:[#allocation12 + $0x188] sm:$0xff]
        %v5271 = vld [vmem:[#allocation12 + $0x190] sm:$0xff]
        %v5272 = vld [vmem:[#allocation12 + $0x198] sm:$0xff]
        %v5273 = vld [vmem:[#allocation12 + $0x1a0] sm:$0xff]
        %v5274 = vld [vmem:[#allocation12 + $0x1a8] sm:$0xff]
        %v5275 = vld [vmem:[#allocation12 + $0x1b0] sm:$0xff]
        %v5276 = vld [vmem:[#allocation12 + $0x1b8] sm:$0xff]
        %v5277 = vld [vmem:[#allocation12 + $0x1c0] sm:$0xff]
        %v5278 = vld [vmem:[#allocation12 + $0x1c8] sm:$0xff]
        %v5279 = vld [vmem:[#allocation12 + $0x1d0] sm:$0xff]
        %v5280 = vld [vmem:[#allocation12 + $0x1d8] sm:$0xff]
        %v5281 = vld [vmem:[#allocation12 + $0x1e0] sm:$0xff]
        %v5282 = vld [vmem:[#allocation12 + $0x1e8] sm:$0xff]
        %v5283 = vld [vmem:[#allocation12 + $0x1f0] sm:$0xff]
        %v5284 = vld [vmem:[#allocation12 + $0x1f8] sm:$0xff]
        %v5285 = vld [vmem:[#allocation12 + $0x200] sm:$0xff]
        %v5286 = vld [vmem:[#allocation12 + $0x208] sm:$0xff]
        %v5287 = vld [vmem:[#allocation12 + $0x210] sm:$0xff]
        %v5288 = vld [vmem:[#allocation12 + $0x218] sm:$0xff]
        %v5289 = vld [vmem:[#allocation12 + $0x220] sm:$0xff]
        %v5290 = vld [vmem:[#allocation12 + $0x228] sm:$0xff]
        %v5291 = vld [vmem:[#allocation12 + $0x230] sm:$0xff]
        %v5292 = vld [vmem:[#allocation12 + $0x238] sm:$0xff]
        %v5293 = vld [vmem:[#allocation12 + $0x240] sm:$0xff]
        %v5294 = vld [vmem:[#allocation12 + $0x248] sm:$0xff]
        %v5295 = vld [vmem:[#allocation12 + $0x250] sm:$0xff]
        %v5296 = vld [vmem:[#allocation12 + $0x258] sm:$0xff]
        %v5297 = vld [vmem:[#allocation12 + $0x260] sm:$0xff]
        %v5298 = vld [vmem:[#allocation12 + $0x268] sm:$0xff]
        %v5299 = vld [vmem:[#allocation12 + $0x270] sm:$0xff]
        %v5300 = vld [vmem:[#allocation12 + $0x278] sm:$0xff]
        %5301 = vmatpush.msra.mxu0 %v5296
        %5302 = vmatpush.msra.mxu0 %v5291
        %5303 = vmatpush.msra.mxu0 %v5286
        %5304 = vmatpush.msra.mxu0 %v5281
        %5305 = vmatpush.msra.mxu0 %v5276
        %5306 = vmatpush.msra.mxu0 %v5271
        %5307 = vmatpush.msra.mxu0 %v5266
        %5308 = vmatpush.msra.mxu0 %v5261
        %5309 = vmatpush.msra.mxu0 %v5256
        %5310 = vmatpush.msra.mxu0 %v5251
        %5311 = vmatpush.msra.mxu0 %v5246
        %5312 = vmatpush.msra.mxu0 %v5241
        %5313 = vmatpush.msra.mxu0 %v5236
        %5314 = vmatpush.msra.mxu0 %v5231
        %5315 = vmatpush.msra.mxu0 %v5226
        %5316 = vmatpush.msra.mxu0 %v5221
        %5317 = vmatmul.f32.gmra.mxu0 %v5220
        %v5318 = vpop.f32.mrf.mxu0
        %v5319 = vadd.f32 0.0, %v5318
        %5320 = vdwg.mxu0
        %5321 = vmatpush.msra.mxu0 %v5297
        %5322 = vmatpush.msra.mxu0 %v5292
        %5323 = vmatpush.msra.mxu0 %v5287
        %5324 = vmatpush.msra.mxu0 %v5282
        %5325 = vmatpush.msra.mxu0 %v5277
        %5326 = vmatpush.msra.mxu0 %v5272
        %5327 = vmatpush.msra.mxu0 %v5267
        %5328 = vmatpush.msra.mxu0 %v5262
        %5329 = vmatpush.msra.mxu0 %v5257
        %5330 = vmatpush.msra.mxu0 %v5252
        %5331 = vmatpush.msra.mxu0 %v5247
        %5332 = vmatpush.msra.mxu0 %v5242
        %5333 = vmatpush.msra.mxu0 %v5237
        %5334 = vmatpush.msra.mxu0 %v5232
        %5335 = vmatpush.msra.mxu0 %v5227
        %5336 = vmatpush.msra.mxu0 %v5222
        %5337 = vmatmul.f32.gmra.mxu0 %v5220
        %v5338 = vpop.f32.mrf.mxu0
        %v5339 = vadd.f32 0.0, %v5338
        %5340 = vdwg.mxu0
        %5341 = vmatpush.msra.mxu0 %v5298
        %5342 = vmatpush.msra.mxu0 %v5293
        %5343 = vmatpush.msra.mxu0 %v5288
        %5344 = vmatpush.msra.mxu0 %v5283
        %5345 = vmatpush.msra.mxu0 %v5278
        %5346 = vmatpush.msra.mxu0 %v5273
        %5347 = vmatpush.msra.mxu0 %v5268
        %5348 = vmatpush.msra.mxu0 %v5263
        %5349 = vmatpush.msra.mxu0 %v5258
        %5350 = vmatpush.msra.mxu0 %v5253
        %5351 = vmatpush.msra.mxu0 %v5248
        %5352 = vmatpush.msra.mxu0 %v5243
        %5353 = vmatpush.msra.mxu0 %v5238
        %5354 = vmatpush.msra.mxu0 %v5233
        %5355 = vmatpush.msra.mxu0 %v5228
        %5356 = vmatpush.msra.mxu0 %v5223
        %5357 = vmatmul.f32.gmra.mxu0 %v5220
        %v5358 = vpop.f32.mrf.mxu0
        %v5359 = vadd.f32 0.0, %v5358
        %5360 = vdwg.mxu0
        %5361 = vmatpush.msra.mxu0 %v5299
        %5362 = vmatpush.msra.mxu0 %v5294
        %5363 = vmatpush.msra.mxu0 %v5289
        %5364 = vmatpush.msra.mxu0 %v5284
        %5365 = vmatpush.msra.mxu0 %v5279
        %5366 = vmatpush.msra.mxu0 %v5274
        %5367 = vmatpush.msra.mxu0 %v5269
        %5368 = vmatpush.msra.mxu0 %v5264
        %5369 = vmatpush.msra.mxu0 %v5259
        %5370 = vmatpush.msra.mxu0 %v5254
        %5371 = vmatpush.msra.mxu0 %v5249
        %5372 = vmatpush.msra.mxu0 %v5244
        %5373 = vmatpush.msra.mxu0 %v5239
        %5374 = vmatpush.msra.mxu0 %v5234
        %5375 = vmatpush.msra.mxu0 %v5229
        %5376 = vmatpush.msra.mxu0 %v5224
        %5377 = vmatmul.f32.gmra.mxu0 %v5220
        %v5378 = vpop.f32.mrf.mxu0
        %v5379 = vadd.f32 0.0, %v5378
        %5380 = vdwg.mxu0
        %5381 = vmatpush.msra.mxu0 %v5300
        %5382 = vmatpush.msra.mxu0 %v5295
        %5383 = vmatpush.msra.mxu0 %v5290
        %5384 = vmatpush.msra.mxu0 %v5285
        %5385 = vmatpush.msra.mxu0 %v5280
        %5386 = vmatpush.msra.mxu0 %v5275
        %5387 = vmatpush.msra.mxu0 %v5270
        %5388 = vmatpush.msra.mxu0 %v5265
        %5389 = vmatpush.msra.mxu0 %v5260
        %5390 = vmatpush.msra.mxu0 %v5255
        %5391 = vmatpush.msra.mxu0 %v5250
        %5392 = vmatpush.msra.mxu0 %v5245
        %5393 = vmatpush.msra.mxu0 %v5240
        %5394 = vmatpush.msra.mxu0 %v5235
        %5395 = vmatpush.msra.mxu0 %v5230
        %5396 = vmatpush.msra.mxu0 %v5225
        %5397 = vmatmul.f32.gmra.mxu0 %v5220
        %v5398 = vpop.f32.mrf.mxu0
        %v5399 = vadd.f32 0.0, %v5398
        %5400 = vdwg.mxu0
        %v5401 = vadd.f32 %v5123, %v5319
        %v5402 = vadd.f32 %v5143, %v5339
        %v5403 = vadd.f32 %v5163, %v5359
        %v5404 = vadd.f32 %v5183, %v5379
        %v5405 = vadd.f32 %v5203, %v5399
        %v5406 = vld [vmem:[%s6] sm:$0x1f]
        %v5408 = vperm.slane %v5406, 0
        %v5409 = vperm.slane %v5406, 1
        %v5410 = vperm.slane %v5406, 2
        %v5411 = vperm.slane %v5406, 3
        %v5412 = vperm.slane %v5406, 4
        %v5418 = vadd.f32 %v5401, %v5408
        %v5419 = vadd.f32 %v5402, %v5409
        %v5420 = vadd.f32 %v5403, %v5410
        %v5421 = vadd.f32 %v5404, %v5411
        %v5422 = vadd.f32 %v5405, %v5412
        %v5423 = vsub.f32 0.0, %v5418
        %v5424 = vmul.f32 %v5423, 1.442695
        %v5425 = vpow.pop %v5424
        %v5426 = vadd.f32 %v5425, 1.0
        %v5427 = vrcp.pop %v5426
        %v5428 = vmul.f32 %v5426, %v5427
        %v5429 = vsub.f32 1.0, %v5428
        %v5430 = vmul.f32 %v5427, %v5429
        %v5431 = vadd.f32 %v5427, %v5430
        %vm5432 = vweird.f32 %v5426
        %vm5433 = vweird.f32 %v5427
        %vm5434 = vmor %vm5432, %vm5433
        %v5435 = vsel %vm5434, %v5427, %v5431
        %v5436 = vand.u32 2147483647, %v5426
        %vm5437 = vcmp.eq.f32.partialorder %v5436, 8.507059e+37
        %v5438 = vand.u32 %v5426, 2147483648
        %v5439 = vor.u32 1.1754944e-38, %v5438
        %v5440 = vsel %vm5437, %v5439, %v5435
        %v5441 = vmul.f32 1.0, %v5440
        %v5442 = vsub.f32 0.0, %v5419
        %v5443 = vmul.f32 %v5442, 1.442695
        %v5444 = vpow.pop %v5443
        %v5445 = vadd.f32 %v5444, 1.0
        %v5446 = vrcp.pop %v5445
        %v5447 = vmul.f32 %v5445, %v5446
        %v5448 = vsub.f32 1.0, %v5447
        %v5449 = vmul.f32 %v5446, %v5448
        %v5450 = vadd.f32 %v5446, %v5449
        %vm5451 = vweird.f32 %v5445
        %vm5452 = vweird.f32 %v5446
        %vm5453 = vmor %vm5451, %vm5452
        %v5454 = vsel %vm5453, %v5446, %v5450
        %v5455 = vand.u32 2147483647, %v5445
        %vm5456 = vcmp.eq.f32.partialorder %v5455, 8.507059e+37
        %v5457 = vand.u32 %v5445, 2147483648
        %v5458 = vor.u32 1.1754944e-38, %v5457
        %v5459 = vsel %vm5456, %v5458, %v5454
        %v5460 = vmul.f32 1.0, %v5459
        %v5461 = vsub.f32 0.0, %v5420
        %v5462 = vmul.f32 %v5461, 1.442695
        %v5463 = vpow.pop %v5462
        %v5464 = vadd.f32 %v5463, 1.0
        %v5465 = vrcp.pop %v5464
        %v5466 = vmul.f32 %v5464, %v5465
        %v5467 = vsub.f32 1.0, %v5466
        %v5468 = vmul.f32 %v5465, %v5467
        %v5469 = vadd.f32 %v5465, %v5468
        %vm5470 = vweird.f32 %v5464
        %vm5471 = vweird.f32 %v5465
        %vm5472 = vmor %vm5470, %vm5471
        %v5473 = vsel %vm5472, %v5465, %v5469
        %v5474 = vand.u32 2147483647, %v5464
        %vm5475 = vcmp.eq.f32.partialorder %v5474, 8.507059e+37
        %v5476 = vand.u32 %v5464, 2147483648
        %v5477 = vor.u32 1.1754944e-38, %v5476
        %v5478 = vsel %vm5475, %v5477, %v5473
        %v5479 = vmul.f32 1.0, %v5478
        %v5480 = vtanh.pop %v5421
        %v5481 = vsub.f32 0.0, %v5422
        %v5482 = vmul.f32 %v5481, 1.442695
        %v5483 = vpow.pop %v5482
        %v5484 = vadd.f32 %v5483, 1.0
        %v5485 = vrcp.pop %v5484
        %v5486 = vmul.f32 %v5484, %v5485
        %v5487 = vsub.f32 1.0, %v5486
        %v5488 = vmul.f32 %v5485, %v5487
        %v5489 = vadd.f32 %v5485, %v5488
        %vm5490 = vweird.f32 %v5484
        %vm5491 = vweird.f32 %v5485
        %vm5492 = vmor %vm5490, %vm5491
        %v5493 = vsel %vm5492, %v5485, %v5489
        %v5494 = vand.u32 2147483647, %v5484
        %vm5495 = vcmp.eq.f32.partialorder %v5494, 8.507059e+37
        %v5496 = vand.u32 %v5484, 2147483648
        %v5497 = vor.u32 1.1754944e-38, %v5496
        %v5498 = vsel %vm5495, %v5497, %v5493
        %v5499 = vmul.f32 1.0, %v5498
        %v5500 = vmul.f32 %v5441, %v4488
        %v5501 = vmul.f32 %v5460, %v5480
        %v5502 = vadd.f32 %v5500, %v5501
        %v5503 = vmul.f32 %v5479, %v5220
        %v5504 = vadd.f32 %v5502, %v5503
        %v5505 = vtanh.pop %v5504
        %v5506 = vmul.f32 %v5499, %v5505
        %v5507 = vld [vmem:[#allocation14] sm:$0xff]
        %v5508 = vld [vmem:[#allocation14 + $0x8] sm:$0xff]
        %v5509 = vld [vmem:[#allocation14 + $0x10] sm:$0xff]
        %v5510 = vld [vmem:[#allocation14 + $0x18] sm:$0xff]
        %v5511 = vld [vmem:[#allocation14 + $0x20] sm:$0xff]
        %v5512 = vld [vmem:[#allocation14 + $0x28] sm:$0xff]
        %v5513 = vld [vmem:[#allocation14 + $0x30] sm:$0xff]
        %v5514 = vld [vmem:[#allocation14 + $0x38] sm:$0xff]
        %v5515 = vld [vmem:[#allocation14 + $0x40] sm:$0xff]
        %v5516 = vld [vmem:[#allocation14 + $0x48] sm:$0xff]
        %v5517 = vld [vmem:[#allocation14 + $0x50] sm:$0xff]
        %v5518 = vld [vmem:[#allocation14 + $0x58] sm:$0xff]
        %v5519 = vld [vmem:[#allocation14 + $0x60] sm:$0xff]
        %v5520 = vld [vmem:[#allocation14 + $0x68] sm:$0xff]
        %v5521 = vld [vmem:[#allocation14 + $0x70] sm:$0xff]
        %v5522 = vld [vmem:[#allocation14 + $0x78] sm:$0xff]
        %v5523 = vld [vmem:[#allocation15] sm:$0xff]
        %v5524 = vld [vmem:[#allocation15 + $0x8] sm:$0xff]
        %v5525 = vld [vmem:[#allocation15 + $0x10] sm:$0xff]
        %v5526 = vld [vmem:[#allocation15 + $0x18] sm:$0xff]
        %v5527 = vld [vmem:[#allocation15 + $0x20] sm:$0xff]
        %v5528 = vld [vmem:[#allocation15 + $0x28] sm:$0xff]
        %v5529 = vld [vmem:[#allocation15 + $0x30] sm:$0xff]
        %v5530 = vld [vmem:[#allocation15 + $0x38] sm:$0xff]
        %v5531 = vld [vmem:[#allocation15 + $0x40] sm:$0xff]
        %v5532 = vld [vmem:[#allocation15 + $0x48] sm:$0xff]
        %v5533 = vld [vmem:[#allocation15 + $0x50] sm:$0xff]
        %v5534 = vld [vmem:[#allocation15 + $0x58] sm:$0xff]
        %v5535 = vld [vmem:[#allocation15 + $0x60] sm:$0xff]
        %v5536 = vld [vmem:[#allocation15 + $0x68] sm:$0xff]
        %v5537 = vld [vmem:[#allocation15 + $0x70] sm:$0xff]
        %v5538 = vld [vmem:[#allocation15 + $0x78] sm:$0xff]
        %5539 = vmatpush.msra.mxu0 %v5538
        %5540 = vmatpush.msra.mxu0 %v5537
        %5541 = vmatpush.msra.mxu0 %v5536
        %5542 = vmatpush.msra.mxu0 %v5535
        %5543 = vmatpush.msra.mxu0 %v5534
        %5544 = vmatpush.msra.mxu0 %v5533
        %5545 = vmatpush.msra.mxu0 %v5532
        %5546 = vmatpush.msra.mxu0 %v5531
        %5547 = vmatpush.msra.mxu0 %v5530
        %5548 = vmatpush.msra.mxu0 %v5529
        %5549 = vmatpush.msra.mxu0 %v5528
        %5550 = vmatpush.msra.mxu0 %v5527
        %5551 = vmatpush.msra.mxu0 %v5526
        %5552 = vmatpush.msra.mxu0 %v5525
        %5553 = vmatpush.msra.mxu0 %v5524
        %5554 = vmatpush.msra.mxu0 %v5523
        %5555 = vmatmul.f32.gmra.mxu0 %v5504
        %v5556 = vpop.f32.mrf.mxu0
        %v5557 = vadd.f32 0.0, %v5556
        %5558 = vdwg.mxu0
        %5559 = vmatpush.msra.mxu0 %v5522
        %5560 = vmatpush.msra.mxu0 %v5521
        %5561 = vmatpush.msra.mxu0 %v5520
        %5562 = vmatpush.msra.mxu0 %v5519
        %5563 = vmatpush.msra.mxu0 %v5518
        %5564 = vmatpush.msra.mxu0 %v5517
        %5565 = vmatpush.msra.mxu0 %v5516
        %5566 = vmatpush.msra.mxu0 %v5515
        %5567 = vmatpush.msra.mxu0 %v5514
        %5568 = vmatpush.msra.mxu0 %v5513
        %5569 = vmatpush.msra.mxu0 %v5512
        %5570 = vmatpush.msra.mxu0 %v5511
        %5571 = vmatpush.msra.mxu0 %v5510
        %5572 = vmatpush.msra.mxu0 %v5509
        %5573 = vmatpush.msra.mxu0 %v5508
        %5574 = vmatpush.msra.mxu0 %v5507
        %5575 = vmatmul.f32.gmra.mxu0 %v5506
        %v5576 = vpop.f32.mrf.mxu0
        %v5577 = vadd.f32 %v5557, %v5576
        %5578 = vdwg.mxu0
        %v5579 = vld [vmem:[#allocation5] sm:$0xff]
        %v5580 = vld [vmem:[#allocation5 + $0x8] sm:$0xff]
        %v5581 = vld [vmem:[#allocation5 + $0x10] sm:$0xff]
        %v5582 = vld [vmem:[#allocation5 + $0x18] sm:$0xff]
        %v5583 = vadd.f32 %v5577, %v5579
        %v5584 = vadd.f32 %v5577, %v5580
        %v5585 = vadd.f32 %v5577, %v5581
        %v5586 = vadd.f32 %v5577, %v5582
        %v5587 = vld [vmem:[%s10] sm:$0x1]
        %v5589 = vperm.slane %v5587, 0
        %v5591 = vadd.f32 %v5583, %v5589
        %v5592 = vadd.f32 %v5584, %v5589
        %v5593 = vadd.f32 %v5585, %v5589
        %v5594 = vadd.f32 %v5586, %v5589
        %v5595 = vtanh.pop %v5591
        %v5596 = vtanh.pop %v5592
        %v5597 = vtanh.pop %v5593
        %v5598 = vtanh.pop %v5594
        %v5599 = vld [vmem:[%s11] sm:$0x1]
        %v5601 = vperm.slane %v5599, 0
        %v5603 = vmul.f32 %v5595, %v5601
        %v5604 = vmul.f32 %v5596, %v5601
        %v5605 = vmul.f32 %v5597, %v5601
        %v5606 = vmul.f32 %v5598, %v5601
        %5607 = vadd.xlane.f32.xlu0 %v5603
        %v5608 = vpop.xlane.xlu0 %5607
        %5609 = vadd.xlane.f32.xlu0 %v5604
        %v5610 = vpop.xlane.xlu0 %5609
        %5611 = vadd.xlane.f32.xlu0 %v5605
        %v5612 = vpop.xlane.xlu0 %5611
        %5613 = vadd.xlane.f32.xlu0 %v5606
        %v5614 = vpop.xlane.xlu0 %5613
        %p5615 = scmp.lt.s32.totalorder %s4851, 4
        %s5616 = scalar_select %p5615, %s4851, 4
        %v5617 = vstv %s5616
        %vm5618 = vcmp.gt.s32.totalorder %v5617, 0
        %vm5619 = vcmp.gt.s32.totalorder %v5617, 1
        %vm5620 = vcmp.gt.s32.totalorder %v5617, 2
        %vm5621 = vcmp.gt.s32.totalorder %v5617, 3
        %v5622 = vsel %vm5618, %v5608, -1e+30
        %v5623 = vsel %vm5619, %v5610, -1e+30
        %v5624 = vsel %vm5620, %v5612, -1e+30
        %v5625 = vsel %vm5621, %v5614, -1e+30
        %v5626 = vmax.f32 %v5622, %v5623
        %v5627 = vmax.f32 %v5624, %v5625
        %v5628 = vmax.f32 %v5626, %v5627
        %v5629 = vsub.f32 %v5608, %v5628
        %v5630 = vsub.f32 %v5610, %v5628
        %v5631 = vsub.f32 %v5612, %v5628
        %v5632 = vsub.f32 %v5614, %v5628
        %v5633 = vsel %vm5618, %v5629, -1e+30
        %v5634 = vsel %vm5619, %v5630, -1e+30
        %v5635 = vsel %vm5620, %v5631, -1e+30
        %v5636 = vsel %vm5621, %v5632, -1e+30
        %v5637 = vmul.f32 %v5633, 1.442695
        %v5638 = vpow.pop %v5637
        %v5639 = vmul.f32 %v5634, 1.442695
        %v5640 = vpow.pop %v5639
        %v5641 = vmul.f32 %v5635, 1.442695
        %v5642 = vpow.pop %v5641
        %v5643 = vmul.f32 %v5636, 1.442695
        %v5644 = vpow.pop %v5643
        %v5645 = vadd.f32 %v5638, %v5640
        %v5646 = vadd.f32 %v5645, %v5642
        %v5647 = vadd.f32 %v5646, %v5644
        %v5648 = vmax.f32 %v5647, 1e-30
        %v5649 = vrcp.pop %v5648
        %v5650 = vmul.f32 %v5648, %v5649
        %v5651 = vsub.f32 1.0, %v5650
        %v5652 = vmul.f32 %v5649, %v5651
        %v5653 = vadd.f32 %v5649, %v5652
        %vm5654 = vweird.f32 %v5648
        %vm5655 = vweird.f32 %v5649
        %vm5656 = vmor %vm5654, %vm5655
        %v5657 = vsel %vm5656, %v5649, %v5653
        %v5658 = vand.u32 2147483647, %v5648
        %vm5659 = vcmp.eq.f32.partialorder %v5658, 8.507059e+37
        %v5660 = vand.u32 %v5648, 2147483648
        %v5661 = vor.u32 1.1754944e-38, %v5660
        %v5662 = vsel %vm5659, %v5661, %v5657
        %v5663 = vmul.f32 %v5638, %v5662
        %v5664 = vmul.f32 %v5640, %v5662
        %v5665 = vmul.f32 %v5642, %v5662
        %v5666 = vmul.f32 %v5644, %v5662
        %v5667 = vld [vmem:[#allocation4] sm:$0xff]
        %v5668 = vld [vmem:[#allocation4 + $0x8] sm:$0xff]
        %v5669 = vld [vmem:[#allocation4 + $0x10] sm:$0xff]
        %v5670 = vld [vmem:[#allocation4 + $0x18] sm:$0xff]
        %v5671 = vmul.f32 %v5663, %v5667
        %v5672 = vmul.f32 %v5664, %v5668
        %v5673 = vmul.f32 %v5665, %v5669
        %v5674 = vmul.f32 %v5666, %v5670
        %v5675 = vadd.f32 %v5671, %v5672
        %v5676 = vadd.f32 %v5675, %v5673
        %v5677 = vadd.f32 %v5676, %v5674
        %v5678 = vld [vmem:[#allocation18] sm:$0xff]
        %v5679 = vld [vmem:[#allocation18 + $0x8] sm:$0xff]
        %v5680 = vld [vmem:[#allocation18 + $0x10] sm:$0xff]
        %v5681 = vld [vmem:[#allocation18 + $0x18] sm:$0xff]
        %v5682 = vld [vmem:[#allocation18 + $0x20] sm:$0xff]
        %v5683 = vld [vmem:[#allocation18 + $0x28] sm:$0xff]
        %v5684 = vld [vmem:[#allocation18 + $0x30] sm:$0xff]
        %v5685 = vld [vmem:[#allocation18 + $0x38] sm:$0xff]
        %v5686 = vld [vmem:[#allocation18 + $0x40] sm:$0xff]
        %v5687 = vld [vmem:[#allocation18 + $0x48] sm:$0xff]
        %v5688 = vld [vmem:[#allocation18 + $0x50] sm:$0xff]
        %v5689 = vld [vmem:[#allocation18 + $0x58] sm:$0xff]
        %v5690 = vld [vmem:[#allocation18 + $0x60] sm:$0xff]
        %v5691 = vld [vmem:[#allocation18 + $0x68] sm:$0xff]
        %v5692 = vld [vmem:[#allocation18 + $0x70] sm:$0xff]
        %v5693 = vld [vmem:[#allocation18 + $0x78] sm:$0xff]
        %v5694 = vld [vmem:[#allocation20] sm:$0xff]
        %v5695 = vld [vmem:[#allocation20 + $0x8] sm:$0xff]
        %v5696 = vld [vmem:[#allocation20 + $0x10] sm:$0xff]
        %v5697 = vld [vmem:[#allocation20 + $0x18] sm:$0xff]
        %v5698 = vld [vmem:[#allocation20 + $0x20] sm:$0xff]
        %v5699 = vld [vmem:[#allocation20 + $0x28] sm:$0xff]
        %v5700 = vld [vmem:[#allocation20 + $0x30] sm:$0xff]
        %v5701 = vld [vmem:[#allocation20 + $0x38] sm:$0xff]
        %v5702 = vld [vmem:[#allocation20 + $0x40] sm:$0xff]
        %v5703 = vld [vmem:[#allocation20 + $0x48] sm:$0xff]
        %v5704 = vld [vmem:[#allocation20 + $0x50] sm:$0xff]
        %v5705 = vld [vmem:[#allocation20 + $0x58] sm:$0xff]
        %v5706 = vld [vmem:[#allocation20 + $0x60] sm:$0xff]
        %v5707 = vld [vmem:[#allocation20 + $0x68] sm:$0xff]
        %v5708 = vld [vmem:[#allocation20 + $0x70] sm:$0xff]
        %v5709 = vld [vmem:[#allocation20 + $0x78] sm:$0xff]
        %5710 = vmatpush.msra.mxu0 %v5709
        %5711 = vmatpush.msra.mxu0 %v5708
        %5712 = vmatpush.msra.mxu0 %v5707
        %5713 = vmatpush.msra.mxu0 %v5706
        %5714 = vmatpush.msra.mxu0 %v5705
        %5715 = vmatpush.msra.mxu0 %v5704
        %5716 = vmatpush.msra.mxu0 %v5703
        %5717 = vmatpush.msra.mxu0 %v5702
        %5718 = vmatpush.msra.mxu0 %v5701
        %5719 = vmatpush.msra.mxu0 %v5700
        %5720 = vmatpush.msra.mxu0 %v5699
        %5721 = vmatpush.msra.mxu0 %v5698
        %5722 = vmatpush.msra.mxu0 %v5697
        %5723 = vmatpush.msra.mxu0 %v5696
        %5724 = vmatpush.msra.mxu0 %v5695
        %5725 = vmatpush.msra.mxu0 %v5694
        %5726 = vmatmul.f32.gmra.mxu0 %v5677
        %v5727 = vpop.f32.mrf.mxu0
        %v5728 = vadd.f32 0.0, %v5727
        %5729 = vdwg.mxu0
        %5730 = vmatpush.msra.mxu0 %v5693
        %5731 = vmatpush.msra.mxu0 %v5692
        %5732 = vmatpush.msra.mxu0 %v5691
        %5733 = vmatpush.msra.mxu0 %v5690
        %5734 = vmatpush.msra.mxu0 %v5689
        %5735 = vmatpush.msra.mxu0 %v5688
        %5736 = vmatpush.msra.mxu0 %v5687
        %5737 = vmatpush.msra.mxu0 %v5686
        %5738 = vmatpush.msra.mxu0 %v5685
        %5739 = vmatpush.msra.mxu0 %v5684
        %5740 = vmatpush.msra.mxu0 %v5683
        %5741 = vmatpush.msra.mxu0 %v5682
        %5742 = vmatpush.msra.mxu0 %v5681
        %5743 = vmatpush.msra.mxu0 %v5680
        %5744 = vmatpush.msra.mxu0 %v5679
        %5745 = vmatpush.msra.mxu0 %v5678
        %5746 = vmatmul.f32.gmra.mxu0 %v5506
        %v5747 = vpop.f32.mrf.mxu0
        %v5748 = vadd.f32 %v5728, %v5747
        %5749 = vdwg.mxu0
        %v5750 = vld [vmem:[#allocation21] sm:$0xff]
        %v5751 = vld [vmem:[#allocation21 + $0x8] sm:$0xff]
        %5752 = vrot.lane.b32.xlu0 %v4853, 112
        %v5753 = vpop.permute.xlu0 %5752
        %v5754 = vsel %vm897, %v5753, 0
        %5756 = vmatpush.msra.mxu0 0.0
        %5757 = vmatpush.msra.mxu0 0.0
        %5758 = vmatpush.msra.mxu0 0.0
        %5759 = vmatpush.msra.mxu0 0.0
        %5760 = vmatpush.msra.mxu0 0.0
        %5761 = vmatpush.msra.mxu0 0.0
        %5762 = vmatpush.msra.mxu0 0.0
        %5763 = vmatpush.msra.mxu0 0.0
        %5764 = vmatpush.msra.mxu0 0.0
        %5765 = vmatpush.msra.mxu0 0.0
        %5766 = vmatpush.msra.mxu0 0.0
        %5767 = vmatpush.msra.mxu0 0.0
        %5768 = vmatpush.msra.mxu0 0.0
        %5769 = vmatpush.msra.mxu0 0.0
        %5770 = vmatpush.msra.mxu0 %v5751
        %5771 = vmatpush.msra.mxu0 %v5750
        %5772 = vmatmul.f32.gmra.mxu0 %v5754
        %v5773 = vpop.f32.mrf.mxu0
        %v5774 = vadd.f32 0.0, %v5773
        %5775 = vdwg.mxu0
        %v5776 = vadd.f32 %v5748, %v5774
        %v5777 = vld [vmem:[%s15] sm:$0x1]
        %v5779 = vperm.slane %v5777, 0
        %v5781 = vadd.f32 %v5776, %v5779
        %v5782 = vtanh.pop %v5781
        %p5783 = scmp.lt.s32.totalorder %s4851, 0
        %s5784 = ssub.s32 0, %s4851
        %s5785 = scalar_select %p5783, %s5784, %s4851
        %s5786 = sand.u32 %s5785, 3
        %s5787 = ssub.s32 0, %s5786
        %s5788 = scalar_select %p5783, %s5787, %s5786
        %p5789 = scmp.ne.s32.totalorder %s5788, 0
        %p5790 = scmp.lt.s32.totalorder %s5788, 0
        %p5791 = pnand %p5790, %p5789
        %p5792 = pneg %p5791
        %s5793 = sadd.s32 %s5788, 4
        %s5794 = scalar_select %p5792, %s5793, %s5788
        %s5795 = smul.u32 %s5794, 8
        %s5796 = scalar_lea.vmem [#allocation4], %s5795
        %5797 = vst [vmem:[%s5796] sm:$0xff] %v5782
        %v5798 = vld [vmem:[#allocation17] sm:$0xff]
        %v5799 = vld [vmem:[#allocation17 + $0x8] sm:$0xff]
        %v5800 = vld [vmem:[#allocation17 + $0x10] sm:$0xff]
        %v5801 = vld [vmem:[#allocation17 + $0x18] sm:$0xff]
        %v5802 = vld [vmem:[#allocation17 + $0x20] sm:$0xff]
        %v5803 = vld [vmem:[#allocation17 + $0x28] sm:$0xff]
        %v5804 = vld [vmem:[#allocation17 + $0x30] sm:$0xff]
        %v5805 = vld [vmem:[#allocation17 + $0x38] sm:$0xff]
        %v5806 = vld [vmem:[#allocation17 + $0x40] sm:$0xff]
        %v5807 = vld [vmem:[#allocation17 + $0x48] sm:$0xff]
        %v5808 = vld [vmem:[#allocation17 + $0x50] sm:$0xff]
        %v5809 = vld [vmem:[#allocation17 + $0x58] sm:$0xff]
        %v5810 = vld [vmem:[#allocation17 + $0x60] sm:$0xff]
        %v5811 = vld [vmem:[#allocation17 + $0x68] sm:$0xff]
        %v5812 = vld [vmem:[#allocation17 + $0x70] sm:$0xff]
        %v5813 = vld [vmem:[#allocation17 + $0x78] sm:$0xff]
        %5814 = vmatpush.msra.mxu0 %v5813
        %5815 = vmatpush.msra.mxu0 %v5812
        %5816 = vmatpush.msra.mxu0 %v5811
        %5817 = vmatpush.msra.mxu0 %v5810
        %5818 = vmatpush.msra.mxu0 %v5809
        %5819 = vmatpush.msra.mxu0 %v5808
        %5820 = vmatpush.msra.mxu0 %v5807
        %5821 = vmatpush.msra.mxu0 %v5806
        %5822 = vmatpush.msra.mxu0 %v5805
        %5823 = vmatpush.msra.mxu0 %v5804
        %5824 = vmatpush.msra.mxu0 %v5803
        %5825 = vmatpush.msra.mxu0 %v5802
        %5826 = vmatpush.msra.mxu0 %v5801
        %5827 = vmatpush.msra.mxu0 %v5800
        %5828 = vmatpush.msra.mxu0 %v5799
        %5829 = vmatpush.msra.mxu0 %v5798
        %5830 = vmatmul.f32.gmra.mxu0 %v5782
        %v5831 = vpop.f32.mrf.mxu0
        %v5832 = vadd.f32 0.0, %v5831
        %5833 = vdwg.mxu0
        %s5834 = scalar_lea.vmem [#allocation5], %s5795
        %5835 = vst [vmem:[%s5834] sm:$0xff] %v5832
        %v5836 = vld [vmem:[%s16] sm:$0x1]
        %v5838 = vperm.slane %v5836, 0
        %v5840 = vmul.f32 %v5782, %v5838
        %5841 = vadd.xlane.f32.xlu0 %v5840
        %v5842 = vpop.xlane.xlu0 %5841
        %v5843 = vld [vmem:[#allocation6] sm:$0x1]
        %v5845 = vperm.slane %v5843, 0
        %v5847 = vadd.f32 %v5842, %v5845
        %v5848 = vsub.f32 0.0, %v5847
        %v5849 = vmul.f32 %v5848, 1.442695
        %v5850 = vpow.pop %v5849
        %v5851 = vadd.f32 %v5850, 1.0
        %v5852 = vrcp.pop %v5851
        %v5853 = vmul.f32 %v5851, %v5852
        %v5854 = vsub.f32 1.0, %v5853
        %v5855 = vmul.f32 %v5852, %v5854
        %v5856 = vadd.f32 %v5852, %v5855
        %vm5857 = vweird.f32 %v5851
        %vm5858 = vweird.f32 %v5852
        %vm5859 = vmor %vm5857, %vm5858
        %v5860 = vsel %vm5859, %v5852, %v5856
        %v5861 = vand.u32 2147483647, %v5851
        %vm5862 = vcmp.eq.f32.partialorder %v5861, 8.507059e+37
        %v5863 = vand.u32 %v5851, 2147483648
        %v5864 = vor.u32 1.1754944e-38, %v5863
        %v5865 = vsel %vm5862, %v5864, %v5860
        %v5866 = vmul.f32 1.0, %v5865
        %5867 = vst [vmem:[#allocation2] sm:$0xff] %v5782
        %5868 = vst [vmem:[#allocation3] sm:$0xff] %v5504
        %5870 = vrot.lane.b32.xlu0 %v2818, 1
        %v5871 = vpop.permute.xlu0 %5870
        %5874 = vrot.lane.b32.xlu0 %v3834, 2
        %v5875 = vpop.permute.xlu0 %5874
        %5878 = vrot.lane.b32.xlu0 %v4850, 3
        %v5879 = vpop.permute.xlu0 %5878
        %5882 = vrot.lane.b32.xlu0 %v5866, 4
        %v5883 = vpop.permute.xlu0 %5882
        %vm5885 = vcmask 7168
        %v5886 = vsel %vm5885, %v1802, %v5871
        %vm5887 = vcmask 15360
        %v5888 = vsel %vm5887, %v5886, %v5875
        %vm5889 = vcmask 23552
        %v5890 = vsel %vm5889, %v5888, %v5879
        %vm5891 = vcmask 31744
        %v5892 = vsel %vm5891, %v5890, %v5883
        %vm5893 = vcmask 39936
        %5894 = vst.msk [vmem:[%s770] sm:$0xff] %vm5893, %v5892
        %p5895 = scmp.lt.s32.totalorder %s44, 1
        %s5896 = scalar_select %p5895, %s44, 1
        %p5897 = scmp.lt.s32.totalorder %s43, 0
        %s5898 = scalar_select %p5897, %s43, 0
        %s5899 = sadd.s32 %s5898, %s5896
        %s5900 = smul.addr %s5899, 8
        %s5901 = scalar_lea.vmem %s18, %s5900
        // Predicated region
        $region137: #{tpu_custom_call.1} parent=91 // pred_check
          %p5902 = pneg %p456
        $region138: #{tpu_custom_call.1} parent=91 // pred_check_branch
          %5904 = sbr.rel (%p5902) target = $region140
        $region139: #{tpu_custom_call.1} parent=91 // pred_region
          _
        $region140: #{tpu_custom_call.1} parent=91 // pred_fallthru
          _
      $region92: #{tpu_custom_call.1} parent=5 // pred_fallthru
        _
      %p5905 = scmp.le.s32.totalorder 2, %s34
      // Predicated region
      $region141: #{tpu_custom_call.1} parent=5 // pred_check
        %p5906 = pneg %p5905
      $region142: #{tpu_custom_call.1} parent=5 // pred_check_branch
        %5908 = sbr.rel (%p5906) target = $region144
      $region143: #{tpu_custom_call.1} parent=5 // pred_region
        %s5909 = ssub.s32 %s34, 2
        // Predicated region
        $region145: #{tpu_custom_call.1} parent=143 // pred_check
          %p5910 = pneg %p462
        $region146: #{tpu_custom_call.1} parent=143 // pred_check_branch
          %5912 = sbr.rel (%p5910) target = $region148
        $region147: #{tpu_custom_call.1} parent=143 // pred_region
          %p5913 = scmp.lt.s32.totalorder %s46, 1
          %s5914 = scalar_select %p5913, %s46, 1
          %p5915 = scmp.lt.s32.totalorder %s45, 0
          %s5916 = scalar_select %p5915, %s45, 0
          %s5917 = sadd.s32 %s5916, %s5914
          %s5918 = smul.addr %s5917, 8
          %s5919 = scalar_lea.vmem %s18, %s5918
        $region148: #{tpu_custom_call.1} parent=143 // pred_fallthru
          _
      $region144: #{tpu_custom_call.1} parent=5 // pred_fallthru
        _
    $region6: #{tpu_custom_call.1} parent=1 // loop_footer
      %s38 = sadd.s32 1, %s34
    $region7: #{tpu_custom_call.1} parent=1 // loop_footer_branch
      %33 = sbr.rel target = $region3
    $region8: #{tpu_custom_call.1} parent=1 // loop_exit
      _
    %5920 = vsyncpa [#allocation8], 1
    %s5921 = scalar_lea.sflag [#allocation8], 1
    %5922 = vsyncpa %s5921, 1
    %5923 = vsyncpa [#allocation10], 1
    %5924 = vsyncpa [#allocation13], 1
    %5925 = vsyncpa [#allocation16], 1
    %5926 = vsyncpa [#allocation19], 1
    %5927 = vsyncpa [#allocation22], 1

</llo_original>
